<compile_context>
chip_gen: v5e
topology: v5e:2x2
jax: 0.10.0
libtpu: 0.0.40
codegen_flags: <defaults>
</compile_context>

<pallas_src>
import math
import functools

import jax
import jax.numpy as jnp
from jax.experimental import pallas as pl
from jax.experimental.pallas import tpu as pltpu

LANE = 128


# ----------------------------------------------------------------------------
# Pallas conv kernel: one Cout tile of a stride-1 "same" conv.
# Grid = (n_cout_tiles,).  Batch is folded into the matmul M dimension, the
# 3x3 taps are folded into the K dimension (im2col), so each program issues a
# single MXU dot of shape (B*H*W, KH*KW*Cin) x (KH*KW*Cin, ct).
# ----------------------------------------------------------------------------
def _conv_kernel(x_ref, w_ref, b_ref, o_ref, *, B, H, W, KH, KW,
                 relu_in, relu_out):
    # x_ref : (B, H+2p, W+2p, Cin) f32   -- fetched once (block index constant)
    # w_ref : (KH*KW*Cin, ct)      bf16  -- im2col-ordered weight tile
    # b_ref : (1, ct)              f32
    # o_ref : (B, H, W, ct)        f32
    x = x_ref[...]
    if relu_in:
        x = jnp.maximum(x, 0.0)
    x = x.astype(jnp.bfloat16)                      # MXU operand dtype
    cin = x.shape[-1]
    ct = o_ref.shape[-1]
    m = B * H * W

    if KH == 1 and KW == 1:
        patches = x.reshape(m, cin)
    else:
        # im2col: lane-aligned concat (Cin is a multiple of 128 for every layer)
        # -> one MXU dot with K = KH*KW*Cin instead of 9 dots + 8 VALU adds.
        cols = [x[:, ky:ky + H, kx:kx + W, :].reshape(m, cin)
                for ky in range(KH) for kx in range(KW)]
        patches = jnp.concatenate(cols, axis=-1)    # (m, KH*KW*Cin)

    acc = jnp.dot(patches, w_ref[...], preferred_element_type=jnp.float32)
    acc = acc + b_ref[...]                          # (1, ct) broadcast, f32
    if relu_out:
        acc = jnp.maximum(acc, 0.0)
    o_ref[...] = acc.reshape(B, H, W, ct)


def conv2d(x, p, *, relu_in=False, relu_out=False):
    """NHWC stride-1 conv (3x3 pad 1 or 1x1 pad 0) via the Pallas kernel."""
    w, b = p["w"], p["b"]                           # pre-transformed at init
    k, cin, cout, coutp = p["k"], p["cin"], p["cout"], p["coutp"]
    B, H, W_, C = x.shape
    assert C == cin
    pad = (k - 1) // 2
    xp = jnp.pad(x, ((0, 0), (pad, pad), (pad, pad), (0, 0))) if pad else x
    Hp, Wp = H + 2 * pad, W_ + 2 * pad

    # Cout tiling: cap weight tiles at 256 lanes (double-buffered 1024-Cin bf16
    # tiles ~9.4 MiB) and keep >=2 parallel grid points for the large layers.
    if coutp >= 512:
        ct = 256
    elif coutp >= 256:
        ct = 128
    else:
        ct = coutp                                  # padded heads: single tile
    n_ct = coutp // ct

    kern = functools.partial(_conv_kernel, B=B, H=H, W=W_, KH=k, KW=k,
                             relu_in=relu_in, relu_out=relu_out)
    out = pl.pallas_call(
        kern,
        out_shape=jax.ShapeDtypeStruct((B, H, W_, coutp), jnp.float32),
        grid_spec=pltpu.PrefetchScalarGridSpec(
            num_scalar_prefetch=0,
            grid=(n_ct,),
            in_specs=[
                # Activation block index is constant across the grid, so the
                # (small) activation is DMA'd once and stays VMEM-resident
                # while the (large) weight tiles stream.
                pl.BlockSpec((B, Hp, Wp, cin), lambda c: (0, 0, 0, 0)),
                pl.BlockSpec((k * k * cin, ct), lambda c: (0, c)),
                pl.BlockSpec((1, ct), lambda c: (0, c)),
            ],
            out_specs=pl.BlockSpec((B, H, W_, ct), lambda c: (0, 0, 0, c)),
        ),
        compiler_params=pltpu.CompilerParams(
            dimension_semantics=("parallel",),
            vmem_limit_bytes=32 << 20,              # fits v7x (64 MiB physical)
        ),
    )(xp, w, b)
    if coutp != cout:
        out = out[..., :cout]                       # drop zero-padded head lanes
    return out


# ----------------------------------------------------------------------------
# Glue ops (resize / pooling / residual adds) kept in plain JAX.
# ----------------------------------------------------------------------------
def bilinear_up(x, scale):
    # matches F.interpolate(..., mode='bilinear', align_corners=False)
    B, H, W, C = x.shape
    return jax.image.resize(x, (B, H * scale, W * scale, C), method="bilinear")


def nearest_up2(x):
    return jnp.repeat(jnp.repeat(x, 2, axis=1), 2, axis=2)


def avgpool2(x):
    B, H, W, C = x.shape
    return x.reshape(B, H // 2, 2, W // 2, 2, C).mean(axis=(2, 4))


# Reconstructed standard STM-style ResBlock: x + conv2(relu(conv1(relu(x)))),
# with a 3x3 downsample conv on the skip path when indim != outdim.
def resblock(x, p):
    r = conv2d(x, p["conv1"], relu_in=True)
    r = conv2d(r, p["conv2"], relu_in=True)
    if "downsample" in p:
        x = conv2d(x, p["downsample"])
    return x + r


# Reconstructed standard UpsampleBlock: skip_conv(skip) + 2x bilinear(up) -> ResBlock.
def upsample_block(skip_f, up_f, p):
    x = conv2d(skip_f, p["skip_conv"])
    x = x + bilinear_up(up_f, 2)
    return resblock(x, p["out_conv"])


def hfm(x):
    # TODO(synk): HFM definition not given; reconstructed as the standard
    # high-frequency module: x - nearest_upsample(avgpool_2(x)).
    return x - nearest_up2(avgpool2(x))


# ----------------------------------------------------------------------------
# Deterministic parameter init (PyTorch-style uniform fan-in bounds).
# Weights are transformed ONCE here to the kernel-ready layout:
#   OIHW -> (KH*KW*Cin, Cout_padded) bf16, bias -> (1, Cout_padded) f32,
# with Cout zero-padded up to a lane-dense multiple of 128.
# ----------------------------------------------------------------------------
def init_conv(key, cin, cout, k):
    kw, kb = jax.random.split(key)
    bound = 1.0 / math.sqrt(cin * k * k)
    w = jax.random.uniform(kw, (cout, cin, k, k), jnp.float32, -bound, bound)
    b = jax.random.uniform(kb, (cout,), jnp.float32, -bound, bound)

    coutp = max(LANE, ((cout + LANE - 1) // LANE) * LANE)
    # tap k = ky*KW + kx holds w[:, :, ky, kx].T; then fold taps into rows.
    wk = jnp.transpose(w, (2, 3, 1, 0)).reshape(k * k * cin, cout)
    wk = jnp.pad(wk, ((0, 0), (0, coutp - cout))).astype(jnp.bfloat16)
    bk = jnp.pad(b.reshape(1, cout), ((0, 0), (0, coutp - cout)))
    return {"w": wk, "b": bk, "k": k, "cin": cin, "cout": cout, "coutp": coutp}


def init_resblock(key, indim, outdim):
    k1, k2, k3 = jax.random.split(key, 3)
    p = {"conv1": init_conv(k1, indim, outdim, 3),
         "conv2": init_conv(k2, outdim, outdim, 3)}
    if indim != outdim:
        p["downsample"] = init_conv(k3, indim, outdim, 3)
    return p


def init_upsample(key, skip_c, up_c, out_c):
    k1, k2 = jax.random.split(key)
    return {"skip_conv": init_conv(k1, skip_c, up_c, 3),
            "out_conv": init_resblock(k2, up_c, out_c)}


def init_decoder(key):
    ks = jax.random.split(key, 14)
    return {
        "compress": init_resblock(ks[0], 1024, 512),
        "up_16_8": init_upsample(ks[1], 512, 512, 256),
        "up_8_4": init_upsample(ks[2], 256, 256, 256),
        "SIE_pred": init_conv(ks[3], 256, 1, 3),
        "pred": init_conv(ks[4], 256, 2, 3),
        "boundary_1": init_conv(ks[5], 256, 256, 3),
        "mask_1": init_conv(ks[6], 256, 256, 3),
        "boundary_2": init_conv(ks[7], 256, 256, 3),
        "boundary_3": init_conv(ks[8], 256, 256, 3),
        "fusion_1": init_conv(ks[9], 256, 256, 1),
        "fusion_2": init_conv(ks[10], 256, 256, 1),
        "predict_boundary_1": init_conv(ks[11], 256, 256, 3),
        "predict_boundary_2": init_conv(ks[12], 256, 1, 3),
        "predict_mask": init_conv(ks[13], 256, 256, 3),
    }


# ----------------------------------------------------------------------------
# Decoder forward (mirrors the PyTorch module exactly, in NHWC).
# TODO(synk): the 16x16 head chain (boundary_*/mask_*/fusion_*/predict_*) could
# be fused into one VMEM-resident pallas_call streaming only weights; kept as
# separate calls here for clarity/robustness.
# ----------------------------------------------------------------------------
def decoder_forward(params, f16, f8, f4):
    x = resblock(f16, params["compress"])                      # 1024 -> 512 @ H/16
    x = upsample_block(f8, x, params["up_16_8"])               # -> 256 @ H/8
    x = upsample_block(f4, x, params["up_8_4"])                # -> 256 @ H/4

    x_b = conv2d(x, params["boundary_1"])
    x_b = hfm(x_b)
    x_m = conv2d(x, params["mask_1"])
    x_m2b = conv2d(x_m, params["fusion_1"], relu_out=True)     # relu(fusion_1(x_m))
    x_b = x_b + x_m2b
    x_b = conv2d(x_b, params["boundary_2"])
    x_b = conv2d(x_b, params["boundary_3"], relu_out=True)     # relu(boundary_3(x_b))
    x_b2m = conv2d(x_b, params["fusion_2"], relu_out=True)     # relu(fusion_2(x_b))
    x_m = x_m + x_b2m
    x_m = conv2d(x_m, params["predict_mask"])

    x_sie = conv2d(x_m, params["SIE_pred"], relu_in=True)      # SIE_pred(relu(x_m))
    x_m_out = conv2d(x_m, params["pred"], relu_in=True)        # pred(relu(x_m))

    x_b = conv2d(x_b, params["predict_boundary_1"], relu_out=True)
    x_b = conv2d(x_b, params["predict_boundary_2"])

    x_sie = bilinear_up(x_sie, 4)
    x_m_out = bilinear_up(x_m_out, 4)
    x_b = bilinear_up(x_b, 4)
    return x_m_out, x_b, x_sie


if __name__ == "__main__":
    key = jax.random.PRNGKey(0)
    kp, k16, k8, k4 = jax.random.split(key, 4)
    params = init_decoder(kp)

    B = 2
    # f16 @ 1/16 scale (1024 ch), f8 @ 1/8 (512 ch), f4 @ 1/4 (256 ch); base image 64x64.
    f16 = jax.random.normal(k16, (B, 4, 4, 1024), jnp.float32)
    f8 = jax.random.normal(k8, (B, 8, 8, 512), jnp.float32)
    f4 = jax.random.normal(k4, (B, 16, 16, 256), jnp.float32)

    x_m, x_b, x_sie = decoder_forward(params, f16, f8, f4)
    jax.block_until_ready((x_m, x_b, x_sie))

    assert x_m.shape == (B, 64, 64, 2)
    assert x_b.shape == (B, 64, 64, 1)
    assert x_sie.shape == (B, 64, 64, 1)
    print("KERNEL_OK")
</pallas_src>

<mosaic_0001>
module attributes {stable_mosaic.version = 11 : i64} {
  func.func @_conv_kernel(%arg0: i32, %arg1: memref<2x6x6x1024xf32, #tpu.memory_space<vmem>>, %arg2: memref<9216x256xbf16, #tpu.memory_space<vmem>>, %arg3: memref<1x256xf32, #tpu.memory_space<vmem>>, %arg4: memref<2x4x4x256xf32, #tpu.memory_space<vmem>>) attributes {dimension_semantics = [#tpu.dimension_semantics<parallel>], iteration_bounds = array<i64: 2>, scalar_prefetch = 0 : i64, scratch_operands = 0 : i64, tpu.core_type = #tpu.core_type<tc>, window_params = [{pipeline_mode = #tpu.pipeline_mode<synchronous>, transform_indices = @transform_0, window_bounds = array<i64: 2, 6, 6, 1024>}, {transform_indices = @transform_1, window_bounds = array<i64: 9216, 256>}, {transform_indices = @transform_2, window_bounds = array<i64: 1, 256>}, {transform_indices = @transform_3, window_bounds = array<i64: 2, 4, 4, 256>}]} {
    %c0 = arith.constant 0 : index
    %c0_0 = arith.constant 0 : index
    %c0_1 = arith.constant 0 : index
    %c0_2 = arith.constant 0 : index
    %0 = vector.load %arg1[%c0, %c0_0, %c0_1, %c0_2] : memref<2x6x6x1024xf32, #tpu.memory_space<vmem>>, vector<2x6x6x1024xf32>
    %cst = arith.constant 0.000000e+00 : f32
    %1 = vector.broadcast %cst : f32 to vector<2x6x6x1024xf32>
    %2 = arith.maximumf %0, %1 : vector<2x6x6x1024xf32>
    %3 = arith.truncf %2 : vector<2x6x6x1024xf32> to vector<2x6x6x1024xbf16>
    %4 = vector.extract_strided_slice %3 {offsets = [0, 0, 0, 0], sizes = [2, 4, 4, 1024], strides = [1, 1, 1, 1]} : vector<2x6x6x1024xbf16> to vector<2x4x4x1024xbf16>
    %5 = vector.shape_cast %4 : vector<2x4x4x1024xbf16> to vector<32x1024xbf16>
    %6 = vector.extract_strided_slice %3 {offsets = [0, 0, 1, 0], sizes = [2, 4, 4, 1024], strides = [1, 1, 1, 1]} : vector<2x6x6x1024xbf16> to vector<2x4x4x1024xbf16>
    %7 = vector.shape_cast %6 : vector<2x4x4x1024xbf16> to vector<32x1024xbf16>
    %8 = vector.extract_strided_slice %3 {offsets = [0, 0, 2, 0], sizes = [2, 4, 4, 1024], strides = [1, 1, 1, 1]} : vector<2x6x6x1024xbf16> to vector<2x4x4x1024xbf16>
    %9 = vector.shape_cast %8 : vector<2x4x4x1024xbf16> to vector<32x1024xbf16>
    %10 = vector.extract_strided_slice %3 {offsets = [0, 1, 0, 0], sizes = [2, 4, 4, 1024], strides = [1, 1, 1, 1]} : vector<2x6x6x1024xbf16> to vector<2x4x4x1024xbf16>
    %11 = vector.shape_cast %10 : vector<2x4x4x1024xbf16> to vector<32x1024xbf16>
    %12 = vector.extract_strided_slice %3 {offsets = [0, 1, 1, 0], sizes = [2, 4, 4, 1024], strides = [1, 1, 1, 1]} : vector<2x6x6x1024xbf16> to vector<2x4x4x1024xbf16>
    %13 = vector.shape_cast %12 : vector<2x4x4x1024xbf16> to vector<32x1024xbf16>
    %14 = vector.extract_strided_slice %3 {offsets = [0, 1, 2, 0], sizes = [2, 4, 4, 1024], strides = [1, 1, 1, 1]} : vector<2x6x6x1024xbf16> to vector<2x4x4x1024xbf16>
    %15 = vector.shape_cast %14 : vector<2x4x4x1024xbf16> to vector<32x1024xbf16>
    %16 = vector.extract_strided_slice %3 {offsets = [0, 2, 0, 0], sizes = [2, 4, 4, 1024], strides = [1, 1, 1, 1]} : vector<2x6x6x1024xbf16> to vector<2x4x4x1024xbf16>
    %17 = vector.shape_cast %16 : vector<2x4x4x1024xbf16> to vector<32x1024xbf16>
    %18 = vector.extract_strided_slice %3 {offsets = [0, 2, 1, 0], sizes = [2, 4, 4, 1024], strides = [1, 1, 1, 1]} : vector<2x6x6x1024xbf16> to vector<2x4x4x1024xbf16>
    %19 = vector.shape_cast %18 : vector<2x4x4x1024xbf16> to vector<32x1024xbf16>
    %20 = vector.extract_strided_slice %3 {offsets = [0, 2, 2, 0], sizes = [2, 4, 4, 1024], strides = [1, 1, 1, 1]} : vector<2x6x6x1024xbf16> to vector<2x4x4x1024xbf16>
    %21 = vector.shape_cast %20 : vector<2x4x4x1024xbf16> to vector<32x1024xbf16>
    %22 = tpu.concatenate %5, %7, %9, %11, %13, %15, %17, %19, %21 in 1 : vector<32x1024xbf16>, vector<32x1024xbf16>, vector<32x1024xbf16>, vector<32x1024xbf16>, vector<32x1024xbf16>, vector<32x1024xbf16>, vector<32x1024xbf16>, vector<32x1024xbf16>, vector<32x1024xbf16> -> vector<32x9216xbf16>
    %c0_3 = arith.constant 0 : index
    %c0_4 = arith.constant 0 : index
    %23 = vector.load %arg2[%c0_3, %c0_4] : memref<9216x256xbf16, #tpu.memory_space<vmem>>, vector<9216x256xbf16>
    %cst_5 = arith.constant dense<0.000000e+00> : vector<32x256xf32>
    %24 = tpu.matmul %22, %23, %cst_5 {dimension_numbers = #tpu.dot_dimension_numbers<[1], [0], [0], [1], [0, 0, 1, 1], [], []>} : vector<32x9216xbf16>, vector<9216x256xbf16>, vector<32x256xf32> -> vector<32x256xf32>
    %c0_6 = arith.constant 0 : index
    %c0_7 = arith.constant 0 : index
    %25 = vector.load %arg3[%c0_6, %c0_7] : memref<1x256xf32, #tpu.memory_space<vmem>>, vector<1x256xf32>
    %26 = vector.broadcast %25 : vector<1x256xf32> to vector<32x256xf32>
    %27 = arith.addf %24, %26 : vector<32x256xf32>
    %28 = vector.shape_cast %27 : vector<32x256xf32> to vector<2x4x4x256xf32>
    %c0_8 = arith.constant 0 : index
    %c0_9 = arith.constant 0 : index
    %c0_10 = arith.constant 0 : index
    %c0_11 = arith.constant 0 : index
    %29 = vector.load %arg4[%c0_8, %c0_9, %c0_10, %c0_11] : memref<2x4x4x256xf32, #tpu.memory_space<vmem>>, vector<2x4x4x256xf32>
    tpu.vector_store %arg4[%c0_8, %c0_9, %c0_10, %c0_11], %28 {strides = array<i32>} : memref<2x4x4x256xf32, #tpu.memory_space<vmem>>, vector<2x4x4x256xf32>,
    return
  }
  func.func @transform_0(%arg0: i32) -> (i32, i32, i32, i32) {
    %c0_i32 = arith.constant 0 : i32
    %c0_i32_0 = arith.constant 0 : i32
    %c0_i32_1 = arith.constant 0 : i32
    %c0_i32_2 = arith.constant 0 : i32
    %c0_i32_3 = arith.constant 0 : i32
    return %c0_i32, %c0_i32_0, %c0_i32_1, %c0_i32_2 : i32, i32, i32, i32
  }
  func.func @transform_1(%arg0: i32) -> (i32, i32) {
    %c0_i32 = arith.constant 0 : i32
    %c0_i32_0 = arith.constant 0 : i32
    return %c0_i32, %arg0 : i32, i32
  }
  func.func @transform_2(%arg0: i32) -> (i32, i32) {
    %c0_i32 = arith.constant 0 : i32
    %c0_i32_0 = arith.constant 0 : i32
    return %c0_i32, %arg0 : i32, i32
  }
  func.func @transform_3(%arg0: i32) -> (i32, i32, i32, i32) {
    %c0_i32 = arith.constant 0 : i32
    %c0_i32_0 = arith.constant 0 : i32
    %c0_i32_1 = arith.constant 0 : i32
    %c0_i32_2 = arith.constant 0 : i32
    return %c0_i32, %c0_i32_0, %c0_i32_1, %arg0 : i32, i32, i32, i32
  }
}

</mosaic_0001>

<llo_original>
// kernel: tpu_custom_call.1
$region0: #{tpu_custom_call.1}
  #allocation0 [shape = 'u32[]', space=smem, size = 0x4, offset = 0x4, fixed_abs, tag = 'smem constant byte address 0x4 - core index']
  #allocation1 [shape = 'u32[72,128]{1,0:T(1,128)}', space=vmem, size = 0x9000, scoped, tag = 'internal scratch']
  %s0 = inlined_call_operand.vmem [shape: f32[2,6,6,1024], index: 0, kind: input, shape index: {}]
  %s1 = inlined_call_operand.hbm [shape: bf16[9216,512], index: 1, kind: input, shape index: {}]
  %s2 = inlined_call_operand.hbm [shape: f32[1,512], index: 2, kind: input, shape index: {}]
  %s3 = inlined_call_operand.hbm [shape: f32[2,4,4,512], index: 3, kind: output, shape index: {}]
  %s4 = sld [smem:[#allocation0]]
  $region53: #{tpu_custom_call.1} parent=0
    _
  %s6 = ssub.s32 1, %s4
  %s7 = scalar_select 0, %s6, %s4
  $region1: #{tpu_custom_call.1} parent=0
    #allocation2 [shape = 'u8[9437184]{0}', space=vmem, size = 0x900000, scoped, tag = 'input window, operand 1']
    #allocation3 [shape = 's32[2]{0}', space=sflag, size = 0x8, scoped, tag = 'scoped memory for tpu_custom_call.1']
    #allocation4 [shape = 's32[2]{0}', space=sflag, size = 0x8, scoped, tag = 'scoped memory for tpu_custom_call.1']
    #allocation5 [shape = 'u8[2048]{0}', space=vmem, size = 0x800, scoped, tag = 'input window, operand 2']
    #allocation6 [shape = 's32[2]{0}', space=sflag, size = 0x8, scoped, tag = 'scoped memory for tpu_custom_call.1']
    #allocation7 [shape = 'u8[65536]{0}', space=vmem, size = 0x10000, scoped, tag = 'output window, operand 0']
    %8 = vsyncpa [#allocation3], 0
    %s9 = scalar_lea.sflag [#allocation3], 1
    %10 = vsyncpa %s9, 0
    %11 = vsyncpa [#allocation6], 0
    %s12 = scalar_lea.sflag [#allocation6], 1
    %13 = vsyncpa %s12, 0
    %14 = vsyncpa [#allocation4], 0
    %s15 = scalar_lea.sflag [#allocation4], 1
    %16 = vsyncpa %s15, 0
    loop: start=0, step=1, limit=4
    $region2: #{tpu_custom_call.1} parent=1 // loop_pre_header
      _
    $region3: #{tpu_custom_call.1} parent=1 // loop_header
      %s18 = sphi 0, %s22
      %p19 = scmp.ge.s32.totalorder %s18, 4
      %s26 = sphi 0, %s26
      %s28 = sphi 0, %s26
      %s29 = sphi 0, %s28
      %s43 = sphi 0, %s29
      %s49 = sphi 0, %s51
      %s52 = sphi 0, %s49
      %s53 = sphi 0, %s52
      %s69 = sphi 0, %s53
      %s75 = sphi 0, %s77
      %s78 = sphi 0, %s75
      %s79 = sphi 0, %s78
      %s95 = sphi 0, %s79
      %s101 = sphi 0, %s103
      %s104 = sphi 0, %s101
      %s105 = sphi 0, %s104
      %s121 = sphi 0, %s105
    $region4: #{tpu_custom_call.1} parent=1 // loop_header_branch
      %21 = sbr.rel (%p19) target = $region8
    $region5: #{tpu_custom_call.1} parent=1 // loop_body
      %s23 = ssub.s32 %s18, 1
      %s24 = ssub.s32 %s18, 2
      %s25 = sadd.s32 %s18, 1
      %s27 = sadd.s32 %s26, 1
      %p30 = scmp.eq.s32.totalorder %s18, 1
      %p31 = scmp.ne.s32.totalorder %s26, %s28
      %p32 = scmp.eq.s32.totalorder %s18, 0
      %p33 = por %p31, %p32
      %p34 = scmp.ne.s32.totalorder %s26, %s28
      %p35 = scmp.eq.s32.totalorder %s23, 1
      %p36 = por %p34, %p35
      %p37 = scmp.ne.s32.totalorder %s28, %s29
      %p38 = scmp.eq.s32.totalorder %s23, 0
      %p39 = por %p37, %p38
      %p40 = scmp.ne.s32.totalorder %s28, %s29
      %p41 = scmp.eq.s32.totalorder %s24, 1
      %p42 = por %p40, %p41
      %p44 = scmp.ne.s32.totalorder %s29, %s43
      %p45 = scmp.eq.s32.totalorder %s24, 0
      %p46 = por %p44, %p45
      %s47 = ssub.s32 %s18, %s25
      %p48 = scmp.eq.s32.totalorder %s47, 0
      %s50 = sadd.s32 %s49, 1
      %s51 = scalar_select %p48, %s49, %s50
      %p54 = pneg %p48
      %p55 = scmp.eq.s32.totalorder %s18, 1
      %p56 = por %p54, %p55
      %p57 = scmp.ne.s32.totalorder %s49, %s52
      %p58 = scmp.eq.s32.totalorder %s18, 0
      %p59 = por %p57, %p58
      %p60 = scmp.ne.s32.totalorder %s49, %s52
      %p61 = scmp.eq.s32.totalorder %s23, 1
      %p62 = por %p60, %p61
      %p63 = scmp.ne.s32.totalorder %s52, %s53
      %p64 = scmp.eq.s32.totalorder %s23, 0
      %p65 = por %p63, %p64
      %p66 = scmp.ne.s32.totalorder %s52, %s53
      %p67 = scmp.eq.s32.totalorder %s24, 1
      %p68 = por %p66, %p67
      %p70 = scmp.ne.s32.totalorder %s53, %s69
      %p71 = scmp.eq.s32.totalorder %s24, 0
      %p72 = por %p70, %p71
      %s73 = ssub.s32 %s18, %s25
      %p74 = scmp.eq.s32.totalorder %s73, 0
      %s76 = sadd.s32 %s75, 1
      %s77 = scalar_select %p74, %s75, %s76
      %p80 = pneg %p74
      %p81 = scmp.eq.s32.totalorder %s18, 1
      %p82 = por %p80, %p81
      %p83 = scmp.ne.s32.totalorder %s75, %s78
      %p84 = scmp.eq.s32.totalorder %s18, 0
      %p85 = por %p83, %p84
      %p86 = scmp.ne.s32.totalorder %s75, %s78
      %p87 = scmp.eq.s32.totalorder %s23, 1
      %p88 = por %p86, %p87
      %p89 = scmp.ne.s32.totalorder %s78, %s79
      %p90 = scmp.eq.s32.totalorder %s23, 0
      %p91 = por %p89, %p90
      %p92 = scmp.ne.s32.totalorder %s78, %s79
      %p93 = scmp.eq.s32.totalorder %s24, 1
      %p94 = por %p92, %p93
      %p96 = scmp.ne.s32.totalorder %s79, %s95
      %p97 = scmp.eq.s32.totalorder %s24, 0
      %p98 = por %p96, %p97
      %s99 = ssub.s32 %s18, %s25
      %p100 = scmp.eq.s32.totalorder %s99, 0
      %s102 = sadd.s32 %s101, 1
      %s103 = scalar_select %p100, %s101, %s102
      %p106 = pneg %p100
      %p107 = scmp.eq.s32.totalorder %s18, 1
      %p108 = por %p106, %p107
      %p109 = scmp.ne.s32.totalorder %s101, %s104
      %p110 = scmp.eq.s32.totalorder %s18, 0
      %p111 = por %p109, %p110
      %p112 = scmp.ne.s32.totalorder %s101, %s104
      %p113 = scmp.eq.s32.totalorder %s23, 1
      %p114 = por %p112, %p113
      %p115 = scmp.ne.s32.totalorder %s104, %s105
      %p116 = scmp.eq.s32.totalorder %s23, 0
      %p117 = por %p115, %p116
      %p118 = scmp.ne.s32.totalorder %s104, %s105
      %p119 = scmp.eq.s32.totalorder %s24, 1
      %p120 = por %p118, %p119
      %p122 = scmp.ne.s32.totalorder %s105, %s121
      %p123 = scmp.eq.s32.totalorder %s24, 0
      %p124 = por %p122, %p123
      %p125 = scmp.le.s32.totalorder 1, %s18
      %p126 = scmp.lt.s32.totalorder %s18, 3
      %p127 = pnand %p125, %p126
      %p128 = pneg %p127
      // Predicated region
      $region9: #{tpu_custom_call.1} parent=5 // pred_check
        _
      $region10: #{tpu_custom_call.1} parent=5 // pred_check_branch
        %130 = sbr.rel (%p127) target = $region12
      $region11: #{tpu_custom_call.1} parent=5 // pred_region
        %s131 = ssub.s32 %s18, 1
        // Predicated region
        $region13: #{tpu_custom_call.1} parent=11 // pred_check
          %p132 = pneg %p39
        $region14: #{tpu_custom_call.1} parent=11 // pred_check_branch
          %134 = sbr.rel (%p132) target = $region16
        $region15: #{tpu_custom_call.1} parent=11 // pred_region
          _
        $region16: #{tpu_custom_call.1} parent=11 // pred_fallthru
          _
      $region12: #{tpu_custom_call.1} parent=5 // pred_fallthru
        _
      %p135 = scmp.lt.s32.totalorder %s18, 2
      // Predicated region
      $region17: #{tpu_custom_call.1} parent=5 // pred_check
        %p136 = pneg %p135
      $region18: #{tpu_custom_call.1} parent=5 // pred_check_branch
        %138 = sbr.rel (%p136) target = $region20
      $region19: #{tpu_custom_call.1} parent=5 // pred_region
        // Predicated region
        $region21: #{tpu_custom_call.1} parent=19 // pred_check
          %p139 = pneg %p59
        $region22: #{tpu_custom_call.1} parent=19 // pred_check_branch
          %141 = sbr.rel (%p139) target = $region24
        $region23: #{tpu_custom_call.1} parent=19 // pred_region
          %s142 = sand.u32 %s49, 1
          %s143 = scalar_lea.sflag [#allocation3], %s142
          %s144 = sand.u32 %s49, 1
          %s145 = smul.addr %s144, 9216
          %s146 = scalar_lea.vmem [#allocation2], %s145
          %s147 = smul.u32 2, %s18
          %149 = vsyncadd %s143, 0
          %s150 = smul.addr %s147, 4
          %s151 = scalar_lea.hbm %s1, %s150
          %s152 = sshll.u32 %s151, 4
          %s153 = int_to_ptr.hbm [resolvable:$true] %s152
          %s154 = sshll.u32 %s146, 4
          %s155 = int_to_ptr.vmem [resolvable:$true] %s154
          %160 = dma.hbm_to_vmem [thread:$0]  %s153, 147456, %s155, %s143, 256, 128, 8
        $region24: #{tpu_custom_call.1} parent=19 // pred_fallthru
          _
        // Predicated region
        $region25: #{tpu_custom_call.1} parent=19 // pred_check
          %p161 = pneg %p85
        $region26: #{tpu_custom_call.1} parent=19 // pred_check_branch
          %163 = sbr.rel (%p161) target = $region28
        $region27: #{tpu_custom_call.1} parent=19 // pred_region
          %s164 = sand.u32 %s75, 1
          %s165 = scalar_lea.sflag [#allocation6], %s164
          %s166 = sand.u32 %s75, 1
          %s167 = smul.addr %s166, 2
          %s168 = scalar_lea.vmem [#allocation5], %s167
          %s169 = smul.u32 2, %s18
          %171 = vsyncadd %s165, 0
          %s172 = scalar_lea.hbm %s2, %s169
          %s174 = sshll.u32 %s172, 4
          %s175 = int_to_ptr.hbm [resolvable:$true] %s174
          %s176 = sshll.u32 %s168, 4
          %s177 = int_to_ptr.vmem [resolvable:$true] %s176
          %179 = dma.hbm_to_vmem [thread:$0]  %s175, 32, %s177, %s165
        $region28: #{tpu_custom_call.1} parent=19 // pred_fallthru
          _
      $region20: #{tpu_custom_call.1} parent=5 // pred_fallthru
        _
      %p180 = scmp.le.s32.totalorder 1, %s18
      %p181 = scmp.lt.s32.totalorder %s18, 3
      %p182 = pnand %p180, %p181
      %p183 = pneg %p182
      // Predicated region
      $region29: #{tpu_custom_call.1} parent=5 // pred_check
        _
      $region30: #{tpu_custom_call.1} parent=5 // pred_check_branch
        %185 = sbr.rel (%p182) target = $region32
      $region31: #{tpu_custom_call.1} parent=5 // pred_region
        %s186 = ssub.s32 %s18, 1
        %s187 = sand.u32 %s52, 1
        %s188 = scalar_lea.sflag [#allocation3], %s187
        %s189 = sand.u32 %s52, 1
        %s190 = smul.addr %s189, 9216
        %s191 = scalar_lea.vmem [#allocation2], %s190
        // Predicated region
        $region33: #{tpu_custom_call.1} parent=31 // pred_check
          %p192 = pneg %p65
        $region34: #{tpu_custom_call.1} parent=31 // pred_check_branch
          %194 = sbr.rel (%p192) target = $region36
        $region35: #{tpu_custom_call.1} parent=31 // pred_region
          %196 = dma.done %s188, 147456
        $region36: #{tpu_custom_call.1} parent=31 // pred_fallthru
          _
        %s197 = sand.u32 %s78, 1
        %s198 = scalar_lea.sflag [#allocation6], %s197
        %s199 = sand.u32 %s78, 1
        %s200 = smul.addr %s199, 2
        %s201 = scalar_lea.vmem [#allocation5], %s200
        // Predicated region
        $region37: #{tpu_custom_call.1} parent=31 // pred_check
          %p202 = pneg %p91
        $region38: #{tpu_custom_call.1} parent=31 // pred_check_branch
          %204 = sbr.rel (%p202) target = $region40
        $region39: #{tpu_custom_call.1} parent=31 // pred_region
          %206 = dma.done %s198, 32
        $region40: #{tpu_custom_call.1} parent=31 // pred_fallthru
          _
        %p207 = pneg %p39
        %p208 = pneg %p36
        %s209 = sand.u32 %s52, 1
        %s210 = scalar_lea.sflag [#allocation3], %s209
        %s211 = sand.u32 %s52, 1
        %s212 = smul.addr %s211, 9216
        %s213 = scalar_lea.vmem [#allocation2], %s212
        %p214 = pneg %p65
        %p215 = pneg %p62
        %s216 = sand.u32 %s78, 1
        %s217 = scalar_lea.sflag [#allocation6], %s216
        %s218 = sand.u32 %s78, 1
        %s219 = smul.addr %s218, 2
        %s220 = scalar_lea.vmem [#allocation5], %s219
        %p221 = pneg %p91
        %p222 = pneg %p88
        %p223 = pneg %p117
        %p224 = pneg %p114
        %s225 = sand.u32 %s104, 1
        %s226 = scalar_lea.sflag [#allocation4], %s225
        %s227 = sand.u32 %s104, 1
        %s228 = smul.addr %s227, 64
        %s229 = scalar_lea.vmem [#allocation7], %s228
        %s230 = smul.u32 2, %s23
        %s231 = smul.u32 2, %s23
        %s232 = smul.u32 2, %s23
        %v233 = vld [vmem:[%s0] sm:$0x3f]
        %v234 = vld [vmem:[%s0 + $0x8] sm:$0x3f]
        %v235 = vld [vmem:[%s0 + $0x10] sm:$0x3f]
        %v236 = vld [vmem:[%s0 + $0x18] sm:$0x3f]
        %v237 = vld [vmem:[%s0 + $0x20] sm:$0x3f]
        %v238 = vld [vmem:[%s0 + $0x28] sm:$0x3f]
        %v239 = vld [vmem:[%s0 + $0x30] sm:$0x3f]
        %v240 = vld [vmem:[%s0 + $0x38] sm:$0x3f]
        %v241 = vld [vmem:[%s0 + $0x40] sm:$0x3f]
        %v242 = vld [vmem:[%s0 + $0x48] sm:$0x3f]
        %v243 = vld [vmem:[%s0 + $0x50] sm:$0x3f]
        %v244 = vld [vmem:[%s0 + $0x58] sm:$0x3f]
        %v245 = vld [vmem:[%s0 + $0x60] sm:$0x3f]
        %v246 = vld [vmem:[%s0 + $0x68] sm:$0x3f]
        %v247 = vld [vmem:[%s0 + $0x70] sm:$0x3f]
        %v248 = vld [vmem:[%s0 + $0x78] sm:$0x3f]
        %v249 = vld [vmem:[%s0 + $0x80] sm:$0x3f]
        %v250 = vld [vmem:[%s0 + $0x88] sm:$0x3f]
        %v251 = vld [vmem:[%s0 + $0x90] sm:$0x3f]
        %v252 = vld [vmem:[%s0 + $0x98] sm:$0x3f]
        %v253 = vld [vmem:[%s0 + $0xa0] sm:$0x3f]
        %v254 = vld [vmem:[%s0 + $0xa8] sm:$0x3f]
        %v255 = vld [vmem:[%s0 + $0xb0] sm:$0x3f]
        %v256 = vld [vmem:[%s0 + $0xb8] sm:$0x3f]
        %v257 = vld [vmem:[%s0 + $0xc0] sm:$0x3f]
        %v258 = vld [vmem:[%s0 + $0xc8] sm:$0x3f]
        %v259 = vld [vmem:[%s0 + $0xd0] sm:$0x3f]
        %v260 = vld [vmem:[%s0 + $0xd8] sm:$0x3f]
        %v261 = vld [vmem:[%s0 + $0xe0] sm:$0x3f]
        %v262 = vld [vmem:[%s0 + $0xe8] sm:$0x3f]
        %v263 = vld [vmem:[%s0 + $0xf0] sm:$0x3f]
        %v264 = vld [vmem:[%s0 + $0xf8] sm:$0x3f]
        %v265 = vld [vmem:[%s0 + $0x100] sm:$0x3f]
        %v266 = vld [vmem:[%s0 + $0x108] sm:$0x3f]
        %v267 = vld [vmem:[%s0 + $0x110] sm:$0x3f]
        %v268 = vld [vmem:[%s0 + $0x118] sm:$0x3f]
        %v269 = vld [vmem:[%s0 + $0x120] sm:$0x3f]
        %v270 = vld [vmem:[%s0 + $0x128] sm:$0x3f]
        %v271 = vld [vmem:[%s0 + $0x130] sm:$0x3f]
        %v272 = vld [vmem:[%s0 + $0x138] sm:$0x3f]
        %v273 = vld [vmem:[%s0 + $0x140] sm:$0x3f]
        %v274 = vld [vmem:[%s0 + $0x148] sm:$0x3f]
        %v275 = vld [vmem:[%s0 + $0x150] sm:$0x3f]
        %v276 = vld [vmem:[%s0 + $0x158] sm:$0x3f]
        %v277 = vld [vmem:[%s0 + $0x160] sm:$0x3f]
        %v278 = vld [vmem:[%s0 + $0x168] sm:$0x3f]
        %v279 = vld [vmem:[%s0 + $0x170] sm:$0x3f]
        %v280 = vld [vmem:[%s0 + $0x178] sm:$0x3f]
        %v281 = vld [vmem:[%s0 + $0x180] sm:$0x3f]
        %v282 = vld [vmem:[%s0 + $0x188] sm:$0x3f]
        %v283 = vld [vmem:[%s0 + $0x190] sm:$0x3f]
        %v284 = vld [vmem:[%s0 + $0x198] sm:$0x3f]
        %v285 = vld [vmem:[%s0 + $0x1a0] sm:$0x3f]
        %v286 = vld [vmem:[%s0 + $0x1a8] sm:$0x3f]
        %v287 = vld [vmem:[%s0 + $0x1b0] sm:$0x3f]
        %v288 = vld [vmem:[%s0 + $0x1b8] sm:$0x3f]
        %v289 = vld [vmem:[%s0 + $0x1c0] sm:$0x3f]
        %v290 = vld [vmem:[%s0 + $0x1c8] sm:$0x3f]
        %v291 = vld [vmem:[%s0 + $0x1d0] sm:$0x3f]
        %v292 = vld [vmem:[%s0 + $0x1d8] sm:$0x3f]
        %v293 = vld [vmem:[%s0 + $0x1e0] sm:$0x3f]
        %v294 = vld [vmem:[%s0 + $0x1e8] sm:$0x3f]
        %v295 = vld [vmem:[%s0 + $0x1f0] sm:$0x3f]
        %v296 = vld [vmem:[%s0 + $0x1f8] sm:$0x3f]
        %v297 = vld [vmem:[%s0 + $0x200] sm:$0x3f]
        %v298 = vld [vmem:[%s0 + $0x208] sm:$0x3f]
        %v299 = vld [vmem:[%s0 + $0x210] sm:$0x3f]
        %v300 = vld [vmem:[%s0 + $0x218] sm:$0x3f]
        %v301 = vld [vmem:[%s0 + $0x220] sm:$0x3f]
        %v302 = vld [vmem:[%s0 + $0x228] sm:$0x3f]
        %v303 = vld [vmem:[%s0 + $0x230] sm:$0x3f]
        %v304 = vld [vmem:[%s0 + $0x238] sm:$0x3f]
        %v305 = vld [vmem:[%s0 + $0x240] sm:$0x3f]
        %v306 = vld [vmem:[%s0 + $0x248] sm:$0x3f]
        %v307 = vld [vmem:[%s0 + $0x250] sm:$0x3f]
        %v308 = vld [vmem:[%s0 + $0x258] sm:$0x3f]
        %v309 = vld [vmem:[%s0 + $0x260] sm:$0x3f]
        %v310 = vld [vmem:[%s0 + $0x268] sm:$0x3f]
        %v311 = vld [vmem:[%s0 + $0x270] sm:$0x3f]
        %v312 = vld [vmem:[%s0 + $0x278] sm:$0x3f]
        %v313 = vld [vmem:[%s0 + $0x280] sm:$0x3f]
        %v314 = vld [vmem:[%s0 + $0x288] sm:$0x3f]
        %v315 = vld [vmem:[%s0 + $0x290] sm:$0x3f]
        %v316 = vld [vmem:[%s0 + $0x298] sm:$0x3f]
        %v317 = vld [vmem:[%s0 + $0x2a0] sm:$0x3f]
        %v318 = vld [vmem:[%s0 + $0x2a8] sm:$0x3f]
        %v319 = vld [vmem:[%s0 + $0x2b0] sm:$0x3f]
        %v320 = vld [vmem:[%s0 + $0x2b8] sm:$0x3f]
        %v321 = vld [vmem:[%s0 + $0x2c0] sm:$0x3f]
        %v322 = vld [vmem:[%s0 + $0x2c8] sm:$0x3f]
        %v323 = vld [vmem:[%s0 + $0x2d0] sm:$0x3f]
        %v324 = vld [vmem:[%s0 + $0x2d8] sm:$0x3f]
        %v325 = vld [vmem:[%s0 + $0x2e0] sm:$0x3f]
        %v326 = vld [vmem:[%s0 + $0x2e8] sm:$0x3f]
        %v327 = vld [vmem:[%s0 + $0x2f0] sm:$0x3f]
        %v328 = vld [vmem:[%s0 + $0x2f8] sm:$0x3f]
        %v329 = vmax.f32 %v233, 0.0
        %v330 = vmax.f32 %v234, 0.0
        %v331 = vmax.f32 %v235, 0.0
        %v332 = vmax.f32 %v236, 0.0
        %v333 = vmax.f32 %v237, 0.0
        %v334 = vmax.f32 %v238, 0.0
        %v335 = vmax.f32 %v239, 0.0
        %v336 = vmax.f32 %v240, 0.0
        %v337 = vmax.f32 %v241, 0.0
        %v338 = vmax.f32 %v242, 0.0
        %v339 = vmax.f32 %v243, 0.0
        %v340 = vmax.f32 %v244, 0.0
        %v341 = vmax.f32 %v245, 0.0
        %v342 = vmax.f32 %v246, 0.0
        %v343 = vmax.f32 %v247, 0.0
        %v344 = vmax.f32 %v248, 0.0
        %v345 = vmax.f32 %v249, 0.0
        %v346 = vmax.f32 %v250, 0.0
        %v347 = vmax.f32 %v251, 0.0
        %v348 = vmax.f32 %v252, 0.0
        %v349 = vmax.f32 %v253, 0.0
        %v350 = vmax.f32 %v254, 0.0
        %v351 = vmax.f32 %v255, 0.0
        %v352 = vmax.f32 %v256, 0.0
        %v353 = vmax.f32 %v257, 0.0
        %v354 = vmax.f32 %v258, 0.0
        %v355 = vmax.f32 %v259, 0.0
        %v356 = vmax.f32 %v260, 0.0
        %v357 = vmax.f32 %v261, 0.0
        %v358 = vmax.f32 %v262, 0.0
        %v359 = vmax.f32 %v263, 0.0
        %v360 = vmax.f32 %v264, 0.0
        %v361 = vmax.f32 %v265, 0.0
        %v362 = vmax.f32 %v266, 0.0
        %v363 = vmax.f32 %v267, 0.0
        %v364 = vmax.f32 %v268, 0.0
        %v365 = vmax.f32 %v269, 0.0
        %v366 = vmax.f32 %v270, 0.0
        %v367 = vmax.f32 %v271, 0.0
        %v368 = vmax.f32 %v272, 0.0
        %v369 = vmax.f32 %v273, 0.0
        %v370 = vmax.f32 %v274, 0.0
        %v371 = vmax.f32 %v275, 0.0
        %v372 = vmax.f32 %v276, 0.0
        %v373 = vmax.f32 %v277, 0.0
        %v374 = vmax.f32 %v278, 0.0
        %v375 = vmax.f32 %v279, 0.0
        %v376 = vmax.f32 %v280, 0.0
        %v377 = vmax.f32 %v281, 0.0
        %v378 = vmax.f32 %v282, 0.0
        %v379 = vmax.f32 %v283, 0.0
        %v380 = vmax.f32 %v284, 0.0
        %v381 = vmax.f32 %v285, 0.0
        %v382 = vmax.f32 %v286, 0.0
        %v383 = vmax.f32 %v287, 0.0
        %v384 = vmax.f32 %v288, 0.0
        %v385 = vmax.f32 %v289, 0.0
        %v386 = vmax.f32 %v290, 0.0
        %v387 = vmax.f32 %v291, 0.0
        %v388 = vmax.f32 %v292, 0.0
        %v389 = vmax.f32 %v293, 0.0
        %v390 = vmax.f32 %v294, 0.0
        %v391 = vmax.f32 %v295, 0.0
        %v392 = vmax.f32 %v296, 0.0
        %v393 = vmax.f32 %v297, 0.0
        %v394 = vmax.f32 %v298, 0.0
        %v395 = vmax.f32 %v299, 0.0
        %v396 = vmax.f32 %v300, 0.0
        %v397 = vmax.f32 %v301, 0.0
        %v398 = vmax.f32 %v302, 0.0
        %v399 = vmax.f32 %v303, 0.0
        %v400 = vmax.f32 %v304, 0.0
        %v401 = vmax.f32 %v305, 0.0
        %v402 = vmax.f32 %v306, 0.0
        %v403 = vmax.f32 %v307, 0.0
        %v404 = vmax.f32 %v308, 0.0
        %v405 = vmax.f32 %v309, 0.0
        %v406 = vmax.f32 %v310, 0.0
        %v407 = vmax.f32 %v311, 0.0
        %v408 = vmax.f32 %v312, 0.0
        %v409 = vmax.f32 %v313, 0.0
        %v410 = vmax.f32 %v314, 0.0
        %v411 = vmax.f32 %v315, 0.0
        %v412 = vmax.f32 %v316, 0.0
        %v413 = vmax.f32 %v317, 0.0
        %v414 = vmax.f32 %v318, 0.0
        %v415 = vmax.f32 %v319, 0.0
        %v416 = vmax.f32 %v320, 0.0
        %v417 = vmax.f32 %v321, 0.0
        %v418 = vmax.f32 %v322, 0.0
        %v419 = vmax.f32 %v323, 0.0
        %v420 = vmax.f32 %v324, 0.0
        %v421 = vmax.f32 %v325, 0.0
        %v422 = vmax.f32 %v326, 0.0
        %v423 = vmax.f32 %v327, 0.0
        %v424 = vmax.f32 %v328, 0.0
        %v425 = vpack.c.bf16 %v330, %v329
        %v426 = vpack.c.bf16 %v332, %v331
        %v427 = vpack.c.bf16 %v334, %v333
        %v428 = vpack.c.bf16 %v336, %v335
        %v429 = vpack.c.bf16 %v338, %v337
        %v430 = vpack.c.bf16 %v340, %v339
        %v431 = vpack.c.bf16 %v342, %v341
        %v432 = vpack.c.bf16 %v344, %v343
        %v433 = vpack.c.bf16 %v346, %v345
        %v434 = vpack.c.bf16 %v348, %v347
        %v435 = vpack.c.bf16 %v350, %v349
        %v436 = vpack.c.bf16 %v352, %v351
        %v437 = vpack.c.bf16 %v354, %v353
        %v438 = vpack.c.bf16 %v356, %v355
        %v439 = vpack.c.bf16 %v358, %v357
        %v440 = vpack.c.bf16 %v360, %v359
        %v441 = vpack.c.bf16 %v362, %v361
        %v442 = vpack.c.bf16 %v364, %v363
        %v443 = vpack.c.bf16 %v366, %v365
        %v444 = vpack.c.bf16 %v368, %v367
        %v445 = vpack.c.bf16 %v370, %v369
        %v446 = vpack.c.bf16 %v372, %v371
        %v447 = vpack.c.bf16 %v374, %v373
        %v448 = vpack.c.bf16 %v376, %v375
        %v449 = vpack.c.bf16 %v378, %v377
        %v450 = vpack.c.bf16 %v380, %v379
        %v451 = vpack.c.bf16 %v382, %v381
        %v452 = vpack.c.bf16 %v384, %v383
        %v453 = vpack.c.bf16 %v386, %v385
        %v454 = vpack.c.bf16 %v388, %v387
        %v455 = vpack.c.bf16 %v390, %v389
        %v456 = vpack.c.bf16 %v392, %v391
        %v457 = vpack.c.bf16 %v394, %v393
        %v458 = vpack.c.bf16 %v396, %v395
        %v459 = vpack.c.bf16 %v398, %v397
        %v460 = vpack.c.bf16 %v400, %v399
        %v461 = vpack.c.bf16 %v402, %v401
        %v462 = vpack.c.bf16 %v404, %v403
        %v463 = vpack.c.bf16 %v406, %v405
        %v464 = vpack.c.bf16 %v408, %v407
        %v465 = vpack.c.bf16 %v410, %v409
        %v466 = vpack.c.bf16 %v412, %v411
        %v467 = vpack.c.bf16 %v414, %v413
        %v468 = vpack.c.bf16 %v416, %v415
        %v469 = vpack.c.bf16 %v418, %v417
        %v470 = vpack.c.bf16 %v420, %v419
        %v471 = vpack.c.bf16 %v422, %v421
        %v472 = vpack.c.bf16 %v424, %v423
        %v505 = vrot.slane %v425, 2
        %v506 = vrot.slane %v426, 4
        %v507 = vrot.slane %v426, 6
        %v508 = vrot.slane %v427, 2
        %v509 = vrot.slane %v428, 4
        %v510 = vrot.slane %v428, 6
        %v511 = vrot.slane %v429, 2
        %v512 = vrot.slane %v430, 4
        %v513 = vrot.slane %v430, 6
        %v514 = vrot.slane %v431, 2
        %v515 = vrot.slane %v432, 4
        %v516 = vrot.slane %v432, 6
        %v517 = vrot.slane %v433, 2
        %v518 = vrot.slane %v434, 4
        %v519 = vrot.slane %v434, 6
        %v520 = vrot.slane %v435, 2
        %v521 = vrot.slane %v436, 4
        %v522 = vrot.slane %v436, 6
        %v523 = vrot.slane %v437, 2
        %v524 = vrot.slane %v438, 4
        %v525 = vrot.slane %v438, 6
        %v526 = vrot.slane %v439, 2
        %v527 = vrot.slane %v440, 4
        %v528 = vrot.slane %v440, 6
        %v529 = vrot.slane %v449, 2
        %v530 = vrot.slane %v450, 4
        %v531 = vrot.slane %v450, 6
        %v532 = vrot.slane %v451, 2
        %v533 = vrot.slane %v452, 4
        %v534 = vrot.slane %v452, 6
        %v535 = vrot.slane %v453, 2
        %v536 = vrot.slane %v454, 4
        %v537 = vrot.slane %v454, 6
        %v538 = vrot.slane %v455, 2
        %v539 = vrot.slane %v456, 4
        %v540 = vrot.slane %v456, 6
        %v541 = vrot.slane %v457, 2
        %v542 = vrot.slane %v458, 4
        %v543 = vrot.slane %v458, 6
        %v544 = vrot.slane %v459, 2
        %v545 = vrot.slane %v460, 4
        %v546 = vrot.slane %v460, 6
        %v547 = vrot.slane %v461, 2
        %v548 = vrot.slane %v462, 4
        %v549 = vrot.slane %v462, 6
        %v550 = vrot.slane %v463, 2
        %v551 = vrot.slane %v464, 4
        %v552 = vrot.slane %v464, 6
        %vm553 = vcmask 1041408
        %v556 = vsel %vm553, %v425, %v505
        %vm557 = vcmask 1045508
        %v560 = vsel %vm557, %v506, %v507
        %vm561 = vcmask 1043456
        %v562 = vsel %vm561, %v556, %v560
        %v565 = vsel %vm553, %v427, %v508
        %v568 = vsel %vm557, %v509, %v510
        %v569 = vsel %vm561, %v565, %v568
        %v572 = vsel %vm553, %v429, %v511
        %v575 = vsel %vm557, %v512, %v513
        %v576 = vsel %vm561, %v572, %v575
        %v579 = vsel %vm553, %v431, %v514
        %v582 = vsel %vm557, %v515, %v516
        %v583 = vsel %vm561, %v579, %v582
        %v586 = vsel %vm553, %v433, %v517
        %v589 = vsel %vm557, %v518, %v519
        %v590 = vsel %vm561, %v586, %v589
        %v593 = vsel %vm553, %v435, %v520
        %v596 = vsel %vm557, %v521, %v522
        %v597 = vsel %vm561, %v593, %v596
        %v600 = vsel %vm553, %v437, %v523
        %v603 = vsel %vm557, %v524, %v525
        %v604 = vsel %vm561, %v600, %v603
        %v607 = vsel %vm553, %v439, %v526
        %v610 = vsel %vm557, %v527, %v528
        %v611 = vsel %vm561, %v607, %v610
        %v614 = vsel %vm553, %v449, %v529
        %v617 = vsel %vm557, %v530, %v531
        %v618 = vsel %vm561, %v614, %v617
        %v621 = vsel %vm553, %v451, %v532
        %v624 = vsel %vm557, %v533, %v534
        %v625 = vsel %vm561, %v621, %v624
        %v628 = vsel %vm553, %v453, %v535
        %v631 = vsel %vm557, %v536, %v537
        %v632 = vsel %vm561, %v628, %v631
        %v635 = vsel %vm553, %v455, %v538
        %v638 = vsel %vm557, %v539, %v540
        %v639 = vsel %vm561, %v635, %v638
        %v642 = vsel %vm553, %v457, %v541
        %v645 = vsel %vm557, %v542, %v543
        %v646 = vsel %vm561, %v642, %v645
        %v649 = vsel %vm553, %v459, %v544
        %v652 = vsel %vm557, %v545, %v546
        %v653 = vsel %vm561, %v649, %v652
        %v656 = vsel %vm553, %v461, %v547
        %v659 = vsel %vm557, %v548, %v549
        %v660 = vsel %vm561, %v656, %v659
        %v663 = vsel %vm553, %v463, %v550
        %v666 = vsel %vm557, %v551, %v552
        %v667 = vsel %vm561, %v663, %v666
        %vm668 = vcmask 1043458
        %v669 = vsel %vm668, %v425, %v505
        %vm670 = vcmask 1045504
        %v671 = vsel %vm670, %v507, %v506
        %vm672 = vcmask 1045506
        %v673 = vsel %vm672, %v669, %v671
        %v675 = vrot.slane %v673, 2
        %v676 = vsel %vm668, %v427, %v508
        %v677 = vsel %vm670, %v510, %v509
        %v678 = vsel %vm672, %v676, %v677
        %v680 = vrot.slane %v678, 2
        %v681 = vsel %vm668, %v429, %v511
        %v682 = vsel %vm670, %v513, %v512
        %v683 = vsel %vm672, %v681, %v682
        %v685 = vrot.slane %v683, 2
        %v686 = vsel %vm668, %v431, %v514
        %v687 = vsel %vm670, %v516, %v515
        %v688 = vsel %vm672, %v686, %v687
        %v690 = vrot.slane %v688, 2
        %v691 = vsel %vm668, %v433, %v517
        %v692 = vsel %vm670, %v519, %v518
        %v693 = vsel %vm672, %v691, %v692
        %v695 = vrot.slane %v693, 2
        %v696 = vsel %vm668, %v435, %v520
        %v697 = vsel %vm670, %v522, %v521
        %v698 = vsel %vm672, %v696, %v697
        %v700 = vrot.slane %v698, 2
        %v701 = vsel %vm668, %v437, %v523
        %v702 = vsel %vm670, %v525, %v524
        %v703 = vsel %vm672, %v701, %v702
        %v705 = vrot.slane %v703, 2
        %v706 = vsel %vm668, %v439, %v526
        %v707 = vsel %vm670, %v528, %v527
        %v708 = vsel %vm672, %v706, %v707
        %v710 = vrot.slane %v708, 2
        %v711 = vsel %vm668, %v449, %v529
        %v712 = vsel %vm670, %v531, %v530
        %v713 = vsel %vm672, %v711, %v712
        %v715 = vrot.slane %v713, 2
        %v716 = vsel %vm668, %v451, %v532
        %v717 = vsel %vm670, %v534, %v533
        %v718 = vsel %vm672, %v716, %v717
        %v720 = vrot.slane %v718, 2
        %v721 = vsel %vm668, %v453, %v535
        %v722 = vsel %vm670, %v537, %v536
        %v723 = vsel %vm672, %v721, %v722
        %v725 = vrot.slane %v723, 2
        %v726 = vsel %vm668, %v455, %v538
        %v727 = vsel %vm670, %v540, %v539
        %v728 = vsel %vm672, %v726, %v727
        %v730 = vrot.slane %v728, 2
        %v731 = vsel %vm668, %v457, %v541
        %v732 = vsel %vm670, %v543, %v542
        %v733 = vsel %vm672, %v731, %v732
        %v735 = vrot.slane %v733, 2
        %v736 = vsel %vm668, %v459, %v544
        %v737 = vsel %vm670, %v546, %v545
        %v738 = vsel %vm672, %v736, %v737
        %v740 = vrot.slane %v738, 2
        %v741 = vsel %vm668, %v461, %v547
        %v742 = vsel %vm670, %v549, %v548
        %v743 = vsel %vm672, %v741, %v742
        %v745 = vrot.slane %v743, 2
        %v746 = vsel %vm668, %v463, %v550
        %v747 = vsel %vm670, %v552, %v551
        %v748 = vsel %vm672, %v746, %v747
        %v750 = vrot.slane %v748, 2
        %vm751 = vsmask.f32 1280
        %vm752 = vsmask.f32 3336
        %vm753 = vmor %vm751, %vm752
        %vm754 = vsmask.f32 5392
        %vm755 = vmor %vm753, %vm754
        %vm756 = vsmask.f32 7448
        %vm757 = vmor %vm755, %vm756
        %v758 = vshrl.u32 %v562, 16
        %v760 = vrot.slane %v758, 6
        %v761 = vshll.u32 %v562, 16
        %v763 = vrot.slane %v761, 7
        %v764 = vor.u32 %v760, %v763
        %v765 = vrot.slane %v764, 2
        %v767 = vshll.u32 %v675, 16
        %v769 = vrot.slane %v767, 7
        %v770 = vsel %vm757, %v765, %v769
        %v771 = vshrl.u32 %v569, 16
        %v773 = vrot.slane %v771, 6
        %v774 = vshll.u32 %v569, 16
        %v776 = vrot.slane %v774, 7
        %v777 = vor.u32 %v773, %v776
        %v778 = vrot.slane %v777, 2
        %v780 = vshll.u32 %v680, 16
        %v782 = vrot.slane %v780, 7
        %v783 = vsel %vm757, %v778, %v782
        %v784 = vshrl.u32 %v576, 16
        %v786 = vrot.slane %v784, 6
        %v787 = vshll.u32 %v576, 16
        %v789 = vrot.slane %v787, 7
        %v790 = vor.u32 %v786, %v789
        %v791 = vrot.slane %v790, 2
        %v793 = vshll.u32 %v685, 16
        %v795 = vrot.slane %v793, 7
        %v796 = vsel %vm757, %v791, %v795
        %v797 = vshrl.u32 %v583, 16
        %v799 = vrot.slane %v797, 6
        %v800 = vshll.u32 %v583, 16
        %v802 = vrot.slane %v800, 7
        %v803 = vor.u32 %v799, %v802
        %v804 = vrot.slane %v803, 2
        %v806 = vshll.u32 %v690, 16
        %v808 = vrot.slane %v806, 7
        %v809 = vsel %vm757, %v804, %v808
        %v810 = vshrl.u32 %v590, 16
        %v812 = vrot.slane %v810, 6
        %v813 = vshll.u32 %v590, 16
        %v815 = vrot.slane %v813, 7
        %v816 = vor.u32 %v812, %v815
        %v817 = vrot.slane %v816, 2
        %v819 = vshll.u32 %v695, 16
        %v821 = vrot.slane %v819, 7
        %v822 = vsel %vm757, %v817, %v821
        %v823 = vshrl.u32 %v597, 16
        %v825 = vrot.slane %v823, 6
        %v826 = vshll.u32 %v597, 16
        %v828 = vrot.slane %v826, 7
        %v829 = vor.u32 %v825, %v828
        %v830 = vrot.slane %v829, 2
        %v832 = vshll.u32 %v700, 16
        %v834 = vrot.slane %v832, 7
        %v835 = vsel %vm757, %v830, %v834
        %v836 = vshrl.u32 %v604, 16
        %v838 = vrot.slane %v836, 6
        %v839 = vshll.u32 %v604, 16
        %v841 = vrot.slane %v839, 7
        %v842 = vor.u32 %v838, %v841
        %v843 = vrot.slane %v842, 2
        %v845 = vshll.u32 %v705, 16
        %v847 = vrot.slane %v845, 7
        %v848 = vsel %vm757, %v843, %v847
        %v849 = vshrl.u32 %v611, 16
        %v851 = vrot.slane %v849, 6
        %v852 = vshll.u32 %v611, 16
        %v854 = vrot.slane %v852, 7
        %v855 = vor.u32 %v851, %v854
        %v856 = vrot.slane %v855, 2
        %v858 = vshll.u32 %v710, 16
        %v860 = vrot.slane %v858, 7
        %v861 = vsel %vm757, %v856, %v860
        %v862 = vshrl.u32 %v618, 16
        %v864 = vrot.slane %v862, 6
        %v865 = vshll.u32 %v618, 16
        %v867 = vrot.slane %v865, 7
        %v868 = vor.u32 %v864, %v867
        %v869 = vrot.slane %v868, 2
        %v871 = vshll.u32 %v715, 16
        %v873 = vrot.slane %v871, 7
        %v874 = vsel %vm757, %v869, %v873
        %v875 = vshrl.u32 %v625, 16
        %v877 = vrot.slane %v875, 6
        %v878 = vshll.u32 %v625, 16
        %v880 = vrot.slane %v878, 7
        %v881 = vor.u32 %v877, %v880
        %v882 = vrot.slane %v881, 2
        %v884 = vshll.u32 %v720, 16
        %v886 = vrot.slane %v884, 7
        %v887 = vsel %vm757, %v882, %v886
        %v888 = vshrl.u32 %v632, 16
        %v890 = vrot.slane %v888, 6
        %v891 = vshll.u32 %v632, 16
        %v893 = vrot.slane %v891, 7
        %v894 = vor.u32 %v890, %v893
        %v895 = vrot.slane %v894, 2
        %v897 = vshll.u32 %v725, 16
        %v899 = vrot.slane %v897, 7
        %v900 = vsel %vm757, %v895, %v899
        %v901 = vshrl.u32 %v639, 16
        %v903 = vrot.slane %v901, 6
        %v904 = vshll.u32 %v639, 16
        %v906 = vrot.slane %v904, 7
        %v907 = vor.u32 %v903, %v906
        %v908 = vrot.slane %v907, 2
        %v910 = vshll.u32 %v730, 16
        %v912 = vrot.slane %v910, 7
        %v913 = vsel %vm757, %v908, %v912
        %v914 = vshrl.u32 %v646, 16
        %v916 = vrot.slane %v914, 6
        %v917 = vshll.u32 %v646, 16
        %v919 = vrot.slane %v917, 7
        %v920 = vor.u32 %v916, %v919
        %v921 = vrot.slane %v920, 2
        %v923 = vshll.u32 %v735, 16
        %v925 = vrot.slane %v923, 7
        %v926 = vsel %vm757, %v921, %v925
        %v927 = vshrl.u32 %v653, 16
        %v929 = vrot.slane %v927, 6
        %v930 = vshll.u32 %v653, 16
        %v932 = vrot.slane %v930, 7
        %v933 = vor.u32 %v929, %v932
        %v934 = vrot.slane %v933, 2
        %v936 = vshll.u32 %v740, 16
        %v938 = vrot.slane %v936, 7
        %v939 = vsel %vm757, %v934, %v938
        %v940 = vshrl.u32 %v660, 16
        %v942 = vrot.slane %v940, 6
        %v943 = vshll.u32 %v660, 16
        %v945 = vrot.slane %v943, 7
        %v946 = vor.u32 %v942, %v945
        %v947 = vrot.slane %v946, 2
        %v949 = vshll.u32 %v745, 16
        %v951 = vrot.slane %v949, 7
        %v952 = vsel %vm757, %v947, %v951
        %v953 = vshrl.u32 %v667, 16
        %v955 = vrot.slane %v953, 6
        %v956 = vshll.u32 %v667, 16
        %v958 = vrot.slane %v956, 7
        %v959 = vor.u32 %v955, %v958
        %v960 = vrot.slane %v959, 2
        %v962 = vshll.u32 %v750, 16
        %v964 = vrot.slane %v962, 7
        %v965 = vsel %vm757, %v960, %v964
        %vm982 = vcmask 1040384
        %vm983 = vcmask 1042434
        %vm984 = vmor %vm982, %vm983
        %vm985 = vcmask 1044484
        %vm986 = vmor %vm984, %vm985
        %vm987 = vcmask 1046534
        %vm988 = vmor %vm986, %vm987
        %v989 = vrot.slane %v562, 7
        %v990 = vrot.slane %v989, 2
        %v991 = vrot.slane %v675, 7
        %v992 = vsel %vm988, %v990, %v991
        %v993 = vrot.slane %v569, 7
        %v994 = vrot.slane %v993, 2
        %v995 = vrot.slane %v680, 7
        %v996 = vsel %vm988, %v994, %v995
        %v997 = vrot.slane %v576, 7
        %v998 = vrot.slane %v997, 2
        %v999 = vrot.slane %v685, 7
        %v1000 = vsel %vm988, %v998, %v999
        %v1001 = vrot.slane %v583, 7
        %v1002 = vrot.slane %v1001, 2
        %v1003 = vrot.slane %v690, 7
        %v1004 = vsel %vm988, %v1002, %v1003
        %v1005 = vrot.slane %v590, 7
        %v1006 = vrot.slane %v1005, 2
        %v1007 = vrot.slane %v695, 7
        %v1008 = vsel %vm988, %v1006, %v1007
        %v1009 = vrot.slane %v597, 7
        %v1010 = vrot.slane %v1009, 2
        %v1011 = vrot.slane %v700, 7
        %v1012 = vsel %vm988, %v1010, %v1011
        %v1013 = vrot.slane %v604, 7
        %v1014 = vrot.slane %v1013, 2
        %v1015 = vrot.slane %v705, 7
        %v1016 = vsel %vm988, %v1014, %v1015
        %v1017 = vrot.slane %v611, 7
        %v1018 = vrot.slane %v1017, 2
        %v1019 = vrot.slane %v710, 7
        %v1020 = vsel %vm988, %v1018, %v1019
        %v1021 = vrot.slane %v618, 7
        %v1022 = vrot.slane %v1021, 2
        %v1023 = vrot.slane %v715, 7
        %v1024 = vsel %vm988, %v1022, %v1023
        %v1025 = vrot.slane %v625, 7
        %v1026 = vrot.slane %v1025, 2
        %v1027 = vrot.slane %v720, 7
        %v1028 = vsel %vm988, %v1026, %v1027
        %v1029 = vrot.slane %v632, 7
        %v1030 = vrot.slane %v1029, 2
        %v1031 = vrot.slane %v725, 7
        %v1032 = vsel %vm988, %v1030, %v1031
        %v1033 = vrot.slane %v639, 7
        %v1034 = vrot.slane %v1033, 2
        %v1035 = vrot.slane %v730, 7
        %v1036 = vsel %vm988, %v1034, %v1035
        %v1037 = vrot.slane %v646, 7
        %v1038 = vrot.slane %v1037, 2
        %v1039 = vrot.slane %v735, 7
        %v1040 = vsel %vm988, %v1038, %v1039
        %v1041 = vrot.slane %v653, 7
        %v1042 = vrot.slane %v1041, 2
        %v1043 = vrot.slane %v740, 7
        %v1044 = vsel %vm988, %v1042, %v1043
        %v1045 = vrot.slane %v660, 7
        %v1046 = vrot.slane %v1045, 2
        %v1047 = vrot.slane %v745, 7
        %v1048 = vsel %vm988, %v1046, %v1047
        %v1049 = vrot.slane %v667, 7
        %v1050 = vrot.slane %v1049, 2
        %v1051 = vrot.slane %v750, 7
        %v1052 = vsel %vm988, %v1050, %v1051
        %v1061 = vrot.slane %v441, 2
        %v1062 = vrot.slane %v442, 4
        %v1063 = vrot.slane %v442, 6
        %v1064 = vrot.slane %v443, 2
        %v1065 = vrot.slane %v444, 4
        %v1066 = vrot.slane %v444, 6
        %v1067 = vrot.slane %v465, 2
        %v1068 = vrot.slane %v466, 4
        %v1069 = vrot.slane %v466, 6
        %v1070 = vrot.slane %v467, 2
        %v1071 = vrot.slane %v468, 4
        %v1072 = vrot.slane %v468, 6
        %v1075 = vsel %vm553, %v441, %v1061
        %v1078 = vsel %vm557, %v1062, %v1063
        %v1079 = vsel %vm561, %v1075, %v1078
        %v1082 = vsel %vm553, %v443, %v1064
        %v1085 = vsel %vm557, %v1065, %v1066
        %v1086 = vsel %vm561, %v1082, %v1085
        %v1089 = vsel %vm553, %v465, %v1067
        %v1092 = vsel %vm557, %v1068, %v1069
        %v1093 = vsel %vm561, %v1089, %v1092
        %v1096 = vsel %vm553, %v467, %v1070
        %v1099 = vsel %vm557, %v1071, %v1072
        %v1100 = vsel %vm561, %v1096, %v1099
        %v1101 = vsel %vm668, %v441, %v1061
        %v1102 = vsel %vm670, %v1063, %v1062
        %v1103 = vsel %vm672, %v1101, %v1102
        %v1105 = vrot.slane %v1103, 2
        %v1106 = vsel %vm668, %v443, %v1064
        %v1107 = vsel %vm670, %v1066, %v1065
        %v1108 = vsel %vm672, %v1106, %v1107
        %v1110 = vrot.slane %v1108, 2
        %v1111 = vsel %vm668, %v465, %v1067
        %v1112 = vsel %vm670, %v1069, %v1068
        %v1113 = vsel %vm672, %v1111, %v1112
        %v1115 = vrot.slane %v1113, 2
        %v1116 = vsel %vm668, %v467, %v1070
        %v1117 = vsel %vm670, %v1072, %v1071
        %v1118 = vsel %vm672, %v1116, %v1117
        %v1120 = vrot.slane %v1118, 2
        %v1121 = vshrl.u32 %v1079, 16
        %v1123 = vrot.slane %v1121, 6
        %v1124 = vshll.u32 %v1079, 16
        %v1126 = vrot.slane %v1124, 7
        %v1127 = vor.u32 %v1123, %v1126
        %v1128 = vrot.slane %v1127, 2
        %v1130 = vshll.u32 %v1105, 16
        %v1132 = vrot.slane %v1130, 7
        %v1133 = vsel %vm757, %v1128, %v1132
        %v1134 = vshrl.u32 %v1086, 16
        %v1136 = vrot.slane %v1134, 6
        %v1137 = vshll.u32 %v1086, 16
        %v1139 = vrot.slane %v1137, 7
        %v1140 = vor.u32 %v1136, %v1139
        %v1141 = vrot.slane %v1140, 2
        %v1143 = vshll.u32 %v1110, 16
        %v1145 = vrot.slane %v1143, 7
        %v1146 = vsel %vm757, %v1141, %v1145
        %v1147 = vshrl.u32 %v1093, 16
        %v1149 = vrot.slane %v1147, 6
        %v1150 = vshll.u32 %v1093, 16
        %v1152 = vrot.slane %v1150, 7
        %v1153 = vor.u32 %v1149, %v1152
        %v1154 = vrot.slane %v1153, 2
        %v1156 = vshll.u32 %v1115, 16
        %v1158 = vrot.slane %v1156, 7
        %v1159 = vsel %vm757, %v1154, %v1158
        %v1160 = vshrl.u32 %v1100, 16
        %v1162 = vrot.slane %v1160, 6
        %v1163 = vshll.u32 %v1100, 16
        %v1165 = vrot.slane %v1163, 7
        %v1166 = vor.u32 %v1162, %v1165
        %v1167 = vrot.slane %v1166, 2
        %v1169 = vshll.u32 %v1120, 16
        %v1171 = vrot.slane %v1169, 7
        %v1172 = vsel %vm757, %v1167, %v1171
        %v1177 = vrot.slane %v1079, 7
        %v1178 = vrot.slane %v1177, 2
        %v1179 = vrot.slane %v1105, 7
        %v1180 = vsel %vm988, %v1178, %v1179
        %v1181 = vrot.slane %v1086, 7
        %v1182 = vrot.slane %v1181, 2
        %v1183 = vrot.slane %v1110, 7
        %v1184 = vsel %vm988, %v1182, %v1183
        %v1185 = vrot.slane %v1093, 7
        %v1186 = vrot.slane %v1185, 2
        %v1187 = vrot.slane %v1115, 7
        %v1188 = vsel %vm988, %v1186, %v1187
        %v1189 = vrot.slane %v1100, 7
        %v1190 = vrot.slane %v1189, 2
        %v1191 = vrot.slane %v1120, 7
        %v1192 = vsel %vm988, %v1190, %v1191
        %v1201 = vrot.slane %v445, 2
        %v1202 = vrot.slane %v446, 4
        %v1203 = vrot.slane %v446, 6
        %v1204 = vrot.slane %v447, 2
        %v1205 = vrot.slane %v448, 4
        %v1206 = vrot.slane %v448, 6
        %v1207 = vrot.slane %v469, 2
        %v1208 = vrot.slane %v470, 4
        %v1209 = vrot.slane %v470, 6
        %v1210 = vrot.slane %v471, 2
        %v1211 = vrot.slane %v472, 4
        %v1212 = vrot.slane %v472, 6
        %v1215 = vsel %vm553, %v445, %v1201
        %v1218 = vsel %vm557, %v1202, %v1203
        %v1219 = vsel %vm561, %v1215, %v1218
        %v1222 = vsel %vm553, %v447, %v1204
        %v1225 = vsel %vm557, %v1205, %v1206
        %v1226 = vsel %vm561, %v1222, %v1225
        %v1229 = vsel %vm553, %v469, %v1207
        %v1232 = vsel %vm557, %v1208, %v1209
        %v1233 = vsel %vm561, %v1229, %v1232
        %v1236 = vsel %vm553, %v471, %v1210
        %v1239 = vsel %vm557, %v1211, %v1212
        %v1240 = vsel %vm561, %v1236, %v1239
        %v1241 = vsel %vm668, %v445, %v1201
        %v1242 = vsel %vm670, %v1203, %v1202
        %v1243 = vsel %vm672, %v1241, %v1242
        %v1245 = vrot.slane %v1243, 2
        %v1246 = vsel %vm668, %v447, %v1204
        %v1247 = vsel %vm670, %v1206, %v1205
        %v1248 = vsel %vm672, %v1246, %v1247
        %v1250 = vrot.slane %v1248, 2
        %v1251 = vsel %vm668, %v469, %v1207
        %v1252 = vsel %vm670, %v1209, %v1208
        %v1253 = vsel %vm672, %v1251, %v1252
        %v1255 = vrot.slane %v1253, 2
        %v1256 = vsel %vm668, %v471, %v1210
        %v1257 = vsel %vm670, %v1212, %v1211
        %v1258 = vsel %vm672, %v1256, %v1257
        %v1260 = vrot.slane %v1258, 2
        %v1261 = vshrl.u32 %v1219, 16
        %v1263 = vrot.slane %v1261, 6
        %v1264 = vshll.u32 %v1219, 16
        %v1266 = vrot.slane %v1264, 7
        %v1267 = vor.u32 %v1263, %v1266
        %v1268 = vrot.slane %v1267, 2
        %v1270 = vshll.u32 %v1245, 16
        %v1272 = vrot.slane %v1270, 7
        %v1273 = vsel %vm757, %v1268, %v1272
        %v1274 = vshrl.u32 %v1226, 16
        %v1276 = vrot.slane %v1274, 6
        %v1277 = vshll.u32 %v1226, 16
        %v1279 = vrot.slane %v1277, 7
        %v1280 = vor.u32 %v1276, %v1279
        %v1281 = vrot.slane %v1280, 2
        %v1283 = vshll.u32 %v1250, 16
        %v1285 = vrot.slane %v1283, 7
        %v1286 = vsel %vm757, %v1281, %v1285
        %v1287 = vshrl.u32 %v1233, 16
        %v1289 = vrot.slane %v1287, 6
        %v1290 = vshll.u32 %v1233, 16
        %v1292 = vrot.slane %v1290, 7
        %v1293 = vor.u32 %v1289, %v1292
        %v1294 = vrot.slane %v1293, 2
        %v1296 = vshll.u32 %v1255, 16
        %v1298 = vrot.slane %v1296, 7
        %v1299 = vsel %vm757, %v1294, %v1298
        %v1300 = vshrl.u32 %v1240, 16
        %v1302 = vrot.slane %v1300, 6
        %v1303 = vshll.u32 %v1240, 16
        %v1305 = vrot.slane %v1303, 7
        %v1306 = vor.u32 %v1302, %v1305
        %v1307 = vrot.slane %v1306, 2
        %v1309 = vshll.u32 %v1260, 16
        %v1311 = vrot.slane %v1309, 7
        %v1312 = vsel %vm757, %v1307, %v1311
        %v1317 = vrot.slane %v1219, 7
        %v1318 = vrot.slane %v1317, 2
        %v1319 = vrot.slane %v1245, 7
        %v1320 = vsel %vm988, %v1318, %v1319
        %v1321 = vrot.slane %v1226, 7
        %v1322 = vrot.slane %v1321, 2
        %v1323 = vrot.slane %v1250, 7
        %v1324 = vsel %vm988, %v1322, %v1323
        %v1325 = vrot.slane %v1233, 7
        %v1326 = vrot.slane %v1325, 2
        %v1327 = vrot.slane %v1255, 7
        %v1328 = vsel %vm988, %v1326, %v1327
        %v1329 = vrot.slane %v1240, 7
        %v1330 = vrot.slane %v1329, 2
        %v1331 = vrot.slane %v1260, 7
        %v1332 = vsel %vm988, %v1330, %v1331
        %1333 = vst [vmem:[#allocation1] ss:$4 sm:$0xff] %v562
        %s1334 = scalar_lea.vmem [#allocation1], 1
        %1335 = vst [vmem:[%s1334] ss:$4 sm:$0xff] %v576
        %s1336 = scalar_lea.vmem [#allocation1], 2
        %1337 = vst [vmem:[%s1336] ss:$4 sm:$0xff] %v590
        %s1338 = scalar_lea.vmem [#allocation1], 3
        %1339 = vst [vmem:[%s1338] ss:$4 sm:$0xff] %v604
        %s1340 = scalar_lea.vmem [#allocation1], 32
        %1341 = vst [vmem:[%s1340] ss:$4 sm:$0xff] %v569
        %s1342 = scalar_lea.vmem [#allocation1], 33
        %1343 = vst [vmem:[%s1342] ss:$4 sm:$0xff] %v583
        %s1344 = scalar_lea.vmem [#allocation1], 34
        %1345 = vst [vmem:[%s1344] ss:$4 sm:$0xff] %v597
        %s1346 = scalar_lea.vmem [#allocation1], 35
        %1347 = vst [vmem:[%s1346] ss:$4 sm:$0xff] %v611
        %v1348 = vld.sshfl [vmem:[#allocation1] sm:$0xff pattern:$0x73625140]
        %v1349 = vld.sshfl [vmem:[#allocation1 + $0x8] sm:$0xff pattern:$0x73625140]
        %v1350 = vld.sshfl [vmem:[#allocation1 + $0x10] sm:$0xff pattern:$0x73625140]
        %v1351 = vld.sshfl [vmem:[#allocation1 + $0x18] sm:$0xff pattern:$0x73625140]
        %v1352 = vld.sshfl [vmem:[#allocation1 + $0x20] sm:$0xff pattern:$0x73625140]
        %v1353 = vld.sshfl [vmem:[#allocation1 + $0x28] sm:$0xff pattern:$0x73625140]
        %v1354 = vld.sshfl [vmem:[#allocation1 + $0x30] sm:$0xff pattern:$0x73625140]
        %v1355 = vld.sshfl [vmem:[#allocation1 + $0x38] sm:$0xff pattern:$0x73625140]
        %1356 = vst [vmem:[#allocation1] ss:$4 sm:$0xff] %v618
        %1357 = vst [vmem:[%s1334] ss:$4 sm:$0xff] %v632
        %1358 = vst [vmem:[%s1336] ss:$4 sm:$0xff] %v646
        %1359 = vst [vmem:[%s1338] ss:$4 sm:$0xff] %v660
        %1360 = vst [vmem:[%s1340] ss:$4 sm:$0xff] %v625
        %1361 = vst [vmem:[%s1342] ss:$4 sm:$0xff] %v639
        %1362 = vst [vmem:[%s1344] ss:$4 sm:$0xff] %v653
        %1363 = vst [vmem:[%s1346] ss:$4 sm:$0xff] %v667
        %v1364 = vld.sshfl [vmem:[#allocation1] sm:$0xff pattern:$0x73625140]
        %v1365 = vld.sshfl [vmem:[#allocation1 + $0x8] sm:$0xff pattern:$0x73625140]
        %v1366 = vld.sshfl [vmem:[#allocation1 + $0x10] sm:$0xff pattern:$0x73625140]
        %v1367 = vld.sshfl [vmem:[#allocation1 + $0x18] sm:$0xff pattern:$0x73625140]
        %v1368 = vld.sshfl [vmem:[#allocation1 + $0x20] sm:$0xff pattern:$0x73625140]
        %v1369 = vld.sshfl [vmem:[#allocation1 + $0x28] sm:$0xff pattern:$0x73625140]
        %v1370 = vld.sshfl [vmem:[#allocation1 + $0x30] sm:$0xff pattern:$0x73625140]
        %v1371 = vld.sshfl [vmem:[#allocation1 + $0x38] sm:$0xff pattern:$0x73625140]
        %1389 = vst [vmem:[#allocation1] ss:$4 sm:$0xff] %v770
        %s1391 = scalar_lea.vmem [#allocation1], 1
        %1392 = vst [vmem:[%s1391] ss:$4 sm:$0xff] %v796
        %s1394 = scalar_lea.vmem [#allocation1], 2
        %1395 = vst [vmem:[%s1394] ss:$4 sm:$0xff] %v822
        %s1397 = scalar_lea.vmem [#allocation1], 3
        %1398 = vst [vmem:[%s1397] ss:$4 sm:$0xff] %v848
        %s1400 = scalar_lea.vmem [#allocation1], 32
        %1401 = vst [vmem:[%s1400] ss:$4 sm:$0xff] %v783
        %s1403 = scalar_lea.vmem [#allocation1], 33
        %1404 = vst [vmem:[%s1403] ss:$4 sm:$0xff] %v809
        %s1406 = scalar_lea.vmem [#allocation1], 34
        %1407 = vst [vmem:[%s1406] ss:$4 sm:$0xff] %v835
        %s1409 = scalar_lea.vmem [#allocation1], 35
        %1410 = vst [vmem:[%s1409] ss:$4 sm:$0xff] %v861
        %v1411 = vld.sshfl [vmem:[#allocation1] sm:$0xff pattern:$0x73625140]
        %v1412 = vld.sshfl [vmem:[#allocation1 + $0x8] sm:$0xff pattern:$0x73625140]
        %v1413 = vld.sshfl [vmem:[#allocation1 + $0x10] sm:$0xff pattern:$0x73625140]
        %v1414 = vld.sshfl [vmem:[#allocation1 + $0x18] sm:$0xff pattern:$0x73625140]
        %v1415 = vld.sshfl [vmem:[#allocation1 + $0x20] sm:$0xff pattern:$0x73625140]
        %v1416 = vld.sshfl [vmem:[#allocation1 + $0x28] sm:$0xff pattern:$0x73625140]
        %v1417 = vld.sshfl [vmem:[#allocation1 + $0x30] sm:$0xff pattern:$0x73625140]
        %v1418 = vld.sshfl [vmem:[#allocation1 + $0x38] sm:$0xff pattern:$0x73625140]
        %1420 = vst [vmem:[#allocation1] ss:$4 sm:$0xff] %v874
        %1422 = vst [vmem:[%s1391] ss:$4 sm:$0xff] %v900
        %1424 = vst [vmem:[%s1394] ss:$4 sm:$0xff] %v926
        %1426 = vst [vmem:[%s1397] ss:$4 sm:$0xff] %v952
        %1428 = vst [vmem:[%s1400] ss:$4 sm:$0xff] %v887
        %1430 = vst [vmem:[%s1403] ss:$4 sm:$0xff] %v913
        %1432 = vst [vmem:[%s1406] ss:$4 sm:$0xff] %v939
        %1434 = vst [vmem:[%s1409] ss:$4 sm:$0xff] %v965
        %v1435 = vld.sshfl [vmem:[#allocation1] sm:$0xff pattern:$0x73625140]
        %v1436 = vld.sshfl [vmem:[#allocation1 + $0x8] sm:$0xff pattern:$0x73625140]
        %v1437 = vld.sshfl [vmem:[#allocation1 + $0x10] sm:$0xff pattern:$0x73625140]
        %v1438 = vld.sshfl [vmem:[#allocation1 + $0x18] sm:$0xff pattern:$0x73625140]
        %v1439 = vld.sshfl [vmem:[#allocation1 + $0x20] sm:$0xff pattern:$0x73625140]
        %v1440 = vld.sshfl [vmem:[#allocation1 + $0x28] sm:$0xff pattern:$0x73625140]
        %v1441 = vld.sshfl [vmem:[#allocation1 + $0x30] sm:$0xff pattern:$0x73625140]
        %v1442 = vld.sshfl [vmem:[#allocation1 + $0x38] sm:$0xff pattern:$0x73625140]
        %1460 = vst [vmem:[#allocation1] ss:$4 sm:$0xff] %v992
        %s1462 = scalar_lea.vmem [#allocation1], 1
        %1463 = vst [vmem:[%s1462] ss:$4 sm:$0xff] %v1000
        %s1465 = scalar_lea.vmem [#allocation1], 2
        %1466 = vst [vmem:[%s1465] ss:$4 sm:$0xff] %v1008
        %s1468 = scalar_lea.vmem [#allocation1], 3
        %1469 = vst [vmem:[%s1468] ss:$4 sm:$0xff] %v1016
        %s1471 = scalar_lea.vmem [#allocation1], 32
        %1472 = vst [vmem:[%s1471] ss:$4 sm:$0xff] %v996
        %s1474 = scalar_lea.vmem [#allocation1], 33
        %1475 = vst [vmem:[%s1474] ss:$4 sm:$0xff] %v1004
        %s1477 = scalar_lea.vmem [#allocation1], 34
        %1478 = vst [vmem:[%s1477] ss:$4 sm:$0xff] %v1012
        %s1480 = scalar_lea.vmem [#allocation1], 35
        %1481 = vst [vmem:[%s1480] ss:$4 sm:$0xff] %v1020
        %v1482 = vld.sshfl [vmem:[#allocation1] sm:$0xff pattern:$0x73625140]
        %v1483 = vld.sshfl [vmem:[#allocation1 + $0x8] sm:$0xff pattern:$0x73625140]
        %v1484 = vld.sshfl [vmem:[#allocation1 + $0x10] sm:$0xff pattern:$0x73625140]
        %v1485 = vld.sshfl [vmem:[#allocation1 + $0x18] sm:$0xff pattern:$0x73625140]
        %v1486 = vld.sshfl [vmem:[#allocation1 + $0x20] sm:$0xff pattern:$0x73625140]
        %v1487 = vld.sshfl [vmem:[#allocation1 + $0x28] sm:$0xff pattern:$0x73625140]
        %v1488 = vld.sshfl [vmem:[#allocation1 + $0x30] sm:$0xff pattern:$0x73625140]
        %v1489 = vld.sshfl [vmem:[#allocation1 + $0x38] sm:$0xff pattern:$0x73625140]
        %1491 = vst [vmem:[#allocation1] ss:$4 sm:$0xff] %v1024
        %1493 = vst [vmem:[%s1462] ss:$4 sm:$0xff] %v1032
        %1495 = vst [vmem:[%s1465] ss:$4 sm:$0xff] %v1040
        %1497 = vst [vmem:[%s1468] ss:$4 sm:$0xff] %v1048
        %1499 = vst [vmem:[%s1471] ss:$4 sm:$0xff] %v1028
        %1501 = vst [vmem:[%s1474] ss:$4 sm:$0xff] %v1036
        %1503 = vst [vmem:[%s1477] ss:$4 sm:$0xff] %v1044
        %1505 = vst [vmem:[%s1480] ss:$4 sm:$0xff] %v1052
        %v1506 = vld.sshfl [vmem:[#allocation1] sm:$0xff pattern:$0x73625140]
        %v1507 = vld.sshfl [vmem:[#allocation1 + $0x8] sm:$0xff pattern:$0x73625140]
        %v1508 = vld.sshfl [vmem:[#allocation1 + $0x10] sm:$0xff pattern:$0x73625140]
        %v1509 = vld.sshfl [vmem:[#allocation1 + $0x18] sm:$0xff pattern:$0x73625140]
        %v1510 = vld.sshfl [vmem:[#allocation1 + $0x20] sm:$0xff pattern:$0x73625140]
        %v1511 = vld.sshfl [vmem:[#allocation1 + $0x28] sm:$0xff pattern:$0x73625140]
        %v1512 = vld.sshfl [vmem:[#allocation1 + $0x30] sm:$0xff pattern:$0x73625140]
        %v1513 = vld.sshfl [vmem:[#allocation1 + $0x38] sm:$0xff pattern:$0x73625140]
        %1530 = vst [vmem:[#allocation1] ss:$4 sm:$0xff] %v576
        %s1531 = scalar_lea.vmem [#allocation1], 1
        %1532 = vst [vmem:[%s1531] ss:$4 sm:$0xff] %v590
        %s1533 = scalar_lea.vmem [#allocation1], 2
        %1534 = vst [vmem:[%s1533] ss:$4 sm:$0xff] %v604
        %s1535 = scalar_lea.vmem [#allocation1], 3
        %1536 = vst [vmem:[%s1535] ss:$4 sm:$0xff] %v1079
        %s1537 = scalar_lea.vmem [#allocation1], 32
        %1538 = vst [vmem:[%s1537] ss:$4 sm:$0xff] %v583
        %s1539 = scalar_lea.vmem [#allocation1], 33
        %1540 = vst [vmem:[%s1539] ss:$4 sm:$0xff] %v597
        %s1541 = scalar_lea.vmem [#allocation1], 34
        %1542 = vst [vmem:[%s1541] ss:$4 sm:$0xff] %v611
        %s1543 = scalar_lea.vmem [#allocation1], 35
        %1544 = vst [vmem:[%s1543] ss:$4 sm:$0xff] %v1086
        %v1545 = vld.sshfl [vmem:[#allocation1] sm:$0xff pattern:$0x73625140]
        %v1546 = vld.sshfl [vmem:[#allocation1 + $0x8] sm:$0xff pattern:$0x73625140]
        %v1547 = vld.sshfl [vmem:[#allocation1 + $0x10] sm:$0xff pattern:$0x73625140]
        %v1548 = vld.sshfl [vmem:[#allocation1 + $0x18] sm:$0xff pattern:$0x73625140]
        %v1549 = vld.sshfl [vmem:[#allocation1 + $0x20] sm:$0xff pattern:$0x73625140]
        %v1550 = vld.sshfl [vmem:[#allocation1 + $0x28] sm:$0xff pattern:$0x73625140]
        %v1551 = vld.sshfl [vmem:[#allocation1 + $0x30] sm:$0xff pattern:$0x73625140]
        %v1552 = vld.sshfl [vmem:[#allocation1 + $0x38] sm:$0xff pattern:$0x73625140]
        %1553 = vst [vmem:[#allocation1] ss:$4 sm:$0xff] %v632
        %1554 = vst [vmem:[%s1531] ss:$4 sm:$0xff] %v646
        %1555 = vst [vmem:[%s1533] ss:$4 sm:$0xff] %v660
        %1556 = vst [vmem:[%s1535] ss:$4 sm:$0xff] %v1093
        %1557 = vst [vmem:[%s1537] ss:$4 sm:$0xff] %v639
        %1558 = vst [vmem:[%s1539] ss:$4 sm:$0xff] %v653
        %1559 = vst [vmem:[%s1541] ss:$4 sm:$0xff] %v667
        %1560 = vst [vmem:[%s1543] ss:$4 sm:$0xff] %v1100
        %v1561 = vld.sshfl [vmem:[#allocation1] sm:$0xff pattern:$0x73625140]
        %v1562 = vld.sshfl [vmem:[#allocation1 + $0x8] sm:$0xff pattern:$0x73625140]
        %v1563 = vld.sshfl [vmem:[#allocation1 + $0x10] sm:$0xff pattern:$0x73625140]
        %v1564 = vld.sshfl [vmem:[#allocation1 + $0x18] sm:$0xff pattern:$0x73625140]
        %v1565 = vld.sshfl [vmem:[#allocation1 + $0x20] sm:$0xff pattern:$0x73625140]
        %v1566 = vld.sshfl [vmem:[#allocation1 + $0x28] sm:$0xff pattern:$0x73625140]
        %v1567 = vld.sshfl [vmem:[#allocation1 + $0x30] sm:$0xff pattern:$0x73625140]
        %v1568 = vld.sshfl [vmem:[#allocation1 + $0x38] sm:$0xff pattern:$0x73625140]
        %1585 = vst [vmem:[#allocation1] ss:$4 sm:$0xff] %v796
        %s1586 = scalar_lea.vmem [#allocation1], 1
        %1587 = vst [vmem:[%s1586] ss:$4 sm:$0xff] %v822
        %s1588 = scalar_lea.vmem [#allocation1], 2
        %1589 = vst [vmem:[%s1588] ss:$4 sm:$0xff] %v848
        %s1591 = scalar_lea.vmem [#allocation1], 3
        %1592 = vst [vmem:[%s1591] ss:$4 sm:$0xff] %v1133
        %s1593 = scalar_lea.vmem [#allocation1], 32
        %1594 = vst [vmem:[%s1593] ss:$4 sm:$0xff] %v809
        %s1595 = scalar_lea.vmem [#allocation1], 33
        %1596 = vst [vmem:[%s1595] ss:$4 sm:$0xff] %v835
        %s1597 = scalar_lea.vmem [#allocation1], 34
        %1598 = vst [vmem:[%s1597] ss:$4 sm:$0xff] %v861
        %s1600 = scalar_lea.vmem [#allocation1], 35
        %1601 = vst [vmem:[%s1600] ss:$4 sm:$0xff] %v1146
        %v1602 = vld.sshfl [vmem:[#allocation1] sm:$0xff pattern:$0x73625140]
        %v1603 = vld.sshfl [vmem:[#allocation1 + $0x8] sm:$0xff pattern:$0x73625140]
        %v1604 = vld.sshfl [vmem:[#allocation1 + $0x10] sm:$0xff pattern:$0x73625140]
        %v1605 = vld.sshfl [vmem:[#allocation1 + $0x18] sm:$0xff pattern:$0x73625140]
        %v1606 = vld.sshfl [vmem:[#allocation1 + $0x20] sm:$0xff pattern:$0x73625140]
        %v1607 = vld.sshfl [vmem:[#allocation1 + $0x28] sm:$0xff pattern:$0x73625140]
        %v1608 = vld.sshfl [vmem:[#allocation1 + $0x30] sm:$0xff pattern:$0x73625140]
        %v1609 = vld.sshfl [vmem:[#allocation1 + $0x38] sm:$0xff pattern:$0x73625140]
        %1610 = vst [vmem:[#allocation1] ss:$4 sm:$0xff] %v900
        %1611 = vst [vmem:[%s1586] ss:$4 sm:$0xff] %v926
        %1612 = vst [vmem:[%s1588] ss:$4 sm:$0xff] %v952
        %1614 = vst [vmem:[%s1591] ss:$4 sm:$0xff] %v1159
        %1615 = vst [vmem:[%s1593] ss:$4 sm:$0xff] %v913
        %1616 = vst [vmem:[%s1595] ss:$4 sm:$0xff] %v939
        %1617 = vst [vmem:[%s1597] ss:$4 sm:$0xff] %v965
        %1619 = vst [vmem:[%s1600] ss:$4 sm:$0xff] %v1172
        %v1620 = vld.sshfl [vmem:[#allocation1] sm:$0xff pattern:$0x73625140]
        %v1621 = vld.sshfl [vmem:[#allocation1 + $0x8] sm:$0xff pattern:$0x73625140]
        %v1622 = vld.sshfl [vmem:[#allocation1 + $0x10] sm:$0xff pattern:$0x73625140]
        %v1623 = vld.sshfl [vmem:[#allocation1 + $0x18] sm:$0xff pattern:$0x73625140]
        %v1624 = vld.sshfl [vmem:[#allocation1 + $0x20] sm:$0xff pattern:$0x73625140]
        %v1625 = vld.sshfl [vmem:[#allocation1 + $0x28] sm:$0xff pattern:$0x73625140]
        %v1626 = vld.sshfl [vmem:[#allocation1 + $0x30] sm:$0xff pattern:$0x73625140]
        %v1627 = vld.sshfl [vmem:[#allocation1 + $0x38] sm:$0xff pattern:$0x73625140]
        %1644 = vst [vmem:[#allocation1] ss:$4 sm:$0xff] %v1000
        %s1645 = scalar_lea.vmem [#allocation1], 1
        %1646 = vst [vmem:[%s1645] ss:$4 sm:$0xff] %v1008
        %s1647 = scalar_lea.vmem [#allocation1], 2
        %1648 = vst [vmem:[%s1647] ss:$4 sm:$0xff] %v1016
        %s1650 = scalar_lea.vmem [#allocation1], 3
        %1651 = vst [vmem:[%s1650] ss:$4 sm:$0xff] %v1180
        %s1652 = scalar_lea.vmem [#allocation1], 32
        %1653 = vst [vmem:[%s1652] ss:$4 sm:$0xff] %v1004
        %s1654 = scalar_lea.vmem [#allocation1], 33
        %1655 = vst [vmem:[%s1654] ss:$4 sm:$0xff] %v1012
        %s1656 = scalar_lea.vmem [#allocation1], 34
        %1657 = vst [vmem:[%s1656] ss:$4 sm:$0xff] %v1020
        %s1659 = scalar_lea.vmem [#allocation1], 35
        %1660 = vst [vmem:[%s1659] ss:$4 sm:$0xff] %v1184
        %v1661 = vld.sshfl [vmem:[#allocation1] sm:$0xff pattern:$0x73625140]
        %v1662 = vld.sshfl [vmem:[#allocation1 + $0x8] sm:$0xff pattern:$0x73625140]
        %v1663 = vld.sshfl [vmem:[#allocation1 + $0x10] sm:$0xff pattern:$0x73625140]
        %v1664 = vld.sshfl [vmem:[#allocation1 + $0x18] sm:$0xff pattern:$0x73625140]
        %v1665 = vld.sshfl [vmem:[#allocation1 + $0x20] sm:$0xff pattern:$0x73625140]
        %v1666 = vld.sshfl [vmem:[#allocation1 + $0x28] sm:$0xff pattern:$0x73625140]
        %v1667 = vld.sshfl [vmem:[#allocation1 + $0x30] sm:$0xff pattern:$0x73625140]
        %v1668 = vld.sshfl [vmem:[#allocation1 + $0x38] sm:$0xff pattern:$0x73625140]
        %1669 = vst [vmem:[#allocation1] ss:$4 sm:$0xff] %v1032
        %1670 = vst [vmem:[%s1645] ss:$4 sm:$0xff] %v1040
        %1671 = vst [vmem:[%s1647] ss:$4 sm:$0xff] %v1048
        %1673 = vst [vmem:[%s1650] ss:$4 sm:$0xff] %v1188
        %1674 = vst [vmem:[%s1652] ss:$4 sm:$0xff] %v1036
        %1675 = vst [vmem:[%s1654] ss:$4 sm:$0xff] %v1044
        %1676 = vst [vmem:[%s1656] ss:$4 sm:$0xff] %v1052
        %1678 = vst [vmem:[%s1659] ss:$4 sm:$0xff] %v1192
        %v1679 = vld.sshfl [vmem:[#allocation1] sm:$0xff pattern:$0x73625140]
        %v1680 = vld.sshfl [vmem:[#allocation1 + $0x8] sm:$0xff pattern:$0x73625140]
        %v1681 = vld.sshfl [vmem:[#allocation1 + $0x10] sm:$0xff pattern:$0x73625140]
        %v1682 = vld.sshfl [vmem:[#allocation1 + $0x18] sm:$0xff pattern:$0x73625140]
        %v1683 = vld.sshfl [vmem:[#allocation1 + $0x20] sm:$0xff pattern:$0x73625140]
        %v1684 = vld.sshfl [vmem:[#allocation1 + $0x28] sm:$0xff pattern:$0x73625140]
        %v1685 = vld.sshfl [vmem:[#allocation1 + $0x30] sm:$0xff pattern:$0x73625140]
        %v1686 = vld.sshfl [vmem:[#allocation1 + $0x38] sm:$0xff pattern:$0x73625140]
        %1703 = vst [vmem:[#allocation1] ss:$4 sm:$0xff] %v590
        %s1704 = scalar_lea.vmem [#allocation1], 1
        %1705 = vst [vmem:[%s1704] ss:$4 sm:$0xff] %v604
        %s1706 = scalar_lea.vmem [#allocation1], 2
        %1707 = vst [vmem:[%s1706] ss:$4 sm:$0xff] %v1079
        %s1708 = scalar_lea.vmem [#allocation1], 3
        %1709 = vst [vmem:[%s1708] ss:$4 sm:$0xff] %v1219
        %s1710 = scalar_lea.vmem [#allocation1], 32
        %1711 = vst [vmem:[%s1710] ss:$4 sm:$0xff] %v597
        %s1712 = scalar_lea.vmem [#allocation1], 33
        %1713 = vst [vmem:[%s1712] ss:$4 sm:$0xff] %v611
        %s1714 = scalar_lea.vmem [#allocation1], 34
        %1715 = vst [vmem:[%s1714] ss:$4 sm:$0xff] %v1086
        %s1716 = scalar_lea.vmem [#allocation1], 35
        %1717 = vst [vmem:[%s1716] ss:$4 sm:$0xff] %v1226
        %v1718 = vld.sshfl [vmem:[#allocation1] sm:$0xff pattern:$0x73625140]
        %v1719 = vld.sshfl [vmem:[#allocation1 + $0x8] sm:$0xff pattern:$0x73625140]
        %v1720 = vld.sshfl [vmem:[#allocation1 + $0x10] sm:$0xff pattern:$0x73625140]
        %v1721 = vld.sshfl [vmem:[#allocation1 + $0x18] sm:$0xff pattern:$0x73625140]
        %v1722 = vld.sshfl [vmem:[#allocation1 + $0x20] sm:$0xff pattern:$0x73625140]
        %v1723 = vld.sshfl [vmem:[#allocation1 + $0x28] sm:$0xff pattern:$0x73625140]
        %v1724 = vld.sshfl [vmem:[#allocation1 + $0x30] sm:$0xff pattern:$0x73625140]
        %v1725 = vld.sshfl [vmem:[#allocation1 + $0x38] sm:$0xff pattern:$0x73625140]
        %1726 = vst [vmem:[#allocation1] ss:$4 sm:$0xff] %v646
        %1727 = vst [vmem:[%s1704] ss:$4 sm:$0xff] %v660
        %1728 = vst [vmem:[%s1706] ss:$4 sm:$0xff] %v1093
        %1729 = vst [vmem:[%s1708] ss:$4 sm:$0xff] %v1233
        %1730 = vst [vmem:[%s1710] ss:$4 sm:$0xff] %v653
        %1731 = vst [vmem:[%s1712] ss:$4 sm:$0xff] %v667
        %1732 = vst [vmem:[%s1714] ss:$4 sm:$0xff] %v1100
        %1733 = vst [vmem:[%s1716] ss:$4 sm:$0xff] %v1240
        %v1734 = vld.sshfl [vmem:[#allocation1] sm:$0xff pattern:$0x73625140]
        %v1735 = vld.sshfl [vmem:[#allocation1 + $0x8] sm:$0xff pattern:$0x73625140]
        %v1736 = vld.sshfl [vmem:[#allocation1 + $0x10] sm:$0xff pattern:$0x73625140]
        %v1737 = vld.sshfl [vmem:[#allocation1 + $0x18] sm:$0xff pattern:$0x73625140]
        %v1738 = vld.sshfl [vmem:[#allocation1 + $0x20] sm:$0xff pattern:$0x73625140]
        %v1739 = vld.sshfl [vmem:[#allocation1 + $0x28] sm:$0xff pattern:$0x73625140]
        %v1740 = vld.sshfl [vmem:[#allocation1 + $0x30] sm:$0xff pattern:$0x73625140]
        %v1741 = vld.sshfl [vmem:[#allocation1 + $0x38] sm:$0xff pattern:$0x73625140]
        %1758 = vst [vmem:[#allocation1] ss:$4 sm:$0xff] %v822
        %s1759 = scalar_lea.vmem [#allocation1], 1
        %1760 = vst [vmem:[%s1759] ss:$4 sm:$0xff] %v848
        %s1761 = scalar_lea.vmem [#allocation1], 2
        %1762 = vst [vmem:[%s1761] ss:$4 sm:$0xff] %v1133
        %s1764 = scalar_lea.vmem [#allocation1], 3
        %1765 = vst [vmem:[%s1764] ss:$4 sm:$0xff] %v1273
        %s1766 = scalar_lea.vmem [#allocation1], 32
        %1767 = vst [vmem:[%s1766] ss:$4 sm:$0xff] %v835
        %s1768 = scalar_lea.vmem [#allocation1], 33
        %1769 = vst [vmem:[%s1768] ss:$4 sm:$0xff] %v861
        %s1770 = scalar_lea.vmem [#allocation1], 34
        %1771 = vst [vmem:[%s1770] ss:$4 sm:$0xff] %v1146
        %s1773 = scalar_lea.vmem [#allocation1], 35
        %1774 = vst [vmem:[%s1773] ss:$4 sm:$0xff] %v1286
        %v1775 = vld.sshfl [vmem:[#allocation1] sm:$0xff pattern:$0x73625140]
        %v1776 = vld.sshfl [vmem:[#allocation1 + $0x8] sm:$0xff pattern:$0x73625140]
        %v1777 = vld.sshfl [vmem:[#allocation1 + $0x10] sm:$0xff pattern:$0x73625140]
        %v1778 = vld.sshfl [vmem:[#allocation1 + $0x18] sm:$0xff pattern:$0x73625140]
        %v1779 = vld.sshfl [vmem:[#allocation1 + $0x20] sm:$0xff pattern:$0x73625140]
        %v1780 = vld.sshfl [vmem:[#allocation1 + $0x28] sm:$0xff pattern:$0x73625140]
        %v1781 = vld.sshfl [vmem:[#allocation1 + $0x30] sm:$0xff pattern:$0x73625140]
        %v1782 = vld.sshfl [vmem:[#allocation1 + $0x38] sm:$0xff pattern:$0x73625140]
        %1783 = vst [vmem:[#allocation1] ss:$4 sm:$0xff] %v926
        %1784 = vst [vmem:[%s1759] ss:$4 sm:$0xff] %v952
        %1785 = vst [vmem:[%s1761] ss:$4 sm:$0xff] %v1159
        %1787 = vst [vmem:[%s1764] ss:$4 sm:$0xff] %v1299
        %1788 = vst [vmem:[%s1766] ss:$4 sm:$0xff] %v939
        %1789 = vst [vmem:[%s1768] ss:$4 sm:$0xff] %v965
        %1790 = vst [vmem:[%s1770] ss:$4 sm:$0xff] %v1172
        %1792 = vst [vmem:[%s1773] ss:$4 sm:$0xff] %v1312
        %v1793 = vld.sshfl [vmem:[#allocation1] sm:$0xff pattern:$0x73625140]
        %v1794 = vld.sshfl [vmem:[#allocation1 + $0x8] sm:$0xff pattern:$0x73625140]
        %v1795 = vld.sshfl [vmem:[#allocation1 + $0x10] sm:$0xff pattern:$0x73625140]
        %v1796 = vld.sshfl [vmem:[#allocation1 + $0x18] sm:$0xff pattern:$0x73625140]
        %v1797 = vld.sshfl [vmem:[#allocation1 + $0x20] sm:$0xff pattern:$0x73625140]
        %v1798 = vld.sshfl [vmem:[#allocation1 + $0x28] sm:$0xff pattern:$0x73625140]
        %v1799 = vld.sshfl [vmem:[#allocation1 + $0x30] sm:$0xff pattern:$0x73625140]
        %v1800 = vld.sshfl [vmem:[#allocation1 + $0x38] sm:$0xff pattern:$0x73625140]
        %1817 = vst [vmem:[#allocation1] ss:$4 sm:$0xff] %v1008
        %s1818 = scalar_lea.vmem [#allocation1], 1
        %1819 = vst [vmem:[%s1818] ss:$4 sm:$0xff] %v1016
        %s1820 = scalar_lea.vmem [#allocation1], 2
        %1821 = vst [vmem:[%s1820] ss:$4 sm:$0xff] %v1180
        %s1823 = scalar_lea.vmem [#allocation1], 3
        %1824 = vst [vmem:[%s1823] ss:$4 sm:$0xff] %v1320
        %s1825 = scalar_lea.vmem [#allocation1], 32
        %1826 = vst [vmem:[%s1825] ss:$4 sm:$0xff] %v1012
        %s1827 = scalar_lea.vmem [#allocation1], 33
        %1828 = vst [vmem:[%s1827] ss:$4 sm:$0xff] %v1020
        %s1829 = scalar_lea.vmem [#allocation1], 34
        %1830 = vst [vmem:[%s1829] ss:$4 sm:$0xff] %v1184
        %s1832 = scalar_lea.vmem [#allocation1], 35
        %1833 = vst [vmem:[%s1832] ss:$4 sm:$0xff] %v1324
        %v1834 = vld.sshfl [vmem:[#allocation1] sm:$0xff pattern:$0x73625140]
        %v1835 = vld.sshfl [vmem:[#allocation1 + $0x8] sm:$0xff pattern:$0x73625140]
        %v1836 = vld.sshfl [vmem:[#allocation1 + $0x10] sm:$0xff pattern:$0x73625140]
        %v1837 = vld.sshfl [vmem:[#allocation1 + $0x18] sm:$0xff pattern:$0x73625140]
        %v1838 = vld.sshfl [vmem:[#allocation1 + $0x20] sm:$0xff pattern:$0x73625140]
        %v1839 = vld.sshfl [vmem:[#allocation1 + $0x28] sm:$0xff pattern:$0x73625140]
        %v1840 = vld.sshfl [vmem:[#allocation1 + $0x30] sm:$0xff pattern:$0x73625140]
        %v1841 = vld.sshfl [vmem:[#allocation1 + $0x38] sm:$0xff pattern:$0x73625140]
        %1842 = vst [vmem:[#allocation1] ss:$4 sm:$0xff] %v1040
        %1843 = vst [vmem:[%s1818] ss:$4 sm:$0xff] %v1048
        %1844 = vst [vmem:[%s1820] ss:$4 sm:$0xff] %v1188
        %1846 = vst [vmem:[%s1823] ss:$4 sm:$0xff] %v1328
        %1847 = vst [vmem:[%s1825] ss:$4 sm:$0xff] %v1044
        %1848 = vst [vmem:[%s1827] ss:$4 sm:$0xff] %v1052
        %1849 = vst [vmem:[%s1829] ss:$4 sm:$0xff] %v1192
        %1851 = vst [vmem:[%s1832] ss:$4 sm:$0xff] %v1332
        %v1852 = vld.sshfl [vmem:[#allocation1] sm:$0xff pattern:$0x73625140]
        %v1853 = vld.sshfl [vmem:[#allocation1 + $0x8] sm:$0xff pattern:$0x73625140]
        %v1854 = vld.sshfl [vmem:[#allocation1 + $0x10] sm:$0xff pattern:$0x73625140]
        %v1855 = vld.sshfl [vmem:[#allocation1 + $0x18] sm:$0xff pattern:$0x73625140]
        %v1856 = vld.sshfl [vmem:[#allocation1 + $0x20] sm:$0xff pattern:$0x73625140]
        %v1857 = vld.sshfl [vmem:[#allocation1 + $0x28] sm:$0xff pattern:$0x73625140]
        %v1858 = vld.sshfl [vmem:[#allocation1 + $0x30] sm:$0xff pattern:$0x73625140]
        %v1859 = vld.sshfl [vmem:[#allocation1 + $0x38] sm:$0xff pattern:$0x73625140]
        %v1876 = vld [vmem:[%s191] sm:$0xff]
        %v1877 = vld [vmem:[%s191 + $0x8] sm:$0xff]
        %v1878 = vld [vmem:[%s191 + $0x10] sm:$0xff]
        %v1879 = vld [vmem:[%s191 + $0x18] sm:$0xff]
        %v1880 = vld [vmem:[%s191 + $0x20] sm:$0xff]
        %v1881 = vld [vmem:[%s191 + $0x28] sm:$0xff]
        %v1882 = vld [vmem:[%s191 + $0x30] sm:$0xff]
        %v1883 = vld [vmem:[%s191 + $0x38] sm:$0xff]
        %v1884 = vld [vmem:[%s191 + $0x40] sm:$0xff]
        %v1885 = vld [vmem:[%s191 + $0x48] sm:$0xff]
        %v1886 = vld [vmem:[%s191 + $0x50] sm:$0xff]
        %v1887 = vld [vmem:[%s191 + $0x58] sm:$0xff]
        %v1888 = vld [vmem:[%s191 + $0x60] sm:$0xff]
        %v1889 = vld [vmem:[%s191 + $0x68] sm:$0xff]
        %v1890 = vld [vmem:[%s191 + $0x70] sm:$0xff]
        %v1891 = vld [vmem:[%s191 + $0x78] sm:$0xff]
        %v1892 = vld [vmem:[%s191 + $0x80] sm:$0xff]
        %v1893 = vld [vmem:[%s191 + $0x88] sm:$0xff]
        %v1894 = vld [vmem:[%s191 + $0x90] sm:$0xff]
        %v1895 = vld [vmem:[%s191 + $0x98] sm:$0xff]
        %v1896 = vld [vmem:[%s191 + $0xa0] sm:$0xff]
        %v1897 = vld [vmem:[%s191 + $0xa8] sm:$0xff]
        %v1898 = vld [vmem:[%s191 + $0xb0] sm:$0xff]
        %v1899 = vld [vmem:[%s191 + $0xb8] sm:$0xff]
        %v1900 = vld [vmem:[%s191 + $0xc0] sm:$0xff]
        %v1901 = vld [vmem:[%s191 + $0xc8] sm:$0xff]
        %v1902 = vld [vmem:[%s191 + $0xd0] sm:$0xff]
        %v1903 = vld [vmem:[%s191 + $0xd8] sm:$0xff]
        %v1904 = vld [vmem:[%s191 + $0xe0] sm:$0xff]
        %v1905 = vld [vmem:[%s191 + $0xe8] sm:$0xff]
        %v1906 = vld [vmem:[%s191 + $0xf0] sm:$0xff]
        %v1907 = vld [vmem:[%s191 + $0xf8] sm:$0xff]
        %v1908 = vld [vmem:[%s191 + $0x100] sm:$0xff]
        %v1909 = vld [vmem:[%s191 + $0x108] sm:$0xff]
        %v1910 = vld [vmem:[%s191 + $0x110] sm:$0xff]
        %v1911 = vld [vmem:[%s191 + $0x118] sm:$0xff]
        %v1912 = vld [vmem:[%s191 + $0x120] sm:$0xff]
        %v1913 = vld [vmem:[%s191 + $0x128] sm:$0xff]
        %v1914 = vld [vmem:[%s191 + $0x130] sm:$0xff]
        %v1915 = vld [vmem:[%s191 + $0x138] sm:$0xff]
        %v1916 = vld [vmem:[%s191 + $0x140] sm:$0xff]
        %v1917 = vld [vmem:[%s191 + $0x148] sm:$0xff]
        %v1918 = vld [vmem:[%s191 + $0x150] sm:$0xff]
        %v1919 = vld [vmem:[%s191 + $0x158] sm:$0xff]
        %v1920 = vld [vmem:[%s191 + $0x160] sm:$0xff]
        %v1921 = vld [vmem:[%s191 + $0x168] sm:$0xff]
        %v1922 = vld [vmem:[%s191 + $0x170] sm:$0xff]
        %v1923 = vld [vmem:[%s191 + $0x178] sm:$0xff]
        %v1924 = vld [vmem:[%s191 + $0x180] sm:$0xff]
        %v1925 = vld [vmem:[%s191 + $0x188] sm:$0xff]
        %v1926 = vld [vmem:[%s191 + $0x190] sm:$0xff]
        %v1927 = vld [vmem:[%s191 + $0x198] sm:$0xff]
        %v1928 = vld [vmem:[%s191 + $0x1a0] sm:$0xff]
        %v1929 = vld [vmem:[%s191 + $0x1a8] sm:$0xff]
        %v1930 = vld [vmem:[%s191 + $0x1b0] sm:$0xff]
        %v1931 = vld [vmem:[%s191 + $0x1b8] sm:$0xff]
        %v1932 = vld [vmem:[%s191 + $0x1c0] sm:$0xff]
        %v1933 = vld [vmem:[%s191 + $0x1c8] sm:$0xff]
        %v1934 = vld [vmem:[%s191 + $0x1d0] sm:$0xff]
        %v1935 = vld [vmem:[%s191 + $0x1d8] sm:$0xff]
        %v1936 = vld [vmem:[%s191 + $0x1e0] sm:$0xff]
        %v1937 = vld [vmem:[%s191 + $0x1e8] sm:$0xff]
        %v1938 = vld [vmem:[%s191 + $0x1f0] sm:$0xff]
        %v1939 = vld [vmem:[%s191 + $0x1f8] sm:$0xff]
        %v1940 = vld [vmem:[%s191 + $0x200] sm:$0xff]
        %v1941 = vld [vmem:[%s191 + $0x208] sm:$0xff]
        %v1942 = vld [vmem:[%s191 + $0x210] sm:$0xff]
        %v1943 = vld [vmem:[%s191 + $0x218] sm:$0xff]
        %v1944 = vld [vmem:[%s191 + $0x220] sm:$0xff]
        %v1945 = vld [vmem:[%s191 + $0x228] sm:$0xff]
        %v1946 = vld [vmem:[%s191 + $0x230] sm:$0xff]
        %v1947 = vld [vmem:[%s191 + $0x238] sm:$0xff]
        %v1948 = vld [vmem:[%s191 + $0x240] sm:$0xff]
        %v1949 = vld [vmem:[%s191 + $0x248] sm:$0xff]
        %v1950 = vld [vmem:[%s191 + $0x250] sm:$0xff]
        %v1951 = vld [vmem:[%s191 + $0x258] sm:$0xff]
        %v1952 = vld [vmem:[%s191 + $0x260] sm:$0xff]
        %v1953 = vld [vmem:[%s191 + $0x268] sm:$0xff]
        %v1954 = vld [vmem:[%s191 + $0x270] sm:$0xff]
        %v1955 = vld [vmem:[%s191 + $0x278] sm:$0xff]
        %v1956 = vld [vmem:[%s191 + $0x280] sm:$0xff]
        %v1957 = vld [vmem:[%s191 + $0x288] sm:$0xff]
        %v1958 = vld [vmem:[%s191 + $0x290] sm:$0xff]
        %v1959 = vld [vmem:[%s191 + $0x298] sm:$0xff]
        %v1960 = vld [vmem:[%s191 + $0x2a0] sm:$0xff]
        %v1961 = vld [vmem:[%s191 + $0x2a8] sm:$0xff]
        %v1962 = vld [vmem:[%s191 + $0x2b0] sm:$0xff]
        %v1963 = vld [vmem:[%s191 + $0x2b8] sm:$0xff]
        %v1964 = vld [vmem:[%s191 + $0x2c0] sm:$0xff]
        %v1965 = vld [vmem:[%s191 + $0x2c8] sm:$0xff]
        %v1966 = vld [vmem:[%s191 + $0x2d0] sm:$0xff]
        %v1967 = vld [vmem:[%s191 + $0x2d8] sm:$0xff]
        %v1968 = vld [vmem:[%s191 + $0x2e0] sm:$0xff]
        %v1969 = vld [vmem:[%s191 + $0x2e8] sm:$0xff]
        %v1970 = vld [vmem:[%s191 + $0x2f0] sm:$0xff]
        %v1971 = vld [vmem:[%s191 + $0x2f8] sm:$0xff]
        %v1972 = vld [vmem:[%s191 + $0x300] sm:$0xff]
        %v1973 = vld [vmem:[%s191 + $0x308] sm:$0xff]
        %v1974 = vld [vmem:[%s191 + $0x310] sm:$0xff]
        %v1975 = vld [vmem:[%s191 + $0x318] sm:$0xff]
        %v1976 = vld [vmem:[%s191 + $0x320] sm:$0xff]
        %v1977 = vld [vmem:[%s191 + $0x328] sm:$0xff]
        %v1978 = vld [vmem:[%s191 + $0x330] sm:$0xff]
        %v1979 = vld [vmem:[%s191 + $0x338] sm:$0xff]
        %v1980 = vld [vmem:[%s191 + $0x340] sm:$0xff]
        %v1981 = vld [vmem:[%s191 + $0x348] sm:$0xff]
        %v1982 = vld [vmem:[%s191 + $0x350] sm:$0xff]
        %v1983 = vld [vmem:[%s191 + $0x358] sm:$0xff]
        %v1984 = vld [vmem:[%s191 + $0x360] sm:$0xff]
        %v1985 = vld [vmem:[%s191 + $0x368] sm:$0xff]
        %v1986 = vld [vmem:[%s191 + $0x370] sm:$0xff]
        %v1987 = vld [vmem:[%s191 + $0x378] sm:$0xff]
        %v1988 = vld [vmem:[%s191 + $0x380] sm:$0xff]
        %v1989 = vld [vmem:[%s191 + $0x388] sm:$0xff]
        %v1990 = vld [vmem:[%s191 + $0x390] sm:$0xff]
        %v1991 = vld [vmem:[%s191 + $0x398] sm:$0xff]
        %v1992 = vld [vmem:[%s191 + $0x3a0] sm:$0xff]
        %v1993 = vld [vmem:[%s191 + $0x3a8] sm:$0xff]
        %v1994 = vld [vmem:[%s191 + $0x3b0] sm:$0xff]
        %v1995 = vld [vmem:[%s191 + $0x3b8] sm:$0xff]
        %v1996 = vld [vmem:[%s191 + $0x3c0] sm:$0xff]
        %v1997 = vld [vmem:[%s191 + $0x3c8] sm:$0xff]
        %v1998 = vld [vmem:[%s191 + $0x3d0] sm:$0xff]
        %v1999 = vld [vmem:[%s191 + $0x3d8] sm:$0xff]
        %v2000 = vld [vmem:[%s191 + $0x3e0] sm:$0xff]
        %v2001 = vld [vmem:[%s191 + $0x3e8] sm:$0xff]
        %v2002 = vld [vmem:[%s191 + $0x3f0] sm:$0xff]
        %v2003 = vld [vmem:[%s191 + $0x3f8] sm:$0xff]
        %v2004 = vld [vmem:[%s191 + $0x400] sm:$0xff]
        %v2005 = vld [vmem:[%s191 + $0x408] sm:$0xff]
        %v2006 = vld [vmem:[%s191 + $0x410] sm:$0xff]
        %v2007 = vld [vmem:[%s191 + $0x418] sm:$0xff]
        %v2008 = vld [vmem:[%s191 + $0x420] sm:$0xff]
        %v2009 = vld [vmem:[%s191 + $0x428] sm:$0xff]
        %v2010 = vld [vmem:[%s191 + $0x430] sm:$0xff]
        %v2011 = vld [vmem:[%s191 + $0x438] sm:$0xff]
        %v2012 = vld [vmem:[%s191 + $0x440] sm:$0xff]
        %v2013 = vld [vmem:[%s191 + $0x448] sm:$0xff]
        %v2014 = vld [vmem:[%s191 + $0x450] sm:$0xff]
        %v2015 = vld [vmem:[%s191 + $0x458] sm:$0xff]
        %v2016 = vld [vmem:[%s191 + $0x460] sm:$0xff]
        %v2017 = vld [vmem:[%s191 + $0x468] sm:$0xff]
        %v2018 = vld [vmem:[%s191 + $0x470] sm:$0xff]
        %v2019 = vld [vmem:[%s191 + $0x478] sm:$0xff]
        %v2020 = vld [vmem:[%s191 + $0x480] sm:$0xff]
        %v2021 = vld [vmem:[%s191 + $0x488] sm:$0xff]
        %v2022 = vld [vmem:[%s191 + $0x490] sm:$0xff]
        %v2023 = vld [vmem:[%s191 + $0x498] sm:$0xff]
        %v2024 = vld [vmem:[%s191 + $0x4a0] sm:$0xff]
        %v2025 = vld [vmem:[%s191 + $0x4a8] sm:$0xff]
        %v2026 = vld [vmem:[%s191 + $0x4b0] sm:$0xff]
        %v2027 = vld [vmem:[%s191 + $0x4b8] sm:$0xff]
        %v2028 = vld [vmem:[%s191 + $0x4c0] sm:$0xff]
        %v2029 = vld [vmem:[%s191 + $0x4c8] sm:$0xff]
        %v2030 = vld [vmem:[%s191 + $0x4d0] sm:$0xff]
        %v2031 = vld [vmem:[%s191 + $0x4d8] sm:$0xff]
        %v2032 = vld [vmem:[%s191 + $0x4e0] sm:$0xff]
        %v2033 = vld [vmem:[%s191 + $0x4e8] sm:$0xff]
        %v2034 = vld [vmem:[%s191 + $0x4f0] sm:$0xff]
        %v2035 = vld [vmem:[%s191 + $0x4f8] sm:$0xff]
        %v2036 = vld [vmem:[%s191 + $0x500] sm:$0xff]
        %v2037 = vld [vmem:[%s191 + $0x508] sm:$0xff]
        %v2038 = vld [vmem:[%s191 + $0x510] sm:$0xff]
        %v2039 = vld [vmem:[%s191 + $0x518] sm:$0xff]
        %v2040 = vld [vmem:[%s191 + $0x520] sm:$0xff]
        %v2041 = vld [vmem:[%s191 + $0x528] sm:$0xff]
        %v2042 = vld [vmem:[%s191 + $0x530] sm:$0xff]
        %v2043 = vld [vmem:[%s191 + $0x538] sm:$0xff]
        %v2044 = vld [vmem:[%s191 + $0x540] sm:$0xff]
        %v2045 = vld [vmem:[%s191 + $0x548] sm:$0xff]
        %v2046 = vld [vmem:[%s191 + $0x550] sm:$0xff]
        %v2047 = vld [vmem:[%s191 + $0x558] sm:$0xff]
        %v2048 = vld [vmem:[%s191 + $0x560] sm:$0xff]
        %v2049 = vld [vmem:[%s191 + $0x568] sm:$0xff]
        %v2050 = vld [vmem:[%s191 + $0x570] sm:$0xff]
        %v2051 = vld [vmem:[%s191 + $0x578] sm:$0xff]
        %v2052 = vld [vmem:[%s191 + $0x580] sm:$0xff]
        %v2053 = vld [vmem:[%s191 + $0x588] sm:$0xff]
        %v2054 = vld [vmem:[%s191 + $0x590] sm:$0xff]
        %v2055 = vld [vmem:[%s191 + $0x598] sm:$0xff]
        %v2056 = vld [vmem:[%s191 + $0x5a0] sm:$0xff]
        %v2057 = vld [vmem:[%s191 + $0x5a8] sm:$0xff]
        %v2058 = vld [vmem:[%s191 + $0x5b0] sm:$0xff]
        %v2059 = vld [vmem:[%s191 + $0x5b8] sm:$0xff]
        %v2060 = vld [vmem:[%s191 + $0x5c0] sm:$0xff]
        %v2061 = vld [vmem:[%s191 + $0x5c8] sm:$0xff]
        %v2062 = vld [vmem:[%s191 + $0x5d0] sm:$0xff]
        %v2063 = vld [vmem:[%s191 + $0x5d8] sm:$0xff]
        %v2064 = vld [vmem:[%s191 + $0x5e0] sm:$0xff]
        %v2065 = vld [vmem:[%s191 + $0x5e8] sm:$0xff]
        %v2066 = vld [vmem:[%s191 + $0x5f0] sm:$0xff]
        %v2067 = vld [vmem:[%s191 + $0x5f8] sm:$0xff]
        %v2068 = vld [vmem:[%s191 + $0x600] sm:$0xff]
        %v2069 = vld [vmem:[%s191 + $0x608] sm:$0xff]
        %v2070 = vld [vmem:[%s191 + $0x610] sm:$0xff]
        %v2071 = vld [vmem:[%s191 + $0x618] sm:$0xff]
        %v2072 = vld [vmem:[%s191 + $0x620] sm:$0xff]
        %v2073 = vld [vmem:[%s191 + $0x628] sm:$0xff]
        %v2074 = vld [vmem:[%s191 + $0x630] sm:$0xff]
        %v2075 = vld [vmem:[%s191 + $0x638] sm:$0xff]
        %v2076 = vld [vmem:[%s191 + $0x640] sm:$0xff]
        %v2077 = vld [vmem:[%s191 + $0x648] sm:$0xff]
        %v2078 = vld [vmem:[%s191 + $0x650] sm:$0xff]
        %v2079 = vld [vmem:[%s191 + $0x658] sm:$0xff]
        %v2080 = vld [vmem:[%s191 + $0x660] sm:$0xff]
        %v2081 = vld [vmem:[%s191 + $0x668] sm:$0xff]
        %v2082 = vld [vmem:[%s191 + $0x670] sm:$0xff]
        %v2083 = vld [vmem:[%s191 + $0x678] sm:$0xff]
        %v2084 = vld [vmem:[%s191 + $0x680] sm:$0xff]
        %v2085 = vld [vmem:[%s191 + $0x688] sm:$0xff]
        %v2086 = vld [vmem:[%s191 + $0x690] sm:$0xff]
        %v2087 = vld [vmem:[%s191 + $0x698] sm:$0xff]
        %v2088 = vld [vmem:[%s191 + $0x6a0] sm:$0xff]
        %v2089 = vld [vmem:[%s191 + $0x6a8] sm:$0xff]
        %v2090 = vld [vmem:[%s191 + $0x6b0] sm:$0xff]
        %v2091 = vld [vmem:[%s191 + $0x6b8] sm:$0xff]
        %v2092 = vld [vmem:[%s191 + $0x6c0] sm:$0xff]
        %v2093 = vld [vmem:[%s191 + $0x6c8] sm:$0xff]
        %v2094 = vld [vmem:[%s191 + $0x6d0] sm:$0xff]
        %v2095 = vld [vmem:[%s191 + $0x6d8] sm:$0xff]
        %v2096 = vld [vmem:[%s191 + $0x6e0] sm:$0xff]
        %v2097 = vld [vmem:[%s191 + $0x6e8] sm:$0xff]
        %v2098 = vld [vmem:[%s191 + $0x6f0] sm:$0xff]
        %v2099 = vld [vmem:[%s191 + $0x6f8] sm:$0xff]
        %v2100 = vld [vmem:[%s191 + $0x700] sm:$0xff]
        %v2101 = vld [vmem:[%s191 + $0x708] sm:$0xff]
        %v2102 = vld [vmem:[%s191 + $0x710] sm:$0xff]
        %v2103 = vld [vmem:[%s191 + $0x718] sm:$0xff]
        %v2104 = vld [vmem:[%s191 + $0x720] sm:$0xff]
        %v2105 = vld [vmem:[%s191 + $0x728] sm:$0xff]
        %v2106 = vld [vmem:[%s191 + $0x730] sm:$0xff]
        %v2107 = vld [vmem:[%s191 + $0x738] sm:$0xff]
        %v2108 = vld [vmem:[%s191 + $0x740] sm:$0xff]
        %v2109 = vld [vmem:[%s191 + $0x748] sm:$0xff]
        %v2110 = vld [vmem:[%s191 + $0x750] sm:$0xff]
        %v2111 = vld [vmem:[%s191 + $0x758] sm:$0xff]
        %v2112 = vld [vmem:[%s191 + $0x760] sm:$0xff]
        %v2113 = vld [vmem:[%s191 + $0x768] sm:$0xff]
        %v2114 = vld [vmem:[%s191 + $0x770] sm:$0xff]
        %v2115 = vld [vmem:[%s191 + $0x778] sm:$0xff]
        %v2116 = vld [vmem:[%s191 + $0x780] sm:$0xff]
        %v2117 = vld [vmem:[%s191 + $0x788] sm:$0xff]
        %v2118 = vld [vmem:[%s191 + $0x790] sm:$0xff]
        %v2119 = vld [vmem:[%s191 + $0x798] sm:$0xff]
        %v2120 = vld [vmem:[%s191 + $0x7a0] sm:$0xff]
        %v2121 = vld [vmem:[%s191 + $0x7a8] sm:$0xff]
        %v2122 = vld [vmem:[%s191 + $0x7b0] sm:$0xff]
        %v2123 = vld [vmem:[%s191 + $0x7b8] sm:$0xff]
        %v2124 = vld [vmem:[%s191 + $0x7c0] sm:$0xff]
        %v2125 = vld [vmem:[%s191 + $0x7c8] sm:$0xff]
        %v2126 = vld [vmem:[%s191 + $0x7d0] sm:$0xff]
        %v2127 = vld [vmem:[%s191 + $0x7d8] sm:$0xff]
        %v2128 = vld [vmem:[%s191 + $0x7e0] sm:$0xff]
        %v2129 = vld [vmem:[%s191 + $0x7e8] sm:$0xff]
        %v2130 = vld [vmem:[%s191 + $0x7f0] sm:$0xff]
        %v2131 = vld [vmem:[%s191 + $0x7f8] sm:$0xff]
        %v2132 = vld [vmem:[%s191 + $0x800] sm:$0xff]
        %v2133 = vld [vmem:[%s191 + $0x808] sm:$0xff]
        %v2134 = vld [vmem:[%s191 + $0x810] sm:$0xff]
        %v2135 = vld [vmem:[%s191 + $0x818] sm:$0xff]
        %v2136 = vld [vmem:[%s191 + $0x820] sm:$0xff]
        %v2137 = vld [vmem:[%s191 + $0x828] sm:$0xff]
        %v2138 = vld [vmem:[%s191 + $0x830] sm:$0xff]
        %v2139 = vld [vmem:[%s191 + $0x838] sm:$0xff]
        %v2140 = vld [vmem:[%s191 + $0x840] sm:$0xff]
        %v2141 = vld [vmem:[%s191 + $0x848] sm:$0xff]
        %v2142 = vld [vmem:[%s191 + $0x850] sm:$0xff]
        %v2143 = vld [vmem:[%s191 + $0x858] sm:$0xff]
        %v2144 = vld [vmem:[%s191 + $0x860] sm:$0xff]
        %v2145 = vld [vmem:[%s191 + $0x868] sm:$0xff]
        %v2146 = vld [vmem:[%s191 + $0x870] sm:$0xff]
        %v2147 = vld [vmem:[%s191 + $0x878] sm:$0xff]
        %v2148 = vld [vmem:[%s191 + $0x880] sm:$0xff]
        %v2149 = vld [vmem:[%s191 + $0x888] sm:$0xff]
        %v2150 = vld [vmem:[%s191 + $0x890] sm:$0xff]
        %v2151 = vld [vmem:[%s191 + $0x898] sm:$0xff]
        %v2152 = vld [vmem:[%s191 + $0x8a0] sm:$0xff]
        %v2153 = vld [vmem:[%s191 + $0x8a8] sm:$0xff]
        %v2154 = vld [vmem:[%s191 + $0x8b0] sm:$0xff]
        %v2155 = vld [vmem:[%s191 + $0x8b8] sm:$0xff]
        %v2156 = vld [vmem:[%s191 + $0x8c0] sm:$0xff]
        %v2157 = vld [vmem:[%s191 + $0x8c8] sm:$0xff]
        %v2158 = vld [vmem:[%s191 + $0x8d0] sm:$0xff]
        %v2159 = vld [vmem:[%s191 + $0x8d8] sm:$0xff]
        %v2160 = vld [vmem:[%s191 + $0x8e0] sm:$0xff]
        %v2161 = vld [vmem:[%s191 + $0x8e8] sm:$0xff]
        %v2162 = vld [vmem:[%s191 + $0x8f0] sm:$0xff]
        %v2163 = vld [vmem:[%s191 + $0x8f8] sm:$0xff]
        %v2164 = vld [vmem:[%s191 + $0x900] sm:$0xff]
        %v2165 = vld [vmem:[%s191 + $0x908] sm:$0xff]
        %v2166 = vld [vmem:[%s191 + $0x910] sm:$0xff]
        %v2167 = vld [vmem:[%s191 + $0x918] sm:$0xff]
        %v2168 = vld [vmem:[%s191 + $0x920] sm:$0xff]
        %v2169 = vld [vmem:[%s191 + $0x928] sm:$0xff]
        %v2170 = vld [vmem:[%s191 + $0x930] sm:$0xff]
        %v2171 = vld [vmem:[%s191 + $0x938] sm:$0xff]
        %v2172 = vld [vmem:[%s191 + $0x940] sm:$0xff]
        %v2173 = vld [vmem:[%s191 + $0x948] sm:$0xff]
        %v2174 = vld [vmem:[%s191 + $0x950] sm:$0xff]
        %v2175 = vld [vmem:[%s191 + $0x958] sm:$0xff]
        %v2176 = vld [vmem:[%s191 + $0x960] sm:$0xff]
        %v2177 = vld [vmem:[%s191 + $0x968] sm:$0xff]
        %v2178 = vld [vmem:[%s191 + $0x970] sm:$0xff]
        %v2179 = vld [vmem:[%s191 + $0x978] sm:$0xff]
        %v2180 = vld [vmem:[%s191 + $0x980] sm:$0xff]
        %v2181 = vld [vmem:[%s191 + $0x988] sm:$0xff]
        %v2182 = vld [vmem:[%s191 + $0x990] sm:$0xff]
        %v2183 = vld [vmem:[%s191 + $0x998] sm:$0xff]
        %v2184 = vld [vmem:[%s191 + $0x9a0] sm:$0xff]
        %v2185 = vld [vmem:[%s191 + $0x9a8] sm:$0xff]
        %v2186 = vld [vmem:[%s191 + $0x9b0] sm:$0xff]
        %v2187 = vld [vmem:[%s191 + $0x9b8] sm:$0xff]
        %v2188 = vld [vmem:[%s191 + $0x9c0] sm:$0xff]
        %v2189 = vld [vmem:[%s191 + $0x9c8] sm:$0xff]
        %v2190 = vld [vmem:[%s191 + $0x9d0] sm:$0xff]
        %v2191 = vld [vmem:[%s191 + $0x9d8] sm:$0xff]
        %v2192 = vld [vmem:[%s191 + $0x9e0] sm:$0xff]
        %v2193 = vld [vmem:[%s191 + $0x9e8] sm:$0xff]
        %v2194 = vld [vmem:[%s191 + $0x9f0] sm:$0xff]
        %v2195 = vld [vmem:[%s191 + $0x9f8] sm:$0xff]
        %v2196 = vld [vmem:[%s191 + $0xa00] sm:$0xff]
        %v2197 = vld [vmem:[%s191 + $0xa08] sm:$0xff]
        %v2198 = vld [vmem:[%s191 + $0xa10] sm:$0xff]
        %v2199 = vld [vmem:[%s191 + $0xa18] sm:$0xff]
        %v2200 = vld [vmem:[%s191 + $0xa20] sm:$0xff]
        %v2201 = vld [vmem:[%s191 + $0xa28] sm:$0xff]
        %v2202 = vld [vmem:[%s191 + $0xa30] sm:$0xff]
        %v2203 = vld [vmem:[%s191 + $0xa38] sm:$0xff]
        %v2204 = vld [vmem:[%s191 + $0xa40] sm:$0xff]
        %v2205 = vld [vmem:[%s191 + $0xa48] sm:$0xff]
        %v2206 = vld [vmem:[%s191 + $0xa50] sm:$0xff]
        %v2207 = vld [vmem:[%s191 + $0xa58] sm:$0xff]
        %v2208 = vld [vmem:[%s191 + $0xa60] sm:$0xff]
        %v2209 = vld [vmem:[%s191 + $0xa68] sm:$0xff]
        %v2210 = vld [vmem:[%s191 + $0xa70] sm:$0xff]
        %v2211 = vld [vmem:[%s191 + $0xa78] sm:$0xff]
        %v2212 = vld [vmem:[%s191 + $0xa80] sm:$0xff]
        %v2213 = vld [vmem:[%s191 + $0xa88] sm:$0xff]
        %v2214 = vld [vmem:[%s191 + $0xa90] sm:$0xff]
        %v2215 = vld [vmem:[%s191 + $0xa98] sm:$0xff]
        %v2216 = vld [vmem:[%s191 + $0xaa0] sm:$0xff]
        %v2217 = vld [vmem:[%s191 + $0xaa8] sm:$0xff]
        %v2218 = vld [vmem:[%s191 + $0xab0] sm:$0xff]
        %v2219 = vld [vmem:[%s191 + $0xab8] sm:$0xff]
        %v2220 = vld [vmem:[%s191 + $0xac0] sm:$0xff]
        %v2221 = vld [vmem:[%s191 + $0xac8] sm:$0xff]
        %v2222 = vld [vmem:[%s191 + $0xad0] sm:$0xff]
        %v2223 = vld [vmem:[%s191 + $0xad8] sm:$0xff]
        %v2224 = vld [vmem:[%s191 + $0xae0] sm:$0xff]
        %v2225 = vld [vmem:[%s191 + $0xae8] sm:$0xff]
        %v2226 = vld [vmem:[%s191 + $0xaf0] sm:$0xff]
        %v2227 = vld [vmem:[%s191 + $0xaf8] sm:$0xff]
        %v2228 = vld [vmem:[%s191 + $0xb00] sm:$0xff]
        %v2229 = vld [vmem:[%s191 + $0xb08] sm:$0xff]
        %v2230 = vld [vmem:[%s191 + $0xb10] sm:$0xff]
        %v2231 = vld [vmem:[%s191 + $0xb18] sm:$0xff]
        %v2232 = vld [vmem:[%s191 + $0xb20] sm:$0xff]
        %v2233 = vld [vmem:[%s191 + $0xb28] sm:$0xff]
        %v2234 = vld [vmem:[%s191 + $0xb30] sm:$0xff]
        %v2235 = vld [vmem:[%s191 + $0xb38] sm:$0xff]
        %v2236 = vld [vmem:[%s191 + $0xb40] sm:$0xff]
        %v2237 = vld [vmem:[%s191 + $0xb48] sm:$0xff]
        %v2238 = vld [vmem:[%s191 + $0xb50] sm:$0xff]
        %v2239 = vld [vmem:[%s191 + $0xb58] sm:$0xff]
        %v2240 = vld [vmem:[%s191 + $0xb60] sm:$0xff]
        %v2241 = vld [vmem:[%s191 + $0xb68] sm:$0xff]
        %v2242 = vld [vmem:[%s191 + $0xb70] sm:$0xff]
        %v2243 = vld [vmem:[%s191 + $0xb78] sm:$0xff]
        %v2244 = vld [vmem:[%s191 + $0xb80] sm:$0xff]
        %v2245 = vld [vmem:[%s191 + $0xb88] sm:$0xff]
        %v2246 = vld [vmem:[%s191 + $0xb90] sm:$0xff]
        %v2247 = vld [vmem:[%s191 + $0xb98] sm:$0xff]
        %v2248 = vld [vmem:[%s191 + $0xba0] sm:$0xff]
        %v2249 = vld [vmem:[%s191 + $0xba8] sm:$0xff]
        %v2250 = vld [vmem:[%s191 + $0xbb0] sm:$0xff]
        %v2251 = vld [vmem:[%s191 + $0xbb8] sm:$0xff]
        %v2252 = vld [vmem:[%s191 + $0xbc0] sm:$0xff]
        %v2253 = vld [vmem:[%s191 + $0xbc8] sm:$0xff]
        %v2254 = vld [vmem:[%s191 + $0xbd0] sm:$0xff]
        %v2255 = vld [vmem:[%s191 + $0xbd8] sm:$0xff]
        %v2256 = vld [vmem:[%s191 + $0xbe0] sm:$0xff]
        %v2257 = vld [vmem:[%s191 + $0xbe8] sm:$0xff]
        %v2258 = vld [vmem:[%s191 + $0xbf0] sm:$0xff]
        %v2259 = vld [vmem:[%s191 + $0xbf8] sm:$0xff]
        %v2260 = vld [vmem:[%s191 + $0xc00] sm:$0xff]
        %v2261 = vld [vmem:[%s191 + $0xc08] sm:$0xff]
        %v2262 = vld [vmem:[%s191 + $0xc10] sm:$0xff]
        %v2263 = vld [vmem:[%s191 + $0xc18] sm:$0xff]
        %v2264 = vld [vmem:[%s191 + $0xc20] sm:$0xff]
        %v2265 = vld [vmem:[%s191 + $0xc28] sm:$0xff]
        %v2266 = vld [vmem:[%s191 + $0xc30] sm:$0xff]
        %v2267 = vld [vmem:[%s191 + $0xc38] sm:$0xff]
        %v2268 = vld [vmem:[%s191 + $0xc40] sm:$0xff]
        %v2269 = vld [vmem:[%s191 + $0xc48] sm:$0xff]
        %v2270 = vld [vmem:[%s191 + $0xc50] sm:$0xff]
        %v2271 = vld [vmem:[%s191 + $0xc58] sm:$0xff]
        %v2272 = vld [vmem:[%s191 + $0xc60] sm:$0xff]
        %v2273 = vld [vmem:[%s191 + $0xc68] sm:$0xff]
        %v2274 = vld [vmem:[%s191 + $0xc70] sm:$0xff]
        %v2275 = vld [vmem:[%s191 + $0xc78] sm:$0xff]
        %v2276 = vld [vmem:[%s191 + $0xc80] sm:$0xff]
        %v2277 = vld [vmem:[%s191 + $0xc88] sm:$0xff]
        %v2278 = vld [vmem:[%s191 + $0xc90] sm:$0xff]
        %v2279 = vld [vmem:[%s191 + $0xc98] sm:$0xff]
        %v2280 = vld [vmem:[%s191 + $0xca0] sm:$0xff]
        %v2281 = vld [vmem:[%s191 + $0xca8] sm:$0xff]
        %v2282 = vld [vmem:[%s191 + $0xcb0] sm:$0xff]
        %v2283 = vld [vmem:[%s191 + $0xcb8] sm:$0xff]
        %v2284 = vld [vmem:[%s191 + $0xcc0] sm:$0xff]
        %v2285 = vld [vmem:[%s191 + $0xcc8] sm:$0xff]
        %v2286 = vld [vmem:[%s191 + $0xcd0] sm:$0xff]
        %v2287 = vld [vmem:[%s191 + $0xcd8] sm:$0xff]
        %v2288 = vld [vmem:[%s191 + $0xce0] sm:$0xff]
        %v2289 = vld [vmem:[%s191 + $0xce8] sm:$0xff]
        %v2290 = vld [vmem:[%s191 + $0xcf0] sm:$0xff]
        %v2291 = vld [vmem:[%s191 + $0xcf8] sm:$0xff]
        %v2292 = vld [vmem:[%s191 + $0xd00] sm:$0xff]
        %v2293 = vld [vmem:[%s191 + $0xd08] sm:$0xff]
        %v2294 = vld [vmem:[%s191 + $0xd10] sm:$0xff]
        %v2295 = vld [vmem:[%s191 + $0xd18] sm:$0xff]
        %v2296 = vld [vmem:[%s191 + $0xd20] sm:$0xff]
        %v2297 = vld [vmem:[%s191 + $0xd28] sm:$0xff]
        %v2298 = vld [vmem:[%s191 + $0xd30] sm:$0xff]
        %v2299 = vld [vmem:[%s191 + $0xd38] sm:$0xff]
        %v2300 = vld [vmem:[%s191 + $0xd40] sm:$0xff]
        %v2301 = vld [vmem:[%s191 + $0xd48] sm:$0xff]
        %v2302 = vld [vmem:[%s191 + $0xd50] sm:$0xff]
        %v2303 = vld [vmem:[%s191 + $0xd58] sm:$0xff]
        %v2304 = vld [vmem:[%s191 + $0xd60] sm:$0xff]
        %v2305 = vld [vmem:[%s191 + $0xd68] sm:$0xff]
        %v2306 = vld [vmem:[%s191 + $0xd70] sm:$0xff]
        %v2307 = vld [vmem:[%s191 + $0xd78] sm:$0xff]
        %v2308 = vld [vmem:[%s191 + $0xd80] sm:$0xff]
        %v2309 = vld [vmem:[%s191 + $0xd88] sm:$0xff]
        %v2310 = vld [vmem:[%s191 + $0xd90] sm:$0xff]
        %v2311 = vld [vmem:[%s191 + $0xd98] sm:$0xff]
        %v2312 = vld [vmem:[%s191 + $0xda0] sm:$0xff]
        %v2313 = vld [vmem:[%s191 + $0xda8] sm:$0xff]
        %v2314 = vld [vmem:[%s191 + $0xdb0] sm:$0xff]
        %v2315 = vld [vmem:[%s191 + $0xdb8] sm:$0xff]
        %v2316 = vld [vmem:[%s191 + $0xdc0] sm:$0xff]
        %v2317 = vld [vmem:[%s191 + $0xdc8] sm:$0xff]
        %v2318 = vld [vmem:[%s191 + $0xdd0] sm:$0xff]
        %v2319 = vld [vmem:[%s191 + $0xdd8] sm:$0xff]
        %v2320 = vld [vmem:[%s191 + $0xde0] sm:$0xff]
        %v2321 = vld [vmem:[%s191 + $0xde8] sm:$0xff]
        %v2322 = vld [vmem:[%s191 + $0xdf0] sm:$0xff]
        %v2323 = vld [vmem:[%s191 + $0xdf8] sm:$0xff]
        %v2324 = vld [vmem:[%s191 + $0xe00] sm:$0xff]
        %v2325 = vld [vmem:[%s191 + $0xe08] sm:$0xff]
        %v2326 = vld [vmem:[%s191 + $0xe10] sm:$0xff]
        %v2327 = vld [vmem:[%s191 + $0xe18] sm:$0xff]
        %v2328 = vld [vmem:[%s191 + $0xe20] sm:$0xff]
        %v2329 = vld [vmem:[%s191 + $0xe28] sm:$0xff]
        %v2330 = vld [vmem:[%s191 + $0xe30] sm:$0xff]
        %v2331 = vld [vmem:[%s191 + $0xe38] sm:$0xff]
        %v2332 = vld [vmem:[%s191 + $0xe40] sm:$0xff]
        %v2333 = vld [vmem:[%s191 + $0xe48] sm:$0xff]
        %v2334 = vld [vmem:[%s191 + $0xe50] sm:$0xff]
        %v2335 = vld [vmem:[%s191 + $0xe58] sm:$0xff]
        %v2336 = vld [vmem:[%s191 + $0xe60] sm:$0xff]
        %v2337 = vld [vmem:[%s191 + $0xe68] sm:$0xff]
        %v2338 = vld [vmem:[%s191 + $0xe70] sm:$0xff]
        %v2339 = vld [vmem:[%s191 + $0xe78] sm:$0xff]
        %v2340 = vld [vmem:[%s191 + $0xe80] sm:$0xff]
        %v2341 = vld [vmem:[%s191 + $0xe88] sm:$0xff]
        %v2342 = vld [vmem:[%s191 + $0xe90] sm:$0xff]
        %v2343 = vld [vmem:[%s191 + $0xe98] sm:$0xff]
        %v2344 = vld [vmem:[%s191 + $0xea0] sm:$0xff]
        %v2345 = vld [vmem:[%s191 + $0xea8] sm:$0xff]
        %v2346 = vld [vmem:[%s191 + $0xeb0] sm:$0xff]
        %v2347 = vld [vmem:[%s191 + $0xeb8] sm:$0xff]
        %v2348 = vld [vmem:[%s191 + $0xec0] sm:$0xff]
        %v2349 = vld [vmem:[%s191 + $0xec8] sm:$0xff]
        %v2350 = vld [vmem:[%s191 + $0xed0] sm:$0xff]
        %v2351 = vld [vmem:[%s191 + $0xed8] sm:$0xff]
        %v2352 = vld [vmem:[%s191 + $0xee0] sm:$0xff]
        %v2353 = vld [vmem:[%s191 + $0xee8] sm:$0xff]
        %v2354 = vld [vmem:[%s191 + $0xef0] sm:$0xff]
        %v2355 = vld [vmem:[%s191 + $0xef8] sm:$0xff]
        %v2356 = vld [vmem:[%s191 + $0xf00] sm:$0xff]
        %v2357 = vld [vmem:[%s191 + $0xf08] sm:$0xff]
        %v2358 = vld [vmem:[%s191 + $0xf10] sm:$0xff]
        %v2359 = vld [vmem:[%s191 + $0xf18] sm:$0xff]
        %v2360 = vld [vmem:[%s191 + $0xf20] sm:$0xff]
        %v2361 = vld [vmem:[%s191 + $0xf28] sm:$0xff]
        %v2362 = vld [vmem:[%s191 + $0xf30] sm:$0xff]
        %v2363 = vld [vmem:[%s191 + $0xf38] sm:$0xff]
        %v2364 = vld [vmem:[%s191 + $0xf40] sm:$0xff]
        %v2365 = vld [vmem:[%s191 + $0xf48] sm:$0xff]
        %v2366 = vld [vmem:[%s191 + $0xf50] sm:$0xff]
        %v2367 = vld [vmem:[%s191 + $0xf58] sm:$0xff]
        %v2368 = vld [vmem:[%s191 + $0xf60] sm:$0xff]
        %v2369 = vld [vmem:[%s191 + $0xf68] sm:$0xff]
        %v2370 = vld [vmem:[%s191 + $0xf70] sm:$0xff]
        %v2371 = vld [vmem:[%s191 + $0xf78] sm:$0xff]
        %v2372 = vld [vmem:[%s191 + $0xf80] sm:$0xff]
        %v2373 = vld [vmem:[%s191 + $0xf88] sm:$0xff]
        %v2374 = vld [vmem:[%s191 + $0xf90] sm:$0xff]
        %v2375 = vld [vmem:[%s191 + $0xf98] sm:$0xff]
        %v2376 = vld [vmem:[%s191 + $0xfa0] sm:$0xff]
        %v2377 = vld [vmem:[%s191 + $0xfa8] sm:$0xff]
        %v2378 = vld [vmem:[%s191 + $0xfb0] sm:$0xff]
        %v2379 = vld [vmem:[%s191 + $0xfb8] sm:$0xff]
        %v2380 = vld [vmem:[%s191 + $0xfc0] sm:$0xff]
        %v2381 = vld [vmem:[%s191 + $0xfc8] sm:$0xff]
        %v2382 = vld [vmem:[%s191 + $0xfd0] sm:$0xff]
        %v2383 = vld [vmem:[%s191 + $0xfd8] sm:$0xff]
        %v2384 = vld [vmem:[%s191 + $0xfe0] sm:$0xff]
        %v2385 = vld [vmem:[%s191 + $0xfe8] sm:$0xff]
        %v2386 = vld [vmem:[%s191 + $0xff0] sm:$0xff]
        %v2387 = vld [vmem:[%s191 + $0xff8] sm:$0xff]
        %v2388 = vld [vmem:[%s191 + $0x1000] sm:$0xff]
        %v2389 = vld [vmem:[%s191 + $0x1008] sm:$0xff]
        %v2390 = vld [vmem:[%s191 + $0x1010] sm:$0xff]
        %v2391 = vld [vmem:[%s191 + $0x1018] sm:$0xff]
        %v2392 = vld [vmem:[%s191 + $0x1020] sm:$0xff]
        %v2393 = vld [vmem:[%s191 + $0x1028] sm:$0xff]
        %v2394 = vld [vmem:[%s191 + $0x1030] sm:$0xff]
        %v2395 = vld [vmem:[%s191 + $0x1038] sm:$0xff]
        %v2396 = vld [vmem:[%s191 + $0x1040] sm:$0xff]
        %v2397 = vld [vmem:[%s191 + $0x1048] sm:$0xff]
        %v2398 = vld [vmem:[%s191 + $0x1050] sm:$0xff]
        %v2399 = vld [vmem:[%s191 + $0x1058] sm:$0xff]
        %v2400 = vld [vmem:[%s191 + $0x1060] sm:$0xff]
        %v2401 = vld [vmem:[%s191 + $0x1068] sm:$0xff]
        %v2402 = vld [vmem:[%s191 + $0x1070] sm:$0xff]
        %v2403 = vld [vmem:[%s191 + $0x1078] sm:$0xff]
        %v2404 = vld [vmem:[%s191 + $0x1080] sm:$0xff]
        %v2405 = vld [vmem:[%s191 + $0x1088] sm:$0xff]
        %v2406 = vld [vmem:[%s191 + $0x1090] sm:$0xff]
        %v2407 = vld [vmem:[%s191 + $0x1098] sm:$0xff]
        %v2408 = vld [vmem:[%s191 + $0x10a0] sm:$0xff]
        %v2409 = vld [vmem:[%s191 + $0x10a8] sm:$0xff]
        %v2410 = vld [vmem:[%s191 + $0x10b0] sm:$0xff]
        %v2411 = vld [vmem:[%s191 + $0x10b8] sm:$0xff]
        %v2412 = vld [vmem:[%s191 + $0x10c0] sm:$0xff]
        %v2413 = vld [vmem:[%s191 + $0x10c8] sm:$0xff]
        %v2414 = vld [vmem:[%s191 + $0x10d0] sm:$0xff]
        %v2415 = vld [vmem:[%s191 + $0x10d8] sm:$0xff]
        %v2416 = vld [vmem:[%s191 + $0x10e0] sm:$0xff]
        %v2417 = vld [vmem:[%s191 + $0x10e8] sm:$0xff]
        %v2418 = vld [vmem:[%s191 + $0x10f0] sm:$0xff]
        %v2419 = vld [vmem:[%s191 + $0x10f8] sm:$0xff]
        %v2420 = vld [vmem:[%s191 + $0x1100] sm:$0xff]
        %v2421 = vld [vmem:[%s191 + $0x1108] sm:$0xff]
        %v2422 = vld [vmem:[%s191 + $0x1110] sm:$0xff]
        %v2423 = vld [vmem:[%s191 + $0x1118] sm:$0xff]
        %v2424 = vld [vmem:[%s191 + $0x1120] sm:$0xff]
        %v2425 = vld [vmem:[%s191 + $0x1128] sm:$0xff]
        %v2426 = vld [vmem:[%s191 + $0x1130] sm:$0xff]
        %v2427 = vld [vmem:[%s191 + $0x1138] sm:$0xff]
        %v2428 = vld [vmem:[%s191 + $0x1140] sm:$0xff]
        %v2429 = vld [vmem:[%s191 + $0x1148] sm:$0xff]
        %v2430 = vld [vmem:[%s191 + $0x1150] sm:$0xff]
        %v2431 = vld [vmem:[%s191 + $0x1158] sm:$0xff]
        %v2432 = vld [vmem:[%s191 + $0x1160] sm:$0xff]
        %v2433 = vld [vmem:[%s191 + $0x1168] sm:$0xff]
        %v2434 = vld [vmem:[%s191 + $0x1170] sm:$0xff]
        %v2435 = vld [vmem:[%s191 + $0x1178] sm:$0xff]
        %v2436 = vld [vmem:[%s191 + $0x1180] sm:$0xff]
        %v2437 = vld [vmem:[%s191 + $0x1188] sm:$0xff]
        %v2438 = vld [vmem:[%s191 + $0x1190] sm:$0xff]
        %v2439 = vld [vmem:[%s191 + $0x1198] sm:$0xff]
        %v2440 = vld [vmem:[%s191 + $0x11a0] sm:$0xff]
        %v2441 = vld [vmem:[%s191 + $0x11a8] sm:$0xff]
        %v2442 = vld [vmem:[%s191 + $0x11b0] sm:$0xff]
        %v2443 = vld [vmem:[%s191 + $0x11b8] sm:$0xff]
        %v2444 = vld [vmem:[%s191 + $0x11c0] sm:$0xff]
        %v2445 = vld [vmem:[%s191 + $0x11c8] sm:$0xff]
        %v2446 = vld [vmem:[%s191 + $0x11d0] sm:$0xff]
        %v2447 = vld [vmem:[%s191 + $0x11d8] sm:$0xff]
        %v2448 = vld [vmem:[%s191 + $0x11e0] sm:$0xff]
        %v2449 = vld [vmem:[%s191 + $0x11e8] sm:$0xff]
        %v2450 = vld [vmem:[%s191 + $0x11f0] sm:$0xff]
        %v2451 = vld [vmem:[%s191 + $0x11f8] sm:$0xff]
        %v2452 = vld [vmem:[%s191 + $0x1200] sm:$0xff]
        %v2453 = vld [vmem:[%s191 + $0x1208] sm:$0xff]
        %v2454 = vld [vmem:[%s191 + $0x1210] sm:$0xff]
        %v2455 = vld [vmem:[%s191 + $0x1218] sm:$0xff]
        %v2456 = vld [vmem:[%s191 + $0x1220] sm:$0xff]
        %v2457 = vld [vmem:[%s191 + $0x1228] sm:$0xff]
        %v2458 = vld [vmem:[%s191 + $0x1230] sm:$0xff]
        %v2459 = vld [vmem:[%s191 + $0x1238] sm:$0xff]
        %v2460 = vld [vmem:[%s191 + $0x1240] sm:$0xff]
        %v2461 = vld [vmem:[%s191 + $0x1248] sm:$0xff]
        %v2462 = vld [vmem:[%s191 + $0x1250] sm:$0xff]
        %v2463 = vld [vmem:[%s191 + $0x1258] sm:$0xff]
        %v2464 = vld [vmem:[%s191 + $0x1260] sm:$0xff]
        %v2465 = vld [vmem:[%s191 + $0x1268] sm:$0xff]
        %v2466 = vld [vmem:[%s191 + $0x1270] sm:$0xff]
        %v2467 = vld [vmem:[%s191 + $0x1278] sm:$0xff]
        %v2468 = vld [vmem:[%s191 + $0x1280] sm:$0xff]
        %v2469 = vld [vmem:[%s191 + $0x1288] sm:$0xff]
        %v2470 = vld [vmem:[%s191 + $0x1290] sm:$0xff]
        %v2471 = vld [vmem:[%s191 + $0x1298] sm:$0xff]
        %v2472 = vld [vmem:[%s191 + $0x12a0] sm:$0xff]
        %v2473 = vld [vmem:[%s191 + $0x12a8] sm:$0xff]
        %v2474 = vld [vmem:[%s191 + $0x12b0] sm:$0xff]
        %v2475 = vld [vmem:[%s191 + $0x12b8] sm:$0xff]
        %v2476 = vld [vmem:[%s191 + $0x12c0] sm:$0xff]
        %v2477 = vld [vmem:[%s191 + $0x12c8] sm:$0xff]
        %v2478 = vld [vmem:[%s191 + $0x12d0] sm:$0xff]
        %v2479 = vld [vmem:[%s191 + $0x12d8] sm:$0xff]
        %v2480 = vld [vmem:[%s191 + $0x12e0] sm:$0xff]
        %v2481 = vld [vmem:[%s191 + $0x12e8] sm:$0xff]
        %v2482 = vld [vmem:[%s191 + $0x12f0] sm:$0xff]
        %v2483 = vld [vmem:[%s191 + $0x12f8] sm:$0xff]
        %v2484 = vld [vmem:[%s191 + $0x1300] sm:$0xff]
        %v2485 = vld [vmem:[%s191 + $0x1308] sm:$0xff]
        %v2486 = vld [vmem:[%s191 + $0x1310] sm:$0xff]
        %v2487 = vld [vmem:[%s191 + $0x1318] sm:$0xff]
        %v2488 = vld [vmem:[%s191 + $0x1320] sm:$0xff]
        %v2489 = vld [vmem:[%s191 + $0x1328] sm:$0xff]
        %v2490 = vld [vmem:[%s191 + $0x1330] sm:$0xff]
        %v2491 = vld [vmem:[%s191 + $0x1338] sm:$0xff]
        %v2492 = vld [vmem:[%s191 + $0x1340] sm:$0xff]
        %v2493 = vld [vmem:[%s191 + $0x1348] sm:$0xff]
        %v2494 = vld [vmem:[%s191 + $0x1350] sm:$0xff]
        %v2495 = vld [vmem:[%s191 + $0x1358] sm:$0xff]
        %v2496 = vld [vmem:[%s191 + $0x1360] sm:$0xff]
        %v2497 = vld [vmem:[%s191 + $0x1368] sm:$0xff]
        %v2498 = vld [vmem:[%s191 + $0x1370] sm:$0xff]
        %v2499 = vld [vmem:[%s191 + $0x1378] sm:$0xff]
        %v2500 = vld [vmem:[%s191 + $0x1380] sm:$0xff]
        %v2501 = vld [vmem:[%s191 + $0x1388] sm:$0xff]
        %v2502 = vld [vmem:[%s191 + $0x1390] sm:$0xff]
        %v2503 = vld [vmem:[%s191 + $0x1398] sm:$0xff]
        %v2504 = vld [vmem:[%s191 + $0x13a0] sm:$0xff]
        %v2505 = vld [vmem:[%s191 + $0x13a8] sm:$0xff]
        %v2506 = vld [vmem:[%s191 + $0x13b0] sm:$0xff]
        %v2507 = vld [vmem:[%s191 + $0x13b8] sm:$0xff]
        %v2508 = vld [vmem:[%s191 + $0x13c0] sm:$0xff]
        %v2509 = vld [vmem:[%s191 + $0x13c8] sm:$0xff]
        %v2510 = vld [vmem:[%s191 + $0x13d0] sm:$0xff]
        %v2511 = vld [vmem:[%s191 + $0x13d8] sm:$0xff]
        %v2512 = vld [vmem:[%s191 + $0x13e0] sm:$0xff]
        %v2513 = vld [vmem:[%s191 + $0x13e8] sm:$0xff]
        %v2514 = vld [vmem:[%s191 + $0x13f0] sm:$0xff]
        %v2515 = vld [vmem:[%s191 + $0x13f8] sm:$0xff]
        %v2516 = vld [vmem:[%s191 + $0x1400] sm:$0xff]
        %v2517 = vld [vmem:[%s191 + $0x1408] sm:$0xff]
        %v2518 = vld [vmem:[%s191 + $0x1410] sm:$0xff]
        %v2519 = vld [vmem:[%s191 + $0x1418] sm:$0xff]
        %v2520 = vld [vmem:[%s191 + $0x1420] sm:$0xff]
        %v2521 = vld [vmem:[%s191 + $0x1428] sm:$0xff]
        %v2522 = vld [vmem:[%s191 + $0x1430] sm:$0xff]
        %v2523 = vld [vmem:[%s191 + $0x1438] sm:$0xff]
        %v2524 = vld [vmem:[%s191 + $0x1440] sm:$0xff]
        %v2525 = vld [vmem:[%s191 + $0x1448] sm:$0xff]
        %v2526 = vld [vmem:[%s191 + $0x1450] sm:$0xff]
        %v2527 = vld [vmem:[%s191 + $0x1458] sm:$0xff]
        %v2528 = vld [vmem:[%s191 + $0x1460] sm:$0xff]
        %v2529 = vld [vmem:[%s191 + $0x1468] sm:$0xff]
        %v2530 = vld [vmem:[%s191 + $0x1470] sm:$0xff]
        %v2531 = vld [vmem:[%s191 + $0x1478] sm:$0xff]
        %v2532 = vld [vmem:[%s191 + $0x1480] sm:$0xff]
        %v2533 = vld [vmem:[%s191 + $0x1488] sm:$0xff]
        %v2534 = vld [vmem:[%s191 + $0x1490] sm:$0xff]
        %v2535 = vld [vmem:[%s191 + $0x1498] sm:$0xff]
        %v2536 = vld [vmem:[%s191 + $0x14a0] sm:$0xff]
        %v2537 = vld [vmem:[%s191 + $0x14a8] sm:$0xff]
        %v2538 = vld [vmem:[%s191 + $0x14b0] sm:$0xff]
        %v2539 = vld [vmem:[%s191 + $0x14b8] sm:$0xff]
        %v2540 = vld [vmem:[%s191 + $0x14c0] sm:$0xff]
        %v2541 = vld [vmem:[%s191 + $0x14c8] sm:$0xff]
        %v2542 = vld [vmem:[%s191 + $0x14d0] sm:$0xff]
        %v2543 = vld [vmem:[%s191 + $0x14d8] sm:$0xff]
        %v2544 = vld [vmem:[%s191 + $0x14e0] sm:$0xff]
        %v2545 = vld [vmem:[%s191 + $0x14e8] sm:$0xff]
        %v2546 = vld [vmem:[%s191 + $0x14f0] sm:$0xff]
        %v2547 = vld [vmem:[%s191 + $0x14f8] sm:$0xff]
        %v2548 = vld [vmem:[%s191 + $0x1500] sm:$0xff]
        %v2549 = vld [vmem:[%s191 + $0x1508] sm:$0xff]
        %v2550 = vld [vmem:[%s191 + $0x1510] sm:$0xff]
        %v2551 = vld [vmem:[%s191 + $0x1518] sm:$0xff]
        %v2552 = vld [vmem:[%s191 + $0x1520] sm:$0xff]
        %v2553 = vld [vmem:[%s191 + $0x1528] sm:$0xff]
        %v2554 = vld [vmem:[%s191 + $0x1530] sm:$0xff]
        %v2555 = vld [vmem:[%s191 + $0x1538] sm:$0xff]
        %v2556 = vld [vmem:[%s191 + $0x1540] sm:$0xff]
        %v2557 = vld [vmem:[%s191 + $0x1548] sm:$0xff]
        %v2558 = vld [vmem:[%s191 + $0x1550] sm:$0xff]
        %v2559 = vld [vmem:[%s191 + $0x1558] sm:$0xff]
        %v2560 = vld [vmem:[%s191 + $0x1560] sm:$0xff]
        %v2561 = vld [vmem:[%s191 + $0x1568] sm:$0xff]
        %v2562 = vld [vmem:[%s191 + $0x1570] sm:$0xff]
        %v2563 = vld [vmem:[%s191 + $0x1578] sm:$0xff]
        %v2564 = vld [vmem:[%s191 + $0x1580] sm:$0xff]
        %v2565 = vld [vmem:[%s191 + $0x1588] sm:$0xff]
        %v2566 = vld [vmem:[%s191 + $0x1590] sm:$0xff]
        %v2567 = vld [vmem:[%s191 + $0x1598] sm:$0xff]
        %v2568 = vld [vmem:[%s191 + $0x15a0] sm:$0xff]
        %v2569 = vld [vmem:[%s191 + $0x15a8] sm:$0xff]
        %v2570 = vld [vmem:[%s191 + $0x15b0] sm:$0xff]
        %v2571 = vld [vmem:[%s191 + $0x15b8] sm:$0xff]
        %v2572 = vld [vmem:[%s191 + $0x15c0] sm:$0xff]
        %v2573 = vld [vmem:[%s191 + $0x15c8] sm:$0xff]
        %v2574 = vld [vmem:[%s191 + $0x15d0] sm:$0xff]
        %v2575 = vld [vmem:[%s191 + $0x15d8] sm:$0xff]
        %v2576 = vld [vmem:[%s191 + $0x15e0] sm:$0xff]
        %v2577 = vld [vmem:[%s191 + $0x15e8] sm:$0xff]
        %v2578 = vld [vmem:[%s191 + $0x15f0] sm:$0xff]
        %v2579 = vld [vmem:[%s191 + $0x15f8] sm:$0xff]
        %v2580 = vld [vmem:[%s191 + $0x1600] sm:$0xff]
        %v2581 = vld [vmem:[%s191 + $0x1608] sm:$0xff]
        %v2582 = vld [vmem:[%s191 + $0x1610] sm:$0xff]
        %v2583 = vld [vmem:[%s191 + $0x1618] sm:$0xff]
        %v2584 = vld [vmem:[%s191 + $0x1620] sm:$0xff]
        %v2585 = vld [vmem:[%s191 + $0x1628] sm:$0xff]
        %v2586 = vld [vmem:[%s191 + $0x1630] sm:$0xff]
        %v2587 = vld [vmem:[%s191 + $0x1638] sm:$0xff]
        %v2588 = vld [vmem:[%s191 + $0x1640] sm:$0xff]
        %v2589 = vld [vmem:[%s191 + $0x1648] sm:$0xff]
        %v2590 = vld [vmem:[%s191 + $0x1650] sm:$0xff]
        %v2591 = vld [vmem:[%s191 + $0x1658] sm:$0xff]
        %v2592 = vld [vmem:[%s191 + $0x1660] sm:$0xff]
        %v2593 = vld [vmem:[%s191 + $0x1668] sm:$0xff]
        %v2594 = vld [vmem:[%s191 + $0x1670] sm:$0xff]
        %v2595 = vld [vmem:[%s191 + $0x1678] sm:$0xff]
        %v2596 = vld [vmem:[%s191 + $0x1680] sm:$0xff]
        %v2597 = vld [vmem:[%s191 + $0x1688] sm:$0xff]
        %v2598 = vld [vmem:[%s191 + $0x1690] sm:$0xff]
        %v2599 = vld [vmem:[%s191 + $0x1698] sm:$0xff]
        %v2600 = vld [vmem:[%s191 + $0x16a0] sm:$0xff]
        %v2601 = vld [vmem:[%s191 + $0x16a8] sm:$0xff]
        %v2602 = vld [vmem:[%s191 + $0x16b0] sm:$0xff]
        %v2603 = vld [vmem:[%s191 + $0x16b8] sm:$0xff]
        %v2604 = vld [vmem:[%s191 + $0x16c0] sm:$0xff]
        %v2605 = vld [vmem:[%s191 + $0x16c8] sm:$0xff]
        %v2606 = vld [vmem:[%s191 + $0x16d0] sm:$0xff]
        %v2607 = vld [vmem:[%s191 + $0x16d8] sm:$0xff]
        %v2608 = vld [vmem:[%s191 + $0x16e0] sm:$0xff]
        %v2609 = vld [vmem:[%s191 + $0x16e8] sm:$0xff]
        %v2610 = vld [vmem:[%s191 + $0x16f0] sm:$0xff]
        %v2611 = vld [vmem:[%s191 + $0x16f8] sm:$0xff]
        %v2612 = vld [vmem:[%s191 + $0x1700] sm:$0xff]
        %v2613 = vld [vmem:[%s191 + $0x1708] sm:$0xff]
        %v2614 = vld [vmem:[%s191 + $0x1710] sm:$0xff]
        %v2615 = vld [vmem:[%s191 + $0x1718] sm:$0xff]
        %v2616 = vld [vmem:[%s191 + $0x1720] sm:$0xff]
        %v2617 = vld [vmem:[%s191 + $0x1728] sm:$0xff]
        %v2618 = vld [vmem:[%s191 + $0x1730] sm:$0xff]
        %v2619 = vld [vmem:[%s191 + $0x1738] sm:$0xff]
        %v2620 = vld [vmem:[%s191 + $0x1740] sm:$0xff]
        %v2621 = vld [vmem:[%s191 + $0x1748] sm:$0xff]
        %v2622 = vld [vmem:[%s191 + $0x1750] sm:$0xff]
        %v2623 = vld [vmem:[%s191 + $0x1758] sm:$0xff]
        %v2624 = vld [vmem:[%s191 + $0x1760] sm:$0xff]
        %v2625 = vld [vmem:[%s191 + $0x1768] sm:$0xff]
        %v2626 = vld [vmem:[%s191 + $0x1770] sm:$0xff]
        %v2627 = vld [vmem:[%s191 + $0x1778] sm:$0xff]
        %v2628 = vld [vmem:[%s191 + $0x1780] sm:$0xff]
        %v2629 = vld [vmem:[%s191 + $0x1788] sm:$0xff]
        %v2630 = vld [vmem:[%s191 + $0x1790] sm:$0xff]
        %v2631 = vld [vmem:[%s191 + $0x1798] sm:$0xff]
        %v2632 = vld [vmem:[%s191 + $0x17a0] sm:$0xff]
        %v2633 = vld [vmem:[%s191 + $0x17a8] sm:$0xff]
        %v2634 = vld [vmem:[%s191 + $0x17b0] sm:$0xff]
        %v2635 = vld [vmem:[%s191 + $0x17b8] sm:$0xff]
        %v2636 = vld [vmem:[%s191 + $0x17c0] sm:$0xff]
        %v2637 = vld [vmem:[%s191 + $0x17c8] sm:$0xff]
        %v2638 = vld [vmem:[%s191 + $0x17d0] sm:$0xff]
        %v2639 = vld [vmem:[%s191 + $0x17d8] sm:$0xff]
        %v2640 = vld [vmem:[%s191 + $0x17e0] sm:$0xff]
        %v2641 = vld [vmem:[%s191 + $0x17e8] sm:$0xff]
        %v2642 = vld [vmem:[%s191 + $0x17f0] sm:$0xff]
        %v2643 = vld [vmem:[%s191 + $0x17f8] sm:$0xff]
        %v2644 = vld [vmem:[%s191 + $0x1800] sm:$0xff]
        %v2645 = vld [vmem:[%s191 + $0x1808] sm:$0xff]
        %v2646 = vld [vmem:[%s191 + $0x1810] sm:$0xff]
        %v2647 = vld [vmem:[%s191 + $0x1818] sm:$0xff]
        %v2648 = vld [vmem:[%s191 + $0x1820] sm:$0xff]
        %v2649 = vld [vmem:[%s191 + $0x1828] sm:$0xff]
        %v2650 = vld [vmem:[%s191 + $0x1830] sm:$0xff]
        %v2651 = vld [vmem:[%s191 + $0x1838] sm:$0xff]
        %v2652 = vld [vmem:[%s191 + $0x1840] sm:$0xff]
        %v2653 = vld [vmem:[%s191 + $0x1848] sm:$0xff]
        %v2654 = vld [vmem:[%s191 + $0x1850] sm:$0xff]
        %v2655 = vld [vmem:[%s191 + $0x1858] sm:$0xff]
        %v2656 = vld [vmem:[%s191 + $0x1860] sm:$0xff]
        %v2657 = vld [vmem:[%s191 + $0x1868] sm:$0xff]
        %v2658 = vld [vmem:[%s191 + $0x1870] sm:$0xff]
        %v2659 = vld [vmem:[%s191 + $0x1878] sm:$0xff]
        %v2660 = vld [vmem:[%s191 + $0x1880] sm:$0xff]
        %v2661 = vld [vmem:[%s191 + $0x1888] sm:$0xff]
        %v2662 = vld [vmem:[%s191 + $0x1890] sm:$0xff]
        %v2663 = vld [vmem:[%s191 + $0x1898] sm:$0xff]
        %v2664 = vld [vmem:[%s191 + $0x18a0] sm:$0xff]
        %v2665 = vld [vmem:[%s191 + $0x18a8] sm:$0xff]
        %v2666 = vld [vmem:[%s191 + $0x18b0] sm:$0xff]
        %v2667 = vld [vmem:[%s191 + $0x18b8] sm:$0xff]
        %v2668 = vld [vmem:[%s191 + $0x18c0] sm:$0xff]
        %v2669 = vld [vmem:[%s191 + $0x18c8] sm:$0xff]
        %v2670 = vld [vmem:[%s191 + $0x18d0] sm:$0xff]
        %v2671 = vld [vmem:[%s191 + $0x18d8] sm:$0xff]
        %v2672 = vld [vmem:[%s191 + $0x18e0] sm:$0xff]
        %v2673 = vld [vmem:[%s191 + $0x18e8] sm:$0xff]
        %v2674 = vld [vmem:[%s191 + $0x18f0] sm:$0xff]
        %v2675 = vld [vmem:[%s191 + $0x18f8] sm:$0xff]
        %v2676 = vld [vmem:[%s191 + $0x1900] sm:$0xff]
        %v2677 = vld [vmem:[%s191 + $0x1908] sm:$0xff]
        %v2678 = vld [vmem:[%s191 + $0x1910] sm:$0xff]
        %v2679 = vld [vmem:[%s191 + $0x1918] sm:$0xff]
        %v2680 = vld [vmem:[%s191 + $0x1920] sm:$0xff]
        %v2681 = vld [vmem:[%s191 + $0x1928] sm:$0xff]
        %v2682 = vld [vmem:[%s191 + $0x1930] sm:$0xff]
        %v2683 = vld [vmem:[%s191 + $0x1938] sm:$0xff]
        %v2684 = vld [vmem:[%s191 + $0x1940] sm:$0xff]
        %v2685 = vld [vmem:[%s191 + $0x1948] sm:$0xff]
        %v2686 = vld [vmem:[%s191 + $0x1950] sm:$0xff]
        %v2687 = vld [vmem:[%s191 + $0x1958] sm:$0xff]
        %v2688 = vld [vmem:[%s191 + $0x1960] sm:$0xff]
        %v2689 = vld [vmem:[%s191 + $0x1968] sm:$0xff]
        %v2690 = vld [vmem:[%s191 + $0x1970] sm:$0xff]
        %v2691 = vld [vmem:[%s191 + $0x1978] sm:$0xff]
        %v2692 = vld [vmem:[%s191 + $0x1980] sm:$0xff]
        %v2693 = vld [vmem:[%s191 + $0x1988] sm:$0xff]
        %v2694 = vld [vmem:[%s191 + $0x1990] sm:$0xff]
        %v2695 = vld [vmem:[%s191 + $0x1998] sm:$0xff]
        %v2696 = vld [vmem:[%s191 + $0x19a0] sm:$0xff]
        %v2697 = vld [vmem:[%s191 + $0x19a8] sm:$0xff]
        %v2698 = vld [vmem:[%s191 + $0x19b0] sm:$0xff]
        %v2699 = vld [vmem:[%s191 + $0x19b8] sm:$0xff]
        %v2700 = vld [vmem:[%s191 + $0x19c0] sm:$0xff]
        %v2701 = vld [vmem:[%s191 + $0x19c8] sm:$0xff]
        %v2702 = vld [vmem:[%s191 + $0x19d0] sm:$0xff]
        %v2703 = vld [vmem:[%s191 + $0x19d8] sm:$0xff]
        %v2704 = vld [vmem:[%s191 + $0x19e0] sm:$0xff]
        %v2705 = vld [vmem:[%s191 + $0x19e8] sm:$0xff]
        %v2706 = vld [vmem:[%s191 + $0x19f0] sm:$0xff]
        %v2707 = vld [vmem:[%s191 + $0x19f8] sm:$0xff]
        %v2708 = vld [vmem:[%s191 + $0x1a00] sm:$0xff]
        %v2709 = vld [vmem:[%s191 + $0x1a08] sm:$0xff]
        %v2710 = vld [vmem:[%s191 + $0x1a10] sm:$0xff]
        %v2711 = vld [vmem:[%s191 + $0x1a18] sm:$0xff]
        %v2712 = vld [vmem:[%s191 + $0x1a20] sm:$0xff]
        %v2713 = vld [vmem:[%s191 + $0x1a28] sm:$0xff]
        %v2714 = vld [vmem:[%s191 + $0x1a30] sm:$0xff]
        %v2715 = vld [vmem:[%s191 + $0x1a38] sm:$0xff]
        %v2716 = vld [vmem:[%s191 + $0x1a40] sm:$0xff]
        %v2717 = vld [vmem:[%s191 + $0x1a48] sm:$0xff]
        %v2718 = vld [vmem:[%s191 + $0x1a50] sm:$0xff]
        %v2719 = vld [vmem:[%s191 + $0x1a58] sm:$0xff]
        %v2720 = vld [vmem:[%s191 + $0x1a60] sm:$0xff]
        %v2721 = vld [vmem:[%s191 + $0x1a68] sm:$0xff]
        %v2722 = vld [vmem:[%s191 + $0x1a70] sm:$0xff]
        %v2723 = vld [vmem:[%s191 + $0x1a78] sm:$0xff]
        %v2724 = vld [vmem:[%s191 + $0x1a80] sm:$0xff]
        %v2725 = vld [vmem:[%s191 + $0x1a88] sm:$0xff]
        %v2726 = vld [vmem:[%s191 + $0x1a90] sm:$0xff]
        %v2727 = vld [vmem:[%s191 + $0x1a98] sm:$0xff]
        %v2728 = vld [vmem:[%s191 + $0x1aa0] sm:$0xff]
        %v2729 = vld [vmem:[%s191 + $0x1aa8] sm:$0xff]
        %v2730 = vld [vmem:[%s191 + $0x1ab0] sm:$0xff]
        %v2731 = vld [vmem:[%s191 + $0x1ab8] sm:$0xff]
        %v2732 = vld [vmem:[%s191 + $0x1ac0] sm:$0xff]
        %v2733 = vld [vmem:[%s191 + $0x1ac8] sm:$0xff]
        %v2734 = vld [vmem:[%s191 + $0x1ad0] sm:$0xff]
        %v2735 = vld [vmem:[%s191 + $0x1ad8] sm:$0xff]
        %v2736 = vld [vmem:[%s191 + $0x1ae0] sm:$0xff]
        %v2737 = vld [vmem:[%s191 + $0x1ae8] sm:$0xff]
        %v2738 = vld [vmem:[%s191 + $0x1af0] sm:$0xff]
        %v2739 = vld [vmem:[%s191 + $0x1af8] sm:$0xff]
        %v2740 = vld [vmem:[%s191 + $0x1b00] sm:$0xff]
        %v2741 = vld [vmem:[%s191 + $0x1b08] sm:$0xff]
        %v2742 = vld [vmem:[%s191 + $0x1b10] sm:$0xff]
        %v2743 = vld [vmem:[%s191 + $0x1b18] sm:$0xff]
        %v2744 = vld [vmem:[%s191 + $0x1b20] sm:$0xff]
        %v2745 = vld [vmem:[%s191 + $0x1b28] sm:$0xff]
        %v2746 = vld [vmem:[%s191 + $0x1b30] sm:$0xff]
        %v2747 = vld [vmem:[%s191 + $0x1b38] sm:$0xff]
        %v2748 = vld [vmem:[%s191 + $0x1b40] sm:$0xff]
        %v2749 = vld [vmem:[%s191 + $0x1b48] sm:$0xff]
        %v2750 = vld [vmem:[%s191 + $0x1b50] sm:$0xff]
        %v2751 = vld [vmem:[%s191 + $0x1b58] sm:$0xff]
        %v2752 = vld [vmem:[%s191 + $0x1b60] sm:$0xff]
        %v2753 = vld [vmem:[%s191 + $0x1b68] sm:$0xff]
        %v2754 = vld [vmem:[%s191 + $0x1b70] sm:$0xff]
        %v2755 = vld [vmem:[%s191 + $0x1b78] sm:$0xff]
        %v2756 = vld [vmem:[%s191 + $0x1b80] sm:$0xff]
        %v2757 = vld [vmem:[%s191 + $0x1b88] sm:$0xff]
        %v2758 = vld [vmem:[%s191 + $0x1b90] sm:$0xff]
        %v2759 = vld [vmem:[%s191 + $0x1b98] sm:$0xff]
        %v2760 = vld [vmem:[%s191 + $0x1ba0] sm:$0xff]
        %v2761 = vld [vmem:[%s191 + $0x1ba8] sm:$0xff]
        %v2762 = vld [vmem:[%s191 + $0x1bb0] sm:$0xff]
        %v2763 = vld [vmem:[%s191 + $0x1bb8] sm:$0xff]
        %v2764 = vld [vmem:[%s191 + $0x1bc0] sm:$0xff]
        %v2765 = vld [vmem:[%s191 + $0x1bc8] sm:$0xff]
        %v2766 = vld [vmem:[%s191 + $0x1bd0] sm:$0xff]
        %v2767 = vld [vmem:[%s191 + $0x1bd8] sm:$0xff]
        %v2768 = vld [vmem:[%s191 + $0x1be0] sm:$0xff]
        %v2769 = vld [vmem:[%s191 + $0x1be8] sm:$0xff]
        %v2770 = vld [vmem:[%s191 + $0x1bf0] sm:$0xff]
        %v2771 = vld [vmem:[%s191 + $0x1bf8] sm:$0xff]
        %v2772 = vld [vmem:[%s191 + $0x1c00] sm:$0xff]
        %v2773 = vld [vmem:[%s191 + $0x1c08] sm:$0xff]
        %v2774 = vld [vmem:[%s191 + $0x1c10] sm:$0xff]
        %v2775 = vld [vmem:[%s191 + $0x1c18] sm:$0xff]
        %v2776 = vld [vmem:[%s191 + $0x1c20] sm:$0xff]
        %v2777 = vld [vmem:[%s191 + $0x1c28] sm:$0xff]
        %v2778 = vld [vmem:[%s191 + $0x1c30] sm:$0xff]
        %v2779 = vld [vmem:[%s191 + $0x1c38] sm:$0xff]
        %v2780 = vld [vmem:[%s191 + $0x1c40] sm:$0xff]
        %v2781 = vld [vmem:[%s191 + $0x1c48] sm:$0xff]
        %v2782 = vld [vmem:[%s191 + $0x1c50] sm:$0xff]
        %v2783 = vld [vmem:[%s191 + $0x1c58] sm:$0xff]
        %v2784 = vld [vmem:[%s191 + $0x1c60] sm:$0xff]
        %v2785 = vld [vmem:[%s191 + $0x1c68] sm:$0xff]
        %v2786 = vld [vmem:[%s191 + $0x1c70] sm:$0xff]
        %v2787 = vld [vmem:[%s191 + $0x1c78] sm:$0xff]
        %v2788 = vld [vmem:[%s191 + $0x1c80] sm:$0xff]
        %v2789 = vld [vmem:[%s191 + $0x1c88] sm:$0xff]
        %v2790 = vld [vmem:[%s191 + $0x1c90] sm:$0xff]
        %v2791 = vld [vmem:[%s191 + $0x1c98] sm:$0xff]
        %v2792 = vld [vmem:[%s191 + $0x1ca0] sm:$0xff]
        %v2793 = vld [vmem:[%s191 + $0x1ca8] sm:$0xff]
        %v2794 = vld [vmem:[%s191 + $0x1cb0] sm:$0xff]
        %v2795 = vld [vmem:[%s191 + $0x1cb8] sm:$0xff]
        %v2796 = vld [vmem:[%s191 + $0x1cc0] sm:$0xff]
        %v2797 = vld [vmem:[%s191 + $0x1cc8] sm:$0xff]
        %v2798 = vld [vmem:[%s191 + $0x1cd0] sm:$0xff]
        %v2799 = vld [vmem:[%s191 + $0x1cd8] sm:$0xff]
        %v2800 = vld [vmem:[%s191 + $0x1ce0] sm:$0xff]
        %v2801 = vld [vmem:[%s191 + $0x1ce8] sm:$0xff]
        %v2802 = vld [vmem:[%s191 + $0x1cf0] sm:$0xff]
        %v2803 = vld [vmem:[%s191 + $0x1cf8] sm:$0xff]
        %v2804 = vld [vmem:[%s191 + $0x1d00] sm:$0xff]
        %v2805 = vld [vmem:[%s191 + $0x1d08] sm:$0xff]
        %v2806 = vld [vmem:[%s191 + $0x1d10] sm:$0xff]
        %v2807 = vld [vmem:[%s191 + $0x1d18] sm:$0xff]
        %v2808 = vld [vmem:[%s191 + $0x1d20] sm:$0xff]
        %v2809 = vld [vmem:[%s191 + $0x1d28] sm:$0xff]
        %v2810 = vld [vmem:[%s191 + $0x1d30] sm:$0xff]
        %v2811 = vld [vmem:[%s191 + $0x1d38] sm:$0xff]
        %v2812 = vld [vmem:[%s191 + $0x1d40] sm:$0xff]
        %v2813 = vld [vmem:[%s191 + $0x1d48] sm:$0xff]
        %v2814 = vld [vmem:[%s191 + $0x1d50] sm:$0xff]
        %v2815 = vld [vmem:[%s191 + $0x1d58] sm:$0xff]
        %v2816 = vld [vmem:[%s191 + $0x1d60] sm:$0xff]
        %v2817 = vld [vmem:[%s191 + $0x1d68] sm:$0xff]
        %v2818 = vld [vmem:[%s191 + $0x1d70] sm:$0xff]
        %v2819 = vld [vmem:[%s191 + $0x1d78] sm:$0xff]
        %v2820 = vld [vmem:[%s191 + $0x1d80] sm:$0xff]
        %v2821 = vld [vmem:[%s191 + $0x1d88] sm:$0xff]
        %v2822 = vld [vmem:[%s191 + $0x1d90] sm:$0xff]
        %v2823 = vld [vmem:[%s191 + $0x1d98] sm:$0xff]
        %v2824 = vld [vmem:[%s191 + $0x1da0] sm:$0xff]
        %v2825 = vld [vmem:[%s191 + $0x1da8] sm:$0xff]
        %v2826 = vld [vmem:[%s191 + $0x1db0] sm:$0xff]
        %v2827 = vld [vmem:[%s191 + $0x1db8] sm:$0xff]
        %v2828 = vld [vmem:[%s191 + $0x1dc0] sm:$0xff]
        %v2829 = vld [vmem:[%s191 + $0x1dc8] sm:$0xff]
        %v2830 = vld [vmem:[%s191 + $0x1dd0] sm:$0xff]
        %v2831 = vld [vmem:[%s191 + $0x1dd8] sm:$0xff]
        %v2832 = vld [vmem:[%s191 + $0x1de0] sm:$0xff]
        %v2833 = vld [vmem:[%s191 + $0x1de8] sm:$0xff]
        %v2834 = vld [vmem:[%s191 + $0x1df0] sm:$0xff]
        %v2835 = vld [vmem:[%s191 + $0x1df8] sm:$0xff]
        %v2836 = vld [vmem:[%s191 + $0x1e00] sm:$0xff]
        %v2837 = vld [vmem:[%s191 + $0x1e08] sm:$0xff]
        %v2838 = vld [vmem:[%s191 + $0x1e10] sm:$0xff]
        %v2839 = vld [vmem:[%s191 + $0x1e18] sm:$0xff]
        %v2840 = vld [vmem:[%s191 + $0x1e20] sm:$0xff]
        %v2841 = vld [vmem:[%s191 + $0x1e28] sm:$0xff]
        %v2842 = vld [vmem:[%s191 + $0x1e30] sm:$0xff]
        %v2843 = vld [vmem:[%s191 + $0x1e38] sm:$0xff]
        %v2844 = vld [vmem:[%s191 + $0x1e40] sm:$0xff]
        %v2845 = vld [vmem:[%s191 + $0x1e48] sm:$0xff]
        %v2846 = vld [vmem:[%s191 + $0x1e50] sm:$0xff]
        %v2847 = vld [vmem:[%s191 + $0x1e58] sm:$0xff]
        %v2848 = vld [vmem:[%s191 + $0x1e60] sm:$0xff]
        %v2849 = vld [vmem:[%s191 + $0x1e68] sm:$0xff]
        %v2850 = vld [vmem:[%s191 + $0x1e70] sm:$0xff]
        %v2851 = vld [vmem:[%s191 + $0x1e78] sm:$0xff]
        %v2852 = vld [vmem:[%s191 + $0x1e80] sm:$0xff]
        %v2853 = vld [vmem:[%s191 + $0x1e88] sm:$0xff]
        %v2854 = vld [vmem:[%s191 + $0x1e90] sm:$0xff]
        %v2855 = vld [vmem:[%s191 + $0x1e98] sm:$0xff]
        %v2856 = vld [vmem:[%s191 + $0x1ea0] sm:$0xff]
        %v2857 = vld [vmem:[%s191 + $0x1ea8] sm:$0xff]
        %v2858 = vld [vmem:[%s191 + $0x1eb0] sm:$0xff]
        %v2859 = vld [vmem:[%s191 + $0x1eb8] sm:$0xff]
        %v2860 = vld [vmem:[%s191 + $0x1ec0] sm:$0xff]
        %v2861 = vld [vmem:[%s191 + $0x1ec8] sm:$0xff]
        %v2862 = vld [vmem:[%s191 + $0x1ed0] sm:$0xff]
        %v2863 = vld [vmem:[%s191 + $0x1ed8] sm:$0xff]
        %v2864 = vld [vmem:[%s191 + $0x1ee0] sm:$0xff]
        %v2865 = vld [vmem:[%s191 + $0x1ee8] sm:$0xff]
        %v2866 = vld [vmem:[%s191 + $0x1ef0] sm:$0xff]
        %v2867 = vld [vmem:[%s191 + $0x1ef8] sm:$0xff]
        %v2868 = vld [vmem:[%s191 + $0x1f00] sm:$0xff]
        %v2869 = vld [vmem:[%s191 + $0x1f08] sm:$0xff]
        %v2870 = vld [vmem:[%s191 + $0x1f10] sm:$0xff]
        %v2871 = vld [vmem:[%s191 + $0x1f18] sm:$0xff]
        %v2872 = vld [vmem:[%s191 + $0x1f20] sm:$0xff]
        %v2873 = vld [vmem:[%s191 + $0x1f28] sm:$0xff]
        %v2874 = vld [vmem:[%s191 + $0x1f30] sm:$0xff]
        %v2875 = vld [vmem:[%s191 + $0x1f38] sm:$0xff]
        %v2876 = vld [vmem:[%s191 + $0x1f40] sm:$0xff]
        %v2877 = vld [vmem:[%s191 + $0x1f48] sm:$0xff]
        %v2878 = vld [vmem:[%s191 + $0x1f50] sm:$0xff]
        %v2879 = vld [vmem:[%s191 + $0x1f58] sm:$0xff]
        %v2880 = vld [vmem:[%s191 + $0x1f60] sm:$0xff]
        %v2881 = vld [vmem:[%s191 + $0x1f68] sm:$0xff]
        %v2882 = vld [vmem:[%s191 + $0x1f70] sm:$0xff]
        %v2883 = vld [vmem:[%s191 + $0x1f78] sm:$0xff]
        %v2884 = vld [vmem:[%s191 + $0x1f80] sm:$0xff]
        %v2885 = vld [vmem:[%s191 + $0x1f88] sm:$0xff]
        %v2886 = vld [vmem:[%s191 + $0x1f90] sm:$0xff]
        %v2887 = vld [vmem:[%s191 + $0x1f98] sm:$0xff]
        %v2888 = vld [vmem:[%s191 + $0x1fa0] sm:$0xff]
        %v2889 = vld [vmem:[%s191 + $0x1fa8] sm:$0xff]
        %v2890 = vld [vmem:[%s191 + $0x1fb0] sm:$0xff]
        %v2891 = vld [vmem:[%s191 + $0x1fb8] sm:$0xff]
        %v2892 = vld [vmem:[%s191 + $0x1fc0] sm:$0xff]
        %v2893 = vld [vmem:[%s191 + $0x1fc8] sm:$0xff]
        %v2894 = vld [vmem:[%s191 + $0x1fd0] sm:$0xff]
        %v2895 = vld [vmem:[%s191 + $0x1fd8] sm:$0xff]
        %v2896 = vld [vmem:[%s191 + $0x1fe0] sm:$0xff]
        %v2897 = vld [vmem:[%s191 + $0x1fe8] sm:$0xff]
        %v2898 = vld [vmem:[%s191 + $0x1ff0] sm:$0xff]
        %v2899 = vld [vmem:[%s191 + $0x1ff8] sm:$0xff]
        %v2900 = vld [vmem:[%s191 + $0x2000] sm:$0xff]
        %v2901 = vld [vmem:[%s191 + $0x2008] sm:$0xff]
        %v2902 = vld [vmem:[%s191 + $0x2010] sm:$0xff]
        %v2903 = vld [vmem:[%s191 + $0x2018] sm:$0xff]
        %v2904 = vld [vmem:[%s191 + $0x2020] sm:$0xff]
        %v2905 = vld [vmem:[%s191 + $0x2028] sm:$0xff]
        %v2906 = vld [vmem:[%s191 + $0x2030] sm:$0xff]
        %v2907 = vld [vmem:[%s191 + $0x2038] sm:$0xff]
        %v2908 = vld [vmem:[%s191 + $0x2040] sm:$0xff]
        %v2909 = vld [vmem:[%s191 + $0x2048] sm:$0xff]
        %v2910 = vld [vmem:[%s191 + $0x2050] sm:$0xff]
        %v2911 = vld [vmem:[%s191 + $0x2058] sm:$0xff]
        %v2912 = vld [vmem:[%s191 + $0x2060] sm:$0xff]
        %v2913 = vld [vmem:[%s191 + $0x2068] sm:$0xff]
        %v2914 = vld [vmem:[%s191 + $0x2070] sm:$0xff]
        %v2915 = vld [vmem:[%s191 + $0x2078] sm:$0xff]
        %v2916 = vld [vmem:[%s191 + $0x2080] sm:$0xff]
        %v2917 = vld [vmem:[%s191 + $0x2088] sm:$0xff]
        %v2918 = vld [vmem:[%s191 + $0x2090] sm:$0xff]
        %v2919 = vld [vmem:[%s191 + $0x2098] sm:$0xff]
        %v2920 = vld [vmem:[%s191 + $0x20a0] sm:$0xff]
        %v2921 = vld [vmem:[%s191 + $0x20a8] sm:$0xff]
        %v2922 = vld [vmem:[%s191 + $0x20b0] sm:$0xff]
        %v2923 = vld [vmem:[%s191 + $0x20b8] sm:$0xff]
        %v2924 = vld [vmem:[%s191 + $0x20c0] sm:$0xff]
        %v2925 = vld [vmem:[%s191 + $0x20c8] sm:$0xff]
        %v2926 = vld [vmem:[%s191 + $0x20d0] sm:$0xff]
        %v2927 = vld [vmem:[%s191 + $0x20d8] sm:$0xff]
        %v2928 = vld [vmem:[%s191 + $0x20e0] sm:$0xff]
        %v2929 = vld [vmem:[%s191 + $0x20e8] sm:$0xff]
        %v2930 = vld [vmem:[%s191 + $0x20f0] sm:$0xff]
        %v2931 = vld [vmem:[%s191 + $0x20f8] sm:$0xff]
        %v2932 = vld [vmem:[%s191 + $0x2100] sm:$0xff]
        %v2933 = vld [vmem:[%s191 + $0x2108] sm:$0xff]
        %v2934 = vld [vmem:[%s191 + $0x2110] sm:$0xff]
        %v2935 = vld [vmem:[%s191 + $0x2118] sm:$0xff]
        %v2936 = vld [vmem:[%s191 + $0x2120] sm:$0xff]
        %v2937 = vld [vmem:[%s191 + $0x2128] sm:$0xff]
        %v2938 = vld [vmem:[%s191 + $0x2130] sm:$0xff]
        %v2939 = vld [vmem:[%s191 + $0x2138] sm:$0xff]
        %v2940 = vld [vmem:[%s191 + $0x2140] sm:$0xff]
        %v2941 = vld [vmem:[%s191 + $0x2148] sm:$0xff]
        %v2942 = vld [vmem:[%s191 + $0x2150] sm:$0xff]
        %v2943 = vld [vmem:[%s191 + $0x2158] sm:$0xff]
        %v2944 = vld [vmem:[%s191 + $0x2160] sm:$0xff]
        %v2945 = vld [vmem:[%s191 + $0x2168] sm:$0xff]
        %v2946 = vld [vmem:[%s191 + $0x2170] sm:$0xff]
        %v2947 = vld [vmem:[%s191 + $0x2178] sm:$0xff]
        %v2948 = vld [vmem:[%s191 + $0x2180] sm:$0xff]
        %v2949 = vld [vmem:[%s191 + $0x2188] sm:$0xff]
        %v2950 = vld [vmem:[%s191 + $0x2190] sm:$0xff]
        %v2951 = vld [vmem:[%s191 + $0x2198] sm:$0xff]
        %v2952 = vld [vmem:[%s191 + $0x21a0] sm:$0xff]
        %v2953 = vld [vmem:[%s191 + $0x21a8] sm:$0xff]
        %v2954 = vld [vmem:[%s191 + $0x21b0] sm:$0xff]
        %v2955 = vld [vmem:[%s191 + $0x21b8] sm:$0xff]
        %v2956 = vld [vmem:[%s191 + $0x21c0] sm:$0xff]
        %v2957 = vld [vmem:[%s191 + $0x21c8] sm:$0xff]
        %v2958 = vld [vmem:[%s191 + $0x21d0] sm:$0xff]
        %v2959 = vld [vmem:[%s191 + $0x21d8] sm:$0xff]
        %v2960 = vld [vmem:[%s191 + $0x21e0] sm:$0xff]
        %v2961 = vld [vmem:[%s191 + $0x21e8] sm:$0xff]
        %v2962 = vld [vmem:[%s191 + $0x21f0] sm:$0xff]
        %v2963 = vld [vmem:[%s191 + $0x21f8] sm:$0xff]
        %v2964 = vld [vmem:[%s191 + $0x2200] sm:$0xff]
        %v2965 = vld [vmem:[%s191 + $0x2208] sm:$0xff]
        %v2966 = vld [vmem:[%s191 + $0x2210] sm:$0xff]
        %v2967 = vld [vmem:[%s191 + $0x2218] sm:$0xff]
        %v2968 = vld [vmem:[%s191 + $0x2220] sm:$0xff]
        %v2969 = vld [vmem:[%s191 + $0x2228] sm:$0xff]
        %v2970 = vld [vmem:[%s191 + $0x2230] sm:$0xff]
        %v2971 = vld [vmem:[%s191 + $0x2238] sm:$0xff]
        %v2972 = vld [vmem:[%s191 + $0x2240] sm:$0xff]
        %v2973 = vld [vmem:[%s191 + $0x2248] sm:$0xff]
        %v2974 = vld [vmem:[%s191 + $0x2250] sm:$0xff]
        %v2975 = vld [vmem:[%s191 + $0x2258] sm:$0xff]
        %v2976 = vld [vmem:[%s191 + $0x2260] sm:$0xff]
        %v2977 = vld [vmem:[%s191 + $0x2268] sm:$0xff]
        %v2978 = vld [vmem:[%s191 + $0x2270] sm:$0xff]
        %v2979 = vld [vmem:[%s191 + $0x2278] sm:$0xff]
        %v2980 = vld [vmem:[%s191 + $0x2280] sm:$0xff]
        %v2981 = vld [vmem:[%s191 + $0x2288] sm:$0xff]
        %v2982 = vld [vmem:[%s191 + $0x2290] sm:$0xff]
        %v2983 = vld [vmem:[%s191 + $0x2298] sm:$0xff]
        %v2984 = vld [vmem:[%s191 + $0x22a0] sm:$0xff]
        %v2985 = vld [vmem:[%s191 + $0x22a8] sm:$0xff]
        %v2986 = vld [vmem:[%s191 + $0x22b0] sm:$0xff]
        %v2987 = vld [vmem:[%s191 + $0x22b8] sm:$0xff]
        %v2988 = vld [vmem:[%s191 + $0x22c0] sm:$0xff]
        %v2989 = vld [vmem:[%s191 + $0x22c8] sm:$0xff]
        %v2990 = vld [vmem:[%s191 + $0x22d0] sm:$0xff]
        %v2991 = vld [vmem:[%s191 + $0x22d8] sm:$0xff]
        %v2992 = vld [vmem:[%s191 + $0x22e0] sm:$0xff]
        %v2993 = vld [vmem:[%s191 + $0x22e8] sm:$0xff]
        %v2994 = vld [vmem:[%s191 + $0x22f0] sm:$0xff]
        %v2995 = vld [vmem:[%s191 + $0x22f8] sm:$0xff]
        %v2996 = vld [vmem:[%s191 + $0x2300] sm:$0xff]
        %v2997 = vld [vmem:[%s191 + $0x2308] sm:$0xff]
        %v2998 = vld [vmem:[%s191 + $0x2310] sm:$0xff]
        %v2999 = vld [vmem:[%s191 + $0x2318] sm:$0xff]
        %v3000 = vld [vmem:[%s191 + $0x2320] sm:$0xff]
        %v3001 = vld [vmem:[%s191 + $0x2328] sm:$0xff]
        %v3002 = vld [vmem:[%s191 + $0x2330] sm:$0xff]
        %v3003 = vld [vmem:[%s191 + $0x2338] sm:$0xff]
        %v3004 = vld [vmem:[%s191 + $0x2340] sm:$0xff]
        %v3005 = vld [vmem:[%s191 + $0x2348] sm:$0xff]
        %v3006 = vld [vmem:[%s191 + $0x2350] sm:$0xff]
        %v3007 = vld [vmem:[%s191 + $0x2358] sm:$0xff]
        %v3008 = vld [vmem:[%s191 + $0x2360] sm:$0xff]
        %v3009 = vld [vmem:[%s191 + $0x2368] sm:$0xff]
        %v3010 = vld [vmem:[%s191 + $0x2370] sm:$0xff]
        %v3011 = vld [vmem:[%s191 + $0x2378] sm:$0xff]
        %v3012 = vld [vmem:[%s191 + $0x2380] sm:$0xff]
        %v3013 = vld [vmem:[%s191 + $0x2388] sm:$0xff]
        %v3014 = vld [vmem:[%s191 + $0x2390] sm:$0xff]
        %v3015 = vld [vmem:[%s191 + $0x2398] sm:$0xff]
        %v3016 = vld [vmem:[%s191 + $0x23a0] sm:$0xff]
        %v3017 = vld [vmem:[%s191 + $0x23a8] sm:$0xff]
        %v3018 = vld [vmem:[%s191 + $0x23b0] sm:$0xff]
        %v3019 = vld [vmem:[%s191 + $0x23b8] sm:$0xff]
        %v3020 = vld [vmem:[%s191 + $0x23c0] sm:$0xff]
        %v3021 = vld [vmem:[%s191 + $0x23c8] sm:$0xff]
        %v3022 = vld [vmem:[%s191 + $0x23d0] sm:$0xff]
        %v3023 = vld [vmem:[%s191 + $0x23d8] sm:$0xff]
        %v3024 = vld [vmem:[%s191 + $0x23e0] sm:$0xff]
        %v3025 = vld [vmem:[%s191 + $0x23e8] sm:$0xff]
        %v3026 = vld [vmem:[%s191 + $0x23f0] sm:$0xff]
        %v3027 = vld [vmem:[%s191 + $0x23f8] sm:$0xff]
        %v3028 = vld [vmem:[%s201] sm:$0x3]
        %v3030 = vperm.slane %v3028, 0
        %v3031 = vperm.slane %v3028, 1
        %v4186 = vunpack.c.l.b16 %v1876
        %v4187 = vunpack.c.h.b16 %v1876
        %v4188 = vunpack.c.l.b16 %v1877
        %v4189 = vunpack.c.h.b16 %v1877
        %v4190 = vunpack.c.l.b16 %v1878
        %v4191 = vunpack.c.h.b16 %v1878
        %v4192 = vunpack.c.l.b16 %v1879
        %v4193 = vunpack.c.h.b16 %v1879
        %v4194 = vunpack.c.l.b16 %v1880
        %v4195 = vunpack.c.h.b16 %v1880
        %v4196 = vunpack.c.l.b16 %v1881
        %v4197 = vunpack.c.h.b16 %v1881
        %v4198 = vunpack.c.l.b16 %v1882
        %v4199 = vunpack.c.h.b16 %v1882
        %v4200 = vunpack.c.l.b16 %v1883
        %v4201 = vunpack.c.h.b16 %v1883
        %v4202 = vunpack.c.l.b16 %v1884
        %v4203 = vunpack.c.h.b16 %v1884
        %v4204 = vunpack.c.l.b16 %v1885
        %v4205 = vunpack.c.h.b16 %v1885
        %v4206 = vunpack.c.l.b16 %v1886
        %v4207 = vunpack.c.h.b16 %v1886
        %v4208 = vunpack.c.l.b16 %v1887
        %v4209 = vunpack.c.h.b16 %v1887
        %v4210 = vunpack.c.l.b16 %v1888
        %v4211 = vunpack.c.h.b16 %v1888
        %v4212 = vunpack.c.l.b16 %v1889
        %v4213 = vunpack.c.h.b16 %v1889
        %v4214 = vunpack.c.l.b16 %v1890
        %v4215 = vunpack.c.h.b16 %v1890
        %v4216 = vunpack.c.l.b16 %v1891
        %v4217 = vunpack.c.h.b16 %v1891
        %v4218 = vunpack.c.l.b16 %v1892
        %v4219 = vunpack.c.h.b16 %v1892
        %v4220 = vunpack.c.l.b16 %v1893
        %v4221 = vunpack.c.h.b16 %v1893
        %v4222 = vunpack.c.l.b16 %v1894
        %v4223 = vunpack.c.h.b16 %v1894
        %v4224 = vunpack.c.l.b16 %v1895
        %v4225 = vunpack.c.h.b16 %v1895
        %v4226 = vunpack.c.l.b16 %v1896
        %v4227 = vunpack.c.h.b16 %v1896
        %v4228 = vunpack.c.l.b16 %v1897
        %v4229 = vunpack.c.h.b16 %v1897
        %v4230 = vunpack.c.l.b16 %v1898
        %v4231 = vunpack.c.h.b16 %v1898
        %v4232 = vunpack.c.l.b16 %v1899
        %v4233 = vunpack.c.h.b16 %v1899
        %v4234 = vunpack.c.l.b16 %v1900
        %v4235 = vunpack.c.h.b16 %v1900
        %v4236 = vunpack.c.l.b16 %v1901
        %v4237 = vunpack.c.h.b16 %v1901
        %v4238 = vunpack.c.l.b16 %v1902
        %v4239 = vunpack.c.h.b16 %v1902
        %v4240 = vunpack.c.l.b16 %v1903
        %v4241 = vunpack.c.h.b16 %v1903
        %v4242 = vunpack.c.l.b16 %v1904
        %v4243 = vunpack.c.h.b16 %v1904
        %v4244 = vunpack.c.l.b16 %v1905
        %v4245 = vunpack.c.h.b16 %v1905
        %v4246 = vunpack.c.l.b16 %v1906
        %v4247 = vunpack.c.h.b16 %v1906
        %v4248 = vunpack.c.l.b16 %v1907
        %v4249 = vunpack.c.h.b16 %v1907
        %v4250 = vunpack.c.l.b16 %v1908
        %v4251 = vunpack.c.h.b16 %v1908
        %v4252 = vunpack.c.l.b16 %v1909
        %v4253 = vunpack.c.h.b16 %v1909
        %v4254 = vunpack.c.l.b16 %v1910
        %v4255 = vunpack.c.h.b16 %v1910
        %v4256 = vunpack.c.l.b16 %v1911
        %v4257 = vunpack.c.h.b16 %v1911
        %v4258 = vunpack.c.l.b16 %v1912
        %v4259 = vunpack.c.h.b16 %v1912
        %v4260 = vunpack.c.l.b16 %v1913
        %v4261 = vunpack.c.h.b16 %v1913
        %v4262 = vunpack.c.l.b16 %v1914
        %v4263 = vunpack.c.h.b16 %v1914
        %v4264 = vunpack.c.l.b16 %v1915
        %v4265 = vunpack.c.h.b16 %v1915
        %v4266 = vunpack.c.l.b16 %v1916
        %v4267 = vunpack.c.h.b16 %v1916
        %v4268 = vunpack.c.l.b16 %v1917
        %v4269 = vunpack.c.h.b16 %v1917
        %v4270 = vunpack.c.l.b16 %v1918
        %v4271 = vunpack.c.h.b16 %v1918
        %v4272 = vunpack.c.l.b16 %v1919
        %v4273 = vunpack.c.h.b16 %v1919
        %v4274 = vunpack.c.l.b16 %v1920
        %v4275 = vunpack.c.h.b16 %v1920
        %v4276 = vunpack.c.l.b16 %v1921
        %v4277 = vunpack.c.h.b16 %v1921
        %v4278 = vunpack.c.l.b16 %v1922
        %v4279 = vunpack.c.h.b16 %v1922
        %v4280 = vunpack.c.l.b16 %v1923
        %v4281 = vunpack.c.h.b16 %v1923
        %v4282 = vunpack.c.l.b16 %v1924
        %v4283 = vunpack.c.h.b16 %v1924
        %v4284 = vunpack.c.l.b16 %v1925
        %v4285 = vunpack.c.h.b16 %v1925
        %v4286 = vunpack.c.l.b16 %v1926
        %v4287 = vunpack.c.h.b16 %v1926
        %v4288 = vunpack.c.l.b16 %v1927
        %v4289 = vunpack.c.h.b16 %v1927
        %v4290 = vunpack.c.l.b16 %v1928
        %v4291 = vunpack.c.h.b16 %v1928
        %v4292 = vunpack.c.l.b16 %v1929
        %v4293 = vunpack.c.h.b16 %v1929
        %v4294 = vunpack.c.l.b16 %v1930
        %v4295 = vunpack.c.h.b16 %v1930
        %v4296 = vunpack.c.l.b16 %v1931
        %v4297 = vunpack.c.h.b16 %v1931
        %v4298 = vunpack.c.l.b16 %v1932
        %v4299 = vunpack.c.h.b16 %v1932
        %v4300 = vunpack.c.l.b16 %v1933
        %v4301 = vunpack.c.h.b16 %v1933
        %v4302 = vunpack.c.l.b16 %v1934
        %v4303 = vunpack.c.h.b16 %v1934
        %v4304 = vunpack.c.l.b16 %v1935
        %v4305 = vunpack.c.h.b16 %v1935
        %v4306 = vunpack.c.l.b16 %v1936
        %v4307 = vunpack.c.h.b16 %v1936
        %v4308 = vunpack.c.l.b16 %v1937
        %v4309 = vunpack.c.h.b16 %v1937
        %v4310 = vunpack.c.l.b16 %v1938
        %v4311 = vunpack.c.h.b16 %v1938
        %v4312 = vunpack.c.l.b16 %v1939
        %v4313 = vunpack.c.h.b16 %v1939
        %v4314 = vunpack.c.l.b16 %v1940
        %v4315 = vunpack.c.h.b16 %v1940
        %v4316 = vunpack.c.l.b16 %v1941
        %v4317 = vunpack.c.h.b16 %v1941
        %v4318 = vunpack.c.l.b16 %v1942
        %v4319 = vunpack.c.h.b16 %v1942
        %v4320 = vunpack.c.l.b16 %v1943
        %v4321 = vunpack.c.h.b16 %v1943
        %v4322 = vunpack.c.l.b16 %v1944
        %v4323 = vunpack.c.h.b16 %v1944
        %v4324 = vunpack.c.l.b16 %v1945
        %v4325 = vunpack.c.h.b16 %v1945
        %v4326 = vunpack.c.l.b16 %v1946
        %v4327 = vunpack.c.h.b16 %v1946
        %v4328 = vunpack.c.l.b16 %v1947
        %v4329 = vunpack.c.h.b16 %v1947
        %v4330 = vunpack.c.l.b16 %v1948
        %v4331 = vunpack.c.h.b16 %v1948
        %v4332 = vunpack.c.l.b16 %v1949
        %v4333 = vunpack.c.h.b16 %v1949
        %v4334 = vunpack.c.l.b16 %v1950
        %v4335 = vunpack.c.h.b16 %v1950
        %v4336 = vunpack.c.l.b16 %v1951
        %v4337 = vunpack.c.h.b16 %v1951
        %v4338 = vunpack.c.l.b16 %v1952
        %v4339 = vunpack.c.h.b16 %v1952
        %v4340 = vunpack.c.l.b16 %v1953
        %v4341 = vunpack.c.h.b16 %v1953
        %v4342 = vunpack.c.l.b16 %v1954
        %v4343 = vunpack.c.h.b16 %v1954
        %v4344 = vunpack.c.l.b16 %v1955
        %v4345 = vunpack.c.h.b16 %v1955
        %v4346 = vunpack.c.l.b16 %v1956
        %v4347 = vunpack.c.h.b16 %v1956
        %v4348 = vunpack.c.l.b16 %v1957
        %v4349 = vunpack.c.h.b16 %v1957
        %v4350 = vunpack.c.l.b16 %v1958
        %v4351 = vunpack.c.h.b16 %v1958
        %v4352 = vunpack.c.l.b16 %v1959
        %v4353 = vunpack.c.h.b16 %v1959
        %v4354 = vunpack.c.l.b16 %v1960
        %v4355 = vunpack.c.h.b16 %v1960
        %v4356 = vunpack.c.l.b16 %v1961
        %v4357 = vunpack.c.h.b16 %v1961
        %v4358 = vunpack.c.l.b16 %v1962
        %v4359 = vunpack.c.h.b16 %v1962
        %v4360 = vunpack.c.l.b16 %v1963
        %v4361 = vunpack.c.h.b16 %v1963
        %v4362 = vunpack.c.l.b16 %v1964
        %v4363 = vunpack.c.h.b16 %v1964
        %v4364 = vunpack.c.l.b16 %v1965
        %v4365 = vunpack.c.h.b16 %v1965
        %v4366 = vunpack.c.l.b16 %v1966
        %v4367 = vunpack.c.h.b16 %v1966
        %v4368 = vunpack.c.l.b16 %v1967
        %v4369 = vunpack.c.h.b16 %v1967
        %v4370 = vunpack.c.l.b16 %v1968
        %v4371 = vunpack.c.h.b16 %v1968
        %v4372 = vunpack.c.l.b16 %v1969
        %v4373 = vunpack.c.h.b16 %v1969
        %v4374 = vunpack.c.l.b16 %v1970
        %v4375 = vunpack.c.h.b16 %v1970
        %v4376 = vunpack.c.l.b16 %v1971
        %v4377 = vunpack.c.h.b16 %v1971
        %v4378 = vunpack.c.l.b16 %v1972
        %v4379 = vunpack.c.h.b16 %v1972
        %v4380 = vunpack.c.l.b16 %v1973
        %v4381 = vunpack.c.h.b16 %v1973
        %v4382 = vunpack.c.l.b16 %v1974
        %v4383 = vunpack.c.h.b16 %v1974
        %v4384 = vunpack.c.l.b16 %v1975
        %v4385 = vunpack.c.h.b16 %v1975
        %v4386 = vunpack.c.l.b16 %v1976
        %v4387 = vunpack.c.h.b16 %v1976
        %v4388 = vunpack.c.l.b16 %v1977
        %v4389 = vunpack.c.h.b16 %v1977
        %v4390 = vunpack.c.l.b16 %v1978
        %v4391 = vunpack.c.h.b16 %v1978
        %v4392 = vunpack.c.l.b16 %v1979
        %v4393 = vunpack.c.h.b16 %v1979
        %v4394 = vunpack.c.l.b16 %v1980
        %v4395 = vunpack.c.h.b16 %v1980
        %v4396 = vunpack.c.l.b16 %v1981
        %v4397 = vunpack.c.h.b16 %v1981
        %v4398 = vunpack.c.l.b16 %v1982
        %v4399 = vunpack.c.h.b16 %v1982
        %v4400 = vunpack.c.l.b16 %v1983
        %v4401 = vunpack.c.h.b16 %v1983
        %v4402 = vunpack.c.l.b16 %v1984
        %v4403 = vunpack.c.h.b16 %v1984
        %v4404 = vunpack.c.l.b16 %v1985
        %v4405 = vunpack.c.h.b16 %v1985
        %v4406 = vunpack.c.l.b16 %v1986
        %v4407 = vunpack.c.h.b16 %v1986
        %v4408 = vunpack.c.l.b16 %v1987
        %v4409 = vunpack.c.h.b16 %v1987
        %v4410 = vunpack.c.l.b16 %v1988
        %v4411 = vunpack.c.h.b16 %v1988
        %v4412 = vunpack.c.l.b16 %v1989
        %v4413 = vunpack.c.h.b16 %v1989
        %v4414 = vunpack.c.l.b16 %v1990
        %v4415 = vunpack.c.h.b16 %v1990
        %v4416 = vunpack.c.l.b16 %v1991
        %v4417 = vunpack.c.h.b16 %v1991
        %v4418 = vunpack.c.l.b16 %v1992
        %v4419 = vunpack.c.h.b16 %v1992
        %v4420 = vunpack.c.l.b16 %v1993
        %v4421 = vunpack.c.h.b16 %v1993
        %v4422 = vunpack.c.l.b16 %v1994
        %v4423 = vunpack.c.h.b16 %v1994
        %v4424 = vunpack.c.l.b16 %v1995
        %v4425 = vunpack.c.h.b16 %v1995
        %v4426 = vunpack.c.l.b16 %v1996
        %v4427 = vunpack.c.h.b16 %v1996
        %v4428 = vunpack.c.l.b16 %v1997
        %v4429 = vunpack.c.h.b16 %v1997
        %v4430 = vunpack.c.l.b16 %v1998
        %v4431 = vunpack.c.h.b16 %v1998
        %v4432 = vunpack.c.l.b16 %v1999
        %v4433 = vunpack.c.h.b16 %v1999
        %v4434 = vunpack.c.l.b16 %v2000
        %v4435 = vunpack.c.h.b16 %v2000
        %v4436 = vunpack.c.l.b16 %v2001
        %v4437 = vunpack.c.h.b16 %v2001
        %v4438 = vunpack.c.l.b16 %v2002
        %v4439 = vunpack.c.h.b16 %v2002
        %v4440 = vunpack.c.l.b16 %v2003
        %v4441 = vunpack.c.h.b16 %v2003
        %v4442 = vunpack.c.l.b16 %v2004
        %v4443 = vunpack.c.h.b16 %v2004
        %v4444 = vunpack.c.l.b16 %v2005
        %v4445 = vunpack.c.h.b16 %v2005
        %v4446 = vunpack.c.l.b16 %v2006
        %v4447 = vunpack.c.h.b16 %v2006
        %v4448 = vunpack.c.l.b16 %v2007
        %v4449 = vunpack.c.h.b16 %v2007
        %v4450 = vunpack.c.l.b16 %v2008
        %v4451 = vunpack.c.h.b16 %v2008
        %v4452 = vunpack.c.l.b16 %v2009
        %v4453 = vunpack.c.h.b16 %v2009
        %v4454 = vunpack.c.l.b16 %v2010
        %v4455 = vunpack.c.h.b16 %v2010
        %v4456 = vunpack.c.l.b16 %v2011
        %v4457 = vunpack.c.h.b16 %v2011
        %v4458 = vunpack.c.l.b16 %v2012
        %v4459 = vunpack.c.h.b16 %v2012
        %v4460 = vunpack.c.l.b16 %v2013
        %v4461 = vunpack.c.h.b16 %v2013
        %v4462 = vunpack.c.l.b16 %v2014
        %v4463 = vunpack.c.h.b16 %v2014
        %v4464 = vunpack.c.l.b16 %v2015
        %v4465 = vunpack.c.h.b16 %v2015
        %v4466 = vunpack.c.l.b16 %v2016
        %v4467 = vunpack.c.h.b16 %v2016
        %v4468 = vunpack.c.l.b16 %v2017
        %v4469 = vunpack.c.h.b16 %v2017
        %v4470 = vunpack.c.l.b16 %v2018
        %v4471 = vunpack.c.h.b16 %v2018
        %v4472 = vunpack.c.l.b16 %v2019
        %v4473 = vunpack.c.h.b16 %v2019
        %v4474 = vunpack.c.l.b16 %v2020
        %v4475 = vunpack.c.h.b16 %v2020
        %v4476 = vunpack.c.l.b16 %v2021
        %v4477 = vunpack.c.h.b16 %v2021
        %v4478 = vunpack.c.l.b16 %v2022
        %v4479 = vunpack.c.h.b16 %v2022
        %v4480 = vunpack.c.l.b16 %v2023
        %v4481 = vunpack.c.h.b16 %v2023
        %v4482 = vunpack.c.l.b16 %v2024
        %v4483 = vunpack.c.h.b16 %v2024
        %v4484 = vunpack.c.l.b16 %v2025
        %v4485 = vunpack.c.h.b16 %v2025
        %v4486 = vunpack.c.l.b16 %v2026
        %v4487 = vunpack.c.h.b16 %v2026
        %v4488 = vunpack.c.l.b16 %v2027
        %v4489 = vunpack.c.h.b16 %v2027
        %v4490 = vunpack.c.l.b16 %v2028
        %v4491 = vunpack.c.h.b16 %v2028
        %v4492 = vunpack.c.l.b16 %v2029
        %v4493 = vunpack.c.h.b16 %v2029
        %v4494 = vunpack.c.l.b16 %v2030
        %v4495 = vunpack.c.h.b16 %v2030
        %v4496 = vunpack.c.l.b16 %v2031
        %v4497 = vunpack.c.h.b16 %v2031
        %v4498 = vunpack.c.l.b16 %v2032
        %v4499 = vunpack.c.h.b16 %v2032
        %v4500 = vunpack.c.l.b16 %v2033
        %v4501 = vunpack.c.h.b16 %v2033
        %v4502 = vunpack.c.l.b16 %v2034
        %v4503 = vunpack.c.h.b16 %v2034
        %v4504 = vunpack.c.l.b16 %v2035
        %v4505 = vunpack.c.h.b16 %v2035
        %v4506 = vunpack.c.l.b16 %v2036
        %v4507 = vunpack.c.h.b16 %v2036
        %v4508 = vunpack.c.l.b16 %v2037
        %v4509 = vunpack.c.h.b16 %v2037
        %v4510 = vunpack.c.l.b16 %v2038
        %v4511 = vunpack.c.h.b16 %v2038
        %v4512 = vunpack.c.l.b16 %v2039
        %v4513 = vunpack.c.h.b16 %v2039
        %v4514 = vunpack.c.l.b16 %v2040
        %v4515 = vunpack.c.h.b16 %v2040
        %v4516 = vunpack.c.l.b16 %v2041
        %v4517 = vunpack.c.h.b16 %v2041
        %v4518 = vunpack.c.l.b16 %v2042
        %v4519 = vunpack.c.h.b16 %v2042
        %v4520 = vunpack.c.l.b16 %v2043
        %v4521 = vunpack.c.h.b16 %v2043
        %v4522 = vunpack.c.l.b16 %v2044
        %v4523 = vunpack.c.h.b16 %v2044
        %v4524 = vunpack.c.l.b16 %v2045
        %v4525 = vunpack.c.h.b16 %v2045
        %v4526 = vunpack.c.l.b16 %v2046
        %v4527 = vunpack.c.h.b16 %v2046
        %v4528 = vunpack.c.l.b16 %v2047
        %v4529 = vunpack.c.h.b16 %v2047
        %v4530 = vunpack.c.l.b16 %v2048
        %v4531 = vunpack.c.h.b16 %v2048
        %v4532 = vunpack.c.l.b16 %v2049
        %v4533 = vunpack.c.h.b16 %v2049
        %v4534 = vunpack.c.l.b16 %v2050
        %v4535 = vunpack.c.h.b16 %v2050
        %v4536 = vunpack.c.l.b16 %v2051
        %v4537 = vunpack.c.h.b16 %v2051
        %v4538 = vunpack.c.l.b16 %v2052
        %v4539 = vunpack.c.h.b16 %v2052
        %v4540 = vunpack.c.l.b16 %v2053
        %v4541 = vunpack.c.h.b16 %v2053
        %v4542 = vunpack.c.l.b16 %v2054
        %v4543 = vunpack.c.h.b16 %v2054
        %v4544 = vunpack.c.l.b16 %v2055
        %v4545 = vunpack.c.h.b16 %v2055
        %v4546 = vunpack.c.l.b16 %v2056
        %v4547 = vunpack.c.h.b16 %v2056
        %v4548 = vunpack.c.l.b16 %v2057
        %v4549 = vunpack.c.h.b16 %v2057
        %v4550 = vunpack.c.l.b16 %v2058
        %v4551 = vunpack.c.h.b16 %v2058
        %v4552 = vunpack.c.l.b16 %v2059
        %v4553 = vunpack.c.h.b16 %v2059
        %v4554 = vunpack.c.l.b16 %v2060
        %v4555 = vunpack.c.h.b16 %v2060
        %v4556 = vunpack.c.l.b16 %v2061
        %v4557 = vunpack.c.h.b16 %v2061
        %v4558 = vunpack.c.l.b16 %v2062
        %v4559 = vunpack.c.h.b16 %v2062
        %v4560 = vunpack.c.l.b16 %v2063
        %v4561 = vunpack.c.h.b16 %v2063
        %v4562 = vunpack.c.l.b16 %v2064
        %v4563 = vunpack.c.h.b16 %v2064
        %v4564 = vunpack.c.l.b16 %v2065
        %v4565 = vunpack.c.h.b16 %v2065
        %v4566 = vunpack.c.l.b16 %v2066
        %v4567 = vunpack.c.h.b16 %v2066
        %v4568 = vunpack.c.l.b16 %v2067
        %v4569 = vunpack.c.h.b16 %v2067
        %v4570 = vunpack.c.l.b16 %v2068
        %v4571 = vunpack.c.h.b16 %v2068
        %v4572 = vunpack.c.l.b16 %v2069
        %v4573 = vunpack.c.h.b16 %v2069
        %v4574 = vunpack.c.l.b16 %v2070
        %v4575 = vunpack.c.h.b16 %v2070
        %v4576 = vunpack.c.l.b16 %v2071
        %v4577 = vunpack.c.h.b16 %v2071
        %v4578 = vunpack.c.l.b16 %v2072
        %v4579 = vunpack.c.h.b16 %v2072
        %v4580 = vunpack.c.l.b16 %v2073
        %v4581 = vunpack.c.h.b16 %v2073
        %v4582 = vunpack.c.l.b16 %v2074
        %v4583 = vunpack.c.h.b16 %v2074
        %v4584 = vunpack.c.l.b16 %v2075
        %v4585 = vunpack.c.h.b16 %v2075
        %v4586 = vunpack.c.l.b16 %v2076
        %v4587 = vunpack.c.h.b16 %v2076
        %v4588 = vunpack.c.l.b16 %v2077
        %v4589 = vunpack.c.h.b16 %v2077
        %v4590 = vunpack.c.l.b16 %v2078
        %v4591 = vunpack.c.h.b16 %v2078
        %v4592 = vunpack.c.l.b16 %v2079
        %v4593 = vunpack.c.h.b16 %v2079
        %v4594 = vunpack.c.l.b16 %v2080
        %v4595 = vunpack.c.h.b16 %v2080
        %v4596 = vunpack.c.l.b16 %v2081
        %v4597 = vunpack.c.h.b16 %v2081
        %v4598 = vunpack.c.l.b16 %v2082
        %v4599 = vunpack.c.h.b16 %v2082
        %v4600 = vunpack.c.l.b16 %v2083
        %v4601 = vunpack.c.h.b16 %v2083
        %v4602 = vunpack.c.l.b16 %v2084
        %v4603 = vunpack.c.h.b16 %v2084
        %v4604 = vunpack.c.l.b16 %v2085
        %v4605 = vunpack.c.h.b16 %v2085
        %v4606 = vunpack.c.l.b16 %v2086
        %v4607 = vunpack.c.h.b16 %v2086
        %v4608 = vunpack.c.l.b16 %v2087
        %v4609 = vunpack.c.h.b16 %v2087
        %v4610 = vunpack.c.l.b16 %v2088
        %v4611 = vunpack.c.h.b16 %v2088
        %v4612 = vunpack.c.l.b16 %v2089
        %v4613 = vunpack.c.h.b16 %v2089
        %v4614 = vunpack.c.l.b16 %v2090
        %v4615 = vunpack.c.h.b16 %v2090
        %v4616 = vunpack.c.l.b16 %v2091
        %v4617 = vunpack.c.h.b16 %v2091
        %v4618 = vunpack.c.l.b16 %v2092
        %v4619 = vunpack.c.h.b16 %v2092
        %v4620 = vunpack.c.l.b16 %v2093
        %v4621 = vunpack.c.h.b16 %v2093
        %v4622 = vunpack.c.l.b16 %v2094
        %v4623 = vunpack.c.h.b16 %v2094
        %v4624 = vunpack.c.l.b16 %v2095
        %v4625 = vunpack.c.h.b16 %v2095
        %v4626 = vunpack.c.l.b16 %v2096
        %v4627 = vunpack.c.h.b16 %v2096
        %v4628 = vunpack.c.l.b16 %v2097
        %v4629 = vunpack.c.h.b16 %v2097
        %v4630 = vunpack.c.l.b16 %v2098
        %v4631 = vunpack.c.h.b16 %v2098
        %v4632 = vunpack.c.l.b16 %v2099
        %v4633 = vunpack.c.h.b16 %v2099
        %v4634 = vunpack.c.l.b16 %v2100
        %v4635 = vunpack.c.h.b16 %v2100
        %v4636 = vunpack.c.l.b16 %v2101
        %v4637 = vunpack.c.h.b16 %v2101
        %v4638 = vunpack.c.l.b16 %v2102
        %v4639 = vunpack.c.h.b16 %v2102
        %v4640 = vunpack.c.l.b16 %v2103
        %v4641 = vunpack.c.h.b16 %v2103
        %v4642 = vunpack.c.l.b16 %v2104
        %v4643 = vunpack.c.h.b16 %v2104
        %v4644 = vunpack.c.l.b16 %v2105
        %v4645 = vunpack.c.h.b16 %v2105
        %v4646 = vunpack.c.l.b16 %v2106
        %v4647 = vunpack.c.h.b16 %v2106
        %v4648 = vunpack.c.l.b16 %v2107
        %v4649 = vunpack.c.h.b16 %v2107
        %v4650 = vunpack.c.l.b16 %v2108
        %v4651 = vunpack.c.h.b16 %v2108
        %v4652 = vunpack.c.l.b16 %v2109
        %v4653 = vunpack.c.h.b16 %v2109
        %v4654 = vunpack.c.l.b16 %v2110
        %v4655 = vunpack.c.h.b16 %v2110
        %v4656 = vunpack.c.l.b16 %v2111
        %v4657 = vunpack.c.h.b16 %v2111
        %v4658 = vunpack.c.l.b16 %v2112
        %v4659 = vunpack.c.h.b16 %v2112
        %v4660 = vunpack.c.l.b16 %v2113
        %v4661 = vunpack.c.h.b16 %v2113
        %v4662 = vunpack.c.l.b16 %v2114
        %v4663 = vunpack.c.h.b16 %v2114
        %v4664 = vunpack.c.l.b16 %v2115
        %v4665 = vunpack.c.h.b16 %v2115
        %v4666 = vunpack.c.l.b16 %v2116
        %v4667 = vunpack.c.h.b16 %v2116
        %v4668 = vunpack.c.l.b16 %v2117
        %v4669 = vunpack.c.h.b16 %v2117
        %v4670 = vunpack.c.l.b16 %v2118
        %v4671 = vunpack.c.h.b16 %v2118
        %v4672 = vunpack.c.l.b16 %v2119
        %v4673 = vunpack.c.h.b16 %v2119
        %v4674 = vunpack.c.l.b16 %v2120
        %v4675 = vunpack.c.h.b16 %v2120
        %v4676 = vunpack.c.l.b16 %v2121
        %v4677 = vunpack.c.h.b16 %v2121
        %v4678 = vunpack.c.l.b16 %v2122
        %v4679 = vunpack.c.h.b16 %v2122
        %v4680 = vunpack.c.l.b16 %v2123
        %v4681 = vunpack.c.h.b16 %v2123
        %v4682 = vunpack.c.l.b16 %v2124
        %v4683 = vunpack.c.h.b16 %v2124
        %v4684 = vunpack.c.l.b16 %v2125
        %v4685 = vunpack.c.h.b16 %v2125
        %v4686 = vunpack.c.l.b16 %v2126
        %v4687 = vunpack.c.h.b16 %v2126
        %v4688 = vunpack.c.l.b16 %v2127
        %v4689 = vunpack.c.h.b16 %v2127
        %v4690 = vunpack.c.l.b16 %v2128
        %v4691 = vunpack.c.h.b16 %v2128
        %v4692 = vunpack.c.l.b16 %v2129
        %v4693 = vunpack.c.h.b16 %v2129
        %v4694 = vunpack.c.l.b16 %v2130
        %v4695 = vunpack.c.h.b16 %v2130
        %v4696 = vunpack.c.l.b16 %v2131
        %v4697 = vunpack.c.h.b16 %v2131
        %v4698 = vunpack.c.l.b16 %v2132
        %v4699 = vunpack.c.h.b16 %v2132
        %v4700 = vunpack.c.l.b16 %v2133
        %v4701 = vunpack.c.h.b16 %v2133
        %v4702 = vunpack.c.l.b16 %v2134
        %v4703 = vunpack.c.h.b16 %v2134
        %v4704 = vunpack.c.l.b16 %v2135
        %v4705 = vunpack.c.h.b16 %v2135
        %v4706 = vunpack.c.l.b16 %v2136
        %v4707 = vunpack.c.h.b16 %v2136
        %v4708 = vunpack.c.l.b16 %v2137
        %v4709 = vunpack.c.h.b16 %v2137
        %v4710 = vunpack.c.l.b16 %v2138
        %v4711 = vunpack.c.h.b16 %v2138
        %v4712 = vunpack.c.l.b16 %v2139
        %v4713 = vunpack.c.h.b16 %v2139
        %v4714 = vunpack.c.l.b16 %v2140
        %v4715 = vunpack.c.h.b16 %v2140
        %v4716 = vunpack.c.l.b16 %v2141
        %v4717 = vunpack.c.h.b16 %v2141
        %v4718 = vunpack.c.l.b16 %v2142
        %v4719 = vunpack.c.h.b16 %v2142
        %v4720 = vunpack.c.l.b16 %v2143
        %v4721 = vunpack.c.h.b16 %v2143
        %v4722 = vunpack.c.l.b16 %v2144
        %v4723 = vunpack.c.h.b16 %v2144
        %v4724 = vunpack.c.l.b16 %v2145
        %v4725 = vunpack.c.h.b16 %v2145
        %v4726 = vunpack.c.l.b16 %v2146
        %v4727 = vunpack.c.h.b16 %v2146
        %v4728 = vunpack.c.l.b16 %v2147
        %v4729 = vunpack.c.h.b16 %v2147
        %v4730 = vunpack.c.l.b16 %v2148
        %v4731 = vunpack.c.h.b16 %v2148
        %v4732 = vunpack.c.l.b16 %v2149
        %v4733 = vunpack.c.h.b16 %v2149
        %v4734 = vunpack.c.l.b16 %v2150
        %v4735 = vunpack.c.h.b16 %v2150
        %v4736 = vunpack.c.l.b16 %v2151
        %v4737 = vunpack.c.h.b16 %v2151
        %v4738 = vunpack.c.l.b16 %v2152
        %v4739 = vunpack.c.h.b16 %v2152
        %v4740 = vunpack.c.l.b16 %v2153
        %v4741 = vunpack.c.h.b16 %v2153
        %v4742 = vunpack.c.l.b16 %v2154
        %v4743 = vunpack.c.h.b16 %v2154
        %v4744 = vunpack.c.l.b16 %v2155
        %v4745 = vunpack.c.h.b16 %v2155
        %v4746 = vunpack.c.l.b16 %v2156
        %v4747 = vunpack.c.h.b16 %v2156
        %v4748 = vunpack.c.l.b16 %v2157
        %v4749 = vunpack.c.h.b16 %v2157
        %v4750 = vunpack.c.l.b16 %v2158
        %v4751 = vunpack.c.h.b16 %v2158
        %v4752 = vunpack.c.l.b16 %v2159
        %v4753 = vunpack.c.h.b16 %v2159
        %v4754 = vunpack.c.l.b16 %v2160
        %v4755 = vunpack.c.h.b16 %v2160
        %v4756 = vunpack.c.l.b16 %v2161
        %v4757 = vunpack.c.h.b16 %v2161
        %v4758 = vunpack.c.l.b16 %v2162
        %v4759 = vunpack.c.h.b16 %v2162
        %v4760 = vunpack.c.l.b16 %v2163
        %v4761 = vunpack.c.h.b16 %v2163
        %v4762 = vunpack.c.l.b16 %v2164
        %v4763 = vunpack.c.h.b16 %v2164
        %v4764 = vunpack.c.l.b16 %v2165
        %v4765 = vunpack.c.h.b16 %v2165
        %v4766 = vunpack.c.l.b16 %v2166
        %v4767 = vunpack.c.h.b16 %v2166
        %v4768 = vunpack.c.l.b16 %v2167
        %v4769 = vunpack.c.h.b16 %v2167
        %v4770 = vunpack.c.l.b16 %v2168
        %v4771 = vunpack.c.h.b16 %v2168
        %v4772 = vunpack.c.l.b16 %v2169
        %v4773 = vunpack.c.h.b16 %v2169
        %v4774 = vunpack.c.l.b16 %v2170
        %v4775 = vunpack.c.h.b16 %v2170
        %v4776 = vunpack.c.l.b16 %v2171
        %v4777 = vunpack.c.h.b16 %v2171
        %v4778 = vunpack.c.l.b16 %v2172
        %v4779 = vunpack.c.h.b16 %v2172
        %v4780 = vunpack.c.l.b16 %v2173
        %v4781 = vunpack.c.h.b16 %v2173
        %v4782 = vunpack.c.l.b16 %v2174
        %v4783 = vunpack.c.h.b16 %v2174
        %v4784 = vunpack.c.l.b16 %v2175
        %v4785 = vunpack.c.h.b16 %v2175
        %v4786 = vunpack.c.l.b16 %v2176
        %v4787 = vunpack.c.h.b16 %v2176
        %v4788 = vunpack.c.l.b16 %v2177
        %v4789 = vunpack.c.h.b16 %v2177
        %v4790 = vunpack.c.l.b16 %v2178
        %v4791 = vunpack.c.h.b16 %v2178
        %v4792 = vunpack.c.l.b16 %v2179
        %v4793 = vunpack.c.h.b16 %v2179
        %v4794 = vunpack.c.l.b16 %v2180
        %v4795 = vunpack.c.h.b16 %v2180
        %v4796 = vunpack.c.l.b16 %v2181
        %v4797 = vunpack.c.h.b16 %v2181
        %v4798 = vunpack.c.l.b16 %v2182
        %v4799 = vunpack.c.h.b16 %v2182
        %v4800 = vunpack.c.l.b16 %v2183
        %v4801 = vunpack.c.h.b16 %v2183
        %v4802 = vunpack.c.l.b16 %v2184
        %v4803 = vunpack.c.h.b16 %v2184
        %v4804 = vunpack.c.l.b16 %v2185
        %v4805 = vunpack.c.h.b16 %v2185
        %v4806 = vunpack.c.l.b16 %v2186
        %v4807 = vunpack.c.h.b16 %v2186
        %v4808 = vunpack.c.l.b16 %v2187
        %v4809 = vunpack.c.h.b16 %v2187
        %v4810 = vunpack.c.l.b16 %v2188
        %v4811 = vunpack.c.h.b16 %v2188
        %v4812 = vunpack.c.l.b16 %v2189
        %v4813 = vunpack.c.h.b16 %v2189
        %v4814 = vunpack.c.l.b16 %v2190
        %v4815 = vunpack.c.h.b16 %v2190
        %v4816 = vunpack.c.l.b16 %v2191
        %v4817 = vunpack.c.h.b16 %v2191
        %v4818 = vunpack.c.l.b16 %v2192
        %v4819 = vunpack.c.h.b16 %v2192
        %v4820 = vunpack.c.l.b16 %v2193
        %v4821 = vunpack.c.h.b16 %v2193
        %v4822 = vunpack.c.l.b16 %v2194
        %v4823 = vunpack.c.h.b16 %v2194
        %v4824 = vunpack.c.l.b16 %v2195
        %v4825 = vunpack.c.h.b16 %v2195
        %v4826 = vunpack.c.l.b16 %v2196
        %v4827 = vunpack.c.h.b16 %v2196
        %v4828 = vunpack.c.l.b16 %v2197
        %v4829 = vunpack.c.h.b16 %v2197
        %v4830 = vunpack.c.l.b16 %v2198
        %v4831 = vunpack.c.h.b16 %v2198
        %v4832 = vunpack.c.l.b16 %v2199
        %v4833 = vunpack.c.h.b16 %v2199
        %v4834 = vunpack.c.l.b16 %v2200
        %v4835 = vunpack.c.h.b16 %v2200
        %v4836 = vunpack.c.l.b16 %v2201
        %v4837 = vunpack.c.h.b16 %v2201
        %v4838 = vunpack.c.l.b16 %v2202
        %v4839 = vunpack.c.h.b16 %v2202
        %v4840 = vunpack.c.l.b16 %v2203
        %v4841 = vunpack.c.h.b16 %v2203
        %v4842 = vunpack.c.l.b16 %v2204
        %v4843 = vunpack.c.h.b16 %v2204
        %v4844 = vunpack.c.l.b16 %v2205
        %v4845 = vunpack.c.h.b16 %v2205
        %v4846 = vunpack.c.l.b16 %v2206
        %v4847 = vunpack.c.h.b16 %v2206
        %v4848 = vunpack.c.l.b16 %v2207
        %v4849 = vunpack.c.h.b16 %v2207
        %v4850 = vunpack.c.l.b16 %v2208
        %v4851 = vunpack.c.h.b16 %v2208
        %v4852 = vunpack.c.l.b16 %v2209
        %v4853 = vunpack.c.h.b16 %v2209
        %v4854 = vunpack.c.l.b16 %v2210
        %v4855 = vunpack.c.h.b16 %v2210
        %v4856 = vunpack.c.l.b16 %v2211
        %v4857 = vunpack.c.h.b16 %v2211
        %v4858 = vunpack.c.l.b16 %v2212
        %v4859 = vunpack.c.h.b16 %v2212
        %v4860 = vunpack.c.l.b16 %v2213
        %v4861 = vunpack.c.h.b16 %v2213
        %v4862 = vunpack.c.l.b16 %v2214
        %v4863 = vunpack.c.h.b16 %v2214
        %v4864 = vunpack.c.l.b16 %v2215
        %v4865 = vunpack.c.h.b16 %v2215
        %v4866 = vunpack.c.l.b16 %v2216
        %v4867 = vunpack.c.h.b16 %v2216
        %v4868 = vunpack.c.l.b16 %v2217
        %v4869 = vunpack.c.h.b16 %v2217
        %v4870 = vunpack.c.l.b16 %v2218
        %v4871 = vunpack.c.h.b16 %v2218
        %v4872 = vunpack.c.l.b16 %v2219
        %v4873 = vunpack.c.h.b16 %v2219
        %v4874 = vunpack.c.l.b16 %v2220
        %v4875 = vunpack.c.h.b16 %v2220
        %v4876 = vunpack.c.l.b16 %v2221
        %v4877 = vunpack.c.h.b16 %v2221
        %v4878 = vunpack.c.l.b16 %v2222
        %v4879 = vunpack.c.h.b16 %v2222
        %v4880 = vunpack.c.l.b16 %v2223
        %v4881 = vunpack.c.h.b16 %v2223
        %v4882 = vunpack.c.l.b16 %v2224
        %v4883 = vunpack.c.h.b16 %v2224
        %v4884 = vunpack.c.l.b16 %v2225
        %v4885 = vunpack.c.h.b16 %v2225
        %v4886 = vunpack.c.l.b16 %v2226
        %v4887 = vunpack.c.h.b16 %v2226
        %v4888 = vunpack.c.l.b16 %v2227
        %v4889 = vunpack.c.h.b16 %v2227
        %v4890 = vunpack.c.l.b16 %v2228
        %v4891 = vunpack.c.h.b16 %v2228
        %v4892 = vunpack.c.l.b16 %v2229
        %v4893 = vunpack.c.h.b16 %v2229
        %v4894 = vunpack.c.l.b16 %v2230
        %v4895 = vunpack.c.h.b16 %v2230
        %v4896 = vunpack.c.l.b16 %v2231
        %v4897 = vunpack.c.h.b16 %v2231
        %v4898 = vunpack.c.l.b16 %v2232
        %v4899 = vunpack.c.h.b16 %v2232
        %v4900 = vunpack.c.l.b16 %v2233
        %v4901 = vunpack.c.h.b16 %v2233
        %v4902 = vunpack.c.l.b16 %v2234
        %v4903 = vunpack.c.h.b16 %v2234
        %v4904 = vunpack.c.l.b16 %v2235
        %v4905 = vunpack.c.h.b16 %v2235
        %v4906 = vunpack.c.l.b16 %v2236
        %v4907 = vunpack.c.h.b16 %v2236
        %v4908 = vunpack.c.l.b16 %v2237
        %v4909 = vunpack.c.h.b16 %v2237
        %v4910 = vunpack.c.l.b16 %v2238
        %v4911 = vunpack.c.h.b16 %v2238
        %v4912 = vunpack.c.l.b16 %v2239
        %v4913 = vunpack.c.h.b16 %v2239
        %v4914 = vunpack.c.l.b16 %v2240
        %v4915 = vunpack.c.h.b16 %v2240
        %v4916 = vunpack.c.l.b16 %v2241
        %v4917 = vunpack.c.h.b16 %v2241
        %v4918 = vunpack.c.l.b16 %v2242
        %v4919 = vunpack.c.h.b16 %v2242
        %v4920 = vunpack.c.l.b16 %v2243
        %v4921 = vunpack.c.h.b16 %v2243
        %v4922 = vunpack.c.l.b16 %v2244
        %v4923 = vunpack.c.h.b16 %v2244
        %v4924 = vunpack.c.l.b16 %v2245
        %v4925 = vunpack.c.h.b16 %v2245
        %v4926 = vunpack.c.l.b16 %v2246
        %v4927 = vunpack.c.h.b16 %v2246
        %v4928 = vunpack.c.l.b16 %v2247
        %v4929 = vunpack.c.h.b16 %v2247
        %v4930 = vunpack.c.l.b16 %v2248
        %v4931 = vunpack.c.h.b16 %v2248
        %v4932 = vunpack.c.l.b16 %v2249
        %v4933 = vunpack.c.h.b16 %v2249
        %v4934 = vunpack.c.l.b16 %v2250
        %v4935 = vunpack.c.h.b16 %v2250
        %v4936 = vunpack.c.l.b16 %v2251
        %v4937 = vunpack.c.h.b16 %v2251
        %v4938 = vunpack.c.l.b16 %v2252
        %v4939 = vunpack.c.h.b16 %v2252
        %v4940 = vunpack.c.l.b16 %v2253
        %v4941 = vunpack.c.h.b16 %v2253
        %v4942 = vunpack.c.l.b16 %v2254
        %v4943 = vunpack.c.h.b16 %v2254
        %v4944 = vunpack.c.l.b16 %v2255
        %v4945 = vunpack.c.h.b16 %v2255
        %v4946 = vunpack.c.l.b16 %v2256
        %v4947 = vunpack.c.h.b16 %v2256
        %v4948 = vunpack.c.l.b16 %v2257
        %v4949 = vunpack.c.h.b16 %v2257
        %v4950 = vunpack.c.l.b16 %v2258
        %v4951 = vunpack.c.h.b16 %v2258
        %v4952 = vunpack.c.l.b16 %v2259
        %v4953 = vunpack.c.h.b16 %v2259
        %v4954 = vunpack.c.l.b16 %v2260
        %v4955 = vunpack.c.h.b16 %v2260
        %v4956 = vunpack.c.l.b16 %v2261
        %v4957 = vunpack.c.h.b16 %v2261
        %v4958 = vunpack.c.l.b16 %v2262
        %v4959 = vunpack.c.h.b16 %v2262
        %v4960 = vunpack.c.l.b16 %v2263
        %v4961 = vunpack.c.h.b16 %v2263
        %v4962 = vunpack.c.l.b16 %v2264
        %v4963 = vunpack.c.h.b16 %v2264
        %v4964 = vunpack.c.l.b16 %v2265
        %v4965 = vunpack.c.h.b16 %v2265
        %v4966 = vunpack.c.l.b16 %v2266
        %v4967 = vunpack.c.h.b16 %v2266
        %v4968 = vunpack.c.l.b16 %v2267
        %v4969 = vunpack.c.h.b16 %v2267
        %v4970 = vunpack.c.l.b16 %v2268
        %v4971 = vunpack.c.h.b16 %v2268
        %v4972 = vunpack.c.l.b16 %v2269
        %v4973 = vunpack.c.h.b16 %v2269
        %v4974 = vunpack.c.l.b16 %v2270
        %v4975 = vunpack.c.h.b16 %v2270
        %v4976 = vunpack.c.l.b16 %v2271
        %v4977 = vunpack.c.h.b16 %v2271
        %v4978 = vunpack.c.l.b16 %v2272
        %v4979 = vunpack.c.h.b16 %v2272
        %v4980 = vunpack.c.l.b16 %v2273
        %v4981 = vunpack.c.h.b16 %v2273
        %v4982 = vunpack.c.l.b16 %v2274
        %v4983 = vunpack.c.h.b16 %v2274
        %v4984 = vunpack.c.l.b16 %v2275
        %v4985 = vunpack.c.h.b16 %v2275
        %v4986 = vunpack.c.l.b16 %v2276
        %v4987 = vunpack.c.h.b16 %v2276
        %v4988 = vunpack.c.l.b16 %v2277
        %v4989 = vunpack.c.h.b16 %v2277
        %v4990 = vunpack.c.l.b16 %v2278
        %v4991 = vunpack.c.h.b16 %v2278
        %v4992 = vunpack.c.l.b16 %v2279
        %v4993 = vunpack.c.h.b16 %v2279
        %v4994 = vunpack.c.l.b16 %v2280
        %v4995 = vunpack.c.h.b16 %v2280
        %v4996 = vunpack.c.l.b16 %v2281
        %v4997 = vunpack.c.h.b16 %v2281
        %v4998 = vunpack.c.l.b16 %v2282
        %v4999 = vunpack.c.h.b16 %v2282
        %v5000 = vunpack.c.l.b16 %v2283
        %v5001 = vunpack.c.h.b16 %v2283
        %v5002 = vunpack.c.l.b16 %v2284
        %v5003 = vunpack.c.h.b16 %v2284
        %v5004 = vunpack.c.l.b16 %v2285
        %v5005 = vunpack.c.h.b16 %v2285
        %v5006 = vunpack.c.l.b16 %v2286
        %v5007 = vunpack.c.h.b16 %v2286
        %v5008 = vunpack.c.l.b16 %v2287
        %v5009 = vunpack.c.h.b16 %v2287
        %v5010 = vunpack.c.l.b16 %v2288
        %v5011 = vunpack.c.h.b16 %v2288
        %v5012 = vunpack.c.l.b16 %v2289
        %v5013 = vunpack.c.h.b16 %v2289
        %v5014 = vunpack.c.l.b16 %v2290
        %v5015 = vunpack.c.h.b16 %v2290
        %v5016 = vunpack.c.l.b16 %v2291
        %v5017 = vunpack.c.h.b16 %v2291
        %v5018 = vunpack.c.l.b16 %v2292
        %v5019 = vunpack.c.h.b16 %v2292
        %v5020 = vunpack.c.l.b16 %v2293
        %v5021 = vunpack.c.h.b16 %v2293
        %v5022 = vunpack.c.l.b16 %v2294
        %v5023 = vunpack.c.h.b16 %v2294
        %v5024 = vunpack.c.l.b16 %v2295
        %v5025 = vunpack.c.h.b16 %v2295
        %v5026 = vunpack.c.l.b16 %v2296
        %v5027 = vunpack.c.h.b16 %v2296
        %v5028 = vunpack.c.l.b16 %v2297
        %v5029 = vunpack.c.h.b16 %v2297
        %v5030 = vunpack.c.l.b16 %v2298
        %v5031 = vunpack.c.h.b16 %v2298
        %v5032 = vunpack.c.l.b16 %v2299
        %v5033 = vunpack.c.h.b16 %v2299
        %v5034 = vunpack.c.l.b16 %v2300
        %v5035 = vunpack.c.h.b16 %v2300
        %v5036 = vunpack.c.l.b16 %v2301
        %v5037 = vunpack.c.h.b16 %v2301
        %v5038 = vunpack.c.l.b16 %v2302
        %v5039 = vunpack.c.h.b16 %v2302
        %v5040 = vunpack.c.l.b16 %v2303
        %v5041 = vunpack.c.h.b16 %v2303
        %v5042 = vunpack.c.l.b16 %v2304
        %v5043 = vunpack.c.h.b16 %v2304
        %v5044 = vunpack.c.l.b16 %v2305
        %v5045 = vunpack.c.h.b16 %v2305
        %v5046 = vunpack.c.l.b16 %v2306
        %v5047 = vunpack.c.h.b16 %v2306
        %v5048 = vunpack.c.l.b16 %v2307
        %v5049 = vunpack.c.h.b16 %v2307
        %v5050 = vunpack.c.l.b16 %v2308
        %v5051 = vunpack.c.h.b16 %v2308
        %v5052 = vunpack.c.l.b16 %v2309
        %v5053 = vunpack.c.h.b16 %v2309
        %v5054 = vunpack.c.l.b16 %v2310
        %v5055 = vunpack.c.h.b16 %v2310
        %v5056 = vunpack.c.l.b16 %v2311
        %v5057 = vunpack.c.h.b16 %v2311
        %v5058 = vunpack.c.l.b16 %v2312
        %v5059 = vunpack.c.h.b16 %v2312
        %v5060 = vunpack.c.l.b16 %v2313
        %v5061 = vunpack.c.h.b16 %v2313
        %v5062 = vunpack.c.l.b16 %v2314
        %v5063 = vunpack.c.h.b16 %v2314
        %v5064 = vunpack.c.l.b16 %v2315
        %v5065 = vunpack.c.h.b16 %v2315
        %v5066 = vunpack.c.l.b16 %v2316
        %v5067 = vunpack.c.h.b16 %v2316
        %v5068 = vunpack.c.l.b16 %v2317
        %v5069 = vunpack.c.h.b16 %v2317
        %v5070 = vunpack.c.l.b16 %v2318
        %v5071 = vunpack.c.h.b16 %v2318
        %v5072 = vunpack.c.l.b16 %v2319
        %v5073 = vunpack.c.h.b16 %v2319
        %v5074 = vunpack.c.l.b16 %v2320
        %v5075 = vunpack.c.h.b16 %v2320
        %v5076 = vunpack.c.l.b16 %v2321
        %v5077 = vunpack.c.h.b16 %v2321
        %v5078 = vunpack.c.l.b16 %v2322
        %v5079 = vunpack.c.h.b16 %v2322
        %v5080 = vunpack.c.l.b16 %v2323
        %v5081 = vunpack.c.h.b16 %v2323
        %v5082 = vunpack.c.l.b16 %v2324
        %v5083 = vunpack.c.h.b16 %v2324
        %v5084 = vunpack.c.l.b16 %v2325
        %v5085 = vunpack.c.h.b16 %v2325
        %v5086 = vunpack.c.l.b16 %v2326
        %v5087 = vunpack.c.h.b16 %v2326
        %v5088 = vunpack.c.l.b16 %v2327
        %v5089 = vunpack.c.h.b16 %v2327
        %v5090 = vunpack.c.l.b16 %v2328
        %v5091 = vunpack.c.h.b16 %v2328
        %v5092 = vunpack.c.l.b16 %v2329
        %v5093 = vunpack.c.h.b16 %v2329
        %v5094 = vunpack.c.l.b16 %v2330
        %v5095 = vunpack.c.h.b16 %v2330
        %v5096 = vunpack.c.l.b16 %v2331
        %v5097 = vunpack.c.h.b16 %v2331
        %v5098 = vunpack.c.l.b16 %v2332
        %v5099 = vunpack.c.h.b16 %v2332
        %v5100 = vunpack.c.l.b16 %v2333
        %v5101 = vunpack.c.h.b16 %v2333
        %v5102 = vunpack.c.l.b16 %v2334
        %v5103 = vunpack.c.h.b16 %v2334
        %v5104 = vunpack.c.l.b16 %v2335
        %v5105 = vunpack.c.h.b16 %v2335
        %v5106 = vunpack.c.l.b16 %v2336
        %v5107 = vunpack.c.h.b16 %v2336
        %v5108 = vunpack.c.l.b16 %v2337
        %v5109 = vunpack.c.h.b16 %v2337
        %v5110 = vunpack.c.l.b16 %v2338
        %v5111 = vunpack.c.h.b16 %v2338
        %v5112 = vunpack.c.l.b16 %v2339
        %v5113 = vunpack.c.h.b16 %v2339
        %v5114 = vunpack.c.l.b16 %v2340
        %v5115 = vunpack.c.h.b16 %v2340
        %v5116 = vunpack.c.l.b16 %v2341
        %v5117 = vunpack.c.h.b16 %v2341
        %v5118 = vunpack.c.l.b16 %v2342
        %v5119 = vunpack.c.h.b16 %v2342
        %v5120 = vunpack.c.l.b16 %v2343
        %v5121 = vunpack.c.h.b16 %v2343
        %v5122 = vunpack.c.l.b16 %v2344
        %v5123 = vunpack.c.h.b16 %v2344
        %v5124 = vunpack.c.l.b16 %v2345
        %v5125 = vunpack.c.h.b16 %v2345
        %v5126 = vunpack.c.l.b16 %v2346
        %v5127 = vunpack.c.h.b16 %v2346
        %v5128 = vunpack.c.l.b16 %v2347
        %v5129 = vunpack.c.h.b16 %v2347
        %v5130 = vunpack.c.l.b16 %v2348
        %v5131 = vunpack.c.h.b16 %v2348
        %v5132 = vunpack.c.l.b16 %v2349
        %v5133 = vunpack.c.h.b16 %v2349
        %v5134 = vunpack.c.l.b16 %v2350
        %v5135 = vunpack.c.h.b16 %v2350
        %v5136 = vunpack.c.l.b16 %v2351
        %v5137 = vunpack.c.h.b16 %v2351
        %v5138 = vunpack.c.l.b16 %v2352
        %v5139 = vunpack.c.h.b16 %v2352
        %v5140 = vunpack.c.l.b16 %v2353
        %v5141 = vunpack.c.h.b16 %v2353
        %v5142 = vunpack.c.l.b16 %v2354
        %v5143 = vunpack.c.h.b16 %v2354
        %v5144 = vunpack.c.l.b16 %v2355
        %v5145 = vunpack.c.h.b16 %v2355
        %v5146 = vunpack.c.l.b16 %v2356
        %v5147 = vunpack.c.h.b16 %v2356
        %v5148 = vunpack.c.l.b16 %v2357
        %v5149 = vunpack.c.h.b16 %v2357
        %v5150 = vunpack.c.l.b16 %v2358
        %v5151 = vunpack.c.h.b16 %v2358
        %v5152 = vunpack.c.l.b16 %v2359
        %v5153 = vunpack.c.h.b16 %v2359
        %v5154 = vunpack.c.l.b16 %v2360
        %v5155 = vunpack.c.h.b16 %v2360
        %v5156 = vunpack.c.l.b16 %v2361
        %v5157 = vunpack.c.h.b16 %v2361
        %v5158 = vunpack.c.l.b16 %v2362
        %v5159 = vunpack.c.h.b16 %v2362
        %v5160 = vunpack.c.l.b16 %v2363
        %v5161 = vunpack.c.h.b16 %v2363
        %v5162 = vunpack.c.l.b16 %v2364
        %v5163 = vunpack.c.h.b16 %v2364
        %v5164 = vunpack.c.l.b16 %v2365
        %v5165 = vunpack.c.h.b16 %v2365
        %v5166 = vunpack.c.l.b16 %v2366
        %v5167 = vunpack.c.h.b16 %v2366
        %v5168 = vunpack.c.l.b16 %v2367
        %v5169 = vunpack.c.h.b16 %v2367
        %v5170 = vunpack.c.l.b16 %v2368
        %v5171 = vunpack.c.h.b16 %v2368
        %v5172 = vunpack.c.l.b16 %v2369
        %v5173 = vunpack.c.h.b16 %v2369
        %v5174 = vunpack.c.l.b16 %v2370
        %v5175 = vunpack.c.h.b16 %v2370
        %v5176 = vunpack.c.l.b16 %v2371
        %v5177 = vunpack.c.h.b16 %v2371
        %v5178 = vunpack.c.l.b16 %v2372
        %v5179 = vunpack.c.h.b16 %v2372
        %v5180 = vunpack.c.l.b16 %v2373
        %v5181 = vunpack.c.h.b16 %v2373
        %v5182 = vunpack.c.l.b16 %v2374
        %v5183 = vunpack.c.h.b16 %v2374
        %v5184 = vunpack.c.l.b16 %v2375
        %v5185 = vunpack.c.h.b16 %v2375
        %v5186 = vunpack.c.l.b16 %v2376
        %v5187 = vunpack.c.h.b16 %v2376
        %v5188 = vunpack.c.l.b16 %v2377
        %v5189 = vunpack.c.h.b16 %v2377
        %v5190 = vunpack.c.l.b16 %v2378
        %v5191 = vunpack.c.h.b16 %v2378
        %v5192 = vunpack.c.l.b16 %v2379
        %v5193 = vunpack.c.h.b16 %v2379
        %v5194 = vunpack.c.l.b16 %v2380
        %v5195 = vunpack.c.h.b16 %v2380
        %v5196 = vunpack.c.l.b16 %v2381
        %v5197 = vunpack.c.h.b16 %v2381
        %v5198 = vunpack.c.l.b16 %v2382
        %v5199 = vunpack.c.h.b16 %v2382
        %v5200 = vunpack.c.l.b16 %v2383
        %v5201 = vunpack.c.h.b16 %v2383
        %v5202 = vunpack.c.l.b16 %v2384
        %v5203 = vunpack.c.h.b16 %v2384
        %v5204 = vunpack.c.l.b16 %v2385
        %v5205 = vunpack.c.h.b16 %v2385
        %v5206 = vunpack.c.l.b16 %v2386
        %v5207 = vunpack.c.h.b16 %v2386
        %v5208 = vunpack.c.l.b16 %v2387
        %v5209 = vunpack.c.h.b16 %v2387
        %v5210 = vunpack.c.l.b16 %v2388
        %v5211 = vunpack.c.h.b16 %v2388
        %v5212 = vunpack.c.l.b16 %v2389
        %v5213 = vunpack.c.h.b16 %v2389
        %v5214 = vunpack.c.l.b16 %v2390
        %v5215 = vunpack.c.h.b16 %v2390
        %v5216 = vunpack.c.l.b16 %v2391
        %v5217 = vunpack.c.h.b16 %v2391
        %v5218 = vunpack.c.l.b16 %v2392
        %v5219 = vunpack.c.h.b16 %v2392
        %v5220 = vunpack.c.l.b16 %v2393
        %v5221 = vunpack.c.h.b16 %v2393
        %v5222 = vunpack.c.l.b16 %v2394
        %v5223 = vunpack.c.h.b16 %v2394
        %v5224 = vunpack.c.l.b16 %v2395
        %v5225 = vunpack.c.h.b16 %v2395
        %v5226 = vunpack.c.l.b16 %v2396
        %v5227 = vunpack.c.h.b16 %v2396
        %v5228 = vunpack.c.l.b16 %v2397
        %v5229 = vunpack.c.h.b16 %v2397
        %v5230 = vunpack.c.l.b16 %v2398
        %v5231 = vunpack.c.h.b16 %v2398
        %v5232 = vunpack.c.l.b16 %v2399
        %v5233 = vunpack.c.h.b16 %v2399
        %v5234 = vunpack.c.l.b16 %v2400
        %v5235 = vunpack.c.h.b16 %v2400
        %v5236 = vunpack.c.l.b16 %v2401
        %v5237 = vunpack.c.h.b16 %v2401
        %v5238 = vunpack.c.l.b16 %v2402
        %v5239 = vunpack.c.h.b16 %v2402
        %v5240 = vunpack.c.l.b16 %v2403
        %v5241 = vunpack.c.h.b16 %v2403
        %v5242 = vunpack.c.l.b16 %v2404
        %v5243 = vunpack.c.h.b16 %v2404
        %v5244 = vunpack.c.l.b16 %v2405
        %v5245 = vunpack.c.h.b16 %v2405
        %v5246 = vunpack.c.l.b16 %v2406
        %v5247 = vunpack.c.h.b16 %v2406
        %v5248 = vunpack.c.l.b16 %v2407
        %v5249 = vunpack.c.h.b16 %v2407
        %v5250 = vunpack.c.l.b16 %v2408
        %v5251 = vunpack.c.h.b16 %v2408
        %v5252 = vunpack.c.l.b16 %v2409
        %v5253 = vunpack.c.h.b16 %v2409
        %v5254 = vunpack.c.l.b16 %v2410
        %v5255 = vunpack.c.h.b16 %v2410
        %v5256 = vunpack.c.l.b16 %v2411
        %v5257 = vunpack.c.h.b16 %v2411
        %v5258 = vunpack.c.l.b16 %v2412
        %v5259 = vunpack.c.h.b16 %v2412
        %v5260 = vunpack.c.l.b16 %v2413
        %v5261 = vunpack.c.h.b16 %v2413
        %v5262 = vunpack.c.l.b16 %v2414
        %v5263 = vunpack.c.h.b16 %v2414
        %v5264 = vunpack.c.l.b16 %v2415
        %v5265 = vunpack.c.h.b16 %v2415
        %v5266 = vunpack.c.l.b16 %v2416
        %v5267 = vunpack.c.h.b16 %v2416
        %v5268 = vunpack.c.l.b16 %v2417
        %v5269 = vunpack.c.h.b16 %v2417
        %v5270 = vunpack.c.l.b16 %v2418
        %v5271 = vunpack.c.h.b16 %v2418
        %v5272 = vunpack.c.l.b16 %v2419
        %v5273 = vunpack.c.h.b16 %v2419
        %v5274 = vunpack.c.l.b16 %v2420
        %v5275 = vunpack.c.h.b16 %v2420
        %v5276 = vunpack.c.l.b16 %v2421
        %v5277 = vunpack.c.h.b16 %v2421
        %v5278 = vunpack.c.l.b16 %v2422
        %v5279 = vunpack.c.h.b16 %v2422
        %v5280 = vunpack.c.l.b16 %v2423
        %v5281 = vunpack.c.h.b16 %v2423
        %v5282 = vunpack.c.l.b16 %v2424
        %v5283 = vunpack.c.h.b16 %v2424
        %v5284 = vunpack.c.l.b16 %v2425
        %v5285 = vunpack.c.h.b16 %v2425
        %v5286 = vunpack.c.l.b16 %v2426
        %v5287 = vunpack.c.h.b16 %v2426
        %v5288 = vunpack.c.l.b16 %v2427
        %v5289 = vunpack.c.h.b16 %v2427
        %v5290 = vunpack.c.l.b16 %v2428
        %v5291 = vunpack.c.h.b16 %v2428
        %v5292 = vunpack.c.l.b16 %v2429
        %v5293 = vunpack.c.h.b16 %v2429
        %v5294 = vunpack.c.l.b16 %v2430
        %v5295 = vunpack.c.h.b16 %v2430
        %v5296 = vunpack.c.l.b16 %v2431
        %v5297 = vunpack.c.h.b16 %v2431
        %v5298 = vunpack.c.l.b16 %v2432
        %v5299 = vunpack.c.h.b16 %v2432
        %v5300 = vunpack.c.l.b16 %v2433
        %v5301 = vunpack.c.h.b16 %v2433
        %v5302 = vunpack.c.l.b16 %v2434
        %v5303 = vunpack.c.h.b16 %v2434
        %v5304 = vunpack.c.l.b16 %v2435
        %v5305 = vunpack.c.h.b16 %v2435
        %v5306 = vunpack.c.l.b16 %v2436
        %v5307 = vunpack.c.h.b16 %v2436
        %v5308 = vunpack.c.l.b16 %v2437
        %v5309 = vunpack.c.h.b16 %v2437
        %v5310 = vunpack.c.l.b16 %v2438
        %v5311 = vunpack.c.h.b16 %v2438
        %v5312 = vunpack.c.l.b16 %v2439
        %v5313 = vunpack.c.h.b16 %v2439
        %v5314 = vunpack.c.l.b16 %v2440
        %v5315 = vunpack.c.h.b16 %v2440
        %v5316 = vunpack.c.l.b16 %v2441
        %v5317 = vunpack.c.h.b16 %v2441
        %v5318 = vunpack.c.l.b16 %v2442
        %v5319 = vunpack.c.h.b16 %v2442
        %v5320 = vunpack.c.l.b16 %v2443
        %v5321 = vunpack.c.h.b16 %v2443
        %v5322 = vunpack.c.l.b16 %v2444
        %v5323 = vunpack.c.h.b16 %v2444
        %v5324 = vunpack.c.l.b16 %v2445
        %v5325 = vunpack.c.h.b16 %v2445
        %v5326 = vunpack.c.l.b16 %v2446
        %v5327 = vunpack.c.h.b16 %v2446
        %v5328 = vunpack.c.l.b16 %v2447
        %v5329 = vunpack.c.h.b16 %v2447
        %v5330 = vunpack.c.l.b16 %v2448
        %v5331 = vunpack.c.h.b16 %v2448
        %v5332 = vunpack.c.l.b16 %v2449
        %v5333 = vunpack.c.h.b16 %v2449
        %v5334 = vunpack.c.l.b16 %v2450
        %v5335 = vunpack.c.h.b16 %v2450
        %v5336 = vunpack.c.l.b16 %v2451
        %v5337 = vunpack.c.h.b16 %v2451
        %v5338 = vunpack.c.l.b16 %v2452
        %v5339 = vunpack.c.h.b16 %v2452
        %v5340 = vunpack.c.l.b16 %v2453
        %v5341 = vunpack.c.h.b16 %v2453
        %v5342 = vunpack.c.l.b16 %v2454
        %v5343 = vunpack.c.h.b16 %v2454
        %v5344 = vunpack.c.l.b16 %v2455
        %v5345 = vunpack.c.h.b16 %v2455
        %v5346 = vunpack.c.l.b16 %v2456
        %v5347 = vunpack.c.h.b16 %v2456
        %v5348 = vunpack.c.l.b16 %v2457
        %v5349 = vunpack.c.h.b16 %v2457
        %v5350 = vunpack.c.l.b16 %v2458
        %v5351 = vunpack.c.h.b16 %v2458
        %v5352 = vunpack.c.l.b16 %v2459
        %v5353 = vunpack.c.h.b16 %v2459
        %v5354 = vunpack.c.l.b16 %v2460
        %v5355 = vunpack.c.h.b16 %v2460
        %v5356 = vunpack.c.l.b16 %v2461
        %v5357 = vunpack.c.h.b16 %v2461
        %v5358 = vunpack.c.l.b16 %v2462
        %v5359 = vunpack.c.h.b16 %v2462
        %v5360 = vunpack.c.l.b16 %v2463
        %v5361 = vunpack.c.h.b16 %v2463
        %v5362 = vunpack.c.l.b16 %v2464
        %v5363 = vunpack.c.h.b16 %v2464
        %v5364 = vunpack.c.l.b16 %v2465
        %v5365 = vunpack.c.h.b16 %v2465
        %v5366 = vunpack.c.l.b16 %v2466
        %v5367 = vunpack.c.h.b16 %v2466
        %v5368 = vunpack.c.l.b16 %v2467
        %v5369 = vunpack.c.h.b16 %v2467
        %v5370 = vunpack.c.l.b16 %v2468
        %v5371 = vunpack.c.h.b16 %v2468
        %v5372 = vunpack.c.l.b16 %v2469
        %v5373 = vunpack.c.h.b16 %v2469
        %v5374 = vunpack.c.l.b16 %v2470
        %v5375 = vunpack.c.h.b16 %v2470
        %v5376 = vunpack.c.l.b16 %v2471
        %v5377 = vunpack.c.h.b16 %v2471
        %v5378 = vunpack.c.l.b16 %v2472
        %v5379 = vunpack.c.h.b16 %v2472
        %v5380 = vunpack.c.l.b16 %v2473
        %v5381 = vunpack.c.h.b16 %v2473
        %v5382 = vunpack.c.l.b16 %v2474
        %v5383 = vunpack.c.h.b16 %v2474
        %v5384 = vunpack.c.l.b16 %v2475
        %v5385 = vunpack.c.h.b16 %v2475
        %v5386 = vunpack.c.l.b16 %v2476
        %v5387 = vunpack.c.h.b16 %v2476
        %v5388 = vunpack.c.l.b16 %v2477
        %v5389 = vunpack.c.h.b16 %v2477
        %v5390 = vunpack.c.l.b16 %v2478
        %v5391 = vunpack.c.h.b16 %v2478
        %v5392 = vunpack.c.l.b16 %v2479
        %v5393 = vunpack.c.h.b16 %v2479
        %v5394 = vunpack.c.l.b16 %v2480
        %v5395 = vunpack.c.h.b16 %v2480
        %v5396 = vunpack.c.l.b16 %v2481
        %v5397 = vunpack.c.h.b16 %v2481
        %v5398 = vunpack.c.l.b16 %v2482
        %v5399 = vunpack.c.h.b16 %v2482
        %v5400 = vunpack.c.l.b16 %v2483
        %v5401 = vunpack.c.h.b16 %v2483
        %v5402 = vunpack.c.l.b16 %v2484
        %v5403 = vunpack.c.h.b16 %v2484
        %v5404 = vunpack.c.l.b16 %v2485
        %v5405 = vunpack.c.h.b16 %v2485
        %v5406 = vunpack.c.l.b16 %v2486
        %v5407 = vunpack.c.h.b16 %v2486
        %v5408 = vunpack.c.l.b16 %v2487
        %v5409 = vunpack.c.h.b16 %v2487
        %v5410 = vunpack.c.l.b16 %v2488
        %v5411 = vunpack.c.h.b16 %v2488
        %v5412 = vunpack.c.l.b16 %v2489
        %v5413 = vunpack.c.h.b16 %v2489
        %v5414 = vunpack.c.l.b16 %v2490
        %v5415 = vunpack.c.h.b16 %v2490
        %v5416 = vunpack.c.l.b16 %v2491
        %v5417 = vunpack.c.h.b16 %v2491
        %v5418 = vunpack.c.l.b16 %v2492
        %v5419 = vunpack.c.h.b16 %v2492
        %v5420 = vunpack.c.l.b16 %v2493
        %v5421 = vunpack.c.h.b16 %v2493
        %v5422 = vunpack.c.l.b16 %v2494
        %v5423 = vunpack.c.h.b16 %v2494
        %v5424 = vunpack.c.l.b16 %v2495
        %v5425 = vunpack.c.h.b16 %v2495
        %v5426 = vunpack.c.l.b16 %v2496
        %v5427 = vunpack.c.h.b16 %v2496
        %v5428 = vunpack.c.l.b16 %v2497
        %v5429 = vunpack.c.h.b16 %v2497
        %v5430 = vunpack.c.l.b16 %v2498
        %v5431 = vunpack.c.h.b16 %v2498
        %v5432 = vunpack.c.l.b16 %v2499
        %v5433 = vunpack.c.h.b16 %v2499
        %v5434 = vunpack.c.l.b16 %v2500
        %v5435 = vunpack.c.h.b16 %v2500
        %v5436 = vunpack.c.l.b16 %v2501
        %v5437 = vunpack.c.h.b16 %v2501
        %v5438 = vunpack.c.l.b16 %v2502
        %v5439 = vunpack.c.h.b16 %v2502
        %v5440 = vunpack.c.l.b16 %v2503
        %v5441 = vunpack.c.h.b16 %v2503
        %v5442 = vunpack.c.l.b16 %v2504
        %v5443 = vunpack.c.h.b16 %v2504
        %v5444 = vunpack.c.l.b16 %v2505
        %v5445 = vunpack.c.h.b16 %v2505
        %v5446 = vunpack.c.l.b16 %v2506
        %v5447 = vunpack.c.h.b16 %v2506
        %v5448 = vunpack.c.l.b16 %v2507
        %v5449 = vunpack.c.h.b16 %v2507
        %v5450 = vunpack.c.l.b16 %v2508
        %v5451 = vunpack.c.h.b16 %v2508
        %v5452 = vunpack.c.l.b16 %v2509
        %v5453 = vunpack.c.h.b16 %v2509
        %v5454 = vunpack.c.l.b16 %v2510
        %v5455 = vunpack.c.h.b16 %v2510
        %v5456 = vunpack.c.l.b16 %v2511
        %v5457 = vunpack.c.h.b16 %v2511
        %v5458 = vunpack.c.l.b16 %v2512
        %v5459 = vunpack.c.h.b16 %v2512
        %v5460 = vunpack.c.l.b16 %v2513
        %v5461 = vunpack.c.h.b16 %v2513
        %v5462 = vunpack.c.l.b16 %v2514
        %v5463 = vunpack.c.h.b16 %v2514
        %v5464 = vunpack.c.l.b16 %v2515
        %v5465 = vunpack.c.h.b16 %v2515
        %v5466 = vunpack.c.l.b16 %v2516
        %v5467 = vunpack.c.h.b16 %v2516
        %v5468 = vunpack.c.l.b16 %v2517
        %v5469 = vunpack.c.h.b16 %v2517
        %v5470 = vunpack.c.l.b16 %v2518
        %v5471 = vunpack.c.h.b16 %v2518
        %v5472 = vunpack.c.l.b16 %v2519
        %v5473 = vunpack.c.h.b16 %v2519
        %v5474 = vunpack.c.l.b16 %v2520
        %v5475 = vunpack.c.h.b16 %v2520
        %v5476 = vunpack.c.l.b16 %v2521
        %v5477 = vunpack.c.h.b16 %v2521
        %v5478 = vunpack.c.l.b16 %v2522
        %v5479 = vunpack.c.h.b16 %v2522
        %v5480 = vunpack.c.l.b16 %v2523
        %v5481 = vunpack.c.h.b16 %v2523
        %v5482 = vunpack.c.l.b16 %v2524
        %v5483 = vunpack.c.h.b16 %v2524
        %v5484 = vunpack.c.l.b16 %v2525
        %v5485 = vunpack.c.h.b16 %v2525
        %v5486 = vunpack.c.l.b16 %v2526
        %v5487 = vunpack.c.h.b16 %v2526
        %v5488 = vunpack.c.l.b16 %v2527
        %v5489 = vunpack.c.h.b16 %v2527
        %v5490 = vunpack.c.l.b16 %v2528
        %v5491 = vunpack.c.h.b16 %v2528
        %v5492 = vunpack.c.l.b16 %v2529
        %v5493 = vunpack.c.h.b16 %v2529
        %v5494 = vunpack.c.l.b16 %v2530
        %v5495 = vunpack.c.h.b16 %v2530
        %v5496 = vunpack.c.l.b16 %v2531
        %v5497 = vunpack.c.h.b16 %v2531
        %v5498 = vunpack.c.l.b16 %v2532
        %v5499 = vunpack.c.h.b16 %v2532
        %v5500 = vunpack.c.l.b16 %v2533
        %v5501 = vunpack.c.h.b16 %v2533
        %v5502 = vunpack.c.l.b16 %v2534
        %v5503 = vunpack.c.h.b16 %v2534
        %v5504 = vunpack.c.l.b16 %v2535
        %v5505 = vunpack.c.h.b16 %v2535
        %v5506 = vunpack.c.l.b16 %v2536
        %v5507 = vunpack.c.h.b16 %v2536
        %v5508 = vunpack.c.l.b16 %v2537
        %v5509 = vunpack.c.h.b16 %v2537
        %v5510 = vunpack.c.l.b16 %v2538
        %v5511 = vunpack.c.h.b16 %v2538
        %v5512 = vunpack.c.l.b16 %v2539
        %v5513 = vunpack.c.h.b16 %v2539
        %v5514 = vunpack.c.l.b16 %v2540
        %v5515 = vunpack.c.h.b16 %v2540
        %v5516 = vunpack.c.l.b16 %v2541
        %v5517 = vunpack.c.h.b16 %v2541
        %v5518 = vunpack.c.l.b16 %v2542
        %v5519 = vunpack.c.h.b16 %v2542
        %v5520 = vunpack.c.l.b16 %v2543
        %v5521 = vunpack.c.h.b16 %v2543
        %v5522 = vunpack.c.l.b16 %v2544
        %v5523 = vunpack.c.h.b16 %v2544
        %v5524 = vunpack.c.l.b16 %v2545
        %v5525 = vunpack.c.h.b16 %v2545
        %v5526 = vunpack.c.l.b16 %v2546
        %v5527 = vunpack.c.h.b16 %v2546
        %v5528 = vunpack.c.l.b16 %v2547
        %v5529 = vunpack.c.h.b16 %v2547
        %v5530 = vunpack.c.l.b16 %v2548
        %v5531 = vunpack.c.h.b16 %v2548
        %v5532 = vunpack.c.l.b16 %v2549
        %v5533 = vunpack.c.h.b16 %v2549
        %v5534 = vunpack.c.l.b16 %v2550
        %v5535 = vunpack.c.h.b16 %v2550
        %v5536 = vunpack.c.l.b16 %v2551
        %v5537 = vunpack.c.h.b16 %v2551
        %v5538 = vunpack.c.l.b16 %v2552
        %v5539 = vunpack.c.h.b16 %v2552
        %v5540 = vunpack.c.l.b16 %v2553
        %v5541 = vunpack.c.h.b16 %v2553
        %v5542 = vunpack.c.l.b16 %v2554
        %v5543 = vunpack.c.h.b16 %v2554
        %v5544 = vunpack.c.l.b16 %v2555
        %v5545 = vunpack.c.h.b16 %v2555
        %v5546 = vunpack.c.l.b16 %v2556
        %v5547 = vunpack.c.h.b16 %v2556
        %v5548 = vunpack.c.l.b16 %v2557
        %v5549 = vunpack.c.h.b16 %v2557
        %v5550 = vunpack.c.l.b16 %v2558
        %v5551 = vunpack.c.h.b16 %v2558
        %v5552 = vunpack.c.l.b16 %v2559
        %v5553 = vunpack.c.h.b16 %v2559
        %v5554 = vunpack.c.l.b16 %v2560
        %v5555 = vunpack.c.h.b16 %v2560
        %v5556 = vunpack.c.l.b16 %v2561
        %v5557 = vunpack.c.h.b16 %v2561
        %v5558 = vunpack.c.l.b16 %v2562
        %v5559 = vunpack.c.h.b16 %v2562
        %v5560 = vunpack.c.l.b16 %v2563
        %v5561 = vunpack.c.h.b16 %v2563
        %v5562 = vunpack.c.l.b16 %v2564
        %v5563 = vunpack.c.h.b16 %v2564
        %v5564 = vunpack.c.l.b16 %v2565
        %v5565 = vunpack.c.h.b16 %v2565
        %v5566 = vunpack.c.l.b16 %v2566
        %v5567 = vunpack.c.h.b16 %v2566
        %v5568 = vunpack.c.l.b16 %v2567
        %v5569 = vunpack.c.h.b16 %v2567
        %v5570 = vunpack.c.l.b16 %v2568
        %v5571 = vunpack.c.h.b16 %v2568
        %v5572 = vunpack.c.l.b16 %v2569
        %v5573 = vunpack.c.h.b16 %v2569
        %v5574 = vunpack.c.l.b16 %v2570
        %v5575 = vunpack.c.h.b16 %v2570
        %v5576 = vunpack.c.l.b16 %v2571
        %v5577 = vunpack.c.h.b16 %v2571
        %v5578 = vunpack.c.l.b16 %v2572
        %v5579 = vunpack.c.h.b16 %v2572
        %v5580 = vunpack.c.l.b16 %v2573
        %v5581 = vunpack.c.h.b16 %v2573
        %v5582 = vunpack.c.l.b16 %v2574
        %v5583 = vunpack.c.h.b16 %v2574
        %v5584 = vunpack.c.l.b16 %v2575
        %v5585 = vunpack.c.h.b16 %v2575
        %v5586 = vunpack.c.l.b16 %v2576
        %v5587 = vunpack.c.h.b16 %v2576
        %v5588 = vunpack.c.l.b16 %v2577
        %v5589 = vunpack.c.h.b16 %v2577
        %v5590 = vunpack.c.l.b16 %v2578
        %v5591 = vunpack.c.h.b16 %v2578
        %v5592 = vunpack.c.l.b16 %v2579
        %v5593 = vunpack.c.h.b16 %v2579
        %v5594 = vunpack.c.l.b16 %v2580
        %v5595 = vunpack.c.h.b16 %v2580
        %v5596 = vunpack.c.l.b16 %v2581
        %v5597 = vunpack.c.h.b16 %v2581
        %v5598 = vunpack.c.l.b16 %v2582
        %v5599 = vunpack.c.h.b16 %v2582
        %v5600 = vunpack.c.l.b16 %v2583
        %v5601 = vunpack.c.h.b16 %v2583
        %v5602 = vunpack.c.l.b16 %v2584
        %v5603 = vunpack.c.h.b16 %v2584
        %v5604 = vunpack.c.l.b16 %v2585
        %v5605 = vunpack.c.h.b16 %v2585
        %v5606 = vunpack.c.l.b16 %v2586
        %v5607 = vunpack.c.h.b16 %v2586
        %v5608 = vunpack.c.l.b16 %v2587
        %v5609 = vunpack.c.h.b16 %v2587
        %v5610 = vunpack.c.l.b16 %v2588
        %v5611 = vunpack.c.h.b16 %v2588
        %v5612 = vunpack.c.l.b16 %v2589
        %v5613 = vunpack.c.h.b16 %v2589
        %v5614 = vunpack.c.l.b16 %v2590
        %v5615 = vunpack.c.h.b16 %v2590
        %v5616 = vunpack.c.l.b16 %v2591
        %v5617 = vunpack.c.h.b16 %v2591
        %v5618 = vunpack.c.l.b16 %v2592
        %v5619 = vunpack.c.h.b16 %v2592
        %v5620 = vunpack.c.l.b16 %v2593
        %v5621 = vunpack.c.h.b16 %v2593
        %v5622 = vunpack.c.l.b16 %v2594
        %v5623 = vunpack.c.h.b16 %v2594
        %v5624 = vunpack.c.l.b16 %v2595
        %v5625 = vunpack.c.h.b16 %v2595
        %v5626 = vunpack.c.l.b16 %v2596
        %v5627 = vunpack.c.h.b16 %v2596
        %v5628 = vunpack.c.l.b16 %v2597
        %v5629 = vunpack.c.h.b16 %v2597
        %v5630 = vunpack.c.l.b16 %v2598
        %v5631 = vunpack.c.h.b16 %v2598
        %v5632 = vunpack.c.l.b16 %v2599
        %v5633 = vunpack.c.h.b16 %v2599
        %v5634 = vunpack.c.l.b16 %v2600
        %v5635 = vunpack.c.h.b16 %v2600
        %v5636 = vunpack.c.l.b16 %v2601
        %v5637 = vunpack.c.h.b16 %v2601
        %v5638 = vunpack.c.l.b16 %v2602
        %v5639 = vunpack.c.h.b16 %v2602
        %v5640 = vunpack.c.l.b16 %v2603
        %v5641 = vunpack.c.h.b16 %v2603
        %v5642 = vunpack.c.l.b16 %v2604
        %v5643 = vunpack.c.h.b16 %v2604
        %v5644 = vunpack.c.l.b16 %v2605
        %v5645 = vunpack.c.h.b16 %v2605
        %v5646 = vunpack.c.l.b16 %v2606
        %v5647 = vunpack.c.h.b16 %v2606
        %v5648 = vunpack.c.l.b16 %v2607
        %v5649 = vunpack.c.h.b16 %v2607
        %v5650 = vunpack.c.l.b16 %v2608
        %v5651 = vunpack.c.h.b16 %v2608
        %v5652 = vunpack.c.l.b16 %v2609
        %v5653 = vunpack.c.h.b16 %v2609
        %v5654 = vunpack.c.l.b16 %v2610
        %v5655 = vunpack.c.h.b16 %v2610
        %v5656 = vunpack.c.l.b16 %v2611
        %v5657 = vunpack.c.h.b16 %v2611
        %v5658 = vunpack.c.l.b16 %v2612
        %v5659 = vunpack.c.h.b16 %v2612
        %v5660 = vunpack.c.l.b16 %v2613
        %v5661 = vunpack.c.h.b16 %v2613
        %v5662 = vunpack.c.l.b16 %v2614
        %v5663 = vunpack.c.h.b16 %v2614
        %v5664 = vunpack.c.l.b16 %v2615
        %v5665 = vunpack.c.h.b16 %v2615
        %v5666 = vunpack.c.l.b16 %v2616
        %v5667 = vunpack.c.h.b16 %v2616
        %v5668 = vunpack.c.l.b16 %v2617
        %v5669 = vunpack.c.h.b16 %v2617
        %v5670 = vunpack.c.l.b16 %v2618
        %v5671 = vunpack.c.h.b16 %v2618
        %v5672 = vunpack.c.l.b16 %v2619
        %v5673 = vunpack.c.h.b16 %v2619
        %v5674 = vunpack.c.l.b16 %v2620
        %v5675 = vunpack.c.h.b16 %v2620
        %v5676 = vunpack.c.l.b16 %v2621
        %v5677 = vunpack.c.h.b16 %v2621
        %v5678 = vunpack.c.l.b16 %v2622
        %v5679 = vunpack.c.h.b16 %v2622
        %v5680 = vunpack.c.l.b16 %v2623
        %v5681 = vunpack.c.h.b16 %v2623
        %v5682 = vunpack.c.l.b16 %v2624
        %v5683 = vunpack.c.h.b16 %v2624
        %v5684 = vunpack.c.l.b16 %v2625
        %v5685 = vunpack.c.h.b16 %v2625
        %v5686 = vunpack.c.l.b16 %v2626
        %v5687 = vunpack.c.h.b16 %v2626
        %v5688 = vunpack.c.l.b16 %v2627
        %v5689 = vunpack.c.h.b16 %v2627
        %v5690 = vunpack.c.l.b16 %v2628
        %v5691 = vunpack.c.h.b16 %v2628
        %v5692 = vunpack.c.l.b16 %v2629
        %v5693 = vunpack.c.h.b16 %v2629
        %v5694 = vunpack.c.l.b16 %v2630
        %v5695 = vunpack.c.h.b16 %v2630
        %v5696 = vunpack.c.l.b16 %v2631
        %v5697 = vunpack.c.h.b16 %v2631
        %v5698 = vunpack.c.l.b16 %v2632
        %v5699 = vunpack.c.h.b16 %v2632
        %v5700 = vunpack.c.l.b16 %v2633
        %v5701 = vunpack.c.h.b16 %v2633
        %v5702 = vunpack.c.l.b16 %v2634
        %v5703 = vunpack.c.h.b16 %v2634
        %v5704 = vunpack.c.l.b16 %v2635
        %v5705 = vunpack.c.h.b16 %v2635
        %v5706 = vunpack.c.l.b16 %v2636
        %v5707 = vunpack.c.h.b16 %v2636
        %v5708 = vunpack.c.l.b16 %v2637
        %v5709 = vunpack.c.h.b16 %v2637
        %v5710 = vunpack.c.l.b16 %v2638
        %v5711 = vunpack.c.h.b16 %v2638
        %v5712 = vunpack.c.l.b16 %v2639
        %v5713 = vunpack.c.h.b16 %v2639
        %v5714 = vunpack.c.l.b16 %v2640
        %v5715 = vunpack.c.h.b16 %v2640
        %v5716 = vunpack.c.l.b16 %v2641
        %v5717 = vunpack.c.h.b16 %v2641
        %v5718 = vunpack.c.l.b16 %v2642
        %v5719 = vunpack.c.h.b16 %v2642
        %v5720 = vunpack.c.l.b16 %v2643
        %v5721 = vunpack.c.h.b16 %v2643
        %v5722 = vunpack.c.l.b16 %v2644
        %v5723 = vunpack.c.h.b16 %v2644
        %v5724 = vunpack.c.l.b16 %v2645
        %v5725 = vunpack.c.h.b16 %v2645
        %v5726 = vunpack.c.l.b16 %v2646
        %v5727 = vunpack.c.h.b16 %v2646
        %v5728 = vunpack.c.l.b16 %v2647
        %v5729 = vunpack.c.h.b16 %v2647
        %v5730 = vunpack.c.l.b16 %v2648
        %v5731 = vunpack.c.h.b16 %v2648
        %v5732 = vunpack.c.l.b16 %v2649
        %v5733 = vunpack.c.h.b16 %v2649
        %v5734 = vunpack.c.l.b16 %v2650
        %v5735 = vunpack.c.h.b16 %v2650
        %v5736 = vunpack.c.l.b16 %v2651
        %v5737 = vunpack.c.h.b16 %v2651
        %v5738 = vunpack.c.l.b16 %v2652
        %v5739 = vunpack.c.h.b16 %v2652
        %v5740 = vunpack.c.l.b16 %v2653
        %v5741 = vunpack.c.h.b16 %v2653
        %v5742 = vunpack.c.l.b16 %v2654
        %v5743 = vunpack.c.h.b16 %v2654
        %v5744 = vunpack.c.l.b16 %v2655
        %v5745 = vunpack.c.h.b16 %v2655
        %v5746 = vunpack.c.l.b16 %v2656
        %v5747 = vunpack.c.h.b16 %v2656
        %v5748 = vunpack.c.l.b16 %v2657
        %v5749 = vunpack.c.h.b16 %v2657
        %v5750 = vunpack.c.l.b16 %v2658
        %v5751 = vunpack.c.h.b16 %v2658
        %v5752 = vunpack.c.l.b16 %v2659
        %v5753 = vunpack.c.h.b16 %v2659
        %v5754 = vunpack.c.l.b16 %v2660
        %v5755 = vunpack.c.h.b16 %v2660
        %v5756 = vunpack.c.l.b16 %v2661
        %v5757 = vunpack.c.h.b16 %v2661
        %v5758 = vunpack.c.l.b16 %v2662
        %v5759 = vunpack.c.h.b16 %v2662
        %v5760 = vunpack.c.l.b16 %v2663
        %v5761 = vunpack.c.h.b16 %v2663
        %v5762 = vunpack.c.l.b16 %v2664
        %v5763 = vunpack.c.h.b16 %v2664
        %v5764 = vunpack.c.l.b16 %v2665
        %v5765 = vunpack.c.h.b16 %v2665
        %v5766 = vunpack.c.l.b16 %v2666
        %v5767 = vunpack.c.h.b16 %v2666
        %v5768 = vunpack.c.l.b16 %v2667
        %v5769 = vunpack.c.h.b16 %v2667
        %v5770 = vunpack.c.l.b16 %v2668
        %v5771 = vunpack.c.h.b16 %v2668
        %v5772 = vunpack.c.l.b16 %v2669
        %v5773 = vunpack.c.h.b16 %v2669
        %v5774 = vunpack.c.l.b16 %v2670
        %v5775 = vunpack.c.h.b16 %v2670
        %v5776 = vunpack.c.l.b16 %v2671
        %v5777 = vunpack.c.h.b16 %v2671
        %v5778 = vunpack.c.l.b16 %v2672
        %v5779 = vunpack.c.h.b16 %v2672
        %v5780 = vunpack.c.l.b16 %v2673
        %v5781 = vunpack.c.h.b16 %v2673
        %v5782 = vunpack.c.l.b16 %v2674
        %v5783 = vunpack.c.h.b16 %v2674
        %v5784 = vunpack.c.l.b16 %v2675
        %v5785 = vunpack.c.h.b16 %v2675
        %v5786 = vunpack.c.l.b16 %v2676
        %v5787 = vunpack.c.h.b16 %v2676
        %v5788 = vunpack.c.l.b16 %v2677
        %v5789 = vunpack.c.h.b16 %v2677
        %v5790 = vunpack.c.l.b16 %v2678
        %v5791 = vunpack.c.h.b16 %v2678
        %v5792 = vunpack.c.l.b16 %v2679
        %v5793 = vunpack.c.h.b16 %v2679
        %v5794 = vunpack.c.l.b16 %v2680
        %v5795 = vunpack.c.h.b16 %v2680
        %v5796 = vunpack.c.l.b16 %v2681
        %v5797 = vunpack.c.h.b16 %v2681
        %v5798 = vunpack.c.l.b16 %v2682
        %v5799 = vunpack.c.h.b16 %v2682
        %v5800 = vunpack.c.l.b16 %v2683
        %v5801 = vunpack.c.h.b16 %v2683
        %v5802 = vunpack.c.l.b16 %v2684
        %v5803 = vunpack.c.h.b16 %v2684
        %v5804 = vunpack.c.l.b16 %v2685
        %v5805 = vunpack.c.h.b16 %v2685
        %v5806 = vunpack.c.l.b16 %v2686
        %v5807 = vunpack.c.h.b16 %v2686
        %v5808 = vunpack.c.l.b16 %v2687
        %v5809 = vunpack.c.h.b16 %v2687
        %v5810 = vunpack.c.l.b16 %v2688
        %v5811 = vunpack.c.h.b16 %v2688
        %v5812 = vunpack.c.l.b16 %v2689
        %v5813 = vunpack.c.h.b16 %v2689
        %v5814 = vunpack.c.l.b16 %v2690
        %v5815 = vunpack.c.h.b16 %v2690
        %v5816 = vunpack.c.l.b16 %v2691
        %v5817 = vunpack.c.h.b16 %v2691
        %v5818 = vunpack.c.l.b16 %v2692
        %v5819 = vunpack.c.h.b16 %v2692
        %v5820 = vunpack.c.l.b16 %v2693
        %v5821 = vunpack.c.h.b16 %v2693
        %v5822 = vunpack.c.l.b16 %v2694
        %v5823 = vunpack.c.h.b16 %v2694
        %v5824 = vunpack.c.l.b16 %v2695
        %v5825 = vunpack.c.h.b16 %v2695
        %v5826 = vunpack.c.l.b16 %v2696
        %v5827 = vunpack.c.h.b16 %v2696
        %v5828 = vunpack.c.l.b16 %v2697
        %v5829 = vunpack.c.h.b16 %v2697
        %v5830 = vunpack.c.l.b16 %v2698
        %v5831 = vunpack.c.h.b16 %v2698
        %v5832 = vunpack.c.l.b16 %v2699
        %v5833 = vunpack.c.h.b16 %v2699
        %v5834 = vunpack.c.l.b16 %v2700
        %v5835 = vunpack.c.h.b16 %v2700
        %v5836 = vunpack.c.l.b16 %v2701
        %v5837 = vunpack.c.h.b16 %v2701
        %v5838 = vunpack.c.l.b16 %v2702
        %v5839 = vunpack.c.h.b16 %v2702
        %v5840 = vunpack.c.l.b16 %v2703
        %v5841 = vunpack.c.h.b16 %v2703
        %v5842 = vunpack.c.l.b16 %v2704
        %v5843 = vunpack.c.h.b16 %v2704
        %v5844 = vunpack.c.l.b16 %v2705
        %v5845 = vunpack.c.h.b16 %v2705
        %v5846 = vunpack.c.l.b16 %v2706
        %v5847 = vunpack.c.h.b16 %v2706
        %v5848 = vunpack.c.l.b16 %v2707
        %v5849 = vunpack.c.h.b16 %v2707
        %v5850 = vunpack.c.l.b16 %v2708
        %v5851 = vunpack.c.h.b16 %v2708
        %v5852 = vunpack.c.l.b16 %v2709
        %v5853 = vunpack.c.h.b16 %v2709
        %v5854 = vunpack.c.l.b16 %v2710
        %v5855 = vunpack.c.h.b16 %v2710
        %v5856 = vunpack.c.l.b16 %v2711
        %v5857 = vunpack.c.h.b16 %v2711
        %v5858 = vunpack.c.l.b16 %v2712
        %v5859 = vunpack.c.h.b16 %v2712
        %v5860 = vunpack.c.l.b16 %v2713
        %v5861 = vunpack.c.h.b16 %v2713
        %v5862 = vunpack.c.l.b16 %v2714
        %v5863 = vunpack.c.h.b16 %v2714
        %v5864 = vunpack.c.l.b16 %v2715
        %v5865 = vunpack.c.h.b16 %v2715
        %v5866 = vunpack.c.l.b16 %v2716
        %v5867 = vunpack.c.h.b16 %v2716
        %v5868 = vunpack.c.l.b16 %v2717
        %v5869 = vunpack.c.h.b16 %v2717
        %v5870 = vunpack.c.l.b16 %v2718
        %v5871 = vunpack.c.h.b16 %v2718
        %v5872 = vunpack.c.l.b16 %v2719
        %v5873 = vunpack.c.h.b16 %v2719
        %v5874 = vunpack.c.l.b16 %v2720
        %v5875 = vunpack.c.h.b16 %v2720
        %v5876 = vunpack.c.l.b16 %v2721
        %v5877 = vunpack.c.h.b16 %v2721
        %v5878 = vunpack.c.l.b16 %v2722
        %v5879 = vunpack.c.h.b16 %v2722
        %v5880 = vunpack.c.l.b16 %v2723
        %v5881 = vunpack.c.h.b16 %v2723
        %v5882 = vunpack.c.l.b16 %v2724
        %v5883 = vunpack.c.h.b16 %v2724
        %v5884 = vunpack.c.l.b16 %v2725
        %v5885 = vunpack.c.h.b16 %v2725
        %v5886 = vunpack.c.l.b16 %v2726
        %v5887 = vunpack.c.h.b16 %v2726
        %v5888 = vunpack.c.l.b16 %v2727
        %v5889 = vunpack.c.h.b16 %v2727
        %v5890 = vunpack.c.l.b16 %v2728
        %v5891 = vunpack.c.h.b16 %v2728
        %v5892 = vunpack.c.l.b16 %v2729
        %v5893 = vunpack.c.h.b16 %v2729
        %v5894 = vunpack.c.l.b16 %v2730
        %v5895 = vunpack.c.h.b16 %v2730
        %v5896 = vunpack.c.l.b16 %v2731
        %v5897 = vunpack.c.h.b16 %v2731
        %v5898 = vunpack.c.l.b16 %v2732
        %v5899 = vunpack.c.h.b16 %v2732
        %v5900 = vunpack.c.l.b16 %v2733
        %v5901 = vunpack.c.h.b16 %v2733
        %v5902 = vunpack.c.l.b16 %v2734
        %v5903 = vunpack.c.h.b16 %v2734
        %v5904 = vunpack.c.l.b16 %v2735
        %v5905 = vunpack.c.h.b16 %v2735
        %v5906 = vunpack.c.l.b16 %v2736
        %v5907 = vunpack.c.h.b16 %v2736
        %v5908 = vunpack.c.l.b16 %v2737
        %v5909 = vunpack.c.h.b16 %v2737
        %v5910 = vunpack.c.l.b16 %v2738
        %v5911 = vunpack.c.h.b16 %v2738
        %v5912 = vunpack.c.l.b16 %v2739
        %v5913 = vunpack.c.h.b16 %v2739
        %v5914 = vunpack.c.l.b16 %v2740
        %v5915 = vunpack.c.h.b16 %v2740
        %v5916 = vunpack.c.l.b16 %v2741
        %v5917 = vunpack.c.h.b16 %v2741
        %v5918 = vunpack.c.l.b16 %v2742
        %v5919 = vunpack.c.h.b16 %v2742
        %v5920 = vunpack.c.l.b16 %v2743
        %v5921 = vunpack.c.h.b16 %v2743
        %v5922 = vunpack.c.l.b16 %v2744
        %v5923 = vunpack.c.h.b16 %v2744
        %v5924 = vunpack.c.l.b16 %v2745
        %v5925 = vunpack.c.h.b16 %v2745
        %v5926 = vunpack.c.l.b16 %v2746
        %v5927 = vunpack.c.h.b16 %v2746
        %v5928 = vunpack.c.l.b16 %v2747
        %v5929 = vunpack.c.h.b16 %v2747
        %v5930 = vunpack.c.l.b16 %v2748
        %v5931 = vunpack.c.h.b16 %v2748
        %v5932 = vunpack.c.l.b16 %v2749
        %v5933 = vunpack.c.h.b16 %v2749
        %v5934 = vunpack.c.l.b16 %v2750
        %v5935 = vunpack.c.h.b16 %v2750
        %v5936 = vunpack.c.l.b16 %v2751
        %v5937 = vunpack.c.h.b16 %v2751
        %v5938 = vunpack.c.l.b16 %v2752
        %v5939 = vunpack.c.h.b16 %v2752
        %v5940 = vunpack.c.l.b16 %v2753
        %v5941 = vunpack.c.h.b16 %v2753
        %v5942 = vunpack.c.l.b16 %v2754
        %v5943 = vunpack.c.h.b16 %v2754
        %v5944 = vunpack.c.l.b16 %v2755
        %v5945 = vunpack.c.h.b16 %v2755
        %v5946 = vunpack.c.l.b16 %v2756
        %v5947 = vunpack.c.h.b16 %v2756
        %v5948 = vunpack.c.l.b16 %v2757
        %v5949 = vunpack.c.h.b16 %v2757
        %v5950 = vunpack.c.l.b16 %v2758
        %v5951 = vunpack.c.h.b16 %v2758
        %v5952 = vunpack.c.l.b16 %v2759
        %v5953 = vunpack.c.h.b16 %v2759
        %v5954 = vunpack.c.l.b16 %v2760
        %v5955 = vunpack.c.h.b16 %v2760
        %v5956 = vunpack.c.l.b16 %v2761
        %v5957 = vunpack.c.h.b16 %v2761
        %v5958 = vunpack.c.l.b16 %v2762
        %v5959 = vunpack.c.h.b16 %v2762
        %v5960 = vunpack.c.l.b16 %v2763
        %v5961 = vunpack.c.h.b16 %v2763
        %v5962 = vunpack.c.l.b16 %v2764
        %v5963 = vunpack.c.h.b16 %v2764
        %v5964 = vunpack.c.l.b16 %v2765
        %v5965 = vunpack.c.h.b16 %v2765
        %v5966 = vunpack.c.l.b16 %v2766
        %v5967 = vunpack.c.h.b16 %v2766
        %v5968 = vunpack.c.l.b16 %v2767
        %v5969 = vunpack.c.h.b16 %v2767
        %v5970 = vunpack.c.l.b16 %v2768
        %v5971 = vunpack.c.h.b16 %v2768
        %v5972 = vunpack.c.l.b16 %v2769
        %v5973 = vunpack.c.h.b16 %v2769
        %v5974 = vunpack.c.l.b16 %v2770
        %v5975 = vunpack.c.h.b16 %v2770
        %v5976 = vunpack.c.l.b16 %v2771
        %v5977 = vunpack.c.h.b16 %v2771
        %v5978 = vunpack.c.l.b16 %v2772
        %v5979 = vunpack.c.h.b16 %v2772
        %v5980 = vunpack.c.l.b16 %v2773
        %v5981 = vunpack.c.h.b16 %v2773
        %v5982 = vunpack.c.l.b16 %v2774
        %v5983 = vunpack.c.h.b16 %v2774
        %v5984 = vunpack.c.l.b16 %v2775
        %v5985 = vunpack.c.h.b16 %v2775
        %v5986 = vunpack.c.l.b16 %v2776
        %v5987 = vunpack.c.h.b16 %v2776
        %v5988 = vunpack.c.l.b16 %v2777
        %v5989 = vunpack.c.h.b16 %v2777
        %v5990 = vunpack.c.l.b16 %v2778
        %v5991 = vunpack.c.h.b16 %v2778
        %v5992 = vunpack.c.l.b16 %v2779
        %v5993 = vunpack.c.h.b16 %v2779
        %v5994 = vunpack.c.l.b16 %v2780
        %v5995 = vunpack.c.h.b16 %v2780
        %v5996 = vunpack.c.l.b16 %v2781
        %v5997 = vunpack.c.h.b16 %v2781
        %v5998 = vunpack.c.l.b16 %v2782
        %v5999 = vunpack.c.h.b16 %v2782
        %v6000 = vunpack.c.l.b16 %v2783
        %v6001 = vunpack.c.h.b16 %v2783
        %v6002 = vunpack.c.l.b16 %v2784
        %v6003 = vunpack.c.h.b16 %v2784
        %v6004 = vunpack.c.l.b16 %v2785
        %v6005 = vunpack.c.h.b16 %v2785
        %v6006 = vunpack.c.l.b16 %v2786
        %v6007 = vunpack.c.h.b16 %v2786
        %v6008 = vunpack.c.l.b16 %v2787
        %v6009 = vunpack.c.h.b16 %v2787
        %v6010 = vunpack.c.l.b16 %v2788
        %v6011 = vunpack.c.h.b16 %v2788
        %v6012 = vunpack.c.l.b16 %v2789
        %v6013 = vunpack.c.h.b16 %v2789
        %v6014 = vunpack.c.l.b16 %v2790
        %v6015 = vunpack.c.h.b16 %v2790
        %v6016 = vunpack.c.l.b16 %v2791
        %v6017 = vunpack.c.h.b16 %v2791
        %v6018 = vunpack.c.l.b16 %v2792
        %v6019 = vunpack.c.h.b16 %v2792
        %v6020 = vunpack.c.l.b16 %v2793
        %v6021 = vunpack.c.h.b16 %v2793
        %v6022 = vunpack.c.l.b16 %v2794
        %v6023 = vunpack.c.h.b16 %v2794
        %v6024 = vunpack.c.l.b16 %v2795
        %v6025 = vunpack.c.h.b16 %v2795
        %v6026 = vunpack.c.l.b16 %v2796
        %v6027 = vunpack.c.h.b16 %v2796
        %v6028 = vunpack.c.l.b16 %v2797
        %v6029 = vunpack.c.h.b16 %v2797
        %v6030 = vunpack.c.l.b16 %v2798
        %v6031 = vunpack.c.h.b16 %v2798
        %v6032 = vunpack.c.l.b16 %v2799
        %v6033 = vunpack.c.h.b16 %v2799
        %v6034 = vunpack.c.l.b16 %v2800
        %v6035 = vunpack.c.h.b16 %v2800
        %v6036 = vunpack.c.l.b16 %v2801
        %v6037 = vunpack.c.h.b16 %v2801
        %v6038 = vunpack.c.l.b16 %v2802
        %v6039 = vunpack.c.h.b16 %v2802
        %v6040 = vunpack.c.l.b16 %v2803
        %v6041 = vunpack.c.h.b16 %v2803
        %v6042 = vunpack.c.l.b16 %v2804
        %v6043 = vunpack.c.h.b16 %v2804
        %v6044 = vunpack.c.l.b16 %v2805
        %v6045 = vunpack.c.h.b16 %v2805
        %v6046 = vunpack.c.l.b16 %v2806
        %v6047 = vunpack.c.h.b16 %v2806
        %v6048 = vunpack.c.l.b16 %v2807
        %v6049 = vunpack.c.h.b16 %v2807
        %v6050 = vunpack.c.l.b16 %v2808
        %v6051 = vunpack.c.h.b16 %v2808
        %v6052 = vunpack.c.l.b16 %v2809
        %v6053 = vunpack.c.h.b16 %v2809
        %v6054 = vunpack.c.l.b16 %v2810
        %v6055 = vunpack.c.h.b16 %v2810
        %v6056 = vunpack.c.l.b16 %v2811
        %v6057 = vunpack.c.h.b16 %v2811
        %v6058 = vunpack.c.l.b16 %v2812
        %v6059 = vunpack.c.h.b16 %v2812
        %v6060 = vunpack.c.l.b16 %v2813
        %v6061 = vunpack.c.h.b16 %v2813
        %v6062 = vunpack.c.l.b16 %v2814
        %v6063 = vunpack.c.h.b16 %v2814
        %v6064 = vunpack.c.l.b16 %v2815
        %v6065 = vunpack.c.h.b16 %v2815
        %v6066 = vunpack.c.l.b16 %v2816
        %v6067 = vunpack.c.h.b16 %v2816
        %v6068 = vunpack.c.l.b16 %v2817
        %v6069 = vunpack.c.h.b16 %v2817
        %v6070 = vunpack.c.l.b16 %v2818
        %v6071 = vunpack.c.h.b16 %v2818
        %v6072 = vunpack.c.l.b16 %v2819
        %v6073 = vunpack.c.h.b16 %v2819
        %v6074 = vunpack.c.l.b16 %v2820
        %v6075 = vunpack.c.h.b16 %v2820
        %v6076 = vunpack.c.l.b16 %v2821
        %v6077 = vunpack.c.h.b16 %v2821
        %v6078 = vunpack.c.l.b16 %v2822
        %v6079 = vunpack.c.h.b16 %v2822
        %v6080 = vunpack.c.l.b16 %v2823
        %v6081 = vunpack.c.h.b16 %v2823
        %v6082 = vunpack.c.l.b16 %v2824
        %v6083 = vunpack.c.h.b16 %v2824
        %v6084 = vunpack.c.l.b16 %v2825
        %v6085 = vunpack.c.h.b16 %v2825
        %v6086 = vunpack.c.l.b16 %v2826
        %v6087 = vunpack.c.h.b16 %v2826
        %v6088 = vunpack.c.l.b16 %v2827
        %v6089 = vunpack.c.h.b16 %v2827
        %v6090 = vunpack.c.l.b16 %v2828
        %v6091 = vunpack.c.h.b16 %v2828
        %v6092 = vunpack.c.l.b16 %v2829
        %v6093 = vunpack.c.h.b16 %v2829
        %v6094 = vunpack.c.l.b16 %v2830
        %v6095 = vunpack.c.h.b16 %v2830
        %v6096 = vunpack.c.l.b16 %v2831
        %v6097 = vunpack.c.h.b16 %v2831
        %v6098 = vunpack.c.l.b16 %v2832
        %v6099 = vunpack.c.h.b16 %v2832
        %v6100 = vunpack.c.l.b16 %v2833
        %v6101 = vunpack.c.h.b16 %v2833
        %v6102 = vunpack.c.l.b16 %v2834
        %v6103 = vunpack.c.h.b16 %v2834
        %v6104 = vunpack.c.l.b16 %v2835
        %v6105 = vunpack.c.h.b16 %v2835
        %v6106 = vunpack.c.l.b16 %v2836
        %v6107 = vunpack.c.h.b16 %v2836
        %v6108 = vunpack.c.l.b16 %v2837
        %v6109 = vunpack.c.h.b16 %v2837
        %v6110 = vunpack.c.l.b16 %v2838
        %v6111 = vunpack.c.h.b16 %v2838
        %v6112 = vunpack.c.l.b16 %v2839
        %v6113 = vunpack.c.h.b16 %v2839
        %v6114 = vunpack.c.l.b16 %v2840
        %v6115 = vunpack.c.h.b16 %v2840
        %v6116 = vunpack.c.l.b16 %v2841
        %v6117 = vunpack.c.h.b16 %v2841
        %v6118 = vunpack.c.l.b16 %v2842
        %v6119 = vunpack.c.h.b16 %v2842
        %v6120 = vunpack.c.l.b16 %v2843
        %v6121 = vunpack.c.h.b16 %v2843
        %v6122 = vunpack.c.l.b16 %v2844
        %v6123 = vunpack.c.h.b16 %v2844
        %v6124 = vunpack.c.l.b16 %v2845
        %v6125 = vunpack.c.h.b16 %v2845
        %v6126 = vunpack.c.l.b16 %v2846
        %v6127 = vunpack.c.h.b16 %v2846
        %v6128 = vunpack.c.l.b16 %v2847
        %v6129 = vunpack.c.h.b16 %v2847
        %v6130 = vunpack.c.l.b16 %v2848
        %v6131 = vunpack.c.h.b16 %v2848
        %v6132 = vunpack.c.l.b16 %v2849
        %v6133 = vunpack.c.h.b16 %v2849
        %v6134 = vunpack.c.l.b16 %v2850
        %v6135 = vunpack.c.h.b16 %v2850
        %v6136 = vunpack.c.l.b16 %v2851
        %v6137 = vunpack.c.h.b16 %v2851
        %v6138 = vunpack.c.l.b16 %v2852
        %v6139 = vunpack.c.h.b16 %v2852
        %v6140 = vunpack.c.l.b16 %v2853
        %v6141 = vunpack.c.h.b16 %v2853
        %v6142 = vunpack.c.l.b16 %v2854
        %v6143 = vunpack.c.h.b16 %v2854
        %v6144 = vunpack.c.l.b16 %v2855
        %v6145 = vunpack.c.h.b16 %v2855
        %v6146 = vunpack.c.l.b16 %v2856
        %v6147 = vunpack.c.h.b16 %v2856
        %v6148 = vunpack.c.l.b16 %v2857
        %v6149 = vunpack.c.h.b16 %v2857
        %v6150 = vunpack.c.l.b16 %v2858
        %v6151 = vunpack.c.h.b16 %v2858
        %v6152 = vunpack.c.l.b16 %v2859
        %v6153 = vunpack.c.h.b16 %v2859
        %v6154 = vunpack.c.l.b16 %v2860
        %v6155 = vunpack.c.h.b16 %v2860
        %v6156 = vunpack.c.l.b16 %v2861
        %v6157 = vunpack.c.h.b16 %v2861
        %v6158 = vunpack.c.l.b16 %v2862
        %v6159 = vunpack.c.h.b16 %v2862
        %v6160 = vunpack.c.l.b16 %v2863
        %v6161 = vunpack.c.h.b16 %v2863
        %v6162 = vunpack.c.l.b16 %v2864
        %v6163 = vunpack.c.h.b16 %v2864
        %v6164 = vunpack.c.l.b16 %v2865
        %v6165 = vunpack.c.h.b16 %v2865
        %v6166 = vunpack.c.l.b16 %v2866
        %v6167 = vunpack.c.h.b16 %v2866
        %v6168 = vunpack.c.l.b16 %v2867
        %v6169 = vunpack.c.h.b16 %v2867
        %v6170 = vunpack.c.l.b16 %v2868
        %v6171 = vunpack.c.h.b16 %v2868
        %v6172 = vunpack.c.l.b16 %v2869
        %v6173 = vunpack.c.h.b16 %v2869
        %v6174 = vunpack.c.l.b16 %v2870
        %v6175 = vunpack.c.h.b16 %v2870
        %v6176 = vunpack.c.l.b16 %v2871
        %v6177 = vunpack.c.h.b16 %v2871
        %v6178 = vunpack.c.l.b16 %v2872
        %v6179 = vunpack.c.h.b16 %v2872
        %v6180 = vunpack.c.l.b16 %v2873
        %v6181 = vunpack.c.h.b16 %v2873
        %v6182 = vunpack.c.l.b16 %v2874
        %v6183 = vunpack.c.h.b16 %v2874
        %v6184 = vunpack.c.l.b16 %v2875
        %v6185 = vunpack.c.h.b16 %v2875
        %v6186 = vunpack.c.l.b16 %v2876
        %v6187 = vunpack.c.h.b16 %v2876
        %v6188 = vunpack.c.l.b16 %v2877
        %v6189 = vunpack.c.h.b16 %v2877
        %v6190 = vunpack.c.l.b16 %v2878
        %v6191 = vunpack.c.h.b16 %v2878
        %v6192 = vunpack.c.l.b16 %v2879
        %v6193 = vunpack.c.h.b16 %v2879
        %v6194 = vunpack.c.l.b16 %v2880
        %v6195 = vunpack.c.h.b16 %v2880
        %v6196 = vunpack.c.l.b16 %v2881
        %v6197 = vunpack.c.h.b16 %v2881
        %v6198 = vunpack.c.l.b16 %v2882
        %v6199 = vunpack.c.h.b16 %v2882
        %v6200 = vunpack.c.l.b16 %v2883
        %v6201 = vunpack.c.h.b16 %v2883
        %v6202 = vunpack.c.l.b16 %v2884
        %v6203 = vunpack.c.h.b16 %v2884
        %v6204 = vunpack.c.l.b16 %v2885
        %v6205 = vunpack.c.h.b16 %v2885
        %v6206 = vunpack.c.l.b16 %v2886
        %v6207 = vunpack.c.h.b16 %v2886
        %v6208 = vunpack.c.l.b16 %v2887
        %v6209 = vunpack.c.h.b16 %v2887
        %v6210 = vunpack.c.l.b16 %v2888
        %v6211 = vunpack.c.h.b16 %v2888
        %v6212 = vunpack.c.l.b16 %v2889
        %v6213 = vunpack.c.h.b16 %v2889
        %v6214 = vunpack.c.l.b16 %v2890
        %v6215 = vunpack.c.h.b16 %v2890
        %v6216 = vunpack.c.l.b16 %v2891
        %v6217 = vunpack.c.h.b16 %v2891
        %v6218 = vunpack.c.l.b16 %v2892
        %v6219 = vunpack.c.h.b16 %v2892
        %v6220 = vunpack.c.l.b16 %v2893
        %v6221 = vunpack.c.h.b16 %v2893
        %v6222 = vunpack.c.l.b16 %v2894
        %v6223 = vunpack.c.h.b16 %v2894
        %v6224 = vunpack.c.l.b16 %v2895
        %v6225 = vunpack.c.h.b16 %v2895
        %v6226 = vunpack.c.l.b16 %v2896
        %v6227 = vunpack.c.h.b16 %v2896
        %v6228 = vunpack.c.l.b16 %v2897
        %v6229 = vunpack.c.h.b16 %v2897
        %v6230 = vunpack.c.l.b16 %v2898
        %v6231 = vunpack.c.h.b16 %v2898
        %v6232 = vunpack.c.l.b16 %v2899
        %v6233 = vunpack.c.h.b16 %v2899
        %v6234 = vunpack.c.l.b16 %v2900
        %v6235 = vunpack.c.h.b16 %v2900
        %v6236 = vunpack.c.l.b16 %v2901
        %v6237 = vunpack.c.h.b16 %v2901
        %v6238 = vunpack.c.l.b16 %v2902
        %v6239 = vunpack.c.h.b16 %v2902
        %v6240 = vunpack.c.l.b16 %v2903
        %v6241 = vunpack.c.h.b16 %v2903
        %v6242 = vunpack.c.l.b16 %v2904
        %v6243 = vunpack.c.h.b16 %v2904
        %v6244 = vunpack.c.l.b16 %v2905
        %v6245 = vunpack.c.h.b16 %v2905
        %v6246 = vunpack.c.l.b16 %v2906
        %v6247 = vunpack.c.h.b16 %v2906
        %v6248 = vunpack.c.l.b16 %v2907
        %v6249 = vunpack.c.h.b16 %v2907
        %v6250 = vunpack.c.l.b16 %v2908
        %v6251 = vunpack.c.h.b16 %v2908
        %v6252 = vunpack.c.l.b16 %v2909
        %v6253 = vunpack.c.h.b16 %v2909
        %v6254 = vunpack.c.l.b16 %v2910
        %v6255 = vunpack.c.h.b16 %v2910
        %v6256 = vunpack.c.l.b16 %v2911
        %v6257 = vunpack.c.h.b16 %v2911
        %v6258 = vunpack.c.l.b16 %v2912
        %v6259 = vunpack.c.h.b16 %v2912
        %v6260 = vunpack.c.l.b16 %v2913
        %v6261 = vunpack.c.h.b16 %v2913
        %v6262 = vunpack.c.l.b16 %v2914
        %v6263 = vunpack.c.h.b16 %v2914
        %v6264 = vunpack.c.l.b16 %v2915
        %v6265 = vunpack.c.h.b16 %v2915
        %v6266 = vunpack.c.l.b16 %v2916
        %v6267 = vunpack.c.h.b16 %v2916
        %v6268 = vunpack.c.l.b16 %v2917
        %v6269 = vunpack.c.h.b16 %v2917
        %v6270 = vunpack.c.l.b16 %v2918
        %v6271 = vunpack.c.h.b16 %v2918
        %v6272 = vunpack.c.l.b16 %v2919
        %v6273 = vunpack.c.h.b16 %v2919
        %v6274 = vunpack.c.l.b16 %v2920
        %v6275 = vunpack.c.h.b16 %v2920
        %v6276 = vunpack.c.l.b16 %v2921
        %v6277 = vunpack.c.h.b16 %v2921
        %v6278 = vunpack.c.l.b16 %v2922
        %v6279 = vunpack.c.h.b16 %v2922
        %v6280 = vunpack.c.l.b16 %v2923
        %v6281 = vunpack.c.h.b16 %v2923
        %v6282 = vunpack.c.l.b16 %v2924
        %v6283 = vunpack.c.h.b16 %v2924
        %v6284 = vunpack.c.l.b16 %v2925
        %v6285 = vunpack.c.h.b16 %v2925
        %v6286 = vunpack.c.l.b16 %v2926
        %v6287 = vunpack.c.h.b16 %v2926
        %v6288 = vunpack.c.l.b16 %v2927
        %v6289 = vunpack.c.h.b16 %v2927
        %v6290 = vunpack.c.l.b16 %v2928
        %v6291 = vunpack.c.h.b16 %v2928
        %v6292 = vunpack.c.l.b16 %v2929
        %v6293 = vunpack.c.h.b16 %v2929
        %v6294 = vunpack.c.l.b16 %v2930
        %v6295 = vunpack.c.h.b16 %v2930
        %v6296 = vunpack.c.l.b16 %v2931
        %v6297 = vunpack.c.h.b16 %v2931
        %v6298 = vunpack.c.l.b16 %v2932
        %v6299 = vunpack.c.h.b16 %v2932
        %v6300 = vunpack.c.l.b16 %v2933
        %v6301 = vunpack.c.h.b16 %v2933
        %v6302 = vunpack.c.l.b16 %v2934
        %v6303 = vunpack.c.h.b16 %v2934
        %v6304 = vunpack.c.l.b16 %v2935
        %v6305 = vunpack.c.h.b16 %v2935
        %v6306 = vunpack.c.l.b16 %v2936
        %v6307 = vunpack.c.h.b16 %v2936
        %v6308 = vunpack.c.l.b16 %v2937
        %v6309 = vunpack.c.h.b16 %v2937
        %v6310 = vunpack.c.l.b16 %v2938
        %v6311 = vunpack.c.h.b16 %v2938
        %v6312 = vunpack.c.l.b16 %v2939
        %v6313 = vunpack.c.h.b16 %v2939
        %v6314 = vunpack.c.l.b16 %v2940
        %v6315 = vunpack.c.h.b16 %v2940
        %v6316 = vunpack.c.l.b16 %v2941
        %v6317 = vunpack.c.h.b16 %v2941
        %v6318 = vunpack.c.l.b16 %v2942
        %v6319 = vunpack.c.h.b16 %v2942
        %v6320 = vunpack.c.l.b16 %v2943
        %v6321 = vunpack.c.h.b16 %v2943
        %v6322 = vunpack.c.l.b16 %v2944
        %v6323 = vunpack.c.h.b16 %v2944
        %v6324 = vunpack.c.l.b16 %v2945
        %v6325 = vunpack.c.h.b16 %v2945
        %v6326 = vunpack.c.l.b16 %v2946
        %v6327 = vunpack.c.h.b16 %v2946
        %v6328 = vunpack.c.l.b16 %v2947
        %v6329 = vunpack.c.h.b16 %v2947
        %v6330 = vunpack.c.l.b16 %v2948
        %v6331 = vunpack.c.h.b16 %v2948
        %v6332 = vunpack.c.l.b16 %v2949
        %v6333 = vunpack.c.h.b16 %v2949
        %v6334 = vunpack.c.l.b16 %v2950
        %v6335 = vunpack.c.h.b16 %v2950
        %v6336 = vunpack.c.l.b16 %v2951
        %v6337 = vunpack.c.h.b16 %v2951
        %v6338 = vunpack.c.l.b16 %v2952
        %v6339 = vunpack.c.h.b16 %v2952
        %v6340 = vunpack.c.l.b16 %v2953
        %v6341 = vunpack.c.h.b16 %v2953
        %v6342 = vunpack.c.l.b16 %v2954
        %v6343 = vunpack.c.h.b16 %v2954
        %v6344 = vunpack.c.l.b16 %v2955
        %v6345 = vunpack.c.h.b16 %v2955
        %v6346 = vunpack.c.l.b16 %v2956
        %v6347 = vunpack.c.h.b16 %v2956
        %v6348 = vunpack.c.l.b16 %v2957
        %v6349 = vunpack.c.h.b16 %v2957
        %v6350 = vunpack.c.l.b16 %v2958
        %v6351 = vunpack.c.h.b16 %v2958
        %v6352 = vunpack.c.l.b16 %v2959
        %v6353 = vunpack.c.h.b16 %v2959
        %v6354 = vunpack.c.l.b16 %v2960
        %v6355 = vunpack.c.h.b16 %v2960
        %v6356 = vunpack.c.l.b16 %v2961
        %v6357 = vunpack.c.h.b16 %v2961
        %v6358 = vunpack.c.l.b16 %v2962
        %v6359 = vunpack.c.h.b16 %v2962
        %v6360 = vunpack.c.l.b16 %v2963
        %v6361 = vunpack.c.h.b16 %v2963
        %v6362 = vunpack.c.l.b16 %v2964
        %v6363 = vunpack.c.h.b16 %v2964
        %v6364 = vunpack.c.l.b16 %v2965
        %v6365 = vunpack.c.h.b16 %v2965
        %v6366 = vunpack.c.l.b16 %v2966
        %v6367 = vunpack.c.h.b16 %v2966
        %v6368 = vunpack.c.l.b16 %v2967
        %v6369 = vunpack.c.h.b16 %v2967
        %v6370 = vunpack.c.l.b16 %v2968
        %v6371 = vunpack.c.h.b16 %v2968
        %v6372 = vunpack.c.l.b16 %v2969
        %v6373 = vunpack.c.h.b16 %v2969
        %v6374 = vunpack.c.l.b16 %v2970
        %v6375 = vunpack.c.h.b16 %v2970
        %v6376 = vunpack.c.l.b16 %v2971
        %v6377 = vunpack.c.h.b16 %v2971
        %v6378 = vunpack.c.l.b16 %v2972
        %v6379 = vunpack.c.h.b16 %v2972
        %v6380 = vunpack.c.l.b16 %v2973
        %v6381 = vunpack.c.h.b16 %v2973
        %v6382 = vunpack.c.l.b16 %v2974
        %v6383 = vunpack.c.h.b16 %v2974
        %v6384 = vunpack.c.l.b16 %v2975
        %v6385 = vunpack.c.h.b16 %v2975
        %v6386 = vunpack.c.l.b16 %v2976
        %v6387 = vunpack.c.h.b16 %v2976
        %v6388 = vunpack.c.l.b16 %v2977
        %v6389 = vunpack.c.h.b16 %v2977
        %v6390 = vunpack.c.l.b16 %v2978
        %v6391 = vunpack.c.h.b16 %v2978
        %v6392 = vunpack.c.l.b16 %v2979
        %v6393 = vunpack.c.h.b16 %v2979
        %v6394 = vunpack.c.l.b16 %v2980
        %v6395 = vunpack.c.h.b16 %v2980
        %v6396 = vunpack.c.l.b16 %v2981
        %v6397 = vunpack.c.h.b16 %v2981
        %v6398 = vunpack.c.l.b16 %v2982
        %v6399 = vunpack.c.h.b16 %v2982
        %v6400 = vunpack.c.l.b16 %v2983
        %v6401 = vunpack.c.h.b16 %v2983
        %v6402 = vunpack.c.l.b16 %v2984
        %v6403 = vunpack.c.h.b16 %v2984
        %v6404 = vunpack.c.l.b16 %v2985
        %v6405 = vunpack.c.h.b16 %v2985
        %v6406 = vunpack.c.l.b16 %v2986
        %v6407 = vunpack.c.h.b16 %v2986
        %v6408 = vunpack.c.l.b16 %v2987
        %v6409 = vunpack.c.h.b16 %v2987
        %v6410 = vunpack.c.l.b16 %v2988
        %v6411 = vunpack.c.h.b16 %v2988
        %v6412 = vunpack.c.l.b16 %v2989
        %v6413 = vunpack.c.h.b16 %v2989
        %v6414 = vunpack.c.l.b16 %v2990
        %v6415 = vunpack.c.h.b16 %v2990
        %v6416 = vunpack.c.l.b16 %v2991
        %v6417 = vunpack.c.h.b16 %v2991
        %v6418 = vunpack.c.l.b16 %v2992
        %v6419 = vunpack.c.h.b16 %v2992
        %v6420 = vunpack.c.l.b16 %v2993
        %v6421 = vunpack.c.h.b16 %v2993
        %v6422 = vunpack.c.l.b16 %v2994
        %v6423 = vunpack.c.h.b16 %v2994
        %v6424 = vunpack.c.l.b16 %v2995
        %v6425 = vunpack.c.h.b16 %v2995
        %v6426 = vunpack.c.l.b16 %v2996
        %v6427 = vunpack.c.h.b16 %v2996
        %v6428 = vunpack.c.l.b16 %v2997
        %v6429 = vunpack.c.h.b16 %v2997
        %v6430 = vunpack.c.l.b16 %v2998
        %v6431 = vunpack.c.h.b16 %v2998
        %v6432 = vunpack.c.l.b16 %v2999
        %v6433 = vunpack.c.h.b16 %v2999
        %v6434 = vunpack.c.l.b16 %v3000
        %v6435 = vunpack.c.h.b16 %v3000
        %v6436 = vunpack.c.l.b16 %v3001
        %v6437 = vunpack.c.h.b16 %v3001
        %v6438 = vunpack.c.l.b16 %v3002
        %v6439 = vunpack.c.h.b16 %v3002
        %v6440 = vunpack.c.l.b16 %v3003
        %v6441 = vunpack.c.h.b16 %v3003
        %v6442 = vunpack.c.l.b16 %v3004
        %v6443 = vunpack.c.h.b16 %v3004
        %v6444 = vunpack.c.l.b16 %v3005
        %v6445 = vunpack.c.h.b16 %v3005
        %v6446 = vunpack.c.l.b16 %v3006
        %v6447 = vunpack.c.h.b16 %v3006
        %v6448 = vunpack.c.l.b16 %v3007
        %v6449 = vunpack.c.h.b16 %v3007
        %v6450 = vunpack.c.l.b16 %v3008
        %v6451 = vunpack.c.h.b16 %v3008
        %v6452 = vunpack.c.l.b16 %v3009
        %v6453 = vunpack.c.h.b16 %v3009
        %v6454 = vunpack.c.l.b16 %v3010
        %v6455 = vunpack.c.h.b16 %v3010
        %v6456 = vunpack.c.l.b16 %v3011
        %v6457 = vunpack.c.h.b16 %v3011
        %v6458 = vunpack.c.l.b16 %v3012
        %v6459 = vunpack.c.h.b16 %v3012
        %v6460 = vunpack.c.l.b16 %v3013
        %v6461 = vunpack.c.h.b16 %v3013
        %v6462 = vunpack.c.l.b16 %v3014
        %v6463 = vunpack.c.h.b16 %v3014
        %v6464 = vunpack.c.l.b16 %v3015
        %v6465 = vunpack.c.h.b16 %v3015
        %v6466 = vunpack.c.l.b16 %v3016
        %v6467 = vunpack.c.h.b16 %v3016
        %v6468 = vunpack.c.l.b16 %v3017
        %v6469 = vunpack.c.h.b16 %v3017
        %v6470 = vunpack.c.l.b16 %v3018
        %v6471 = vunpack.c.h.b16 %v3018
        %v6472 = vunpack.c.l.b16 %v3019
        %v6473 = vunpack.c.h.b16 %v3019
        %v6474 = vunpack.c.l.b16 %v3020
        %v6475 = vunpack.c.h.b16 %v3020
        %v6476 = vunpack.c.l.b16 %v3021
        %v6477 = vunpack.c.h.b16 %v3021
        %v6478 = vunpack.c.l.b16 %v3022
        %v6479 = vunpack.c.h.b16 %v3022
        %v6480 = vunpack.c.l.b16 %v3023
        %v6481 = vunpack.c.h.b16 %v3023
        %v6482 = vunpack.c.l.b16 %v3024
        %v6483 = vunpack.c.h.b16 %v3024
        %v6484 = vunpack.c.l.b16 %v3025
        %v6485 = vunpack.c.h.b16 %v3025
        %v6486 = vunpack.c.l.b16 %v3026
        %v6487 = vunpack.c.h.b16 %v3026
        %v6488 = vunpack.c.l.b16 %v3027
        %v6489 = vunpack.c.h.b16 %v3027
        %v6490 = vpack.c.b16 %v4188, %v4186
        %v6491 = vpack.c.b16 %v4189, %v4187
        %v6492 = vpack.c.b16 %v4192, %v4190
        %v6493 = vpack.c.b16 %v4193, %v4191
        %v6494 = vpack.c.b16 %v4196, %v4194
        %v6495 = vpack.c.b16 %v4197, %v4195
        %v6496 = vpack.c.b16 %v4200, %v4198
        %v6497 = vpack.c.b16 %v4201, %v4199
        %v6498 = vpack.c.b16 %v4204, %v4202
        %v6499 = vpack.c.b16 %v4205, %v4203
        %v6500 = vpack.c.b16 %v4208, %v4206
        %v6501 = vpack.c.b16 %v4209, %v4207
        %v6502 = vpack.c.b16 %v4212, %v4210
        %v6503 = vpack.c.b16 %v4213, %v4211
        %v6504 = vpack.c.b16 %v4216, %v4214
        %v6505 = vpack.c.b16 %v4217, %v4215
        %v6506 = vpack.c.b16 %v4220, %v4218
        %v6507 = vpack.c.b16 %v4221, %v4219
        %v6508 = vpack.c.b16 %v4224, %v4222
        %v6509 = vpack.c.b16 %v4225, %v4223
        %v6510 = vpack.c.b16 %v4228, %v4226
        %v6511 = vpack.c.b16 %v4229, %v4227
        %v6512 = vpack.c.b16 %v4232, %v4230
        %v6513 = vpack.c.b16 %v4233, %v4231
        %v6514 = vpack.c.b16 %v4236, %v4234
        %v6515 = vpack.c.b16 %v4237, %v4235
        %v6516 = vpack.c.b16 %v4240, %v4238
        %v6517 = vpack.c.b16 %v4241, %v4239
        %v6518 = vpack.c.b16 %v4244, %v4242
        %v6519 = vpack.c.b16 %v4245, %v4243
        %v6520 = vpack.c.b16 %v4248, %v4246
        %v6521 = vpack.c.b16 %v4249, %v4247
        %v6522 = vpack.c.b16 %v4252, %v4250
        %v6523 = vpack.c.b16 %v4253, %v4251
        %v6524 = vpack.c.b16 %v4256, %v4254
        %v6525 = vpack.c.b16 %v4257, %v4255
        %v6526 = vpack.c.b16 %v4260, %v4258
        %v6527 = vpack.c.b16 %v4261, %v4259
        %v6528 = vpack.c.b16 %v4264, %v4262
        %v6529 = vpack.c.b16 %v4265, %v4263
        %v6530 = vpack.c.b16 %v4268, %v4266
        %v6531 = vpack.c.b16 %v4269, %v4267
        %v6532 = vpack.c.b16 %v4272, %v4270
        %v6533 = vpack.c.b16 %v4273, %v4271
        %v6534 = vpack.c.b16 %v4276, %v4274
        %v6535 = vpack.c.b16 %v4277, %v4275
        %v6536 = vpack.c.b16 %v4280, %v4278
        %v6537 = vpack.c.b16 %v4281, %v4279
        %v6538 = vpack.c.b16 %v4284, %v4282
        %v6539 = vpack.c.b16 %v4285, %v4283
        %v6540 = vpack.c.b16 %v4288, %v4286
        %v6541 = vpack.c.b16 %v4289, %v4287
        %v6542 = vpack.c.b16 %v4292, %v4290
        %v6543 = vpack.c.b16 %v4293, %v4291
        %v6544 = vpack.c.b16 %v4296, %v4294
        %v6545 = vpack.c.b16 %v4297, %v4295
        %v6546 = vpack.c.b16 %v4300, %v4298
        %v6547 = vpack.c.b16 %v4301, %v4299
        %v6548 = vpack.c.b16 %v4304, %v4302
        %v6549 = vpack.c.b16 %v4305, %v4303
        %v6550 = vpack.c.b16 %v4308, %v4306
        %v6551 = vpack.c.b16 %v4309, %v4307
        %v6552 = vpack.c.b16 %v4312, %v4310
        %v6553 = vpack.c.b16 %v4313, %v4311
        %v6554 = vpack.c.b16 %v4316, %v4314
        %v6555 = vpack.c.b16 %v4317, %v4315
        %v6556 = vpack.c.b16 %v4320, %v4318
        %v6557 = vpack.c.b16 %v4321, %v4319
        %v6558 = vpack.c.b16 %v4324, %v4322
        %v6559 = vpack.c.b16 %v4325, %v4323
        %v6560 = vpack.c.b16 %v4328, %v4326
        %v6561 = vpack.c.b16 %v4329, %v4327
        %v6562 = vpack.c.b16 %v4332, %v4330
        %v6563 = vpack.c.b16 %v4333, %v4331
        %v6564 = vpack.c.b16 %v4336, %v4334
        %v6565 = vpack.c.b16 %v4337, %v4335
        %v6566 = vpack.c.b16 %v4340, %v4338
        %v6567 = vpack.c.b16 %v4341, %v4339
        %v6568 = vpack.c.b16 %v4344, %v4342
        %v6569 = vpack.c.b16 %v4345, %v4343
        %v6570 = vpack.c.b16 %v4348, %v4346
        %v6571 = vpack.c.b16 %v4349, %v4347
        %v6572 = vpack.c.b16 %v4352, %v4350
        %v6573 = vpack.c.b16 %v4353, %v4351
        %v6574 = vpack.c.b16 %v4356, %v4354
        %v6575 = vpack.c.b16 %v4357, %v4355
        %v6576 = vpack.c.b16 %v4360, %v4358
        %v6577 = vpack.c.b16 %v4361, %v4359
        %v6578 = vpack.c.b16 %v4364, %v4362
        %v6579 = vpack.c.b16 %v4365, %v4363
        %v6580 = vpack.c.b16 %v4368, %v4366
        %v6581 = vpack.c.b16 %v4369, %v4367
        %v6582 = vpack.c.b16 %v4372, %v4370
        %v6583 = vpack.c.b16 %v4373, %v4371
        %v6584 = vpack.c.b16 %v4376, %v4374
        %v6585 = vpack.c.b16 %v4377, %v4375
        %v6586 = vpack.c.b16 %v4380, %v4378
        %v6587 = vpack.c.b16 %v4381, %v4379
        %v6588 = vpack.c.b16 %v4384, %v4382
        %v6589 = vpack.c.b16 %v4385, %v4383
        %v6590 = vpack.c.b16 %v4388, %v4386
        %v6591 = vpack.c.b16 %v4389, %v4387
        %v6592 = vpack.c.b16 %v4392, %v4390
        %v6593 = vpack.c.b16 %v4393, %v4391
        %v6594 = vpack.c.b16 %v4396, %v4394
        %v6595 = vpack.c.b16 %v4397, %v4395
        %v6596 = vpack.c.b16 %v4400, %v4398
        %v6597 = vpack.c.b16 %v4401, %v4399
        %v6598 = vpack.c.b16 %v4404, %v4402
        %v6599 = vpack.c.b16 %v4405, %v4403
        %v6600 = vpack.c.b16 %v4408, %v4406
        %v6601 = vpack.c.b16 %v4409, %v4407
        %v6602 = vpack.c.b16 %v4412, %v4410
        %v6603 = vpack.c.b16 %v4413, %v4411
        %v6604 = vpack.c.b16 %v4416, %v4414
        %v6605 = vpack.c.b16 %v4417, %v4415
        %v6606 = vpack.c.b16 %v4420, %v4418
        %v6607 = vpack.c.b16 %v4421, %v4419
        %v6608 = vpack.c.b16 %v4424, %v4422
        %v6609 = vpack.c.b16 %v4425, %v4423
        %v6610 = vpack.c.b16 %v4428, %v4426
        %v6611 = vpack.c.b16 %v4429, %v4427
        %v6612 = vpack.c.b16 %v4432, %v4430
        %v6613 = vpack.c.b16 %v4433, %v4431
        %v6614 = vpack.c.b16 %v4436, %v4434
        %v6615 = vpack.c.b16 %v4437, %v4435
        %v6616 = vpack.c.b16 %v4440, %v4438
        %v6617 = vpack.c.b16 %v4441, %v4439
        %v6618 = vpack.c.b16 %v4444, %v4442
        %v6619 = vpack.c.b16 %v4445, %v4443
        %v6620 = vpack.c.b16 %v4448, %v4446
        %v6621 = vpack.c.b16 %v4449, %v4447
        %v6622 = vpack.c.b16 %v4452, %v4450
        %v6623 = vpack.c.b16 %v4453, %v4451
        %v6624 = vpack.c.b16 %v4456, %v4454
        %v6625 = vpack.c.b16 %v4457, %v4455
        %v6626 = vpack.c.b16 %v4460, %v4458
        %v6627 = vpack.c.b16 %v4461, %v4459
        %v6628 = vpack.c.b16 %v4464, %v4462
        %v6629 = vpack.c.b16 %v4465, %v4463
        %v6630 = vpack.c.b16 %v4468, %v4466
        %v6631 = vpack.c.b16 %v4469, %v4467
        %v6632 = vpack.c.b16 %v4472, %v4470
        %v6633 = vpack.c.b16 %v4473, %v4471
        %v6634 = vpack.c.b16 %v4476, %v4474
        %v6635 = vpack.c.b16 %v4477, %v4475
        %v6636 = vpack.c.b16 %v4480, %v4478
        %v6637 = vpack.c.b16 %v4481, %v4479
        %v6638 = vpack.c.b16 %v4484, %v4482
        %v6639 = vpack.c.b16 %v4485, %v4483
        %v6640 = vpack.c.b16 %v4488, %v4486
        %v6641 = vpack.c.b16 %v4489, %v4487
        %v6642 = vpack.c.b16 %v4492, %v4490
        %v6643 = vpack.c.b16 %v4493, %v4491
        %v6644 = vpack.c.b16 %v4496, %v4494
        %v6645 = vpack.c.b16 %v4497, %v4495
        %v6646 = vpack.c.b16 %v4500, %v4498
        %v6647 = vpack.c.b16 %v4501, %v4499
        %v6648 = vpack.c.b16 %v4504, %v4502
        %v6649 = vpack.c.b16 %v4505, %v4503
        %v6650 = vpack.c.b16 %v4508, %v4506
        %v6651 = vpack.c.b16 %v4509, %v4507
        %v6652 = vpack.c.b16 %v4512, %v4510
        %v6653 = vpack.c.b16 %v4513, %v4511
        %v6654 = vpack.c.b16 %v4516, %v4514
        %v6655 = vpack.c.b16 %v4517, %v4515
        %v6656 = vpack.c.b16 %v4520, %v4518
        %v6657 = vpack.c.b16 %v4521, %v4519
        %v6658 = vpack.c.b16 %v4524, %v4522
        %v6659 = vpack.c.b16 %v4525, %v4523
        %v6660 = vpack.c.b16 %v4528, %v4526
        %v6661 = vpack.c.b16 %v4529, %v4527
        %v6662 = vpack.c.b16 %v4532, %v4530
        %v6663 = vpack.c.b16 %v4533, %v4531
        %v6664 = vpack.c.b16 %v4536, %v4534
        %v6665 = vpack.c.b16 %v4537, %v4535
        %v6666 = vpack.c.b16 %v4540, %v4538
        %v6667 = vpack.c.b16 %v4541, %v4539
        %v6668 = vpack.c.b16 %v4544, %v4542
        %v6669 = vpack.c.b16 %v4545, %v4543
        %v6670 = vpack.c.b16 %v4548, %v4546
        %v6671 = vpack.c.b16 %v4549, %v4547
        %v6672 = vpack.c.b16 %v4552, %v4550
        %v6673 = vpack.c.b16 %v4553, %v4551
        %v6674 = vpack.c.b16 %v4556, %v4554
        %v6675 = vpack.c.b16 %v4557, %v4555
        %v6676 = vpack.c.b16 %v4560, %v4558
        %v6677 = vpack.c.b16 %v4561, %v4559
        %v6678 = vpack.c.b16 %v4564, %v4562
        %v6679 = vpack.c.b16 %v4565, %v4563
        %v6680 = vpack.c.b16 %v4568, %v4566
        %v6681 = vpack.c.b16 %v4569, %v4567
        %v6682 = vpack.c.b16 %v4572, %v4570
        %v6683 = vpack.c.b16 %v4573, %v4571
        %v6684 = vpack.c.b16 %v4576, %v4574
        %v6685 = vpack.c.b16 %v4577, %v4575
        %v6686 = vpack.c.b16 %v4580, %v4578
        %v6687 = vpack.c.b16 %v4581, %v4579
        %v6688 = vpack.c.b16 %v4584, %v4582
        %v6689 = vpack.c.b16 %v4585, %v4583
        %v6690 = vpack.c.b16 %v4588, %v4586
        %v6691 = vpack.c.b16 %v4589, %v4587
        %v6692 = vpack.c.b16 %v4592, %v4590
        %v6693 = vpack.c.b16 %v4593, %v4591
        %v6694 = vpack.c.b16 %v4596, %v4594
        %v6695 = vpack.c.b16 %v4597, %v4595
        %v6696 = vpack.c.b16 %v4600, %v4598
        %v6697 = vpack.c.b16 %v4601, %v4599
        %v6698 = vpack.c.b16 %v4604, %v4602
        %v6699 = vpack.c.b16 %v4605, %v4603
        %v6700 = vpack.c.b16 %v4608, %v4606
        %v6701 = vpack.c.b16 %v4609, %v4607
        %v6702 = vpack.c.b16 %v4612, %v4610
        %v6703 = vpack.c.b16 %v4613, %v4611
        %v6704 = vpack.c.b16 %v4616, %v4614
        %v6705 = vpack.c.b16 %v4617, %v4615
        %v6706 = vpack.c.b16 %v4620, %v4618
        %v6707 = vpack.c.b16 %v4621, %v4619
        %v6708 = vpack.c.b16 %v4624, %v4622
        %v6709 = vpack.c.b16 %v4625, %v4623
        %v6710 = vpack.c.b16 %v4628, %v4626
        %v6711 = vpack.c.b16 %v4629, %v4627
        %v6712 = vpack.c.b16 %v4632, %v4630
        %v6713 = vpack.c.b16 %v4633, %v4631
        %v6714 = vpack.c.b16 %v4636, %v4634
        %v6715 = vpack.c.b16 %v4637, %v4635
        %v6716 = vpack.c.b16 %v4640, %v4638
        %v6717 = vpack.c.b16 %v4641, %v4639
        %v6718 = vpack.c.b16 %v4644, %v4642
        %v6719 = vpack.c.b16 %v4645, %v4643
        %v6720 = vpack.c.b16 %v4648, %v4646
        %v6721 = vpack.c.b16 %v4649, %v4647
        %v6722 = vpack.c.b16 %v4652, %v4650
        %v6723 = vpack.c.b16 %v4653, %v4651
        %v6724 = vpack.c.b16 %v4656, %v4654
        %v6725 = vpack.c.b16 %v4657, %v4655
        %v6726 = vpack.c.b16 %v4660, %v4658
        %v6727 = vpack.c.b16 %v4661, %v4659
        %v6728 = vpack.c.b16 %v4664, %v4662
        %v6729 = vpack.c.b16 %v4665, %v4663
        %v6730 = vpack.c.b16 %v4668, %v4666
        %v6731 = vpack.c.b16 %v4669, %v4667
        %v6732 = vpack.c.b16 %v4672, %v4670
        %v6733 = vpack.c.b16 %v4673, %v4671
        %v6734 = vpack.c.b16 %v4676, %v4674
        %v6735 = vpack.c.b16 %v4677, %v4675
        %v6736 = vpack.c.b16 %v4680, %v4678
        %v6737 = vpack.c.b16 %v4681, %v4679
        %v6738 = vpack.c.b16 %v4684, %v4682
        %v6739 = vpack.c.b16 %v4685, %v4683
        %v6740 = vpack.c.b16 %v4688, %v4686
        %v6741 = vpack.c.b16 %v4689, %v4687
        %v6742 = vpack.c.b16 %v4692, %v4690
        %v6743 = vpack.c.b16 %v4693, %v4691
        %v6744 = vpack.c.b16 %v4696, %v4694
        %v6745 = vpack.c.b16 %v4697, %v4695
        %v6746 = vpack.c.b16 %v4700, %v4698
        %v6747 = vpack.c.b16 %v4701, %v4699
        %v6748 = vpack.c.b16 %v4704, %v4702
        %v6749 = vpack.c.b16 %v4705, %v4703
        %v6750 = vpack.c.b16 %v4708, %v4706
        %v6751 = vpack.c.b16 %v4709, %v4707
        %v6752 = vpack.c.b16 %v4712, %v4710
        %v6753 = vpack.c.b16 %v4713, %v4711
        %v6754 = vpack.c.b16 %v4716, %v4714
        %v6755 = vpack.c.b16 %v4717, %v4715
        %v6756 = vpack.c.b16 %v4720, %v4718
        %v6757 = vpack.c.b16 %v4721, %v4719
        %v6758 = vpack.c.b16 %v4724, %v4722
        %v6759 = vpack.c.b16 %v4725, %v4723
        %v6760 = vpack.c.b16 %v4728, %v4726
        %v6761 = vpack.c.b16 %v4729, %v4727
        %v6762 = vpack.c.b16 %v4732, %v4730
        %v6763 = vpack.c.b16 %v4733, %v4731
        %v6764 = vpack.c.b16 %v4736, %v4734
        %v6765 = vpack.c.b16 %v4737, %v4735
        %v6766 = vpack.c.b16 %v4740, %v4738
        %v6767 = vpack.c.b16 %v4741, %v4739
        %v6768 = vpack.c.b16 %v4744, %v4742
        %v6769 = vpack.c.b16 %v4745, %v4743
        %v6770 = vpack.c.b16 %v4748, %v4746
        %v6771 = vpack.c.b16 %v4749, %v4747
        %v6772 = vpack.c.b16 %v4752, %v4750
        %v6773 = vpack.c.b16 %v4753, %v4751
        %v6774 = vpack.c.b16 %v4756, %v4754
        %v6775 = vpack.c.b16 %v4757, %v4755
        %v6776 = vpack.c.b16 %v4760, %v4758
        %v6777 = vpack.c.b16 %v4761, %v4759
        %v6778 = vpack.c.b16 %v4764, %v4762
        %v6779 = vpack.c.b16 %v4765, %v4763
        %v6780 = vpack.c.b16 %v4768, %v4766
        %v6781 = vpack.c.b16 %v4769, %v4767
        %v6782 = vpack.c.b16 %v4772, %v4770
        %v6783 = vpack.c.b16 %v4773, %v4771
        %v6784 = vpack.c.b16 %v4776, %v4774
        %v6785 = vpack.c.b16 %v4777, %v4775
        %v6786 = vpack.c.b16 %v4780, %v4778
        %v6787 = vpack.c.b16 %v4781, %v4779
        %v6788 = vpack.c.b16 %v4784, %v4782
        %v6789 = vpack.c.b16 %v4785, %v4783
        %v6790 = vpack.c.b16 %v4788, %v4786
        %v6791 = vpack.c.b16 %v4789, %v4787
        %v6792 = vpack.c.b16 %v4792, %v4790
        %v6793 = vpack.c.b16 %v4793, %v4791
        %v6794 = vpack.c.b16 %v4796, %v4794
        %v6795 = vpack.c.b16 %v4797, %v4795
        %v6796 = vpack.c.b16 %v4800, %v4798
        %v6797 = vpack.c.b16 %v4801, %v4799
        %v6798 = vpack.c.b16 %v4804, %v4802
        %v6799 = vpack.c.b16 %v4805, %v4803
        %v6800 = vpack.c.b16 %v4808, %v4806
        %v6801 = vpack.c.b16 %v4809, %v4807
        %v6802 = vpack.c.b16 %v4812, %v4810
        %v6803 = vpack.c.b16 %v4813, %v4811
        %v6804 = vpack.c.b16 %v4816, %v4814
        %v6805 = vpack.c.b16 %v4817, %v4815
        %v6806 = vpack.c.b16 %v4820, %v4818
        %v6807 = vpack.c.b16 %v4821, %v4819
        %v6808 = vpack.c.b16 %v4824, %v4822
        %v6809 = vpack.c.b16 %v4825, %v4823
        %v6810 = vpack.c.b16 %v4828, %v4826
        %v6811 = vpack.c.b16 %v4829, %v4827
        %v6812 = vpack.c.b16 %v4832, %v4830
        %v6813 = vpack.c.b16 %v4833, %v4831
        %v6814 = vpack.c.b16 %v4836, %v4834
        %v6815 = vpack.c.b16 %v4837, %v4835
        %v6816 = vpack.c.b16 %v4840, %v4838
        %v6817 = vpack.c.b16 %v4841, %v4839
        %v6818 = vpack.c.b16 %v4844, %v4842
        %v6819 = vpack.c.b16 %v4845, %v4843
        %v6820 = vpack.c.b16 %v4848, %v4846
        %v6821 = vpack.c.b16 %v4849, %v4847
        %v6822 = vpack.c.b16 %v4852, %v4850
        %v6823 = vpack.c.b16 %v4853, %v4851
        %v6824 = vpack.c.b16 %v4856, %v4854
        %v6825 = vpack.c.b16 %v4857, %v4855
        %v6826 = vpack.c.b16 %v4860, %v4858
        %v6827 = vpack.c.b16 %v4861, %v4859
        %v6828 = vpack.c.b16 %v4864, %v4862
        %v6829 = vpack.c.b16 %v4865, %v4863
        %v6830 = vpack.c.b16 %v4868, %v4866
        %v6831 = vpack.c.b16 %v4869, %v4867
        %v6832 = vpack.c.b16 %v4872, %v4870
        %v6833 = vpack.c.b16 %v4873, %v4871
        %v6834 = vpack.c.b16 %v4876, %v4874
        %v6835 = vpack.c.b16 %v4877, %v4875
        %v6836 = vpack.c.b16 %v4880, %v4878
        %v6837 = vpack.c.b16 %v4881, %v4879
        %v6838 = vpack.c.b16 %v4884, %v4882
        %v6839 = vpack.c.b16 %v4885, %v4883
        %v6840 = vpack.c.b16 %v4888, %v4886
        %v6841 = vpack.c.b16 %v4889, %v4887
        %v6842 = vpack.c.b16 %v4892, %v4890
        %v6843 = vpack.c.b16 %v4893, %v4891
        %v6844 = vpack.c.b16 %v4896, %v4894
        %v6845 = vpack.c.b16 %v4897, %v4895
        %v6846 = vpack.c.b16 %v4900, %v4898
        %v6847 = vpack.c.b16 %v4901, %v4899
        %v6848 = vpack.c.b16 %v4904, %v4902
        %v6849 = vpack.c.b16 %v4905, %v4903
        %v6850 = vpack.c.b16 %v4908, %v4906
        %v6851 = vpack.c.b16 %v4909, %v4907
        %v6852 = vpack.c.b16 %v4912, %v4910
        %v6853 = vpack.c.b16 %v4913, %v4911
        %v6854 = vpack.c.b16 %v4916, %v4914
        %v6855 = vpack.c.b16 %v4917, %v4915
        %v6856 = vpack.c.b16 %v4920, %v4918
        %v6857 = vpack.c.b16 %v4921, %v4919
        %v6858 = vpack.c.b16 %v4924, %v4922
        %v6859 = vpack.c.b16 %v4925, %v4923
        %v6860 = vpack.c.b16 %v4928, %v4926
        %v6861 = vpack.c.b16 %v4929, %v4927
        %v6862 = vpack.c.b16 %v4932, %v4930
        %v6863 = vpack.c.b16 %v4933, %v4931
        %v6864 = vpack.c.b16 %v4936, %v4934
        %v6865 = vpack.c.b16 %v4937, %v4935
        %v6866 = vpack.c.b16 %v4940, %v4938
        %v6867 = vpack.c.b16 %v4941, %v4939
        %v6868 = vpack.c.b16 %v4944, %v4942
        %v6869 = vpack.c.b16 %v4945, %v4943
        %v6870 = vpack.c.b16 %v4948, %v4946
        %v6871 = vpack.c.b16 %v4949, %v4947
        %v6872 = vpack.c.b16 %v4952, %v4950
        %v6873 = vpack.c.b16 %v4953, %v4951
        %v6874 = vpack.c.b16 %v4956, %v4954
        %v6875 = vpack.c.b16 %v4957, %v4955
        %v6876 = vpack.c.b16 %v4960, %v4958
        %v6877 = vpack.c.b16 %v4961, %v4959
        %v6878 = vpack.c.b16 %v4964, %v4962
        %v6879 = vpack.c.b16 %v4965, %v4963
        %v6880 = vpack.c.b16 %v4968, %v4966
        %v6881 = vpack.c.b16 %v4969, %v4967
        %v6882 = vpack.c.b16 %v4972, %v4970
        %v6883 = vpack.c.b16 %v4973, %v4971
        %v6884 = vpack.c.b16 %v4976, %v4974
        %v6885 = vpack.c.b16 %v4977, %v4975
        %v6886 = vpack.c.b16 %v4980, %v4978
        %v6887 = vpack.c.b16 %v4981, %v4979
        %v6888 = vpack.c.b16 %v4984, %v4982
        %v6889 = vpack.c.b16 %v4985, %v4983
        %v6890 = vpack.c.b16 %v4988, %v4986
        %v6891 = vpack.c.b16 %v4989, %v4987
        %v6892 = vpack.c.b16 %v4992, %v4990
        %v6893 = vpack.c.b16 %v4993, %v4991
        %v6894 = vpack.c.b16 %v4996, %v4994
        %v6895 = vpack.c.b16 %v4997, %v4995
        %v6896 = vpack.c.b16 %v5000, %v4998
        %v6897 = vpack.c.b16 %v5001, %v4999
        %v6898 = vpack.c.b16 %v5004, %v5002
        %v6899 = vpack.c.b16 %v5005, %v5003
        %v6900 = vpack.c.b16 %v5008, %v5006
        %v6901 = vpack.c.b16 %v5009, %v5007
        %v6902 = vpack.c.b16 %v5012, %v5010
        %v6903 = vpack.c.b16 %v5013, %v5011
        %v6904 = vpack.c.b16 %v5016, %v5014
        %v6905 = vpack.c.b16 %v5017, %v5015
        %v6906 = vpack.c.b16 %v5020, %v5018
        %v6907 = vpack.c.b16 %v5021, %v5019
        %v6908 = vpack.c.b16 %v5024, %v5022
        %v6909 = vpack.c.b16 %v5025, %v5023
        %v6910 = vpack.c.b16 %v5028, %v5026
        %v6911 = vpack.c.b16 %v5029, %v5027
        %v6912 = vpack.c.b16 %v5032, %v5030
        %v6913 = vpack.c.b16 %v5033, %v5031
        %v6914 = vpack.c.b16 %v5036, %v5034
        %v6915 = vpack.c.b16 %v5037, %v5035
        %v6916 = vpack.c.b16 %v5040, %v5038
        %v6917 = vpack.c.b16 %v5041, %v5039
        %v6918 = vpack.c.b16 %v5044, %v5042
        %v6919 = vpack.c.b16 %v5045, %v5043
        %v6920 = vpack.c.b16 %v5048, %v5046
        %v6921 = vpack.c.b16 %v5049, %v5047
        %v6922 = vpack.c.b16 %v5052, %v5050
        %v6923 = vpack.c.b16 %v5053, %v5051
        %v6924 = vpack.c.b16 %v5056, %v5054
        %v6925 = vpack.c.b16 %v5057, %v5055
        %v6926 = vpack.c.b16 %v5060, %v5058
        %v6927 = vpack.c.b16 %v5061, %v5059
        %v6928 = vpack.c.b16 %v5064, %v5062
        %v6929 = vpack.c.b16 %v5065, %v5063
        %v6930 = vpack.c.b16 %v5068, %v5066
        %v6931 = vpack.c.b16 %v5069, %v5067
        %v6932 = vpack.c.b16 %v5072, %v5070
        %v6933 = vpack.c.b16 %v5073, %v5071
        %v6934 = vpack.c.b16 %v5076, %v5074
        %v6935 = vpack.c.b16 %v5077, %v5075
        %v6936 = vpack.c.b16 %v5080, %v5078
        %v6937 = vpack.c.b16 %v5081, %v5079
        %v6938 = vpack.c.b16 %v5084, %v5082
        %v6939 = vpack.c.b16 %v5085, %v5083
        %v6940 = vpack.c.b16 %v5088, %v5086
        %v6941 = vpack.c.b16 %v5089, %v5087
        %v6942 = vpack.c.b16 %v5092, %v5090
        %v6943 = vpack.c.b16 %v5093, %v5091
        %v6944 = vpack.c.b16 %v5096, %v5094
        %v6945 = vpack.c.b16 %v5097, %v5095
        %v6946 = vpack.c.b16 %v5100, %v5098
        %v6947 = vpack.c.b16 %v5101, %v5099
        %v6948 = vpack.c.b16 %v5104, %v5102
        %v6949 = vpack.c.b16 %v5105, %v5103
        %v6950 = vpack.c.b16 %v5108, %v5106
        %v6951 = vpack.c.b16 %v5109, %v5107
        %v6952 = vpack.c.b16 %v5112, %v5110
        %v6953 = vpack.c.b16 %v5113, %v5111
        %v6954 = vpack.c.b16 %v5116, %v5114
        %v6955 = vpack.c.b16 %v5117, %v5115
        %v6956 = vpack.c.b16 %v5120, %v5118
        %v6957 = vpack.c.b16 %v5121, %v5119
        %v6958 = vpack.c.b16 %v5124, %v5122
        %v6959 = vpack.c.b16 %v5125, %v5123
        %v6960 = vpack.c.b16 %v5128, %v5126
        %v6961 = vpack.c.b16 %v5129, %v5127
        %v6962 = vpack.c.b16 %v5132, %v5130
        %v6963 = vpack.c.b16 %v5133, %v5131
        %v6964 = vpack.c.b16 %v5136, %v5134
        %v6965 = vpack.c.b16 %v5137, %v5135
        %v6966 = vpack.c.b16 %v5140, %v5138
        %v6967 = vpack.c.b16 %v5141, %v5139
        %v6968 = vpack.c.b16 %v5144, %v5142
        %v6969 = vpack.c.b16 %v5145, %v5143
        %v6970 = vpack.c.b16 %v5148, %v5146
        %v6971 = vpack.c.b16 %v5149, %v5147
        %v6972 = vpack.c.b16 %v5152, %v5150
        %v6973 = vpack.c.b16 %v5153, %v5151
        %v6974 = vpack.c.b16 %v5156, %v5154
        %v6975 = vpack.c.b16 %v5157, %v5155
        %v6976 = vpack.c.b16 %v5160, %v5158
        %v6977 = vpack.c.b16 %v5161, %v5159
        %v6978 = vpack.c.b16 %v5164, %v5162
        %v6979 = vpack.c.b16 %v5165, %v5163
        %v6980 = vpack.c.b16 %v5168, %v5166
        %v6981 = vpack.c.b16 %v5169, %v5167
        %v6982 = vpack.c.b16 %v5172, %v5170
        %v6983 = vpack.c.b16 %v5173, %v5171
        %v6984 = vpack.c.b16 %v5176, %v5174
        %v6985 = vpack.c.b16 %v5177, %v5175
        %v6986 = vpack.c.b16 %v5180, %v5178
        %v6987 = vpack.c.b16 %v5181, %v5179
        %v6988 = vpack.c.b16 %v5184, %v5182
        %v6989 = vpack.c.b16 %v5185, %v5183
        %v6990 = vpack.c.b16 %v5188, %v5186
        %v6991 = vpack.c.b16 %v5189, %v5187
        %v6992 = vpack.c.b16 %v5192, %v5190
        %v6993 = vpack.c.b16 %v5193, %v5191
        %v6994 = vpack.c.b16 %v5196, %v5194
        %v6995 = vpack.c.b16 %v5197, %v5195
        %v6996 = vpack.c.b16 %v5200, %v5198
        %v6997 = vpack.c.b16 %v5201, %v5199
        %v6998 = vpack.c.b16 %v5204, %v5202
        %v6999 = vpack.c.b16 %v5205, %v5203
        %v7000 = vpack.c.b16 %v5208, %v5206
        %v7001 = vpack.c.b16 %v5209, %v5207
        %v7002 = vpack.c.b16 %v5212, %v5210
        %v7003 = vpack.c.b16 %v5213, %v5211
        %v7004 = vpack.c.b16 %v5216, %v5214
        %v7005 = vpack.c.b16 %v5217, %v5215
        %v7006 = vpack.c.b16 %v5220, %v5218
        %v7007 = vpack.c.b16 %v5221, %v5219
        %v7008 = vpack.c.b16 %v5224, %v5222
        %v7009 = vpack.c.b16 %v5225, %v5223
        %v7010 = vpack.c.b16 %v5228, %v5226
        %v7011 = vpack.c.b16 %v5229, %v5227
        %v7012 = vpack.c.b16 %v5232, %v5230
        %v7013 = vpack.c.b16 %v5233, %v5231
        %v7014 = vpack.c.b16 %v5236, %v5234
        %v7015 = vpack.c.b16 %v5237, %v5235
        %v7016 = vpack.c.b16 %v5240, %v5238
        %v7017 = vpack.c.b16 %v5241, %v5239
        %v7018 = vpack.c.b16 %v5244, %v5242
        %v7019 = vpack.c.b16 %v5245, %v5243
        %v7020 = vpack.c.b16 %v5248, %v5246
        %v7021 = vpack.c.b16 %v5249, %v5247
        %v7022 = vpack.c.b16 %v5252, %v5250
        %v7023 = vpack.c.b16 %v5253, %v5251
        %v7024 = vpack.c.b16 %v5256, %v5254
        %v7025 = vpack.c.b16 %v5257, %v5255
        %v7026 = vpack.c.b16 %v5260, %v5258
        %v7027 = vpack.c.b16 %v5261, %v5259
        %v7028 = vpack.c.b16 %v5264, %v5262
        %v7029 = vpack.c.b16 %v5265, %v5263
        %v7030 = vpack.c.b16 %v5268, %v5266
        %v7031 = vpack.c.b16 %v5269, %v5267
        %v7032 = vpack.c.b16 %v5272, %v5270
        %v7033 = vpack.c.b16 %v5273, %v5271
        %v7034 = vpack.c.b16 %v5276, %v5274
        %v7035 = vpack.c.b16 %v5277, %v5275
        %v7036 = vpack.c.b16 %v5280, %v5278
        %v7037 = vpack.c.b16 %v5281, %v5279
        %v7038 = vpack.c.b16 %v5284, %v5282
        %v7039 = vpack.c.b16 %v5285, %v5283
        %v7040 = vpack.c.b16 %v5288, %v5286
        %v7041 = vpack.c.b16 %v5289, %v5287
        %v7042 = vpack.c.b16 %v5292, %v5290
        %v7043 = vpack.c.b16 %v5293, %v5291
        %v7044 = vpack.c.b16 %v5296, %v5294
        %v7045 = vpack.c.b16 %v5297, %v5295
        %v7046 = vpack.c.b16 %v5300, %v5298
        %v7047 = vpack.c.b16 %v5301, %v5299
        %v7048 = vpack.c.b16 %v5304, %v5302
        %v7049 = vpack.c.b16 %v5305, %v5303
        %v7050 = vpack.c.b16 %v5308, %v5306
        %v7051 = vpack.c.b16 %v5309, %v5307
        %v7052 = vpack.c.b16 %v5312, %v5310
        %v7053 = vpack.c.b16 %v5313, %v5311
        %v7054 = vpack.c.b16 %v5316, %v5314
        %v7055 = vpack.c.b16 %v5317, %v5315
        %v7056 = vpack.c.b16 %v5320, %v5318
        %v7057 = vpack.c.b16 %v5321, %v5319
        %v7058 = vpack.c.b16 %v5324, %v5322
        %v7059 = vpack.c.b16 %v5325, %v5323
        %v7060 = vpack.c.b16 %v5328, %v5326
        %v7061 = vpack.c.b16 %v5329, %v5327
        %v7062 = vpack.c.b16 %v5332, %v5330
        %v7063 = vpack.c.b16 %v5333, %v5331
        %v7064 = vpack.c.b16 %v5336, %v5334
        %v7065 = vpack.c.b16 %v5337, %v5335
        %v7066 = vpack.c.b16 %v5340, %v5338
        %v7067 = vpack.c.b16 %v5341, %v5339
        %v7068 = vpack.c.b16 %v5344, %v5342
        %v7069 = vpack.c.b16 %v5345, %v5343
        %v7070 = vpack.c.b16 %v5348, %v5346
        %v7071 = vpack.c.b16 %v5349, %v5347
        %v7072 = vpack.c.b16 %v5352, %v5350
        %v7073 = vpack.c.b16 %v5353, %v5351
        %v7074 = vpack.c.b16 %v5356, %v5354
        %v7075 = vpack.c.b16 %v5357, %v5355
        %v7076 = vpack.c.b16 %v5360, %v5358
        %v7077 = vpack.c.b16 %v5361, %v5359
        %v7078 = vpack.c.b16 %v5364, %v5362
        %v7079 = vpack.c.b16 %v5365, %v5363
        %v7080 = vpack.c.b16 %v5368, %v5366
        %v7081 = vpack.c.b16 %v5369, %v5367
        %v7082 = vpack.c.b16 %v5372, %v5370
        %v7083 = vpack.c.b16 %v5373, %v5371
        %v7084 = vpack.c.b16 %v5376, %v5374
        %v7085 = vpack.c.b16 %v5377, %v5375
        %v7086 = vpack.c.b16 %v5380, %v5378
        %v7087 = vpack.c.b16 %v5381, %v5379
        %v7088 = vpack.c.b16 %v5384, %v5382
        %v7089 = vpack.c.b16 %v5385, %v5383
        %v7090 = vpack.c.b16 %v5388, %v5386
        %v7091 = vpack.c.b16 %v5389, %v5387
        %v7092 = vpack.c.b16 %v5392, %v5390
        %v7093 = vpack.c.b16 %v5393, %v5391
        %v7094 = vpack.c.b16 %v5396, %v5394
        %v7095 = vpack.c.b16 %v5397, %v5395
        %v7096 = vpack.c.b16 %v5400, %v5398
        %v7097 = vpack.c.b16 %v5401, %v5399
        %v7098 = vpack.c.b16 %v5404, %v5402
        %v7099 = vpack.c.b16 %v5405, %v5403
        %v7100 = vpack.c.b16 %v5408, %v5406
        %v7101 = vpack.c.b16 %v5409, %v5407
        %v7102 = vpack.c.b16 %v5412, %v5410
        %v7103 = vpack.c.b16 %v5413, %v5411
        %v7104 = vpack.c.b16 %v5416, %v5414
        %v7105 = vpack.c.b16 %v5417, %v5415
        %v7106 = vpack.c.b16 %v5420, %v5418
        %v7107 = vpack.c.b16 %v5421, %v5419
        %v7108 = vpack.c.b16 %v5424, %v5422
        %v7109 = vpack.c.b16 %v5425, %v5423
        %v7110 = vpack.c.b16 %v5428, %v5426
        %v7111 = vpack.c.b16 %v5429, %v5427
        %v7112 = vpack.c.b16 %v5432, %v5430
        %v7113 = vpack.c.b16 %v5433, %v5431
        %v7114 = vpack.c.b16 %v5436, %v5434
        %v7115 = vpack.c.b16 %v5437, %v5435
        %v7116 = vpack.c.b16 %v5440, %v5438
        %v7117 = vpack.c.b16 %v5441, %v5439
        %v7118 = vpack.c.b16 %v5444, %v5442
        %v7119 = vpack.c.b16 %v5445, %v5443
        %v7120 = vpack.c.b16 %v5448, %v5446
        %v7121 = vpack.c.b16 %v5449, %v5447
        %v7122 = vpack.c.b16 %v5452, %v5450
        %v7123 = vpack.c.b16 %v5453, %v5451
        %v7124 = vpack.c.b16 %v5456, %v5454
        %v7125 = vpack.c.b16 %v5457, %v5455
        %v7126 = vpack.c.b16 %v5460, %v5458
        %v7127 = vpack.c.b16 %v5461, %v5459
        %v7128 = vpack.c.b16 %v5464, %v5462
        %v7129 = vpack.c.b16 %v5465, %v5463
        %v7130 = vpack.c.b16 %v5468, %v5466
        %v7131 = vpack.c.b16 %v5469, %v5467
        %v7132 = vpack.c.b16 %v5472, %v5470
        %v7133 = vpack.c.b16 %v5473, %v5471
        %v7134 = vpack.c.b16 %v5476, %v5474
        %v7135 = vpack.c.b16 %v5477, %v5475
        %v7136 = vpack.c.b16 %v5480, %v5478
        %v7137 = vpack.c.b16 %v5481, %v5479
        %v7138 = vpack.c.b16 %v5484, %v5482
        %v7139 = vpack.c.b16 %v5485, %v5483
        %v7140 = vpack.c.b16 %v5488, %v5486
        %v7141 = vpack.c.b16 %v5489, %v5487
        %v7142 = vpack.c.b16 %v5492, %v5490
        %v7143 = vpack.c.b16 %v5493, %v5491
        %v7144 = vpack.c.b16 %v5496, %v5494
        %v7145 = vpack.c.b16 %v5497, %v5495
        %v7146 = vpack.c.b16 %v5500, %v5498
        %v7147 = vpack.c.b16 %v5501, %v5499
        %v7148 = vpack.c.b16 %v5504, %v5502
        %v7149 = vpack.c.b16 %v5505, %v5503
        %v7150 = vpack.c.b16 %v5508, %v5506
        %v7151 = vpack.c.b16 %v5509, %v5507
        %v7152 = vpack.c.b16 %v5512, %v5510
        %v7153 = vpack.c.b16 %v5513, %v5511
        %v7154 = vpack.c.b16 %v5516, %v5514
        %v7155 = vpack.c.b16 %v5517, %v5515
        %v7156 = vpack.c.b16 %v5520, %v5518
        %v7157 = vpack.c.b16 %v5521, %v5519
        %v7158 = vpack.c.b16 %v5524, %v5522
        %v7159 = vpack.c.b16 %v5525, %v5523
        %v7160 = vpack.c.b16 %v5528, %v5526
        %v7161 = vpack.c.b16 %v5529, %v5527
        %v7162 = vpack.c.b16 %v5532, %v5530
        %v7163 = vpack.c.b16 %v5533, %v5531
        %v7164 = vpack.c.b16 %v5536, %v5534
        %v7165 = vpack.c.b16 %v5537, %v5535
        %v7166 = vpack.c.b16 %v5540, %v5538
        %v7167 = vpack.c.b16 %v5541, %v5539
        %v7168 = vpack.c.b16 %v5544, %v5542
        %v7169 = vpack.c.b16 %v5545, %v5543
        %v7170 = vpack.c.b16 %v5548, %v5546
        %v7171 = vpack.c.b16 %v5549, %v5547
        %v7172 = vpack.c.b16 %v5552, %v5550
        %v7173 = vpack.c.b16 %v5553, %v5551
        %v7174 = vpack.c.b16 %v5556, %v5554
        %v7175 = vpack.c.b16 %v5557, %v5555
        %v7176 = vpack.c.b16 %v5560, %v5558
        %v7177 = vpack.c.b16 %v5561, %v5559
        %v7178 = vpack.c.b16 %v5564, %v5562
        %v7179 = vpack.c.b16 %v5565, %v5563
        %v7180 = vpack.c.b16 %v5568, %v5566
        %v7181 = vpack.c.b16 %v5569, %v5567
        %v7182 = vpack.c.b16 %v5572, %v5570
        %v7183 = vpack.c.b16 %v5573, %v5571
        %v7184 = vpack.c.b16 %v5576, %v5574
        %v7185 = vpack.c.b16 %v5577, %v5575
        %v7186 = vpack.c.b16 %v5580, %v5578
        %v7187 = vpack.c.b16 %v5581, %v5579
        %v7188 = vpack.c.b16 %v5584, %v5582
        %v7189 = vpack.c.b16 %v5585, %v5583
        %v7190 = vpack.c.b16 %v5588, %v5586
        %v7191 = vpack.c.b16 %v5589, %v5587
        %v7192 = vpack.c.b16 %v5592, %v5590
        %v7193 = vpack.c.b16 %v5593, %v5591
        %v7194 = vpack.c.b16 %v5596, %v5594
        %v7195 = vpack.c.b16 %v5597, %v5595
        %v7196 = vpack.c.b16 %v5600, %v5598
        %v7197 = vpack.c.b16 %v5601, %v5599
        %v7198 = vpack.c.b16 %v5604, %v5602
        %v7199 = vpack.c.b16 %v5605, %v5603
        %v7200 = vpack.c.b16 %v5608, %v5606
        %v7201 = vpack.c.b16 %v5609, %v5607
        %v7202 = vpack.c.b16 %v5612, %v5610
        %v7203 = vpack.c.b16 %v5613, %v5611
        %v7204 = vpack.c.b16 %v5616, %v5614
        %v7205 = vpack.c.b16 %v5617, %v5615
        %v7206 = vpack.c.b16 %v5620, %v5618
        %v7207 = vpack.c.b16 %v5621, %v5619
        %v7208 = vpack.c.b16 %v5624, %v5622
        %v7209 = vpack.c.b16 %v5625, %v5623
        %v7210 = vpack.c.b16 %v5628, %v5626
        %v7211 = vpack.c.b16 %v5629, %v5627
        %v7212 = vpack.c.b16 %v5632, %v5630
        %v7213 = vpack.c.b16 %v5633, %v5631
        %v7214 = vpack.c.b16 %v5636, %v5634
        %v7215 = vpack.c.b16 %v5637, %v5635
        %v7216 = vpack.c.b16 %v5640, %v5638
        %v7217 = vpack.c.b16 %v5641, %v5639
        %v7218 = vpack.c.b16 %v5644, %v5642
        %v7219 = vpack.c.b16 %v5645, %v5643
        %v7220 = vpack.c.b16 %v5648, %v5646
        %v7221 = vpack.c.b16 %v5649, %v5647
        %v7222 = vpack.c.b16 %v5652, %v5650
        %v7223 = vpack.c.b16 %v5653, %v5651
        %v7224 = vpack.c.b16 %v5656, %v5654
        %v7225 = vpack.c.b16 %v5657, %v5655
        %v7226 = vpack.c.b16 %v5660, %v5658
        %v7227 = vpack.c.b16 %v5661, %v5659
        %v7228 = vpack.c.b16 %v5664, %v5662
        %v7229 = vpack.c.b16 %v5665, %v5663
        %v7230 = vpack.c.b16 %v5668, %v5666
        %v7231 = vpack.c.b16 %v5669, %v5667
        %v7232 = vpack.c.b16 %v5672, %v5670
        %v7233 = vpack.c.b16 %v5673, %v5671
        %v7234 = vpack.c.b16 %v5676, %v5674
        %v7235 = vpack.c.b16 %v5677, %v5675
        %v7236 = vpack.c.b16 %v5680, %v5678
        %v7237 = vpack.c.b16 %v5681, %v5679
        %v7238 = vpack.c.b16 %v5684, %v5682
        %v7239 = vpack.c.b16 %v5685, %v5683
        %v7240 = vpack.c.b16 %v5688, %v5686
        %v7241 = vpack.c.b16 %v5689, %v5687
        %v7242 = vpack.c.b16 %v5692, %v5690
        %v7243 = vpack.c.b16 %v5693, %v5691
        %v7244 = vpack.c.b16 %v5696, %v5694
        %v7245 = vpack.c.b16 %v5697, %v5695
        %v7246 = vpack.c.b16 %v5700, %v5698
        %v7247 = vpack.c.b16 %v5701, %v5699
        %v7248 = vpack.c.b16 %v5704, %v5702
        %v7249 = vpack.c.b16 %v5705, %v5703
        %v7250 = vpack.c.b16 %v5708, %v5706
        %v7251 = vpack.c.b16 %v5709, %v5707
        %v7252 = vpack.c.b16 %v5712, %v5710
        %v7253 = vpack.c.b16 %v5713, %v5711
        %v7254 = vpack.c.b16 %v5716, %v5714
        %v7255 = vpack.c.b16 %v5717, %v5715
        %v7256 = vpack.c.b16 %v5720, %v5718
        %v7257 = vpack.c.b16 %v5721, %v5719
        %v7258 = vpack.c.b16 %v5724, %v5722
        %v7259 = vpack.c.b16 %v5725, %v5723
        %v7260 = vpack.c.b16 %v5728, %v5726
        %v7261 = vpack.c.b16 %v5729, %v5727
        %v7262 = vpack.c.b16 %v5732, %v5730
        %v7263 = vpack.c.b16 %v5733, %v5731
        %v7264 = vpack.c.b16 %v5736, %v5734
        %v7265 = vpack.c.b16 %v5737, %v5735
        %v7266 = vpack.c.b16 %v5740, %v5738
        %v7267 = vpack.c.b16 %v5741, %v5739
        %v7268 = vpack.c.b16 %v5744, %v5742
        %v7269 = vpack.c.b16 %v5745, %v5743
        %v7270 = vpack.c.b16 %v5748, %v5746
        %v7271 = vpack.c.b16 %v5749, %v5747
        %v7272 = vpack.c.b16 %v5752, %v5750
        %v7273 = vpack.c.b16 %v5753, %v5751
        %v7274 = vpack.c.b16 %v5756, %v5754
        %v7275 = vpack.c.b16 %v5757, %v5755
        %v7276 = vpack.c.b16 %v5760, %v5758
        %v7277 = vpack.c.b16 %v5761, %v5759
        %v7278 = vpack.c.b16 %v5764, %v5762
        %v7279 = vpack.c.b16 %v5765, %v5763
        %v7280 = vpack.c.b16 %v5768, %v5766
        %v7281 = vpack.c.b16 %v5769, %v5767
        %v7282 = vpack.c.b16 %v5772, %v5770
        %v7283 = vpack.c.b16 %v5773, %v5771
        %v7284 = vpack.c.b16 %v5776, %v5774
        %v7285 = vpack.c.b16 %v5777, %v5775
        %v7286 = vpack.c.b16 %v5780, %v5778
        %v7287 = vpack.c.b16 %v5781, %v5779
        %v7288 = vpack.c.b16 %v5784, %v5782
        %v7289 = vpack.c.b16 %v5785, %v5783
        %v7290 = vpack.c.b16 %v5788, %v5786
        %v7291 = vpack.c.b16 %v5789, %v5787
        %v7292 = vpack.c.b16 %v5792, %v5790
        %v7293 = vpack.c.b16 %v5793, %v5791
        %v7294 = vpack.c.b16 %v5796, %v5794
        %v7295 = vpack.c.b16 %v5797, %v5795
        %v7296 = vpack.c.b16 %v5800, %v5798
        %v7297 = vpack.c.b16 %v5801, %v5799
        %v7298 = vpack.c.b16 %v5804, %v5802
        %v7299 = vpack.c.b16 %v5805, %v5803
        %v7300 = vpack.c.b16 %v5808, %v5806
        %v7301 = vpack.c.b16 %v5809, %v5807
        %v7302 = vpack.c.b16 %v5812, %v5810
        %v7303 = vpack.c.b16 %v5813, %v5811
        %v7304 = vpack.c.b16 %v5816, %v5814
        %v7305 = vpack.c.b16 %v5817, %v5815
        %v7306 = vpack.c.b16 %v5820, %v5818
        %v7307 = vpack.c.b16 %v5821, %v5819
        %v7308 = vpack.c.b16 %v5824, %v5822
        %v7309 = vpack.c.b16 %v5825, %v5823
        %v7310 = vpack.c.b16 %v5828, %v5826
        %v7311 = vpack.c.b16 %v5829, %v5827
        %v7312 = vpack.c.b16 %v5832, %v5830
        %v7313 = vpack.c.b16 %v5833, %v5831
        %v7314 = vpack.c.b16 %v5836, %v5834
        %v7315 = vpack.c.b16 %v5837, %v5835
        %v7316 = vpack.c.b16 %v5840, %v5838
        %v7317 = vpack.c.b16 %v5841, %v5839
        %v7318 = vpack.c.b16 %v5844, %v5842
        %v7319 = vpack.c.b16 %v5845, %v5843
        %v7320 = vpack.c.b16 %v5848, %v5846
        %v7321 = vpack.c.b16 %v5849, %v5847
        %v7322 = vpack.c.b16 %v5852, %v5850
        %v7323 = vpack.c.b16 %v5853, %v5851
        %v7324 = vpack.c.b16 %v5856, %v5854
        %v7325 = vpack.c.b16 %v5857, %v5855
        %v7326 = vpack.c.b16 %v5860, %v5858
        %v7327 = vpack.c.b16 %v5861, %v5859
        %v7328 = vpack.c.b16 %v5864, %v5862
        %v7329 = vpack.c.b16 %v5865, %v5863
        %v7330 = vpack.c.b16 %v5868, %v5866
        %v7331 = vpack.c.b16 %v5869, %v5867
        %v7332 = vpack.c.b16 %v5872, %v5870
        %v7333 = vpack.c.b16 %v5873, %v5871
        %v7334 = vpack.c.b16 %v5876, %v5874
        %v7335 = vpack.c.b16 %v5877, %v5875
        %v7336 = vpack.c.b16 %v5880, %v5878
        %v7337 = vpack.c.b16 %v5881, %v5879
        %v7338 = vpack.c.b16 %v5884, %v5882
        %v7339 = vpack.c.b16 %v5885, %v5883
        %v7340 = vpack.c.b16 %v5888, %v5886
        %v7341 = vpack.c.b16 %v5889, %v5887
        %v7342 = vpack.c.b16 %v5892, %v5890
        %v7343 = vpack.c.b16 %v5893, %v5891
        %v7344 = vpack.c.b16 %v5896, %v5894
        %v7345 = vpack.c.b16 %v5897, %v5895
        %v7346 = vpack.c.b16 %v5900, %v5898
        %v7347 = vpack.c.b16 %v5901, %v5899
        %v7348 = vpack.c.b16 %v5904, %v5902
        %v7349 = vpack.c.b16 %v5905, %v5903
        %v7350 = vpack.c.b16 %v5908, %v5906
        %v7351 = vpack.c.b16 %v5909, %v5907
        %v7352 = vpack.c.b16 %v5912, %v5910
        %v7353 = vpack.c.b16 %v5913, %v5911
        %v7354 = vpack.c.b16 %v5916, %v5914
        %v7355 = vpack.c.b16 %v5917, %v5915
        %v7356 = vpack.c.b16 %v5920, %v5918
        %v7357 = vpack.c.b16 %v5921, %v5919
        %v7358 = vpack.c.b16 %v5924, %v5922
        %v7359 = vpack.c.b16 %v5925, %v5923
        %v7360 = vpack.c.b16 %v5928, %v5926
        %v7361 = vpack.c.b16 %v5929, %v5927
        %v7362 = vpack.c.b16 %v5932, %v5930
        %v7363 = vpack.c.b16 %v5933, %v5931
        %v7364 = vpack.c.b16 %v5936, %v5934
        %v7365 = vpack.c.b16 %v5937, %v5935
        %v7366 = vpack.c.b16 %v5940, %v5938
        %v7367 = vpack.c.b16 %v5941, %v5939
        %v7368 = vpack.c.b16 %v5944, %v5942
        %v7369 = vpack.c.b16 %v5945, %v5943
        %v7370 = vpack.c.b16 %v5948, %v5946
        %v7371 = vpack.c.b16 %v5949, %v5947
        %v7372 = vpack.c.b16 %v5952, %v5950
        %v7373 = vpack.c.b16 %v5953, %v5951
        %v7374 = vpack.c.b16 %v5956, %v5954
        %v7375 = vpack.c.b16 %v5957, %v5955
        %v7376 = vpack.c.b16 %v5960, %v5958
        %v7377 = vpack.c.b16 %v5961, %v5959
        %v7378 = vpack.c.b16 %v5964, %v5962
        %v7379 = vpack.c.b16 %v5965, %v5963
        %v7380 = vpack.c.b16 %v5968, %v5966
        %v7381 = vpack.c.b16 %v5969, %v5967
        %v7382 = vpack.c.b16 %v5972, %v5970
        %v7383 = vpack.c.b16 %v5973, %v5971
        %v7384 = vpack.c.b16 %v5976, %v5974
        %v7385 = vpack.c.b16 %v5977, %v5975
        %v7386 = vpack.c.b16 %v5980, %v5978
        %v7387 = vpack.c.b16 %v5981, %v5979
        %v7388 = vpack.c.b16 %v5984, %v5982
        %v7389 = vpack.c.b16 %v5985, %v5983
        %v7390 = vpack.c.b16 %v5988, %v5986
        %v7391 = vpack.c.b16 %v5989, %v5987
        %v7392 = vpack.c.b16 %v5992, %v5990
        %v7393 = vpack.c.b16 %v5993, %v5991
        %v7394 = vpack.c.b16 %v5996, %v5994
        %v7395 = vpack.c.b16 %v5997, %v5995
        %v7396 = vpack.c.b16 %v6000, %v5998
        %v7397 = vpack.c.b16 %v6001, %v5999
        %v7398 = vpack.c.b16 %v6004, %v6002
        %v7399 = vpack.c.b16 %v6005, %v6003
        %v7400 = vpack.c.b16 %v6008, %v6006
        %v7401 = vpack.c.b16 %v6009, %v6007
        %v7402 = vpack.c.b16 %v6012, %v6010
        %v7403 = vpack.c.b16 %v6013, %v6011
        %v7404 = vpack.c.b16 %v6016, %v6014
        %v7405 = vpack.c.b16 %v6017, %v6015
        %v7406 = vpack.c.b16 %v6020, %v6018
        %v7407 = vpack.c.b16 %v6021, %v6019
        %v7408 = vpack.c.b16 %v6024, %v6022
        %v7409 = vpack.c.b16 %v6025, %v6023
        %v7410 = vpack.c.b16 %v6028, %v6026
        %v7411 = vpack.c.b16 %v6029, %v6027
        %v7412 = vpack.c.b16 %v6032, %v6030
        %v7413 = vpack.c.b16 %v6033, %v6031
        %v7414 = vpack.c.b16 %v6036, %v6034
        %v7415 = vpack.c.b16 %v6037, %v6035
        %v7416 = vpack.c.b16 %v6040, %v6038
        %v7417 = vpack.c.b16 %v6041, %v6039
        %v7418 = vpack.c.b16 %v6044, %v6042
        %v7419 = vpack.c.b16 %v6045, %v6043
        %v7420 = vpack.c.b16 %v6048, %v6046
        %v7421 = vpack.c.b16 %v6049, %v6047
        %v7422 = vpack.c.b16 %v6052, %v6050
        %v7423 = vpack.c.b16 %v6053, %v6051
        %v7424 = vpack.c.b16 %v6056, %v6054
        %v7425 = vpack.c.b16 %v6057, %v6055
        %v7426 = vpack.c.b16 %v6060, %v6058
        %v7427 = vpack.c.b16 %v6061, %v6059
        %v7428 = vpack.c.b16 %v6064, %v6062
        %v7429 = vpack.c.b16 %v6065, %v6063
        %v7430 = vpack.c.b16 %v6068, %v6066
        %v7431 = vpack.c.b16 %v6069, %v6067
        %v7432 = vpack.c.b16 %v6072, %v6070
        %v7433 = vpack.c.b16 %v6073, %v6071
        %v7434 = vpack.c.b16 %v6076, %v6074
        %v7435 = vpack.c.b16 %v6077, %v6075
        %v7436 = vpack.c.b16 %v6080, %v6078
        %v7437 = vpack.c.b16 %v6081, %v6079
        %v7438 = vpack.c.b16 %v6084, %v6082
        %v7439 = vpack.c.b16 %v6085, %v6083
        %v7440 = vpack.c.b16 %v6088, %v6086
        %v7441 = vpack.c.b16 %v6089, %v6087
        %v7442 = vpack.c.b16 %v6092, %v6090
        %v7443 = vpack.c.b16 %v6093, %v6091
        %v7444 = vpack.c.b16 %v6096, %v6094
        %v7445 = vpack.c.b16 %v6097, %v6095
        %v7446 = vpack.c.b16 %v6100, %v6098
        %v7447 = vpack.c.b16 %v6101, %v6099
        %v7448 = vpack.c.b16 %v6104, %v6102
        %v7449 = vpack.c.b16 %v6105, %v6103
        %v7450 = vpack.c.b16 %v6108, %v6106
        %v7451 = vpack.c.b16 %v6109, %v6107
        %v7452 = vpack.c.b16 %v6112, %v6110
        %v7453 = vpack.c.b16 %v6113, %v6111
        %v7454 = vpack.c.b16 %v6116, %v6114
        %v7455 = vpack.c.b16 %v6117, %v6115
        %v7456 = vpack.c.b16 %v6120, %v6118
        %v7457 = vpack.c.b16 %v6121, %v6119
        %v7458 = vpack.c.b16 %v6124, %v6122
        %v7459 = vpack.c.b16 %v6125, %v6123
        %v7460 = vpack.c.b16 %v6128, %v6126
        %v7461 = vpack.c.b16 %v6129, %v6127
        %v7462 = vpack.c.b16 %v6132, %v6130
        %v7463 = vpack.c.b16 %v6133, %v6131
        %v7464 = vpack.c.b16 %v6136, %v6134
        %v7465 = vpack.c.b16 %v6137, %v6135
        %v7466 = vpack.c.b16 %v6140, %v6138
        %v7467 = vpack.c.b16 %v6141, %v6139
        %v7468 = vpack.c.b16 %v6144, %v6142
        %v7469 = vpack.c.b16 %v6145, %v6143
        %v7470 = vpack.c.b16 %v6148, %v6146
        %v7471 = vpack.c.b16 %v6149, %v6147
        %v7472 = vpack.c.b16 %v6152, %v6150
        %v7473 = vpack.c.b16 %v6153, %v6151
        %v7474 = vpack.c.b16 %v6156, %v6154
        %v7475 = vpack.c.b16 %v6157, %v6155
        %v7476 = vpack.c.b16 %v6160, %v6158
        %v7477 = vpack.c.b16 %v6161, %v6159
        %v7478 = vpack.c.b16 %v6164, %v6162
        %v7479 = vpack.c.b16 %v6165, %v6163
        %v7480 = vpack.c.b16 %v6168, %v6166
        %v7481 = vpack.c.b16 %v6169, %v6167
        %v7482 = vpack.c.b16 %v6172, %v6170
        %v7483 = vpack.c.b16 %v6173, %v6171
        %v7484 = vpack.c.b16 %v6176, %v6174
        %v7485 = vpack.c.b16 %v6177, %v6175
        %v7486 = vpack.c.b16 %v6180, %v6178
        %v7487 = vpack.c.b16 %v6181, %v6179
        %v7488 = vpack.c.b16 %v6184, %v6182
        %v7489 = vpack.c.b16 %v6185, %v6183
        %v7490 = vpack.c.b16 %v6188, %v6186
        %v7491 = vpack.c.b16 %v6189, %v6187
        %v7492 = vpack.c.b16 %v6192, %v6190
        %v7493 = vpack.c.b16 %v6193, %v6191
        %v7494 = vpack.c.b16 %v6196, %v6194
        %v7495 = vpack.c.b16 %v6197, %v6195
        %v7496 = vpack.c.b16 %v6200, %v6198
        %v7497 = vpack.c.b16 %v6201, %v6199
        %v7498 = vpack.c.b16 %v6204, %v6202
        %v7499 = vpack.c.b16 %v6205, %v6203
        %v7500 = vpack.c.b16 %v6208, %v6206
        %v7501 = vpack.c.b16 %v6209, %v6207
        %v7502 = vpack.c.b16 %v6212, %v6210
        %v7503 = vpack.c.b16 %v6213, %v6211
        %v7504 = vpack.c.b16 %v6216, %v6214
        %v7505 = vpack.c.b16 %v6217, %v6215
        %v7506 = vpack.c.b16 %v6220, %v6218
        %v7507 = vpack.c.b16 %v6221, %v6219
        %v7508 = vpack.c.b16 %v6224, %v6222
        %v7509 = vpack.c.b16 %v6225, %v6223
        %v7510 = vpack.c.b16 %v6228, %v6226
        %v7511 = vpack.c.b16 %v6229, %v6227
        %v7512 = vpack.c.b16 %v6232, %v6230
        %v7513 = vpack.c.b16 %v6233, %v6231
        %v7514 = vpack.c.b16 %v6236, %v6234
        %v7515 = vpack.c.b16 %v6237, %v6235
        %v7516 = vpack.c.b16 %v6240, %v6238
        %v7517 = vpack.c.b16 %v6241, %v6239
        %v7518 = vpack.c.b16 %v6244, %v6242
        %v7519 = vpack.c.b16 %v6245, %v6243
        %v7520 = vpack.c.b16 %v6248, %v6246
        %v7521 = vpack.c.b16 %v6249, %v6247
        %v7522 = vpack.c.b16 %v6252, %v6250
        %v7523 = vpack.c.b16 %v6253, %v6251
        %v7524 = vpack.c.b16 %v6256, %v6254
        %v7525 = vpack.c.b16 %v6257, %v6255
        %v7526 = vpack.c.b16 %v6260, %v6258
        %v7527 = vpack.c.b16 %v6261, %v6259
        %v7528 = vpack.c.b16 %v6264, %v6262
        %v7529 = vpack.c.b16 %v6265, %v6263
        %v7530 = vpack.c.b16 %v6268, %v6266
        %v7531 = vpack.c.b16 %v6269, %v6267
        %v7532 = vpack.c.b16 %v6272, %v6270
        %v7533 = vpack.c.b16 %v6273, %v6271
        %v7534 = vpack.c.b16 %v6276, %v6274
        %v7535 = vpack.c.b16 %v6277, %v6275
        %v7536 = vpack.c.b16 %v6280, %v6278
        %v7537 = vpack.c.b16 %v6281, %v6279
        %v7538 = vpack.c.b16 %v6284, %v6282
        %v7539 = vpack.c.b16 %v6285, %v6283
        %v7540 = vpack.c.b16 %v6288, %v6286
        %v7541 = vpack.c.b16 %v6289, %v6287
        %v7542 = vpack.c.b16 %v6292, %v6290
        %v7543 = vpack.c.b16 %v6293, %v6291
        %v7544 = vpack.c.b16 %v6296, %v6294
        %v7545 = vpack.c.b16 %v6297, %v6295
        %v7546 = vpack.c.b16 %v6300, %v6298
        %v7547 = vpack.c.b16 %v6301, %v6299
        %v7548 = vpack.c.b16 %v6304, %v6302
        %v7549 = vpack.c.b16 %v6305, %v6303
        %v7550 = vpack.c.b16 %v6308, %v6306
        %v7551 = vpack.c.b16 %v6309, %v6307
        %v7552 = vpack.c.b16 %v6312, %v6310
        %v7553 = vpack.c.b16 %v6313, %v6311
        %v7554 = vpack.c.b16 %v6316, %v6314
        %v7555 = vpack.c.b16 %v6317, %v6315
        %v7556 = vpack.c.b16 %v6320, %v6318
        %v7557 = vpack.c.b16 %v6321, %v6319
        %v7558 = vpack.c.b16 %v6324, %v6322
        %v7559 = vpack.c.b16 %v6325, %v6323
        %v7560 = vpack.c.b16 %v6328, %v6326
        %v7561 = vpack.c.b16 %v6329, %v6327
        %v7562 = vpack.c.b16 %v6332, %v6330
        %v7563 = vpack.c.b16 %v6333, %v6331
        %v7564 = vpack.c.b16 %v6336, %v6334
        %v7565 = vpack.c.b16 %v6337, %v6335
        %v7566 = vpack.c.b16 %v6340, %v6338
        %v7567 = vpack.c.b16 %v6341, %v6339
        %v7568 = vpack.c.b16 %v6344, %v6342
        %v7569 = vpack.c.b16 %v6345, %v6343
        %v7570 = vpack.c.b16 %v6348, %v6346
        %v7571 = vpack.c.b16 %v6349, %v6347
        %v7572 = vpack.c.b16 %v6352, %v6350
        %v7573 = vpack.c.b16 %v6353, %v6351
        %v7574 = vpack.c.b16 %v6356, %v6354
        %v7575 = vpack.c.b16 %v6357, %v6355
        %v7576 = vpack.c.b16 %v6360, %v6358
        %v7577 = vpack.c.b16 %v6361, %v6359
        %v7578 = vpack.c.b16 %v6364, %v6362
        %v7579 = vpack.c.b16 %v6365, %v6363
        %v7580 = vpack.c.b16 %v6368, %v6366
        %v7581 = vpack.c.b16 %v6369, %v6367
        %v7582 = vpack.c.b16 %v6372, %v6370
        %v7583 = vpack.c.b16 %v6373, %v6371
        %v7584 = vpack.c.b16 %v6376, %v6374
        %v7585 = vpack.c.b16 %v6377, %v6375
        %v7586 = vpack.c.b16 %v6380, %v6378
        %v7587 = vpack.c.b16 %v6381, %v6379
        %v7588 = vpack.c.b16 %v6384, %v6382
        %v7589 = vpack.c.b16 %v6385, %v6383
        %v7590 = vpack.c.b16 %v6388, %v6386
        %v7591 = vpack.c.b16 %v6389, %v6387
        %v7592 = vpack.c.b16 %v6392, %v6390
        %v7593 = vpack.c.b16 %v6393, %v6391
        %v7594 = vpack.c.b16 %v6396, %v6394
        %v7595 = vpack.c.b16 %v6397, %v6395
        %v7596 = vpack.c.b16 %v6400, %v6398
        %v7597 = vpack.c.b16 %v6401, %v6399
        %v7598 = vpack.c.b16 %v6404, %v6402
        %v7599 = vpack.c.b16 %v6405, %v6403
        %v7600 = vpack.c.b16 %v6408, %v6406
        %v7601 = vpack.c.b16 %v6409, %v6407
        %v7602 = vpack.c.b16 %v6412, %v6410
        %v7603 = vpack.c.b16 %v6413, %v6411
        %v7604 = vpack.c.b16 %v6416, %v6414
        %v7605 = vpack.c.b16 %v6417, %v6415
        %v7606 = vpack.c.b16 %v6420, %v6418
        %v7607 = vpack.c.b16 %v6421, %v6419
        %v7608 = vpack.c.b16 %v6424, %v6422
        %v7609 = vpack.c.b16 %v6425, %v6423
        %v7610 = vpack.c.b16 %v6428, %v6426
        %v7611 = vpack.c.b16 %v6429, %v6427
        %v7612 = vpack.c.b16 %v6432, %v6430
        %v7613 = vpack.c.b16 %v6433, %v6431
        %v7614 = vpack.c.b16 %v6436, %v6434
        %v7615 = vpack.c.b16 %v6437, %v6435
        %v7616 = vpack.c.b16 %v6440, %v6438
        %v7617 = vpack.c.b16 %v6441, %v6439
        %v7618 = vpack.c.b16 %v6444, %v6442
        %v7619 = vpack.c.b16 %v6445, %v6443
        %v7620 = vpack.c.b16 %v6448, %v6446
        %v7621 = vpack.c.b16 %v6449, %v6447
        %v7622 = vpack.c.b16 %v6452, %v6450
        %v7623 = vpack.c.b16 %v6453, %v6451
        %v7624 = vpack.c.b16 %v6456, %v6454
        %v7625 = vpack.c.b16 %v6457, %v6455
        %v7626 = vpack.c.b16 %v6460, %v6458
        %v7627 = vpack.c.b16 %v6461, %v6459
        %v7628 = vpack.c.b16 %v6464, %v6462
        %v7629 = vpack.c.b16 %v6465, %v6463
        %v7630 = vpack.c.b16 %v6468, %v6466
        %v7631 = vpack.c.b16 %v6469, %v6467
        %v7632 = vpack.c.b16 %v6472, %v6470
        %v7633 = vpack.c.b16 %v6473, %v6471
        %v7634 = vpack.c.b16 %v6476, %v6474
        %v7635 = vpack.c.b16 %v6477, %v6475
        %v7636 = vpack.c.b16 %v6480, %v6478
        %v7637 = vpack.c.b16 %v6481, %v6479
        %v7638 = vpack.c.b16 %v6484, %v6482
        %v7639 = vpack.c.b16 %v6485, %v6483
        %v7640 = vpack.c.b16 %v6488, %v6486
        %v7641 = vpack.c.b16 %v6489, %v6487
        %8794 = vmatpush.bf16.msra.mxu0 %v6504
        %8795 = vmatpush.bf16.msra.mxu0 %v6502
        %8796 = vmatpush.bf16.msra.mxu0 %v6500
        %8797 = vmatpush.bf16.msra.mxu0 %v6498
        %8798 = vmatpush.bf16.msra.mxu0 %v6496
        %8799 = vmatpush.bf16.msra.mxu0 %v6494
        %8800 = vmatpush.bf16.msra.mxu0 %v6492
        %8801 = vmatpush.bf16.msra.mxu0 %v6490
        %8802 = vmatmul.bf16.gmra.mxu0 %v1348
        %v8803 = vpop.f32.mrf.mxu0
        %v8804 = vadd.f32 %v3030, %v8803
        %v8805 = vpop.f32.mrf.mxu0
        %v8806 = vadd.f32 %v3030, %v8805
        %8807 = vmatmul.bf16.gmra.mxu0 %v1364
        %v8808 = vpop.f32.mrf.mxu0
        %v8809 = vadd.f32 %v3030, %v8808
        %v8810 = vpop.f32.mrf.mxu0
        %v8811 = vadd.f32 %v3030, %v8810
        %8812 = vdwg.mxu0
        %8813 = vmatpush.bf16.msra.mxu0 %v6520
        %8814 = vmatpush.bf16.msra.mxu0 %v6518
        %8815 = vmatpush.bf16.msra.mxu0 %v6516
        %8816 = vmatpush.bf16.msra.mxu0 %v6514
        %8817 = vmatpush.bf16.msra.mxu0 %v6512
        %8818 = vmatpush.bf16.msra.mxu0 %v6510
        %8819 = vmatpush.bf16.msra.mxu0 %v6508
        %8820 = vmatpush.bf16.msra.mxu0 %v6506
        %8821 = vmatmul.bf16.gmra.mxu0 %v1349
        %v8822 = vpop.f32.mrf.mxu0
        %v8823 = vadd.f32 %v8804, %v8822
        %v8824 = vpop.f32.mrf.mxu0
        %v8825 = vadd.f32 %v8806, %v8824
        %8826 = vmatmul.bf16.gmra.mxu0 %v1365
        %v8827 = vpop.f32.mrf.mxu0
        %v8828 = vadd.f32 %v8809, %v8827
        %v8829 = vpop.f32.mrf.mxu0
        %v8830 = vadd.f32 %v8811, %v8829
        %8831 = vdwg.mxu0
        %8832 = vmatpush.bf16.msra.mxu0 %v6536
        %8833 = vmatpush.bf16.msra.mxu0 %v6534
        %8834 = vmatpush.bf16.msra.mxu0 %v6532
        %8835 = vmatpush.bf16.msra.mxu0 %v6530
        %8836 = vmatpush.bf16.msra.mxu0 %v6528
        %8837 = vmatpush.bf16.msra.mxu0 %v6526
        %8838 = vmatpush.bf16.msra.mxu0 %v6524
        %8839 = vmatpush.bf16.msra.mxu0 %v6522
        %8840 = vmatmul.bf16.gmra.mxu0 %v1350
        %v8841 = vpop.f32.mrf.mxu0
        %v8842 = vadd.f32 %v8823, %v8841
        %v8843 = vpop.f32.mrf.mxu0
        %v8844 = vadd.f32 %v8825, %v8843
        %8845 = vmatmul.bf16.gmra.mxu0 %v1366
        %v8846 = vpop.f32.mrf.mxu0
        %v8847 = vadd.f32 %v8828, %v8846
        %v8848 = vpop.f32.mrf.mxu0
        %v8849 = vadd.f32 %v8830, %v8848
        %8850 = vdwg.mxu0
        %8851 = vmatpush.bf16.msra.mxu0 %v6552
        %8852 = vmatpush.bf16.msra.mxu0 %v6550
        %8853 = vmatpush.bf16.msra.mxu0 %v6548
        %8854 = vmatpush.bf16.msra.mxu0 %v6546
        %8855 = vmatpush.bf16.msra.mxu0 %v6544
        %8856 = vmatpush.bf16.msra.mxu0 %v6542
        %8857 = vmatpush.bf16.msra.mxu0 %v6540
        %8858 = vmatpush.bf16.msra.mxu0 %v6538
        %8859 = vmatmul.bf16.gmra.mxu0 %v1351
        %v8860 = vpop.f32.mrf.mxu0
        %v8861 = vadd.f32 %v8842, %v8860
        %v8862 = vpop.f32.mrf.mxu0
        %v8863 = vadd.f32 %v8844, %v8862
        %8864 = vmatmul.bf16.gmra.mxu0 %v1367
        %v8865 = vpop.f32.mrf.mxu0
        %v8866 = vadd.f32 %v8847, %v8865
        %v8867 = vpop.f32.mrf.mxu0
        %v8868 = vadd.f32 %v8849, %v8867
        %8869 = vdwg.mxu0
        %8870 = vmatpush.bf16.msra.mxu0 %v6568
        %8871 = vmatpush.bf16.msra.mxu0 %v6566
        %8872 = vmatpush.bf16.msra.mxu0 %v6564
        %8873 = vmatpush.bf16.msra.mxu0 %v6562
        %8874 = vmatpush.bf16.msra.mxu0 %v6560
        %8875 = vmatpush.bf16.msra.mxu0 %v6558
        %8876 = vmatpush.bf16.msra.mxu0 %v6556
        %8877 = vmatpush.bf16.msra.mxu0 %v6554
        %8878 = vmatmul.bf16.gmra.mxu0 %v1352
        %v8879 = vpop.f32.mrf.mxu0
        %v8880 = vadd.f32 %v8861, %v8879
        %v8881 = vpop.f32.mrf.mxu0
        %v8882 = vadd.f32 %v8863, %v8881
        %8883 = vmatmul.bf16.gmra.mxu0 %v1368
        %v8884 = vpop.f32.mrf.mxu0
        %v8885 = vadd.f32 %v8866, %v8884
        %v8886 = vpop.f32.mrf.mxu0
        %v8887 = vadd.f32 %v8868, %v8886
        %8888 = vdwg.mxu0
        %8889 = vmatpush.bf16.msra.mxu0 %v6584
        %8890 = vmatpush.bf16.msra.mxu0 %v6582
        %8891 = vmatpush.bf16.msra.mxu0 %v6580
        %8892 = vmatpush.bf16.msra.mxu0 %v6578
        %8893 = vmatpush.bf16.msra.mxu0 %v6576
        %8894 = vmatpush.bf16.msra.mxu0 %v6574
        %8895 = vmatpush.bf16.msra.mxu0 %v6572
        %8896 = vmatpush.bf16.msra.mxu0 %v6570
        %8897 = vmatmul.bf16.gmra.mxu0 %v1353
        %v8898 = vpop.f32.mrf.mxu0
        %v8899 = vadd.f32 %v8880, %v8898
        %v8900 = vpop.f32.mrf.mxu0
        %v8901 = vadd.f32 %v8882, %v8900
        %8902 = vmatmul.bf16.gmra.mxu0 %v1369
        %v8903 = vpop.f32.mrf.mxu0
        %v8904 = vadd.f32 %v8885, %v8903
        %v8905 = vpop.f32.mrf.mxu0
        %v8906 = vadd.f32 %v8887, %v8905
        %8907 = vdwg.mxu0
        %8908 = vmatpush.bf16.msra.mxu0 %v6600
        %8909 = vmatpush.bf16.msra.mxu0 %v6598
        %8910 = vmatpush.bf16.msra.mxu0 %v6596
        %8911 = vmatpush.bf16.msra.mxu0 %v6594
        %8912 = vmatpush.bf16.msra.mxu0 %v6592
        %8913 = vmatpush.bf16.msra.mxu0 %v6590
        %8914 = vmatpush.bf16.msra.mxu0 %v6588
        %8915 = vmatpush.bf16.msra.mxu0 %v6586
        %8916 = vmatmul.bf16.gmra.mxu0 %v1354
        %v8917 = vpop.f32.mrf.mxu0
        %v8918 = vadd.f32 %v8899, %v8917
        %v8919 = vpop.f32.mrf.mxu0
        %v8920 = vadd.f32 %v8901, %v8919
        %8921 = vmatmul.bf16.gmra.mxu0 %v1370
        %v8922 = vpop.f32.mrf.mxu0
        %v8923 = vadd.f32 %v8904, %v8922
        %v8924 = vpop.f32.mrf.mxu0
        %v8925 = vadd.f32 %v8906, %v8924
        %8926 = vdwg.mxu0
        %8927 = vmatpush.bf16.msra.mxu0 %v6616
        %8928 = vmatpush.bf16.msra.mxu0 %v6614
        %8929 = vmatpush.bf16.msra.mxu0 %v6612
        %8930 = vmatpush.bf16.msra.mxu0 %v6610
        %8931 = vmatpush.bf16.msra.mxu0 %v6608
        %8932 = vmatpush.bf16.msra.mxu0 %v6606
        %8933 = vmatpush.bf16.msra.mxu0 %v6604
        %8934 = vmatpush.bf16.msra.mxu0 %v6602
        %8935 = vmatmul.bf16.gmra.mxu0 %v1355
        %v8936 = vpop.f32.mrf.mxu0
        %v8937 = vadd.f32 %v8918, %v8936
        %v8938 = vpop.f32.mrf.mxu0
        %v8939 = vadd.f32 %v8920, %v8938
        %8940 = vmatmul.bf16.gmra.mxu0 %v1371
        %v8941 = vpop.f32.mrf.mxu0
        %v8942 = vadd.f32 %v8923, %v8941
        %v8943 = vpop.f32.mrf.mxu0
        %v8944 = vadd.f32 %v8925, %v8943
        %8945 = vdwg.mxu0
        %8946 = vmatpush.bf16.msra.mxu0 %v6632
        %8947 = vmatpush.bf16.msra.mxu0 %v6630
        %8948 = vmatpush.bf16.msra.mxu0 %v6628
        %8949 = vmatpush.bf16.msra.mxu0 %v6626
        %8950 = vmatpush.bf16.msra.mxu0 %v6624
        %8951 = vmatpush.bf16.msra.mxu0 %v6622
        %8952 = vmatpush.bf16.msra.mxu0 %v6620
        %8953 = vmatpush.bf16.msra.mxu0 %v6618
        %8954 = vmatmul.bf16.gmra.mxu0 %v1411
        %v8955 = vpop.f32.mrf.mxu0
        %v8956 = vadd.f32 %v8937, %v8955
        %v8957 = vpop.f32.mrf.mxu0
        %v8958 = vadd.f32 %v8939, %v8957
        %8959 = vmatmul.bf16.gmra.mxu0 %v1435
        %v8960 = vpop.f32.mrf.mxu0
        %v8961 = vadd.f32 %v8942, %v8960
        %v8962 = vpop.f32.mrf.mxu0
        %v8963 = vadd.f32 %v8944, %v8962
        %8964 = vdwg.mxu0
        %8965 = vmatpush.bf16.msra.mxu0 %v6648
        %8966 = vmatpush.bf16.msra.mxu0 %v6646
        %8967 = vmatpush.bf16.msra.mxu0 %v6644
        %8968 = vmatpush.bf16.msra.mxu0 %v6642
        %8969 = vmatpush.bf16.msra.mxu0 %v6640
        %8970 = vmatpush.bf16.msra.mxu0 %v6638
        %8971 = vmatpush.bf16.msra.mxu0 %v6636
        %8972 = vmatpush.bf16.msra.mxu0 %v6634
        %8973 = vmatmul.bf16.gmra.mxu0 %v1412
        %v8974 = vpop.f32.mrf.mxu0
        %v8975 = vadd.f32 %v8956, %v8974
        %v8976 = vpop.f32.mrf.mxu0
        %v8977 = vadd.f32 %v8958, %v8976
        %8978 = vmatmul.bf16.gmra.mxu0 %v1436
        %v8979 = vpop.f32.mrf.mxu0
        %v8980 = vadd.f32 %v8961, %v8979
        %v8981 = vpop.f32.mrf.mxu0
        %v8982 = vadd.f32 %v8963, %v8981
        %8983 = vdwg.mxu0
        %8984 = vmatpush.bf16.msra.mxu0 %v6664
        %8985 = vmatpush.bf16.msra.mxu0 %v6662
        %8986 = vmatpush.bf16.msra.mxu0 %v6660
        %8987 = vmatpush.bf16.msra.mxu0 %v6658
        %8988 = vmatpush.bf16.msra.mxu0 %v6656
        %8989 = vmatpush.bf16.msra.mxu0 %v6654
        %8990 = vmatpush.bf16.msra.mxu0 %v6652
        %8991 = vmatpush.bf16.msra.mxu0 %v6650
        %8992 = vmatmul.bf16.gmra.mxu0 %v1413
        %v8993 = vpop.f32.mrf.mxu0
        %v8994 = vadd.f32 %v8975, %v8993
        %v8995 = vpop.f32.mrf.mxu0
        %v8996 = vadd.f32 %v8977, %v8995
        %8997 = vmatmul.bf16.gmra.mxu0 %v1437
        %v8998 = vpop.f32.mrf.mxu0
        %v8999 = vadd.f32 %v8980, %v8998
        %v9000 = vpop.f32.mrf.mxu0
        %v9001 = vadd.f32 %v8982, %v9000
        %9002 = vdwg.mxu0
        %9003 = vmatpush.bf16.msra.mxu0 %v6680
        %9004 = vmatpush.bf16.msra.mxu0 %v6678
        %9005 = vmatpush.bf16.msra.mxu0 %v6676
        %9006 = vmatpush.bf16.msra.mxu0 %v6674
        %9007 = vmatpush.bf16.msra.mxu0 %v6672
        %9008 = vmatpush.bf16.msra.mxu0 %v6670
        %9009 = vmatpush.bf16.msra.mxu0 %v6668
        %9010 = vmatpush.bf16.msra.mxu0 %v6666
        %9011 = vmatmul.bf16.gmra.mxu0 %v1414
        %v9012 = vpop.f32.mrf.mxu0
        %v9013 = vadd.f32 %v8994, %v9012
        %v9014 = vpop.f32.mrf.mxu0
        %v9015 = vadd.f32 %v8996, %v9014
        %9016 = vmatmul.bf16.gmra.mxu0 %v1438
        %v9017 = vpop.f32.mrf.mxu0
        %v9018 = vadd.f32 %v8999, %v9017
        %v9019 = vpop.f32.mrf.mxu0
        %v9020 = vadd.f32 %v9001, %v9019
        %9021 = vdwg.mxu0
        %9022 = vmatpush.bf16.msra.mxu0 %v6696
        %9023 = vmatpush.bf16.msra.mxu0 %v6694
        %9024 = vmatpush.bf16.msra.mxu0 %v6692
        %9025 = vmatpush.bf16.msra.mxu0 %v6690
        %9026 = vmatpush.bf16.msra.mxu0 %v6688
        %9027 = vmatpush.bf16.msra.mxu0 %v6686
        %9028 = vmatpush.bf16.msra.mxu0 %v6684
        %9029 = vmatpush.bf16.msra.mxu0 %v6682
        %9030 = vmatmul.bf16.gmra.mxu0 %v1415
        %v9031 = vpop.f32.mrf.mxu0
        %v9032 = vadd.f32 %v9013, %v9031
        %v9033 = vpop.f32.mrf.mxu0
        %v9034 = vadd.f32 %v9015, %v9033
        %9035 = vmatmul.bf16.gmra.mxu0 %v1439
        %v9036 = vpop.f32.mrf.mxu0
        %v9037 = vadd.f32 %v9018, %v9036
        %v9038 = vpop.f32.mrf.mxu0
        %v9039 = vadd.f32 %v9020, %v9038
        %9040 = vdwg.mxu0
        %9041 = vmatpush.bf16.msra.mxu0 %v6712
        %9042 = vmatpush.bf16.msra.mxu0 %v6710
        %9043 = vmatpush.bf16.msra.mxu0 %v6708
        %9044 = vmatpush.bf16.msra.mxu0 %v6706
        %9045 = vmatpush.bf16.msra.mxu0 %v6704
        %9046 = vmatpush.bf16.msra.mxu0 %v6702
        %9047 = vmatpush.bf16.msra.mxu0 %v6700
        %9048 = vmatpush.bf16.msra.mxu0 %v6698
        %9049 = vmatmul.bf16.gmra.mxu0 %v1416
        %v9050 = vpop.f32.mrf.mxu0
        %v9051 = vadd.f32 %v9032, %v9050
        %v9052 = vpop.f32.mrf.mxu0
        %v9053 = vadd.f32 %v9034, %v9052
        %9054 = vmatmul.bf16.gmra.mxu0 %v1440
        %v9055 = vpop.f32.mrf.mxu0
        %v9056 = vadd.f32 %v9037, %v9055
        %v9057 = vpop.f32.mrf.mxu0
        %v9058 = vadd.f32 %v9039, %v9057
        %9059 = vdwg.mxu0
        %9060 = vmatpush.bf16.msra.mxu0 %v6728
        %9061 = vmatpush.bf16.msra.mxu0 %v6726
        %9062 = vmatpush.bf16.msra.mxu0 %v6724
        %9063 = vmatpush.bf16.msra.mxu0 %v6722
        %9064 = vmatpush.bf16.msra.mxu0 %v6720
        %9065 = vmatpush.bf16.msra.mxu0 %v6718
        %9066 = vmatpush.bf16.msra.mxu0 %v6716
        %9067 = vmatpush.bf16.msra.mxu0 %v6714
        %9068 = vmatmul.bf16.gmra.mxu0 %v1417
        %v9069 = vpop.f32.mrf.mxu0
        %v9070 = vadd.f32 %v9051, %v9069
        %v9071 = vpop.f32.mrf.mxu0
        %v9072 = vadd.f32 %v9053, %v9071
        %9073 = vmatmul.bf16.gmra.mxu0 %v1441
        %v9074 = vpop.f32.mrf.mxu0
        %v9075 = vadd.f32 %v9056, %v9074
        %v9076 = vpop.f32.mrf.mxu0
        %v9077 = vadd.f32 %v9058, %v9076
        %9078 = vdwg.mxu0
        %9079 = vmatpush.bf16.msra.mxu0 %v6744
        %9080 = vmatpush.bf16.msra.mxu0 %v6742
        %9081 = vmatpush.bf16.msra.mxu0 %v6740
        %9082 = vmatpush.bf16.msra.mxu0 %v6738
        %9083 = vmatpush.bf16.msra.mxu0 %v6736
        %9084 = vmatpush.bf16.msra.mxu0 %v6734
        %9085 = vmatpush.bf16.msra.mxu0 %v6732
        %9086 = vmatpush.bf16.msra.mxu0 %v6730
        %9087 = vmatmul.bf16.gmra.mxu0 %v1418
        %v9088 = vpop.f32.mrf.mxu0
        %v9089 = vadd.f32 %v9070, %v9088
        %v9090 = vpop.f32.mrf.mxu0
        %v9091 = vadd.f32 %v9072, %v9090
        %9092 = vmatmul.bf16.gmra.mxu0 %v1442
        %v9093 = vpop.f32.mrf.mxu0
        %v9094 = vadd.f32 %v9075, %v9093
        %v9095 = vpop.f32.mrf.mxu0
        %v9096 = vadd.f32 %v9077, %v9095
        %9097 = vdwg.mxu0
        %9098 = vmatpush.bf16.msra.mxu0 %v6760
        %9099 = vmatpush.bf16.msra.mxu0 %v6758
        %9100 = vmatpush.bf16.msra.mxu0 %v6756
        %9101 = vmatpush.bf16.msra.mxu0 %v6754
        %9102 = vmatpush.bf16.msra.mxu0 %v6752
        %9103 = vmatpush.bf16.msra.mxu0 %v6750
        %9104 = vmatpush.bf16.msra.mxu0 %v6748
        %9105 = vmatpush.bf16.msra.mxu0 %v6746
        %9106 = vmatmul.bf16.gmra.mxu0 %v1482
        %v9107 = vpop.f32.mrf.mxu0
        %v9108 = vadd.f32 %v9089, %v9107
        %v9109 = vpop.f32.mrf.mxu0
        %v9110 = vadd.f32 %v9091, %v9109
        %9111 = vmatmul.bf16.gmra.mxu0 %v1506
        %v9112 = vpop.f32.mrf.mxu0
        %v9113 = vadd.f32 %v9094, %v9112
        %v9114 = vpop.f32.mrf.mxu0
        %v9115 = vadd.f32 %v9096, %v9114
        %9116 = vdwg.mxu0
        %9117 = vmatpush.bf16.msra.mxu0 %v6776
        %9118 = vmatpush.bf16.msra.mxu0 %v6774
        %9119 = vmatpush.bf16.msra.mxu0 %v6772
        %9120 = vmatpush.bf16.msra.mxu0 %v6770
        %9121 = vmatpush.bf16.msra.mxu0 %v6768
        %9122 = vmatpush.bf16.msra.mxu0 %v6766
        %9123 = vmatpush.bf16.msra.mxu0 %v6764
        %9124 = vmatpush.bf16.msra.mxu0 %v6762
        %9125 = vmatmul.bf16.gmra.mxu0 %v1483
        %v9126 = vpop.f32.mrf.mxu0
        %v9127 = vadd.f32 %v9108, %v9126
        %v9128 = vpop.f32.mrf.mxu0
        %v9129 = vadd.f32 %v9110, %v9128
        %9130 = vmatmul.bf16.gmra.mxu0 %v1507
        %v9131 = vpop.f32.mrf.mxu0
        %v9132 = vadd.f32 %v9113, %v9131
        %v9133 = vpop.f32.mrf.mxu0
        %v9134 = vadd.f32 %v9115, %v9133
        %9135 = vdwg.mxu0
        %9136 = vmatpush.bf16.msra.mxu0 %v6792
        %9137 = vmatpush.bf16.msra.mxu0 %v6790
        %9138 = vmatpush.bf16.msra.mxu0 %v6788
        %9139 = vmatpush.bf16.msra.mxu0 %v6786
        %9140 = vmatpush.bf16.msra.mxu0 %v6784
        %9141 = vmatpush.bf16.msra.mxu0 %v6782
        %9142 = vmatpush.bf16.msra.mxu0 %v6780
        %9143 = vmatpush.bf16.msra.mxu0 %v6778
        %9144 = vmatmul.bf16.gmra.mxu0 %v1484
        %v9145 = vpop.f32.mrf.mxu0
        %v9146 = vadd.f32 %v9127, %v9145
        %v9147 = vpop.f32.mrf.mxu0
        %v9148 = vadd.f32 %v9129, %v9147
        %9149 = vmatmul.bf16.gmra.mxu0 %v1508
        %v9150 = vpop.f32.mrf.mxu0
        %v9151 = vadd.f32 %v9132, %v9150
        %v9152 = vpop.f32.mrf.mxu0
        %v9153 = vadd.f32 %v9134, %v9152
        %9154 = vdwg.mxu0
        %9155 = vmatpush.bf16.msra.mxu0 %v6808
        %9156 = vmatpush.bf16.msra.mxu0 %v6806
        %9157 = vmatpush.bf16.msra.mxu0 %v6804
        %9158 = vmatpush.bf16.msra.mxu0 %v6802
        %9159 = vmatpush.bf16.msra.mxu0 %v6800
        %9160 = vmatpush.bf16.msra.mxu0 %v6798
        %9161 = vmatpush.bf16.msra.mxu0 %v6796
        %9162 = vmatpush.bf16.msra.mxu0 %v6794
        %9163 = vmatmul.bf16.gmra.mxu0 %v1485
        %v9164 = vpop.f32.mrf.mxu0
        %v9165 = vadd.f32 %v9146, %v9164
        %v9166 = vpop.f32.mrf.mxu0
        %v9167 = vadd.f32 %v9148, %v9166
        %9168 = vmatmul.bf16.gmra.mxu0 %v1509
        %v9169 = vpop.f32.mrf.mxu0
        %v9170 = vadd.f32 %v9151, %v9169
        %v9171 = vpop.f32.mrf.mxu0
        %v9172 = vadd.f32 %v9153, %v9171
        %9173 = vdwg.mxu0
        %9174 = vmatpush.bf16.msra.mxu0 %v6824
        %9175 = vmatpush.bf16.msra.mxu0 %v6822
        %9176 = vmatpush.bf16.msra.mxu0 %v6820
        %9177 = vmatpush.bf16.msra.mxu0 %v6818
        %9178 = vmatpush.bf16.msra.mxu0 %v6816
        %9179 = vmatpush.bf16.msra.mxu0 %v6814
        %9180 = vmatpush.bf16.msra.mxu0 %v6812
        %9181 = vmatpush.bf16.msra.mxu0 %v6810
        %9182 = vmatmul.bf16.gmra.mxu0 %v1486
        %v9183 = vpop.f32.mrf.mxu0
        %v9184 = vadd.f32 %v9165, %v9183
        %v9185 = vpop.f32.mrf.mxu0
        %v9186 = vadd.f32 %v9167, %v9185
        %9187 = vmatmul.bf16.gmra.mxu0 %v1510
        %v9188 = vpop.f32.mrf.mxu0
        %v9189 = vadd.f32 %v9170, %v9188
        %v9190 = vpop.f32.mrf.mxu0
        %v9191 = vadd.f32 %v9172, %v9190
        %9192 = vdwg.mxu0
        %9193 = vmatpush.bf16.msra.mxu0 %v6840
        %9194 = vmatpush.bf16.msra.mxu0 %v6838
        %9195 = vmatpush.bf16.msra.mxu0 %v6836
        %9196 = vmatpush.bf16.msra.mxu0 %v6834
        %9197 = vmatpush.bf16.msra.mxu0 %v6832
        %9198 = vmatpush.bf16.msra.mxu0 %v6830
        %9199 = vmatpush.bf16.msra.mxu0 %v6828
        %9200 = vmatpush.bf16.msra.mxu0 %v6826
        %9201 = vmatmul.bf16.gmra.mxu0 %v1487
        %v9202 = vpop.f32.mrf.mxu0
        %v9203 = vadd.f32 %v9184, %v9202
        %v9204 = vpop.f32.mrf.mxu0
        %v9205 = vadd.f32 %v9186, %v9204
        %9206 = vmatmul.bf16.gmra.mxu0 %v1511
        %v9207 = vpop.f32.mrf.mxu0
        %v9208 = vadd.f32 %v9189, %v9207
        %v9209 = vpop.f32.mrf.mxu0
        %v9210 = vadd.f32 %v9191, %v9209
        %9211 = vdwg.mxu0
        %9212 = vmatpush.bf16.msra.mxu0 %v6856
        %9213 = vmatpush.bf16.msra.mxu0 %v6854
        %9214 = vmatpush.bf16.msra.mxu0 %v6852
        %9215 = vmatpush.bf16.msra.mxu0 %v6850
        %9216 = vmatpush.bf16.msra.mxu0 %v6848
        %9217 = vmatpush.bf16.msra.mxu0 %v6846
        %9218 = vmatpush.bf16.msra.mxu0 %v6844
        %9219 = vmatpush.bf16.msra.mxu0 %v6842
        %9220 = vmatmul.bf16.gmra.mxu0 %v1488
        %v9221 = vpop.f32.mrf.mxu0
        %v9222 = vadd.f32 %v9203, %v9221
        %v9223 = vpop.f32.mrf.mxu0
        %v9224 = vadd.f32 %v9205, %v9223
        %9225 = vmatmul.bf16.gmra.mxu0 %v1512
        %v9226 = vpop.f32.mrf.mxu0
        %v9227 = vadd.f32 %v9208, %v9226
        %v9228 = vpop.f32.mrf.mxu0
        %v9229 = vadd.f32 %v9210, %v9228
        %9230 = vdwg.mxu0
        %9231 = vmatpush.bf16.msra.mxu0 %v6872
        %9232 = vmatpush.bf16.msra.mxu0 %v6870
        %9233 = vmatpush.bf16.msra.mxu0 %v6868
        %9234 = vmatpush.bf16.msra.mxu0 %v6866
        %9235 = vmatpush.bf16.msra.mxu0 %v6864
        %9236 = vmatpush.bf16.msra.mxu0 %v6862
        %9237 = vmatpush.bf16.msra.mxu0 %v6860
        %9238 = vmatpush.bf16.msra.mxu0 %v6858
        %9239 = vmatmul.bf16.gmra.mxu0 %v1489
        %v9240 = vpop.f32.mrf.mxu0
        %v9241 = vadd.f32 %v9222, %v9240
        %v9242 = vpop.f32.mrf.mxu0
        %v9243 = vadd.f32 %v9224, %v9242
        %9244 = vmatmul.bf16.gmra.mxu0 %v1513
        %v9245 = vpop.f32.mrf.mxu0
        %v9246 = vadd.f32 %v9227, %v9245
        %v9247 = vpop.f32.mrf.mxu0
        %v9248 = vadd.f32 %v9229, %v9247
        %9249 = vdwg.mxu0
        %9250 = vmatpush.bf16.msra.mxu0 %v6888
        %9251 = vmatpush.bf16.msra.mxu0 %v6886
        %9252 = vmatpush.bf16.msra.mxu0 %v6884
        %9253 = vmatpush.bf16.msra.mxu0 %v6882
        %9254 = vmatpush.bf16.msra.mxu0 %v6880
        %9255 = vmatpush.bf16.msra.mxu0 %v6878
        %9256 = vmatpush.bf16.msra.mxu0 %v6876
        %9257 = vmatpush.bf16.msra.mxu0 %v6874
        %9258 = vmatmul.bf16.gmra.mxu0 %v1545
        %v9259 = vpop.f32.mrf.mxu0
        %v9260 = vadd.f32 %v9241, %v9259
        %v9261 = vpop.f32.mrf.mxu0
        %v9262 = vadd.f32 %v9243, %v9261
        %9263 = vmatmul.bf16.gmra.mxu0 %v1561
        %v9264 = vpop.f32.mrf.mxu0
        %v9265 = vadd.f32 %v9246, %v9264
        %v9266 = vpop.f32.mrf.mxu0
        %v9267 = vadd.f32 %v9248, %v9266
        %9268 = vdwg.mxu0
        %9269 = vmatpush.bf16.msra.mxu0 %v6904
        %9270 = vmatpush.bf16.msra.mxu0 %v6902
        %9271 = vmatpush.bf16.msra.mxu0 %v6900
        %9272 = vmatpush.bf16.msra.mxu0 %v6898
        %9273 = vmatpush.bf16.msra.mxu0 %v6896
        %9274 = vmatpush.bf16.msra.mxu0 %v6894
        %9275 = vmatpush.bf16.msra.mxu0 %v6892
        %9276 = vmatpush.bf16.msra.mxu0 %v6890
        %9277 = vmatmul.bf16.gmra.mxu0 %v1546
        %v9278 = vpop.f32.mrf.mxu0
        %v9279 = vadd.f32 %v9260, %v9278
        %v9280 = vpop.f32.mrf.mxu0
        %v9281 = vadd.f32 %v9262, %v9280
        %9282 = vmatmul.bf16.gmra.mxu0 %v1562
        %v9283 = vpop.f32.mrf.mxu0
        %v9284 = vadd.f32 %v9265, %v9283
        %v9285 = vpop.f32.mrf.mxu0
        %v9286 = vadd.f32 %v9267, %v9285
        %9287 = vdwg.mxu0
        %9288 = vmatpush.bf16.msra.mxu0 %v6920
        %9289 = vmatpush.bf16.msra.mxu0 %v6918
        %9290 = vmatpush.bf16.msra.mxu0 %v6916
        %9291 = vmatpush.bf16.msra.mxu0 %v6914
        %9292 = vmatpush.bf16.msra.mxu0 %v6912
        %9293 = vmatpush.bf16.msra.mxu0 %v6910
        %9294 = vmatpush.bf16.msra.mxu0 %v6908
        %9295 = vmatpush.bf16.msra.mxu0 %v6906
        %9296 = vmatmul.bf16.gmra.mxu0 %v1547
        %v9297 = vpop.f32.mrf.mxu0
        %v9298 = vadd.f32 %v9279, %v9297
        %v9299 = vpop.f32.mrf.mxu0
        %v9300 = vadd.f32 %v9281, %v9299
        %9301 = vmatmul.bf16.gmra.mxu0 %v1563
        %v9302 = vpop.f32.mrf.mxu0
        %v9303 = vadd.f32 %v9284, %v9302
        %v9304 = vpop.f32.mrf.mxu0
        %v9305 = vadd.f32 %v9286, %v9304
        %9306 = vdwg.mxu0
        %9307 = vmatpush.bf16.msra.mxu0 %v6936
        %9308 = vmatpush.bf16.msra.mxu0 %v6934
        %9309 = vmatpush.bf16.msra.mxu0 %v6932
        %9310 = vmatpush.bf16.msra.mxu0 %v6930
        %9311 = vmatpush.bf16.msra.mxu0 %v6928
        %9312 = vmatpush.bf16.msra.mxu0 %v6926
        %9313 = vmatpush.bf16.msra.mxu0 %v6924
        %9314 = vmatpush.bf16.msra.mxu0 %v6922
        %9315 = vmatmul.bf16.gmra.mxu0 %v1548
        %v9316 = vpop.f32.mrf.mxu0
        %v9317 = vadd.f32 %v9298, %v9316
        %v9318 = vpop.f32.mrf.mxu0
        %v9319 = vadd.f32 %v9300, %v9318
        %9320 = vmatmul.bf16.gmra.mxu0 %v1564
        %v9321 = vpop.f32.mrf.mxu0
        %v9322 = vadd.f32 %v9303, %v9321
        %v9323 = vpop.f32.mrf.mxu0
        %v9324 = vadd.f32 %v9305, %v9323
        %9325 = vdwg.mxu0
        %9326 = vmatpush.bf16.msra.mxu0 %v6952
        %9327 = vmatpush.bf16.msra.mxu0 %v6950
        %9328 = vmatpush.bf16.msra.mxu0 %v6948
        %9329 = vmatpush.bf16.msra.mxu0 %v6946
        %9330 = vmatpush.bf16.msra.mxu0 %v6944
        %9331 = vmatpush.bf16.msra.mxu0 %v6942
        %9332 = vmatpush.bf16.msra.mxu0 %v6940
        %9333 = vmatpush.bf16.msra.mxu0 %v6938
        %9334 = vmatmul.bf16.gmra.mxu0 %v1549
        %v9335 = vpop.f32.mrf.mxu0
        %v9336 = vadd.f32 %v9317, %v9335
        %v9337 = vpop.f32.mrf.mxu0
        %v9338 = vadd.f32 %v9319, %v9337
        %9339 = vmatmul.bf16.gmra.mxu0 %v1565
        %v9340 = vpop.f32.mrf.mxu0
        %v9341 = vadd.f32 %v9322, %v9340
        %v9342 = vpop.f32.mrf.mxu0
        %v9343 = vadd.f32 %v9324, %v9342
        %9344 = vdwg.mxu0
        %9345 = vmatpush.bf16.msra.mxu0 %v6968
        %9346 = vmatpush.bf16.msra.mxu0 %v6966
        %9347 = vmatpush.bf16.msra.mxu0 %v6964
        %9348 = vmatpush.bf16.msra.mxu0 %v6962
        %9349 = vmatpush.bf16.msra.mxu0 %v6960
        %9350 = vmatpush.bf16.msra.mxu0 %v6958
        %9351 = vmatpush.bf16.msra.mxu0 %v6956
        %9352 = vmatpush.bf16.msra.mxu0 %v6954
        %9353 = vmatmul.bf16.gmra.mxu0 %v1550
        %v9354 = vpop.f32.mrf.mxu0
        %v9355 = vadd.f32 %v9336, %v9354
        %v9356 = vpop.f32.mrf.mxu0
        %v9357 = vadd.f32 %v9338, %v9356
        %9358 = vmatmul.bf16.gmra.mxu0 %v1566
        %v9359 = vpop.f32.mrf.mxu0
        %v9360 = vadd.f32 %v9341, %v9359
        %v9361 = vpop.f32.mrf.mxu0
        %v9362 = vadd.f32 %v9343, %v9361
        %9363 = vdwg.mxu0
        %9364 = vmatpush.bf16.msra.mxu0 %v6984
        %9365 = vmatpush.bf16.msra.mxu0 %v6982
        %9366 = vmatpush.bf16.msra.mxu0 %v6980
        %9367 = vmatpush.bf16.msra.mxu0 %v6978
        %9368 = vmatpush.bf16.msra.mxu0 %v6976
        %9369 = vmatpush.bf16.msra.mxu0 %v6974
        %9370 = vmatpush.bf16.msra.mxu0 %v6972
        %9371 = vmatpush.bf16.msra.mxu0 %v6970
        %9372 = vmatmul.bf16.gmra.mxu0 %v1551
        %v9373 = vpop.f32.mrf.mxu0
        %v9374 = vadd.f32 %v9355, %v9373
        %v9375 = vpop.f32.mrf.mxu0
        %v9376 = vadd.f32 %v9357, %v9375
        %9377 = vmatmul.bf16.gmra.mxu0 %v1567
        %v9378 = vpop.f32.mrf.mxu0
        %v9379 = vadd.f32 %v9360, %v9378
        %v9380 = vpop.f32.mrf.mxu0
        %v9381 = vadd.f32 %v9362, %v9380
        %9382 = vdwg.mxu0
        %9383 = vmatpush.bf16.msra.mxu0 %v7000
        %9384 = vmatpush.bf16.msra.mxu0 %v6998
        %9385 = vmatpush.bf16.msra.mxu0 %v6996
        %9386 = vmatpush.bf16.msra.mxu0 %v6994
        %9387 = vmatpush.bf16.msra.mxu0 %v6992
        %9388 = vmatpush.bf16.msra.mxu0 %v6990
        %9389 = vmatpush.bf16.msra.mxu0 %v6988
        %9390 = vmatpush.bf16.msra.mxu0 %v6986
        %9391 = vmatmul.bf16.gmra.mxu0 %v1552
        %v9392 = vpop.f32.mrf.mxu0
        %v9393 = vadd.f32 %v9374, %v9392
        %v9394 = vpop.f32.mrf.mxu0
        %v9395 = vadd.f32 %v9376, %v9394
        %9396 = vmatmul.bf16.gmra.mxu0 %v1568
        %v9397 = vpop.f32.mrf.mxu0
        %v9398 = vadd.f32 %v9379, %v9397
        %v9399 = vpop.f32.mrf.mxu0
        %v9400 = vadd.f32 %v9381, %v9399
        %9401 = vdwg.mxu0
        %9402 = vmatpush.bf16.msra.mxu0 %v7016
        %9403 = vmatpush.bf16.msra.mxu0 %v7014
        %9404 = vmatpush.bf16.msra.mxu0 %v7012
        %9405 = vmatpush.bf16.msra.mxu0 %v7010
        %9406 = vmatpush.bf16.msra.mxu0 %v7008
        %9407 = vmatpush.bf16.msra.mxu0 %v7006
        %9408 = vmatpush.bf16.msra.mxu0 %v7004
        %9409 = vmatpush.bf16.msra.mxu0 %v7002
        %9410 = vmatmul.bf16.gmra.mxu0 %v1602
        %v9411 = vpop.f32.mrf.mxu0
        %v9412 = vadd.f32 %v9393, %v9411
        %v9413 = vpop.f32.mrf.mxu0
        %v9414 = vadd.f32 %v9395, %v9413
        %9415 = vmatmul.bf16.gmra.mxu0 %v1620
        %v9416 = vpop.f32.mrf.mxu0
        %v9417 = vadd.f32 %v9398, %v9416
        %v9418 = vpop.f32.mrf.mxu0
        %v9419 = vadd.f32 %v9400, %v9418
        %9420 = vdwg.mxu0
        %9421 = vmatpush.bf16.msra.mxu0 %v7032
        %9422 = vmatpush.bf16.msra.mxu0 %v7030
        %9423 = vmatpush.bf16.msra.mxu0 %v7028
        %9424 = vmatpush.bf16.msra.mxu0 %v7026
        %9425 = vmatpush.bf16.msra.mxu0 %v7024
        %9426 = vmatpush.bf16.msra.mxu0 %v7022
        %9427 = vmatpush.bf16.msra.mxu0 %v7020
        %9428 = vmatpush.bf16.msra.mxu0 %v7018
        %9429 = vmatmul.bf16.gmra.mxu0 %v1603
        %v9430 = vpop.f32.mrf.mxu0
        %v9431 = vadd.f32 %v9412, %v9430
        %v9432 = vpop.f32.mrf.mxu0
        %v9433 = vadd.f32 %v9414, %v9432
        %9434 = vmatmul.bf16.gmra.mxu0 %v1621
        %v9435 = vpop.f32.mrf.mxu0
        %v9436 = vadd.f32 %v9417, %v9435
        %v9437 = vpop.f32.mrf.mxu0
        %v9438 = vadd.f32 %v9419, %v9437
        %9439 = vdwg.mxu0
        %9440 = vmatpush.bf16.msra.mxu0 %v7048
        %9441 = vmatpush.bf16.msra.mxu0 %v7046
        %9442 = vmatpush.bf16.msra.mxu0 %v7044
        %9443 = vmatpush.bf16.msra.mxu0 %v7042
        %9444 = vmatpush.bf16.msra.mxu0 %v7040
        %9445 = vmatpush.bf16.msra.mxu0 %v7038
        %9446 = vmatpush.bf16.msra.mxu0 %v7036
        %9447 = vmatpush.bf16.msra.mxu0 %v7034
        %9448 = vmatmul.bf16.gmra.mxu0 %v1604
        %v9449 = vpop.f32.mrf.mxu0
        %v9450 = vadd.f32 %v9431, %v9449
        %v9451 = vpop.f32.mrf.mxu0
        %v9452 = vadd.f32 %v9433, %v9451
        %9453 = vmatmul.bf16.gmra.mxu0 %v1622
        %v9454 = vpop.f32.mrf.mxu0
        %v9455 = vadd.f32 %v9436, %v9454
        %v9456 = vpop.f32.mrf.mxu0
        %v9457 = vadd.f32 %v9438, %v9456
        %9458 = vdwg.mxu0
        %9459 = vmatpush.bf16.msra.mxu0 %v7064
        %9460 = vmatpush.bf16.msra.mxu0 %v7062
        %9461 = vmatpush.bf16.msra.mxu0 %v7060
        %9462 = vmatpush.bf16.msra.mxu0 %v7058
        %9463 = vmatpush.bf16.msra.mxu0 %v7056
        %9464 = vmatpush.bf16.msra.mxu0 %v7054
        %9465 = vmatpush.bf16.msra.mxu0 %v7052
        %9466 = vmatpush.bf16.msra.mxu0 %v7050
        %9467 = vmatmul.bf16.gmra.mxu0 %v1605
        %v9468 = vpop.f32.mrf.mxu0
        %v9469 = vadd.f32 %v9450, %v9468
        %v9470 = vpop.f32.mrf.mxu0
        %v9471 = vadd.f32 %v9452, %v9470
        %9472 = vmatmul.bf16.gmra.mxu0 %v1623
        %v9473 = vpop.f32.mrf.mxu0
        %v9474 = vadd.f32 %v9455, %v9473
        %v9475 = vpop.f32.mrf.mxu0
        %v9476 = vadd.f32 %v9457, %v9475
        %9477 = vdwg.mxu0
        %9478 = vmatpush.bf16.msra.mxu0 %v7080
        %9479 = vmatpush.bf16.msra.mxu0 %v7078
        %9480 = vmatpush.bf16.msra.mxu0 %v7076
        %9481 = vmatpush.bf16.msra.mxu0 %v7074
        %9482 = vmatpush.bf16.msra.mxu0 %v7072
        %9483 = vmatpush.bf16.msra.mxu0 %v7070
        %9484 = vmatpush.bf16.msra.mxu0 %v7068
        %9485 = vmatpush.bf16.msra.mxu0 %v7066
        %9486 = vmatmul.bf16.gmra.mxu0 %v1606
        %v9487 = vpop.f32.mrf.mxu0
        %v9488 = vadd.f32 %v9469, %v9487
        %v9489 = vpop.f32.mrf.mxu0
        %v9490 = vadd.f32 %v9471, %v9489
        %9491 = vmatmul.bf16.gmra.mxu0 %v1624
        %v9492 = vpop.f32.mrf.mxu0
        %v9493 = vadd.f32 %v9474, %v9492
        %v9494 = vpop.f32.mrf.mxu0
        %v9495 = vadd.f32 %v9476, %v9494
        %9496 = vdwg.mxu0
        %9497 = vmatpush.bf16.msra.mxu0 %v7096
        %9498 = vmatpush.bf16.msra.mxu0 %v7094
        %9499 = vmatpush.bf16.msra.mxu0 %v7092
        %9500 = vmatpush.bf16.msra.mxu0 %v7090
        %9501 = vmatpush.bf16.msra.mxu0 %v7088
        %9502 = vmatpush.bf16.msra.mxu0 %v7086
        %9503 = vmatpush.bf16.msra.mxu0 %v7084
        %9504 = vmatpush.bf16.msra.mxu0 %v7082
        %9505 = vmatmul.bf16.gmra.mxu0 %v1607
        %v9506 = vpop.f32.mrf.mxu0
        %v9507 = vadd.f32 %v9488, %v9506
        %v9508 = vpop.f32.mrf.mxu0
        %v9509 = vadd.f32 %v9490, %v9508
        %9510 = vmatmul.bf16.gmra.mxu0 %v1625
        %v9511 = vpop.f32.mrf.mxu0
        %v9512 = vadd.f32 %v9493, %v9511
        %v9513 = vpop.f32.mrf.mxu0
        %v9514 = vadd.f32 %v9495, %v9513
        %9515 = vdwg.mxu0
        %9516 = vmatpush.bf16.msra.mxu0 %v7112
        %9517 = vmatpush.bf16.msra.mxu0 %v7110
        %9518 = vmatpush.bf16.msra.mxu0 %v7108
        %9519 = vmatpush.bf16.msra.mxu0 %v7106
        %9520 = vmatpush.bf16.msra.mxu0 %v7104
        %9521 = vmatpush.bf16.msra.mxu0 %v7102
        %9522 = vmatpush.bf16.msra.mxu0 %v7100
        %9523 = vmatpush.bf16.msra.mxu0 %v7098
        %9524 = vmatmul.bf16.gmra.mxu0 %v1608
        %v9525 = vpop.f32.mrf.mxu0
        %v9526 = vadd.f32 %v9507, %v9525
        %v9527 = vpop.f32.mrf.mxu0
        %v9528 = vadd.f32 %v9509, %v9527
        %9529 = vmatmul.bf16.gmra.mxu0 %v1626
        %v9530 = vpop.f32.mrf.mxu0
        %v9531 = vadd.f32 %v9512, %v9530
        %v9532 = vpop.f32.mrf.mxu0
        %v9533 = vadd.f32 %v9514, %v9532
        %9534 = vdwg.mxu0
        %9535 = vmatpush.bf16.msra.mxu0 %v7128
        %9536 = vmatpush.bf16.msra.mxu0 %v7126
        %9537 = vmatpush.bf16.msra.mxu0 %v7124
        %9538 = vmatpush.bf16.msra.mxu0 %v7122
        %9539 = vmatpush.bf16.msra.mxu0 %v7120
        %9540 = vmatpush.bf16.msra.mxu0 %v7118
        %9541 = vmatpush.bf16.msra.mxu0 %v7116
        %9542 = vmatpush.bf16.msra.mxu0 %v7114
        %9543 = vmatmul.bf16.gmra.mxu0 %v1609
        %v9544 = vpop.f32.mrf.mxu0
        %v9545 = vadd.f32 %v9526, %v9544
        %v9546 = vpop.f32.mrf.mxu0
        %v9547 = vadd.f32 %v9528, %v9546
        %9548 = vmatmul.bf16.gmra.mxu0 %v1627
        %v9549 = vpop.f32.mrf.mxu0
        %v9550 = vadd.f32 %v9531, %v9549
        %v9551 = vpop.f32.mrf.mxu0
        %v9552 = vadd.f32 %v9533, %v9551
        %9553 = vdwg.mxu0
        %9554 = vmatpush.bf16.msra.mxu0 %v7144
        %9555 = vmatpush.bf16.msra.mxu0 %v7142
        %9556 = vmatpush.bf16.msra.mxu0 %v7140
        %9557 = vmatpush.bf16.msra.mxu0 %v7138
        %9558 = vmatpush.bf16.msra.mxu0 %v7136
        %9559 = vmatpush.bf16.msra.mxu0 %v7134
        %9560 = vmatpush.bf16.msra.mxu0 %v7132
        %9561 = vmatpush.bf16.msra.mxu0 %v7130
        %9562 = vmatmul.bf16.gmra.mxu0 %v1661
        %v9563 = vpop.f32.mrf.mxu0
        %v9564 = vadd.f32 %v9545, %v9563
        %v9565 = vpop.f32.mrf.mxu0
        %v9566 = vadd.f32 %v9547, %v9565
        %9567 = vmatmul.bf16.gmra.mxu0 %v1679
        %v9568 = vpop.f32.mrf.mxu0
        %v9569 = vadd.f32 %v9550, %v9568
        %v9570 = vpop.f32.mrf.mxu0
        %v9571 = vadd.f32 %v9552, %v9570
        %9572 = vdwg.mxu0
        %9573 = vmatpush.bf16.msra.mxu0 %v7160
        %9574 = vmatpush.bf16.msra.mxu0 %v7158
        %9575 = vmatpush.bf16.msra.mxu0 %v7156
        %9576 = vmatpush.bf16.msra.mxu0 %v7154
        %9577 = vmatpush.bf16.msra.mxu0 %v7152
        %9578 = vmatpush.bf16.msra.mxu0 %v7150
        %9579 = vmatpush.bf16.msra.mxu0 %v7148
        %9580 = vmatpush.bf16.msra.mxu0 %v7146
        %9581 = vmatmul.bf16.gmra.mxu0 %v1662
        %v9582 = vpop.f32.mrf.mxu0
        %v9583 = vadd.f32 %v9564, %v9582
        %v9584 = vpop.f32.mrf.mxu0
        %v9585 = vadd.f32 %v9566, %v9584
        %9586 = vmatmul.bf16.gmra.mxu0 %v1680
        %v9587 = vpop.f32.mrf.mxu0
        %v9588 = vadd.f32 %v9569, %v9587
        %v9589 = vpop.f32.mrf.mxu0
        %v9590 = vadd.f32 %v9571, %v9589
        %9591 = vdwg.mxu0
        %9592 = vmatpush.bf16.msra.mxu0 %v7176
        %9593 = vmatpush.bf16.msra.mxu0 %v7174
        %9594 = vmatpush.bf16.msra.mxu0 %v7172
        %9595 = vmatpush.bf16.msra.mxu0 %v7170
        %9596 = vmatpush.bf16.msra.mxu0 %v7168
        %9597 = vmatpush.bf16.msra.mxu0 %v7166
        %9598 = vmatpush.bf16.msra.mxu0 %v7164
        %9599 = vmatpush.bf16.msra.mxu0 %v7162
        %9600 = vmatmul.bf16.gmra.mxu0 %v1663
        %v9601 = vpop.f32.mrf.mxu0
        %v9602 = vadd.f32 %v9583, %v9601
        %v9603 = vpop.f32.mrf.mxu0
        %v9604 = vadd.f32 %v9585, %v9603
        %9605 = vmatmul.bf16.gmra.mxu0 %v1681
        %v9606 = vpop.f32.mrf.mxu0
        %v9607 = vadd.f32 %v9588, %v9606
        %v9608 = vpop.f32.mrf.mxu0
        %v9609 = vadd.f32 %v9590, %v9608
        %9610 = vdwg.mxu0
        %9611 = vmatpush.bf16.msra.mxu0 %v7192
        %9612 = vmatpush.bf16.msra.mxu0 %v7190
        %9613 = vmatpush.bf16.msra.mxu0 %v7188
        %9614 = vmatpush.bf16.msra.mxu0 %v7186
        %9615 = vmatpush.bf16.msra.mxu0 %v7184
        %9616 = vmatpush.bf16.msra.mxu0 %v7182
        %9617 = vmatpush.bf16.msra.mxu0 %v7180
        %9618 = vmatpush.bf16.msra.mxu0 %v7178
        %9619 = vmatmul.bf16.gmra.mxu0 %v1664
        %v9620 = vpop.f32.mrf.mxu0
        %v9621 = vadd.f32 %v9602, %v9620
        %v9622 = vpop.f32.mrf.mxu0
        %v9623 = vadd.f32 %v9604, %v9622
        %9624 = vmatmul.bf16.gmra.mxu0 %v1682
        %v9625 = vpop.f32.mrf.mxu0
        %v9626 = vadd.f32 %v9607, %v9625
        %v9627 = vpop.f32.mrf.mxu0
        %v9628 = vadd.f32 %v9609, %v9627
        %9629 = vdwg.mxu0
        %9630 = vmatpush.bf16.msra.mxu0 %v7208
        %9631 = vmatpush.bf16.msra.mxu0 %v7206
        %9632 = vmatpush.bf16.msra.mxu0 %v7204
        %9633 = vmatpush.bf16.msra.mxu0 %v7202
        %9634 = vmatpush.bf16.msra.mxu0 %v7200
        %9635 = vmatpush.bf16.msra.mxu0 %v7198
        %9636 = vmatpush.bf16.msra.mxu0 %v7196
        %9637 = vmatpush.bf16.msra.mxu0 %v7194
        %9638 = vmatmul.bf16.gmra.mxu0 %v1665
        %v9639 = vpop.f32.mrf.mxu0
        %v9640 = vadd.f32 %v9621, %v9639
        %v9641 = vpop.f32.mrf.mxu0
        %v9642 = vadd.f32 %v9623, %v9641
        %9643 = vmatmul.bf16.gmra.mxu0 %v1683
        %v9644 = vpop.f32.mrf.mxu0
        %v9645 = vadd.f32 %v9626, %v9644
        %v9646 = vpop.f32.mrf.mxu0
        %v9647 = vadd.f32 %v9628, %v9646
        %9648 = vdwg.mxu0
        %9649 = vmatpush.bf16.msra.mxu0 %v7224
        %9650 = vmatpush.bf16.msra.mxu0 %v7222
        %9651 = vmatpush.bf16.msra.mxu0 %v7220
        %9652 = vmatpush.bf16.msra.mxu0 %v7218
        %9653 = vmatpush.bf16.msra.mxu0 %v7216
        %9654 = vmatpush.bf16.msra.mxu0 %v7214
        %9655 = vmatpush.bf16.msra.mxu0 %v7212
        %9656 = vmatpush.bf16.msra.mxu0 %v7210
        %9657 = vmatmul.bf16.gmra.mxu0 %v1666
        %v9658 = vpop.f32.mrf.mxu0
        %v9659 = vadd.f32 %v9640, %v9658
        %v9660 = vpop.f32.mrf.mxu0
        %v9661 = vadd.f32 %v9642, %v9660
        %9662 = vmatmul.bf16.gmra.mxu0 %v1684
        %v9663 = vpop.f32.mrf.mxu0
        %v9664 = vadd.f32 %v9645, %v9663
        %v9665 = vpop.f32.mrf.mxu0
        %v9666 = vadd.f32 %v9647, %v9665
        %9667 = vdwg.mxu0
        %9668 = vmatpush.bf16.msra.mxu0 %v7240
        %9669 = vmatpush.bf16.msra.mxu0 %v7238
        %9670 = vmatpush.bf16.msra.mxu0 %v7236
        %9671 = vmatpush.bf16.msra.mxu0 %v7234
        %9672 = vmatpush.bf16.msra.mxu0 %v7232
        %9673 = vmatpush.bf16.msra.mxu0 %v7230
        %9674 = vmatpush.bf16.msra.mxu0 %v7228
        %9675 = vmatpush.bf16.msra.mxu0 %v7226
        %9676 = vmatmul.bf16.gmra.mxu0 %v1667
        %v9677 = vpop.f32.mrf.mxu0
        %v9678 = vadd.f32 %v9659, %v9677
        %v9679 = vpop.f32.mrf.mxu0
        %v9680 = vadd.f32 %v9661, %v9679
        %9681 = vmatmul.bf16.gmra.mxu0 %v1685
        %v9682 = vpop.f32.mrf.mxu0
        %v9683 = vadd.f32 %v9664, %v9682
        %v9684 = vpop.f32.mrf.mxu0
        %v9685 = vadd.f32 %v9666, %v9684
        %9686 = vdwg.mxu0
        %9687 = vmatpush.bf16.msra.mxu0 %v7256
        %9688 = vmatpush.bf16.msra.mxu0 %v7254
        %9689 = vmatpush.bf16.msra.mxu0 %v7252
        %9690 = vmatpush.bf16.msra.mxu0 %v7250
        %9691 = vmatpush.bf16.msra.mxu0 %v7248
        %9692 = vmatpush.bf16.msra.mxu0 %v7246
        %9693 = vmatpush.bf16.msra.mxu0 %v7244
        %9694 = vmatpush.bf16.msra.mxu0 %v7242
        %9695 = vmatmul.bf16.gmra.mxu0 %v1668
        %v9696 = vpop.f32.mrf.mxu0
        %v9697 = vadd.f32 %v9678, %v9696
        %v9698 = vpop.f32.mrf.mxu0
        %v9699 = vadd.f32 %v9680, %v9698
        %9700 = vmatmul.bf16.gmra.mxu0 %v1686
        %v9701 = vpop.f32.mrf.mxu0
        %v9702 = vadd.f32 %v9683, %v9701
        %v9703 = vpop.f32.mrf.mxu0
        %v9704 = vadd.f32 %v9685, %v9703
        %9705 = vdwg.mxu0
        %9706 = vmatpush.bf16.msra.mxu0 %v7272
        %9707 = vmatpush.bf16.msra.mxu0 %v7270
        %9708 = vmatpush.bf16.msra.mxu0 %v7268
        %9709 = vmatpush.bf16.msra.mxu0 %v7266
        %9710 = vmatpush.bf16.msra.mxu0 %v7264
        %9711 = vmatpush.bf16.msra.mxu0 %v7262
        %9712 = vmatpush.bf16.msra.mxu0 %v7260
        %9713 = vmatpush.bf16.msra.mxu0 %v7258
        %9714 = vmatmul.bf16.gmra.mxu0 %v1718
        %v9715 = vpop.f32.mrf.mxu0
        %v9716 = vadd.f32 %v9697, %v9715
        %v9717 = vpop.f32.mrf.mxu0
        %v9718 = vadd.f32 %v9699, %v9717
        %9719 = vmatmul.bf16.gmra.mxu0 %v1734
        %v9720 = vpop.f32.mrf.mxu0
        %v9721 = vadd.f32 %v9702, %v9720
        %v9722 = vpop.f32.mrf.mxu0
        %v9723 = vadd.f32 %v9704, %v9722
        %9724 = vdwg.mxu0
        %9725 = vmatpush.bf16.msra.mxu0 %v7288
        %9726 = vmatpush.bf16.msra.mxu0 %v7286
        %9727 = vmatpush.bf16.msra.mxu0 %v7284
        %9728 = vmatpush.bf16.msra.mxu0 %v7282
        %9729 = vmatpush.bf16.msra.mxu0 %v7280
        %9730 = vmatpush.bf16.msra.mxu0 %v7278
        %9731 = vmatpush.bf16.msra.mxu0 %v7276
        %9732 = vmatpush.bf16.msra.mxu0 %v7274
        %9733 = vmatmul.bf16.gmra.mxu0 %v1719
        %v9734 = vpop.f32.mrf.mxu0
        %v9735 = vadd.f32 %v9716, %v9734
        %v9736 = vpop.f32.mrf.mxu0
        %v9737 = vadd.f32 %v9718, %v9736
        %9738 = vmatmul.bf16.gmra.mxu0 %v1735
        %v9739 = vpop.f32.mrf.mxu0
        %v9740 = vadd.f32 %v9721, %v9739
        %v9741 = vpop.f32.mrf.mxu0
        %v9742 = vadd.f32 %v9723, %v9741
        %9743 = vdwg.mxu0
        %9744 = vmatpush.bf16.msra.mxu0 %v7304
        %9745 = vmatpush.bf16.msra.mxu0 %v7302
        %9746 = vmatpush.bf16.msra.mxu0 %v7300
        %9747 = vmatpush.bf16.msra.mxu0 %v7298
        %9748 = vmatpush.bf16.msra.mxu0 %v7296
        %9749 = vmatpush.bf16.msra.mxu0 %v7294
        %9750 = vmatpush.bf16.msra.mxu0 %v7292
        %9751 = vmatpush.bf16.msra.mxu0 %v7290
        %9752 = vmatmul.bf16.gmra.mxu0 %v1720
        %v9753 = vpop.f32.mrf.mxu0
        %v9754 = vadd.f32 %v9735, %v9753
        %v9755 = vpop.f32.mrf.mxu0
        %v9756 = vadd.f32 %v9737, %v9755
        %9757 = vmatmul.bf16.gmra.mxu0 %v1736
        %v9758 = vpop.f32.mrf.mxu0
        %v9759 = vadd.f32 %v9740, %v9758
        %v9760 = vpop.f32.mrf.mxu0
        %v9761 = vadd.f32 %v9742, %v9760
        %9762 = vdwg.mxu0
        %9763 = vmatpush.bf16.msra.mxu0 %v7320
        %9764 = vmatpush.bf16.msra.mxu0 %v7318
        %9765 = vmatpush.bf16.msra.mxu0 %v7316
        %9766 = vmatpush.bf16.msra.mxu0 %v7314
        %9767 = vmatpush.bf16.msra.mxu0 %v7312
        %9768 = vmatpush.bf16.msra.mxu0 %v7310
        %9769 = vmatpush.bf16.msra.mxu0 %v7308
        %9770 = vmatpush.bf16.msra.mxu0 %v7306
        %9771 = vmatmul.bf16.gmra.mxu0 %v1721
        %v9772 = vpop.f32.mrf.mxu0
        %v9773 = vadd.f32 %v9754, %v9772
        %v9774 = vpop.f32.mrf.mxu0
        %v9775 = vadd.f32 %v9756, %v9774
        %9776 = vmatmul.bf16.gmra.mxu0 %v1737
        %v9777 = vpop.f32.mrf.mxu0
        %v9778 = vadd.f32 %v9759, %v9777
        %v9779 = vpop.f32.mrf.mxu0
        %v9780 = vadd.f32 %v9761, %v9779
        %9781 = vdwg.mxu0
        %9782 = vmatpush.bf16.msra.mxu0 %v7336
        %9783 = vmatpush.bf16.msra.mxu0 %v7334
        %9784 = vmatpush.bf16.msra.mxu0 %v7332
        %9785 = vmatpush.bf16.msra.mxu0 %v7330
        %9786 = vmatpush.bf16.msra.mxu0 %v7328
        %9787 = vmatpush.bf16.msra.mxu0 %v7326
        %9788 = vmatpush.bf16.msra.mxu0 %v7324
        %9789 = vmatpush.bf16.msra.mxu0 %v7322
        %9790 = vmatmul.bf16.gmra.mxu0 %v1722
        %v9791 = vpop.f32.mrf.mxu0
        %v9792 = vadd.f32 %v9773, %v9791
        %v9793 = vpop.f32.mrf.mxu0
        %v9794 = vadd.f32 %v9775, %v9793
        %9795 = vmatmul.bf16.gmra.mxu0 %v1738
        %v9796 = vpop.f32.mrf.mxu0
        %v9797 = vadd.f32 %v9778, %v9796
        %v9798 = vpop.f32.mrf.mxu0
        %v9799 = vadd.f32 %v9780, %v9798
        %9800 = vdwg.mxu0
        %9801 = vmatpush.bf16.msra.mxu0 %v7352
        %9802 = vmatpush.bf16.msra.mxu0 %v7350
        %9803 = vmatpush.bf16.msra.mxu0 %v7348
        %9804 = vmatpush.bf16.msra.mxu0 %v7346
        %9805 = vmatpush.bf16.msra.mxu0 %v7344
        %9806 = vmatpush.bf16.msra.mxu0 %v7342
        %9807 = vmatpush.bf16.msra.mxu0 %v7340
        %9808 = vmatpush.bf16.msra.mxu0 %v7338
        %9809 = vmatmul.bf16.gmra.mxu0 %v1723
        %v9810 = vpop.f32.mrf.mxu0
        %v9811 = vadd.f32 %v9792, %v9810
        %v9812 = vpop.f32.mrf.mxu0
        %v9813 = vadd.f32 %v9794, %v9812
        %9814 = vmatmul.bf16.gmra.mxu0 %v1739
        %v9815 = vpop.f32.mrf.mxu0
        %v9816 = vadd.f32 %v9797, %v9815
        %v9817 = vpop.f32.mrf.mxu0
        %v9818 = vadd.f32 %v9799, %v9817
        %9819 = vdwg.mxu0
        %9820 = vmatpush.bf16.msra.mxu0 %v7368
        %9821 = vmatpush.bf16.msra.mxu0 %v7366
        %9822 = vmatpush.bf16.msra.mxu0 %v7364
        %9823 = vmatpush.bf16.msra.mxu0 %v7362
        %9824 = vmatpush.bf16.msra.mxu0 %v7360
        %9825 = vmatpush.bf16.msra.mxu0 %v7358
        %9826 = vmatpush.bf16.msra.mxu0 %v7356
        %9827 = vmatpush.bf16.msra.mxu0 %v7354
        %9828 = vmatmul.bf16.gmra.mxu0 %v1724
        %v9829 = vpop.f32.mrf.mxu0
        %v9830 = vadd.f32 %v9811, %v9829
        %v9831 = vpop.f32.mrf.mxu0
        %v9832 = vadd.f32 %v9813, %v9831
        %9833 = vmatmul.bf16.gmra.mxu0 %v1740
        %v9834 = vpop.f32.mrf.mxu0
        %v9835 = vadd.f32 %v9816, %v9834
        %v9836 = vpop.f32.mrf.mxu0
        %v9837 = vadd.f32 %v9818, %v9836
        %9838 = vdwg.mxu0
        %9839 = vmatpush.bf16.msra.mxu0 %v7384
        %9840 = vmatpush.bf16.msra.mxu0 %v7382
        %9841 = vmatpush.bf16.msra.mxu0 %v7380
        %9842 = vmatpush.bf16.msra.mxu0 %v7378
        %9843 = vmatpush.bf16.msra.mxu0 %v7376
        %9844 = vmatpush.bf16.msra.mxu0 %v7374
        %9845 = vmatpush.bf16.msra.mxu0 %v7372
        %9846 = vmatpush.bf16.msra.mxu0 %v7370
        %9847 = vmatmul.bf16.gmra.mxu0 %v1725
        %v9848 = vpop.f32.mrf.mxu0
        %v9849 = vadd.f32 %v9830, %v9848
        %v9850 = vpop.f32.mrf.mxu0
        %v9851 = vadd.f32 %v9832, %v9850
        %9852 = vmatmul.bf16.gmra.mxu0 %v1741
        %v9853 = vpop.f32.mrf.mxu0
        %v9854 = vadd.f32 %v9835, %v9853
        %v9855 = vpop.f32.mrf.mxu0
        %v9856 = vadd.f32 %v9837, %v9855
        %9857 = vdwg.mxu0
        %9858 = vmatpush.bf16.msra.mxu0 %v7400
        %9859 = vmatpush.bf16.msra.mxu0 %v7398
        %9860 = vmatpush.bf16.msra.mxu0 %v7396
        %9861 = vmatpush.bf16.msra.mxu0 %v7394
        %9862 = vmatpush.bf16.msra.mxu0 %v7392
        %9863 = vmatpush.bf16.msra.mxu0 %v7390
        %9864 = vmatpush.bf16.msra.mxu0 %v7388
        %9865 = vmatpush.bf16.msra.mxu0 %v7386
        %9866 = vmatmul.bf16.gmra.mxu0 %v1775
        %v9867 = vpop.f32.mrf.mxu0
        %v9868 = vadd.f32 %v9849, %v9867
        %v9869 = vpop.f32.mrf.mxu0
        %v9870 = vadd.f32 %v9851, %v9869
        %9871 = vmatmul.bf16.gmra.mxu0 %v1793
        %v9872 = vpop.f32.mrf.mxu0
        %v9873 = vadd.f32 %v9854, %v9872
        %v9874 = vpop.f32.mrf.mxu0
        %v9875 = vadd.f32 %v9856, %v9874
        %9876 = vdwg.mxu0
        %9877 = vmatpush.bf16.msra.mxu0 %v7416
        %9878 = vmatpush.bf16.msra.mxu0 %v7414
        %9879 = vmatpush.bf16.msra.mxu0 %v7412
        %9880 = vmatpush.bf16.msra.mxu0 %v7410
        %9881 = vmatpush.bf16.msra.mxu0 %v7408
        %9882 = vmatpush.bf16.msra.mxu0 %v7406
        %9883 = vmatpush.bf16.msra.mxu0 %v7404
        %9884 = vmatpush.bf16.msra.mxu0 %v7402
        %9885 = vmatmul.bf16.gmra.mxu0 %v1776
        %v9886 = vpop.f32.mrf.mxu0
        %v9887 = vadd.f32 %v9868, %v9886
        %v9888 = vpop.f32.mrf.mxu0
        %v9889 = vadd.f32 %v9870, %v9888
        %9890 = vmatmul.bf16.gmra.mxu0 %v1794
        %v9891 = vpop.f32.mrf.mxu0
        %v9892 = vadd.f32 %v9873, %v9891
        %v9893 = vpop.f32.mrf.mxu0
        %v9894 = vadd.f32 %v9875, %v9893
        %9895 = vdwg.mxu0
        %9896 = vmatpush.bf16.msra.mxu0 %v7432
        %9897 = vmatpush.bf16.msra.mxu0 %v7430
        %9898 = vmatpush.bf16.msra.mxu0 %v7428
        %9899 = vmatpush.bf16.msra.mxu0 %v7426
        %9900 = vmatpush.bf16.msra.mxu0 %v7424
        %9901 = vmatpush.bf16.msra.mxu0 %v7422
        %9902 = vmatpush.bf16.msra.mxu0 %v7420
        %9903 = vmatpush.bf16.msra.mxu0 %v7418
        %9904 = vmatmul.bf16.gmra.mxu0 %v1777
        %v9905 = vpop.f32.mrf.mxu0
        %v9906 = vadd.f32 %v9887, %v9905
        %v9907 = vpop.f32.mrf.mxu0
        %v9908 = vadd.f32 %v9889, %v9907
        %9909 = vmatmul.bf16.gmra.mxu0 %v1795
        %v9910 = vpop.f32.mrf.mxu0
        %v9911 = vadd.f32 %v9892, %v9910
        %v9912 = vpop.f32.mrf.mxu0
        %v9913 = vadd.f32 %v9894, %v9912
        %9914 = vdwg.mxu0
        %9915 = vmatpush.bf16.msra.mxu0 %v7448
        %9916 = vmatpush.bf16.msra.mxu0 %v7446
        %9917 = vmatpush.bf16.msra.mxu0 %v7444
        %9918 = vmatpush.bf16.msra.mxu0 %v7442
        %9919 = vmatpush.bf16.msra.mxu0 %v7440
        %9920 = vmatpush.bf16.msra.mxu0 %v7438
        %9921 = vmatpush.bf16.msra.mxu0 %v7436
        %9922 = vmatpush.bf16.msra.mxu0 %v7434
        %9923 = vmatmul.bf16.gmra.mxu0 %v1778
        %v9924 = vpop.f32.mrf.mxu0
        %v9925 = vadd.f32 %v9906, %v9924
        %v9926 = vpop.f32.mrf.mxu0
        %v9927 = vadd.f32 %v9908, %v9926
        %9928 = vmatmul.bf16.gmra.mxu0 %v1796
        %v9929 = vpop.f32.mrf.mxu0
        %v9930 = vadd.f32 %v9911, %v9929
        %v9931 = vpop.f32.mrf.mxu0
        %v9932 = vadd.f32 %v9913, %v9931
        %9933 = vdwg.mxu0
        %9934 = vmatpush.bf16.msra.mxu0 %v7464
        %9935 = vmatpush.bf16.msra.mxu0 %v7462
        %9936 = vmatpush.bf16.msra.mxu0 %v7460
        %9937 = vmatpush.bf16.msra.mxu0 %v7458
        %9938 = vmatpush.bf16.msra.mxu0 %v7456
        %9939 = vmatpush.bf16.msra.mxu0 %v7454
        %9940 = vmatpush.bf16.msra.mxu0 %v7452
        %9941 = vmatpush.bf16.msra.mxu0 %v7450
        %9942 = vmatmul.bf16.gmra.mxu0 %v1779
        %v9943 = vpop.f32.mrf.mxu0
        %v9944 = vadd.f32 %v9925, %v9943
        %v9945 = vpop.f32.mrf.mxu0
        %v9946 = vadd.f32 %v9927, %v9945
        %9947 = vmatmul.bf16.gmra.mxu0 %v1797
        %v9948 = vpop.f32.mrf.mxu0
        %v9949 = vadd.f32 %v9930, %v9948
        %v9950 = vpop.f32.mrf.mxu0
        %v9951 = vadd.f32 %v9932, %v9950
        %9952 = vdwg.mxu0
        %9953 = vmatpush.bf16.msra.mxu0 %v7480
        %9954 = vmatpush.bf16.msra.mxu0 %v7478
        %9955 = vmatpush.bf16.msra.mxu0 %v7476
        %9956 = vmatpush.bf16.msra.mxu0 %v7474
        %9957 = vmatpush.bf16.msra.mxu0 %v7472
        %9958 = vmatpush.bf16.msra.mxu0 %v7470
        %9959 = vmatpush.bf16.msra.mxu0 %v7468
        %9960 = vmatpush.bf16.msra.mxu0 %v7466
        %9961 = vmatmul.bf16.gmra.mxu0 %v1780
        %v9962 = vpop.f32.mrf.mxu0
        %v9963 = vadd.f32 %v9944, %v9962
        %v9964 = vpop.f32.mrf.mxu0
        %v9965 = vadd.f32 %v9946, %v9964
        %9966 = vmatmul.bf16.gmra.mxu0 %v1798
        %v9967 = vpop.f32.mrf.mxu0
        %v9968 = vadd.f32 %v9949, %v9967
        %v9969 = vpop.f32.mrf.mxu0
        %v9970 = vadd.f32 %v9951, %v9969
        %9971 = vdwg.mxu0
        %9972 = vmatpush.bf16.msra.mxu0 %v7496
        %9973 = vmatpush.bf16.msra.mxu0 %v7494
        %9974 = vmatpush.bf16.msra.mxu0 %v7492
        %9975 = vmatpush.bf16.msra.mxu0 %v7490
        %9976 = vmatpush.bf16.msra.mxu0 %v7488
        %9977 = vmatpush.bf16.msra.mxu0 %v7486
        %9978 = vmatpush.bf16.msra.mxu0 %v7484
        %9979 = vmatpush.bf16.msra.mxu0 %v7482
        %9980 = vmatmul.bf16.gmra.mxu0 %v1781
        %v9981 = vpop.f32.mrf.mxu0
        %v9982 = vadd.f32 %v9963, %v9981
        %v9983 = vpop.f32.mrf.mxu0
        %v9984 = vadd.f32 %v9965, %v9983
        %9985 = vmatmul.bf16.gmra.mxu0 %v1799
        %v9986 = vpop.f32.mrf.mxu0
        %v9987 = vadd.f32 %v9968, %v9986
        %v9988 = vpop.f32.mrf.mxu0
        %v9989 = vadd.f32 %v9970, %v9988
        %9990 = vdwg.mxu0
        %9991 = vmatpush.bf16.msra.mxu0 %v7512
        %9992 = vmatpush.bf16.msra.mxu0 %v7510
        %9993 = vmatpush.bf16.msra.mxu0 %v7508
        %9994 = vmatpush.bf16.msra.mxu0 %v7506
        %9995 = vmatpush.bf16.msra.mxu0 %v7504
        %9996 = vmatpush.bf16.msra.mxu0 %v7502
        %9997 = vmatpush.bf16.msra.mxu0 %v7500
        %9998 = vmatpush.bf16.msra.mxu0 %v7498
        %9999 = vmatmul.bf16.gmra.mxu0 %v1782
        %v10000 = vpop.f32.mrf.mxu0
        %v10001 = vadd.f32 %v9982, %v10000
        %v10002 = vpop.f32.mrf.mxu0
        %v10003 = vadd.f32 %v9984, %v10002
        %10004 = vmatmul.bf16.gmra.mxu0 %v1800
        %v10005 = vpop.f32.mrf.mxu0
        %v10006 = vadd.f32 %v9987, %v10005
        %v10007 = vpop.f32.mrf.mxu0
        %v10008 = vadd.f32 %v9989, %v10007
        %10009 = vdwg.mxu0
        %10010 = vmatpush.bf16.msra.mxu0 %v7528
        %10011 = vmatpush.bf16.msra.mxu0 %v7526
        %10012 = vmatpush.bf16.msra.mxu0 %v7524
        %10013 = vmatpush.bf16.msra.mxu0 %v7522
        %10014 = vmatpush.bf16.msra.mxu0 %v7520
        %10015 = vmatpush.bf16.msra.mxu0 %v7518
        %10016 = vmatpush.bf16.msra.mxu0 %v7516
        %10017 = vmatpush.bf16.msra.mxu0 %v7514
        %10018 = vmatmul.bf16.gmra.mxu0 %v1834
        %v10019 = vpop.f32.mrf.mxu0
        %v10020 = vadd.f32 %v10001, %v10019
        %v10021 = vpop.f32.mrf.mxu0
        %v10022 = vadd.f32 %v10003, %v10021
        %10023 = vmatmul.bf16.gmra.mxu0 %v1852
        %v10024 = vpop.f32.mrf.mxu0
        %v10025 = vadd.f32 %v10006, %v10024
        %v10026 = vpop.f32.mrf.mxu0
        %v10027 = vadd.f32 %v10008, %v10026
        %10028 = vdwg.mxu0
        %10029 = vmatpush.bf16.msra.mxu0 %v7544
        %10030 = vmatpush.bf16.msra.mxu0 %v7542
        %10031 = vmatpush.bf16.msra.mxu0 %v7540
        %10032 = vmatpush.bf16.msra.mxu0 %v7538
        %10033 = vmatpush.bf16.msra.mxu0 %v7536
        %10034 = vmatpush.bf16.msra.mxu0 %v7534
        %10035 = vmatpush.bf16.msra.mxu0 %v7532
        %10036 = vmatpush.bf16.msra.mxu0 %v7530
        %10037 = vmatmul.bf16.gmra.mxu0 %v1835
        %v10038 = vpop.f32.mrf.mxu0
        %v10039 = vadd.f32 %v10020, %v10038
        %v10040 = vpop.f32.mrf.mxu0
        %v10041 = vadd.f32 %v10022, %v10040
        %10042 = vmatmul.bf16.gmra.mxu0 %v1853
        %v10043 = vpop.f32.mrf.mxu0
        %v10044 = vadd.f32 %v10025, %v10043
        %v10045 = vpop.f32.mrf.mxu0
        %v10046 = vadd.f32 %v10027, %v10045
        %10047 = vdwg.mxu0
        %10048 = vmatpush.bf16.msra.mxu0 %v7560
        %10049 = vmatpush.bf16.msra.mxu0 %v7558
        %10050 = vmatpush.bf16.msra.mxu0 %v7556
        %10051 = vmatpush.bf16.msra.mxu0 %v7554
        %10052 = vmatpush.bf16.msra.mxu0 %v7552
        %10053 = vmatpush.bf16.msra.mxu0 %v7550
        %10054 = vmatpush.bf16.msra.mxu0 %v7548
        %10055 = vmatpush.bf16.msra.mxu0 %v7546
        %10056 = vmatmul.bf16.gmra.mxu0 %v1836
        %v10057 = vpop.f32.mrf.mxu0
        %v10058 = vadd.f32 %v10039, %v10057
        %v10059 = vpop.f32.mrf.mxu0
        %v10060 = vadd.f32 %v10041, %v10059
        %10061 = vmatmul.bf16.gmra.mxu0 %v1854
        %v10062 = vpop.f32.mrf.mxu0
        %v10063 = vadd.f32 %v10044, %v10062
        %v10064 = vpop.f32.mrf.mxu0
        %v10065 = vadd.f32 %v10046, %v10064
        %10066 = vdwg.mxu0
        %10067 = vmatpush.bf16.msra.mxu0 %v7576
        %10068 = vmatpush.bf16.msra.mxu0 %v7574
        %10069 = vmatpush.bf16.msra.mxu0 %v7572
        %10070 = vmatpush.bf16.msra.mxu0 %v7570
        %10071 = vmatpush.bf16.msra.mxu0 %v7568
        %10072 = vmatpush.bf16.msra.mxu0 %v7566
        %10073 = vmatpush.bf16.msra.mxu0 %v7564
        %10074 = vmatpush.bf16.msra.mxu0 %v7562
        %10075 = vmatmul.bf16.gmra.mxu0 %v1837
        %v10076 = vpop.f32.mrf.mxu0
        %v10077 = vadd.f32 %v10058, %v10076
        %v10078 = vpop.f32.mrf.mxu0
        %v10079 = vadd.f32 %v10060, %v10078
        %10080 = vmatmul.bf16.gmra.mxu0 %v1855
        %v10081 = vpop.f32.mrf.mxu0
        %v10082 = vadd.f32 %v10063, %v10081
        %v10083 = vpop.f32.mrf.mxu0
        %v10084 = vadd.f32 %v10065, %v10083
        %10085 = vdwg.mxu0
        %10086 = vmatpush.bf16.msra.mxu0 %v7592
        %10087 = vmatpush.bf16.msra.mxu0 %v7590
        %10088 = vmatpush.bf16.msra.mxu0 %v7588
        %10089 = vmatpush.bf16.msra.mxu0 %v7586
        %10090 = vmatpush.bf16.msra.mxu0 %v7584
        %10091 = vmatpush.bf16.msra.mxu0 %v7582
        %10092 = vmatpush.bf16.msra.mxu0 %v7580
        %10093 = vmatpush.bf16.msra.mxu0 %v7578
        %10094 = vmatmul.bf16.gmra.mxu0 %v1838
        %v10095 = vpop.f32.mrf.mxu0
        %v10096 = vadd.f32 %v10077, %v10095
        %v10097 = vpop.f32.mrf.mxu0
        %v10098 = vadd.f32 %v10079, %v10097
        %10099 = vmatmul.bf16.gmra.mxu0 %v1856
        %v10100 = vpop.f32.mrf.mxu0
        %v10101 = vadd.f32 %v10082, %v10100
        %v10102 = vpop.f32.mrf.mxu0
        %v10103 = vadd.f32 %v10084, %v10102
        %10104 = vdwg.mxu0
        %10105 = vmatpush.bf16.msra.mxu0 %v7608
        %10106 = vmatpush.bf16.msra.mxu0 %v7606
        %10107 = vmatpush.bf16.msra.mxu0 %v7604
        %10108 = vmatpush.bf16.msra.mxu0 %v7602
        %10109 = vmatpush.bf16.msra.mxu0 %v7600
        %10110 = vmatpush.bf16.msra.mxu0 %v7598
        %10111 = vmatpush.bf16.msra.mxu0 %v7596
        %10112 = vmatpush.bf16.msra.mxu0 %v7594
        %10113 = vmatmul.bf16.gmra.mxu0 %v1839
        %v10114 = vpop.f32.mrf.mxu0
        %v10115 = vadd.f32 %v10096, %v10114
        %v10116 = vpop.f32.mrf.mxu0
        %v10117 = vadd.f32 %v10098, %v10116
        %10118 = vmatmul.bf16.gmra.mxu0 %v1857
        %v10119 = vpop.f32.mrf.mxu0
        %v10120 = vadd.f32 %v10101, %v10119
        %v10121 = vpop.f32.mrf.mxu0
        %v10122 = vadd.f32 %v10103, %v10121
        %10123 = vdwg.mxu0
        %10124 = vmatpush.bf16.msra.mxu0 %v7624
        %10125 = vmatpush.bf16.msra.mxu0 %v7622
        %10126 = vmatpush.bf16.msra.mxu0 %v7620
        %10127 = vmatpush.bf16.msra.mxu0 %v7618
        %10128 = vmatpush.bf16.msra.mxu0 %v7616
        %10129 = vmatpush.bf16.msra.mxu0 %v7614
        %10130 = vmatpush.bf16.msra.mxu0 %v7612
        %10131 = vmatpush.bf16.msra.mxu0 %v7610
        %10132 = vmatmul.bf16.gmra.mxu0 %v1840
        %v10133 = vpop.f32.mrf.mxu0
        %v10134 = vadd.f32 %v10115, %v10133
        %v10135 = vpop.f32.mrf.mxu0
        %v10136 = vadd.f32 %v10117, %v10135
        %10137 = vmatmul.bf16.gmra.mxu0 %v1858
        %v10138 = vpop.f32.mrf.mxu0
        %v10139 = vadd.f32 %v10120, %v10138
        %v10140 = vpop.f32.mrf.mxu0
        %v10141 = vadd.f32 %v10122, %v10140
        %10142 = vdwg.mxu0
        %10143 = vmatpush.bf16.msra.mxu0 %v7640
        %10144 = vmatpush.bf16.msra.mxu0 %v7638
        %10145 = vmatpush.bf16.msra.mxu0 %v7636
        %10146 = vmatpush.bf16.msra.mxu0 %v7634
        %10147 = vmatpush.bf16.msra.mxu0 %v7632
        %10148 = vmatpush.bf16.msra.mxu0 %v7630
        %10149 = vmatpush.bf16.msra.mxu0 %v7628
        %10150 = vmatpush.bf16.msra.mxu0 %v7626
        %10151 = vmatmul.bf16.gmra.mxu0 %v1841
        %v10152 = vpop.f32.mrf.mxu0
        %v10153 = vadd.f32 %v10134, %v10152
        %v10154 = vpop.f32.mrf.mxu0
        %v10155 = vadd.f32 %v10136, %v10154
        %10156 = vmatmul.bf16.gmra.mxu0 %v1859
        %v10157 = vpop.f32.mrf.mxu0
        %v10158 = vadd.f32 %v10139, %v10157
        %v10159 = vpop.f32.mrf.mxu0
        %v10160 = vadd.f32 %v10141, %v10159
        %10161 = vdwg.mxu0
        %10162 = vmatpush.bf16.msra.mxu0 %v6505
        %10163 = vmatpush.bf16.msra.mxu0 %v6503
        %10164 = vmatpush.bf16.msra.mxu0 %v6501
        %10165 = vmatpush.bf16.msra.mxu0 %v6499
        %10166 = vmatpush.bf16.msra.mxu0 %v6497
        %10167 = vmatpush.bf16.msra.mxu0 %v6495
        %10168 = vmatpush.bf16.msra.mxu0 %v6493
        %10169 = vmatpush.bf16.msra.mxu0 %v6491
        %10170 = vmatmul.bf16.gmra.mxu0 %v1348
        %v10171 = vpop.f32.mrf.mxu0
        %v10172 = vadd.f32 %v3031, %v10171
        %v10173 = vpop.f32.mrf.mxu0
        %v10174 = vadd.f32 %v3031, %v10173
        %10175 = vmatmul.bf16.gmra.mxu0 %v1364
        %v10176 = vpop.f32.mrf.mxu0
        %v10177 = vadd.f32 %v3031, %v10176
        %v10178 = vpop.f32.mrf.mxu0
        %v10179 = vadd.f32 %v3031, %v10178
        %10180 = vdwg.mxu0
        %10181 = vmatpush.bf16.msra.mxu0 %v6521
        %10182 = vmatpush.bf16.msra.mxu0 %v6519
        %10183 = vmatpush.bf16.msra.mxu0 %v6517
        %10184 = vmatpush.bf16.msra.mxu0 %v6515
        %10185 = vmatpush.bf16.msra.mxu0 %v6513
        %10186 = vmatpush.bf16.msra.mxu0 %v6511
        %10187 = vmatpush.bf16.msra.mxu0 %v6509
        %10188 = vmatpush.bf16.msra.mxu0 %v6507
        %10189 = vmatmul.bf16.gmra.mxu0 %v1349
        %v10190 = vpop.f32.mrf.mxu0
        %v10191 = vadd.f32 %v10172, %v10190
        %v10192 = vpop.f32.mrf.mxu0
        %v10193 = vadd.f32 %v10174, %v10192
        %10194 = vmatmul.bf16.gmra.mxu0 %v1365
        %v10195 = vpop.f32.mrf.mxu0
        %v10196 = vadd.f32 %v10177, %v10195
        %v10197 = vpop.f32.mrf.mxu0
        %v10198 = vadd.f32 %v10179, %v10197
        %10199 = vdwg.mxu0
        %10200 = vmatpush.bf16.msra.mxu0 %v6537
        %10201 = vmatpush.bf16.msra.mxu0 %v6535
        %10202 = vmatpush.bf16.msra.mxu0 %v6533
        %10203 = vmatpush.bf16.msra.mxu0 %v6531
        %10204 = vmatpush.bf16.msra.mxu0 %v6529
        %10205 = vmatpush.bf16.msra.mxu0 %v6527
        %10206 = vmatpush.bf16.msra.mxu0 %v6525
        %10207 = vmatpush.bf16.msra.mxu0 %v6523
        %10208 = vmatmul.bf16.gmra.mxu0 %v1350
        %v10209 = vpop.f32.mrf.mxu0
        %v10210 = vadd.f32 %v10191, %v10209
        %v10211 = vpop.f32.mrf.mxu0
        %v10212 = vadd.f32 %v10193, %v10211
        %10213 = vmatmul.bf16.gmra.mxu0 %v1366
        %v10214 = vpop.f32.mrf.mxu0
        %v10215 = vadd.f32 %v10196, %v10214
        %v10216 = vpop.f32.mrf.mxu0
        %v10217 = vadd.f32 %v10198, %v10216
        %10218 = vdwg.mxu0
        %10219 = vmatpush.bf16.msra.mxu0 %v6553
        %10220 = vmatpush.bf16.msra.mxu0 %v6551
        %10221 = vmatpush.bf16.msra.mxu0 %v6549
        %10222 = vmatpush.bf16.msra.mxu0 %v6547
        %10223 = vmatpush.bf16.msra.mxu0 %v6545
        %10224 = vmatpush.bf16.msra.mxu0 %v6543
        %10225 = vmatpush.bf16.msra.mxu0 %v6541
        %10226 = vmatpush.bf16.msra.mxu0 %v6539
        %10227 = vmatmul.bf16.gmra.mxu0 %v1351
        %v10228 = vpop.f32.mrf.mxu0
        %v10229 = vadd.f32 %v10210, %v10228
        %v10230 = vpop.f32.mrf.mxu0
        %v10231 = vadd.f32 %v10212, %v10230
        %10232 = vmatmul.bf16.gmra.mxu0 %v1367
        %v10233 = vpop.f32.mrf.mxu0
        %v10234 = vadd.f32 %v10215, %v10233
        %v10235 = vpop.f32.mrf.mxu0
        %v10236 = vadd.f32 %v10217, %v10235
        %10237 = vdwg.mxu0
        %10238 = vmatpush.bf16.msra.mxu0 %v6569
        %10239 = vmatpush.bf16.msra.mxu0 %v6567
        %10240 = vmatpush.bf16.msra.mxu0 %v6565
        %10241 = vmatpush.bf16.msra.mxu0 %v6563
        %10242 = vmatpush.bf16.msra.mxu0 %v6561
        %10243 = vmatpush.bf16.msra.mxu0 %v6559
        %10244 = vmatpush.bf16.msra.mxu0 %v6557
        %10245 = vmatpush.bf16.msra.mxu0 %v6555
        %10246 = vmatmul.bf16.gmra.mxu0 %v1352
        %v10247 = vpop.f32.mrf.mxu0
        %v10248 = vadd.f32 %v10229, %v10247
        %v10249 = vpop.f32.mrf.mxu0
        %v10250 = vadd.f32 %v10231, %v10249
        %10251 = vmatmul.bf16.gmra.mxu0 %v1368
        %v10252 = vpop.f32.mrf.mxu0
        %v10253 = vadd.f32 %v10234, %v10252
        %v10254 = vpop.f32.mrf.mxu0
        %v10255 = vadd.f32 %v10236, %v10254
        %10256 = vdwg.mxu0
        %10257 = vmatpush.bf16.msra.mxu0 %v6585
        %10258 = vmatpush.bf16.msra.mxu0 %v6583
        %10259 = vmatpush.bf16.msra.mxu0 %v6581
        %10260 = vmatpush.bf16.msra.mxu0 %v6579
        %10261 = vmatpush.bf16.msra.mxu0 %v6577
        %10262 = vmatpush.bf16.msra.mxu0 %v6575
        %10263 = vmatpush.bf16.msra.mxu0 %v6573
        %10264 = vmatpush.bf16.msra.mxu0 %v6571
        %10265 = vmatmul.bf16.gmra.mxu0 %v1353
        %v10266 = vpop.f32.mrf.mxu0
        %v10267 = vadd.f32 %v10248, %v10266
        %v10268 = vpop.f32.mrf.mxu0
        %v10269 = vadd.f32 %v10250, %v10268
        %10270 = vmatmul.bf16.gmra.mxu0 %v1369
        %v10271 = vpop.f32.mrf.mxu0
        %v10272 = vadd.f32 %v10253, %v10271
        %v10273 = vpop.f32.mrf.mxu0
        %v10274 = vadd.f32 %v10255, %v10273
        %10275 = vdwg.mxu0
        %10276 = vmatpush.bf16.msra.mxu0 %v6601
        %10277 = vmatpush.bf16.msra.mxu0 %v6599
        %10278 = vmatpush.bf16.msra.mxu0 %v6597
        %10279 = vmatpush.bf16.msra.mxu0 %v6595
        %10280 = vmatpush.bf16.msra.mxu0 %v6593
        %10281 = vmatpush.bf16.msra.mxu0 %v6591
        %10282 = vmatpush.bf16.msra.mxu0 %v6589
        %10283 = vmatpush.bf16.msra.mxu0 %v6587
        %10284 = vmatmul.bf16.gmra.mxu0 %v1354
        %v10285 = vpop.f32.mrf.mxu0
        %v10286 = vadd.f32 %v10267, %v10285
        %v10287 = vpop.f32.mrf.mxu0
        %v10288 = vadd.f32 %v10269, %v10287
        %10289 = vmatmul.bf16.gmra.mxu0 %v1370
        %v10290 = vpop.f32.mrf.mxu0
        %v10291 = vadd.f32 %v10272, %v10290
        %v10292 = vpop.f32.mrf.mxu0
        %v10293 = vadd.f32 %v10274, %v10292
        %10294 = vdwg.mxu0
        %10295 = vmatpush.bf16.msra.mxu0 %v6617
        %10296 = vmatpush.bf16.msra.mxu0 %v6615
        %10297 = vmatpush.bf16.msra.mxu0 %v6613
        %10298 = vmatpush.bf16.msra.mxu0 %v6611
        %10299 = vmatpush.bf16.msra.mxu0 %v6609
        %10300 = vmatpush.bf16.msra.mxu0 %v6607
        %10301 = vmatpush.bf16.msra.mxu0 %v6605
        %10302 = vmatpush.bf16.msra.mxu0 %v6603
        %10303 = vmatmul.bf16.gmra.mxu0 %v1355
        %v10304 = vpop.f32.mrf.mxu0
        %v10305 = vadd.f32 %v10286, %v10304
        %v10306 = vpop.f32.mrf.mxu0
        %v10307 = vadd.f32 %v10288, %v10306
        %10308 = vmatmul.bf16.gmra.mxu0 %v1371
        %v10309 = vpop.f32.mrf.mxu0
        %v10310 = vadd.f32 %v10291, %v10309
        %v10311 = vpop.f32.mrf.mxu0
        %v10312 = vadd.f32 %v10293, %v10311
        %10313 = vdwg.mxu0
        %10314 = vmatpush.bf16.msra.mxu0 %v6633
        %10315 = vmatpush.bf16.msra.mxu0 %v6631
        %10316 = vmatpush.bf16.msra.mxu0 %v6629
        %10317 = vmatpush.bf16.msra.mxu0 %v6627
        %10318 = vmatpush.bf16.msra.mxu0 %v6625
        %10319 = vmatpush.bf16.msra.mxu0 %v6623
        %10320 = vmatpush.bf16.msra.mxu0 %v6621
        %10321 = vmatpush.bf16.msra.mxu0 %v6619
        %10322 = vmatmul.bf16.gmra.mxu0 %v1411
        %v10323 = vpop.f32.mrf.mxu0
        %v10324 = vadd.f32 %v10305, %v10323
        %v10325 = vpop.f32.mrf.mxu0
        %v10326 = vadd.f32 %v10307, %v10325
        %10327 = vmatmul.bf16.gmra.mxu0 %v1435
        %v10328 = vpop.f32.mrf.mxu0
        %v10329 = vadd.f32 %v10310, %v10328
        %v10330 = vpop.f32.mrf.mxu0
        %v10331 = vadd.f32 %v10312, %v10330
        %10332 = vdwg.mxu0
        %10333 = vmatpush.bf16.msra.mxu0 %v6649
        %10334 = vmatpush.bf16.msra.mxu0 %v6647
        %10335 = vmatpush.bf16.msra.mxu0 %v6645
        %10336 = vmatpush.bf16.msra.mxu0 %v6643
        %10337 = vmatpush.bf16.msra.mxu0 %v6641
        %10338 = vmatpush.bf16.msra.mxu0 %v6639
        %10339 = vmatpush.bf16.msra.mxu0 %v6637
        %10340 = vmatpush.bf16.msra.mxu0 %v6635
        %10341 = vmatmul.bf16.gmra.mxu0 %v1412
        %v10342 = vpop.f32.mrf.mxu0
        %v10343 = vadd.f32 %v10324, %v10342
        %v10344 = vpop.f32.mrf.mxu0
        %v10345 = vadd.f32 %v10326, %v10344
        %10346 = vmatmul.bf16.gmra.mxu0 %v1436
        %v10347 = vpop.f32.mrf.mxu0
        %v10348 = vadd.f32 %v10329, %v10347
        %v10349 = vpop.f32.mrf.mxu0
        %v10350 = vadd.f32 %v10331, %v10349
        %10351 = vdwg.mxu0
        %10352 = vmatpush.bf16.msra.mxu0 %v6665
        %10353 = vmatpush.bf16.msra.mxu0 %v6663
        %10354 = vmatpush.bf16.msra.mxu0 %v6661
        %10355 = vmatpush.bf16.msra.mxu0 %v6659
        %10356 = vmatpush.bf16.msra.mxu0 %v6657
        %10357 = vmatpush.bf16.msra.mxu0 %v6655
        %10358 = vmatpush.bf16.msra.mxu0 %v6653
        %10359 = vmatpush.bf16.msra.mxu0 %v6651
        %10360 = vmatmul.bf16.gmra.mxu0 %v1413
        %v10361 = vpop.f32.mrf.mxu0
        %v10362 = vadd.f32 %v10343, %v10361
        %v10363 = vpop.f32.mrf.mxu0
        %v10364 = vadd.f32 %v10345, %v10363
        %10365 = vmatmul.bf16.gmra.mxu0 %v1437
        %v10366 = vpop.f32.mrf.mxu0
        %v10367 = vadd.f32 %v10348, %v10366
        %v10368 = vpop.f32.mrf.mxu0
        %v10369 = vadd.f32 %v10350, %v10368
        %10370 = vdwg.mxu0
        %10371 = vmatpush.bf16.msra.mxu0 %v6681
        %10372 = vmatpush.bf16.msra.mxu0 %v6679
        %10373 = vmatpush.bf16.msra.mxu0 %v6677
        %10374 = vmatpush.bf16.msra.mxu0 %v6675
        %10375 = vmatpush.bf16.msra.mxu0 %v6673
        %10376 = vmatpush.bf16.msra.mxu0 %v6671
        %10377 = vmatpush.bf16.msra.mxu0 %v6669
        %10378 = vmatpush.bf16.msra.mxu0 %v6667
        %10379 = vmatmul.bf16.gmra.mxu0 %v1414
        %v10380 = vpop.f32.mrf.mxu0
        %v10381 = vadd.f32 %v10362, %v10380
        %v10382 = vpop.f32.mrf.mxu0
        %v10383 = vadd.f32 %v10364, %v10382
        %10384 = vmatmul.bf16.gmra.mxu0 %v1438
        %v10385 = vpop.f32.mrf.mxu0
        %v10386 = vadd.f32 %v10367, %v10385
        %v10387 = vpop.f32.mrf.mxu0
        %v10388 = vadd.f32 %v10369, %v10387
        %10389 = vdwg.mxu0
        %10390 = vmatpush.bf16.msra.mxu0 %v6697
        %10391 = vmatpush.bf16.msra.mxu0 %v6695
        %10392 = vmatpush.bf16.msra.mxu0 %v6693
        %10393 = vmatpush.bf16.msra.mxu0 %v6691
        %10394 = vmatpush.bf16.msra.mxu0 %v6689
        %10395 = vmatpush.bf16.msra.mxu0 %v6687
        %10396 = vmatpush.bf16.msra.mxu0 %v6685
        %10397 = vmatpush.bf16.msra.mxu0 %v6683
        %10398 = vmatmul.bf16.gmra.mxu0 %v1415
        %v10399 = vpop.f32.mrf.mxu0
        %v10400 = vadd.f32 %v10381, %v10399
        %v10401 = vpop.f32.mrf.mxu0
        %v10402 = vadd.f32 %v10383, %v10401
        %10403 = vmatmul.bf16.gmra.mxu0 %v1439
        %v10404 = vpop.f32.mrf.mxu0
        %v10405 = vadd.f32 %v10386, %v10404
        %v10406 = vpop.f32.mrf.mxu0
        %v10407 = vadd.f32 %v10388, %v10406
        %10408 = vdwg.mxu0
        %10409 = vmatpush.bf16.msra.mxu0 %v6713
        %10410 = vmatpush.bf16.msra.mxu0 %v6711
        %10411 = vmatpush.bf16.msra.mxu0 %v6709
        %10412 = vmatpush.bf16.msra.mxu0 %v6707
        %10413 = vmatpush.bf16.msra.mxu0 %v6705
        %10414 = vmatpush.bf16.msra.mxu0 %v6703
        %10415 = vmatpush.bf16.msra.mxu0 %v6701
        %10416 = vmatpush.bf16.msra.mxu0 %v6699
        %10417 = vmatmul.bf16.gmra.mxu0 %v1416
        %v10418 = vpop.f32.mrf.mxu0
        %v10419 = vadd.f32 %v10400, %v10418
        %v10420 = vpop.f32.mrf.mxu0
        %v10421 = vadd.f32 %v10402, %v10420
        %10422 = vmatmul.bf16.gmra.mxu0 %v1440
        %v10423 = vpop.f32.mrf.mxu0
        %v10424 = vadd.f32 %v10405, %v10423
        %v10425 = vpop.f32.mrf.mxu0
        %v10426 = vadd.f32 %v10407, %v10425
        %10427 = vdwg.mxu0
        %10428 = vmatpush.bf16.msra.mxu0 %v6729
        %10429 = vmatpush.bf16.msra.mxu0 %v6727
        %10430 = vmatpush.bf16.msra.mxu0 %v6725
        %10431 = vmatpush.bf16.msra.mxu0 %v6723
        %10432 = vmatpush.bf16.msra.mxu0 %v6721
        %10433 = vmatpush.bf16.msra.mxu0 %v6719
        %10434 = vmatpush.bf16.msra.mxu0 %v6717
        %10435 = vmatpush.bf16.msra.mxu0 %v6715
        %10436 = vmatmul.bf16.gmra.mxu0 %v1417
        %v10437 = vpop.f32.mrf.mxu0
        %v10438 = vadd.f32 %v10419, %v10437
        %v10439 = vpop.f32.mrf.mxu0
        %v10440 = vadd.f32 %v10421, %v10439
        %10441 = vmatmul.bf16.gmra.mxu0 %v1441
        %v10442 = vpop.f32.mrf.mxu0
        %v10443 = vadd.f32 %v10424, %v10442
        %v10444 = vpop.f32.mrf.mxu0
        %v10445 = vadd.f32 %v10426, %v10444
        %10446 = vdwg.mxu0
        %10447 = vmatpush.bf16.msra.mxu0 %v6745
        %10448 = vmatpush.bf16.msra.mxu0 %v6743
        %10449 = vmatpush.bf16.msra.mxu0 %v6741
        %10450 = vmatpush.bf16.msra.mxu0 %v6739
        %10451 = vmatpush.bf16.msra.mxu0 %v6737
        %10452 = vmatpush.bf16.msra.mxu0 %v6735
        %10453 = vmatpush.bf16.msra.mxu0 %v6733
        %10454 = vmatpush.bf16.msra.mxu0 %v6731
        %10455 = vmatmul.bf16.gmra.mxu0 %v1418
        %v10456 = vpop.f32.mrf.mxu0
        %v10457 = vadd.f32 %v10438, %v10456
        %v10458 = vpop.f32.mrf.mxu0
        %v10459 = vadd.f32 %v10440, %v10458
        %10460 = vmatmul.bf16.gmra.mxu0 %v1442
        %v10461 = vpop.f32.mrf.mxu0
        %v10462 = vadd.f32 %v10443, %v10461
        %v10463 = vpop.f32.mrf.mxu0
        %v10464 = vadd.f32 %v10445, %v10463
        %10465 = vdwg.mxu0
        %10466 = vmatpush.bf16.msra.mxu0 %v6761
        %10467 = vmatpush.bf16.msra.mxu0 %v6759
        %10468 = vmatpush.bf16.msra.mxu0 %v6757
        %10469 = vmatpush.bf16.msra.mxu0 %v6755
        %10470 = vmatpush.bf16.msra.mxu0 %v6753
        %10471 = vmatpush.bf16.msra.mxu0 %v6751
        %10472 = vmatpush.bf16.msra.mxu0 %v6749
        %10473 = vmatpush.bf16.msra.mxu0 %v6747
        %10474 = vmatmul.bf16.gmra.mxu0 %v1482
        %v10475 = vpop.f32.mrf.mxu0
        %v10476 = vadd.f32 %v10457, %v10475
        %v10477 = vpop.f32.mrf.mxu0
        %v10478 = vadd.f32 %v10459, %v10477
        %10479 = vmatmul.bf16.gmra.mxu0 %v1506
        %v10480 = vpop.f32.mrf.mxu0
        %v10481 = vadd.f32 %v10462, %v10480
        %v10482 = vpop.f32.mrf.mxu0
        %v10483 = vadd.f32 %v10464, %v10482
        %10484 = vdwg.mxu0
        %10485 = vmatpush.bf16.msra.mxu0 %v6777
        %10486 = vmatpush.bf16.msra.mxu0 %v6775
        %10487 = vmatpush.bf16.msra.mxu0 %v6773
        %10488 = vmatpush.bf16.msra.mxu0 %v6771
        %10489 = vmatpush.bf16.msra.mxu0 %v6769
        %10490 = vmatpush.bf16.msra.mxu0 %v6767
        %10491 = vmatpush.bf16.msra.mxu0 %v6765
        %10492 = vmatpush.bf16.msra.mxu0 %v6763
        %10493 = vmatmul.bf16.gmra.mxu0 %v1483
        %v10494 = vpop.f32.mrf.mxu0
        %v10495 = vadd.f32 %v10476, %v10494
        %v10496 = vpop.f32.mrf.mxu0
        %v10497 = vadd.f32 %v10478, %v10496
        %10498 = vmatmul.bf16.gmra.mxu0 %v1507
        %v10499 = vpop.f32.mrf.mxu0
        %v10500 = vadd.f32 %v10481, %v10499
        %v10501 = vpop.f32.mrf.mxu0
        %v10502 = vadd.f32 %v10483, %v10501
        %10503 = vdwg.mxu0
        %10504 = vmatpush.bf16.msra.mxu0 %v6793
        %10505 = vmatpush.bf16.msra.mxu0 %v6791
        %10506 = vmatpush.bf16.msra.mxu0 %v6789
        %10507 = vmatpush.bf16.msra.mxu0 %v6787
        %10508 = vmatpush.bf16.msra.mxu0 %v6785
        %10509 = vmatpush.bf16.msra.mxu0 %v6783
        %10510 = vmatpush.bf16.msra.mxu0 %v6781
        %10511 = vmatpush.bf16.msra.mxu0 %v6779
        %10512 = vmatmul.bf16.gmra.mxu0 %v1484
        %v10513 = vpop.f32.mrf.mxu0
        %v10514 = vadd.f32 %v10495, %v10513
        %v10515 = vpop.f32.mrf.mxu0
        %v10516 = vadd.f32 %v10497, %v10515
        %10517 = vmatmul.bf16.gmra.mxu0 %v1508
        %v10518 = vpop.f32.mrf.mxu0
        %v10519 = vadd.f32 %v10500, %v10518
        %v10520 = vpop.f32.mrf.mxu0
        %v10521 = vadd.f32 %v10502, %v10520
        %10522 = vdwg.mxu0
        %10523 = vmatpush.bf16.msra.mxu0 %v6809
        %10524 = vmatpush.bf16.msra.mxu0 %v6807
        %10525 = vmatpush.bf16.msra.mxu0 %v6805
        %10526 = vmatpush.bf16.msra.mxu0 %v6803
        %10527 = vmatpush.bf16.msra.mxu0 %v6801
        %10528 = vmatpush.bf16.msra.mxu0 %v6799
        %10529 = vmatpush.bf16.msra.mxu0 %v6797
        %10530 = vmatpush.bf16.msra.mxu0 %v6795
        %10531 = vmatmul.bf16.gmra.mxu0 %v1485
        %v10532 = vpop.f32.mrf.mxu0
        %v10533 = vadd.f32 %v10514, %v10532
        %v10534 = vpop.f32.mrf.mxu0
        %v10535 = vadd.f32 %v10516, %v10534
        %10536 = vmatmul.bf16.gmra.mxu0 %v1509
        %v10537 = vpop.f32.mrf.mxu0
        %v10538 = vadd.f32 %v10519, %v10537
        %v10539 = vpop.f32.mrf.mxu0
        %v10540 = vadd.f32 %v10521, %v10539
        %10541 = vdwg.mxu0
        %10542 = vmatpush.bf16.msra.mxu0 %v6825
        %10543 = vmatpush.bf16.msra.mxu0 %v6823
        %10544 = vmatpush.bf16.msra.mxu0 %v6821
        %10545 = vmatpush.bf16.msra.mxu0 %v6819
        %10546 = vmatpush.bf16.msra.mxu0 %v6817
        %10547 = vmatpush.bf16.msra.mxu0 %v6815
        %10548 = vmatpush.bf16.msra.mxu0 %v6813
        %10549 = vmatpush.bf16.msra.mxu0 %v6811
        %10550 = vmatmul.bf16.gmra.mxu0 %v1486
        %v10551 = vpop.f32.mrf.mxu0
        %v10552 = vadd.f32 %v10533, %v10551
        %v10553 = vpop.f32.mrf.mxu0
        %v10554 = vadd.f32 %v10535, %v10553
        %10555 = vmatmul.bf16.gmra.mxu0 %v1510
        %v10556 = vpop.f32.mrf.mxu0
        %v10557 = vadd.f32 %v10538, %v10556
        %v10558 = vpop.f32.mrf.mxu0
        %v10559 = vadd.f32 %v10540, %v10558
        %10560 = vdwg.mxu0
        %10561 = vmatpush.bf16.msra.mxu0 %v6841
        %10562 = vmatpush.bf16.msra.mxu0 %v6839
        %10563 = vmatpush.bf16.msra.mxu0 %v6837
        %10564 = vmatpush.bf16.msra.mxu0 %v6835
        %10565 = vmatpush.bf16.msra.mxu0 %v6833
        %10566 = vmatpush.bf16.msra.mxu0 %v6831
        %10567 = vmatpush.bf16.msra.mxu0 %v6829
        %10568 = vmatpush.bf16.msra.mxu0 %v6827
        %10569 = vmatmul.bf16.gmra.mxu0 %v1487
        %v10570 = vpop.f32.mrf.mxu0
        %v10571 = vadd.f32 %v10552, %v10570
        %v10572 = vpop.f32.mrf.mxu0
        %v10573 = vadd.f32 %v10554, %v10572
        %10574 = vmatmul.bf16.gmra.mxu0 %v1511
        %v10575 = vpop.f32.mrf.mxu0
        %v10576 = vadd.f32 %v10557, %v10575
        %v10577 = vpop.f32.mrf.mxu0
        %v10578 = vadd.f32 %v10559, %v10577
        %10579 = vdwg.mxu0
        %10580 = vmatpush.bf16.msra.mxu0 %v6857
        %10581 = vmatpush.bf16.msra.mxu0 %v6855
        %10582 = vmatpush.bf16.msra.mxu0 %v6853
        %10583 = vmatpush.bf16.msra.mxu0 %v6851
        %10584 = vmatpush.bf16.msra.mxu0 %v6849
        %10585 = vmatpush.bf16.msra.mxu0 %v6847
        %10586 = vmatpush.bf16.msra.mxu0 %v6845
        %10587 = vmatpush.bf16.msra.mxu0 %v6843
        %10588 = vmatmul.bf16.gmra.mxu0 %v1488
        %v10589 = vpop.f32.mrf.mxu0
        %v10590 = vadd.f32 %v10571, %v10589
        %v10591 = vpop.f32.mrf.mxu0
        %v10592 = vadd.f32 %v10573, %v10591
        %10593 = vmatmul.bf16.gmra.mxu0 %v1512
        %v10594 = vpop.f32.mrf.mxu0
        %v10595 = vadd.f32 %v10576, %v10594
        %v10596 = vpop.f32.mrf.mxu0
        %v10597 = vadd.f32 %v10578, %v10596
        %10598 = vdwg.mxu0
        %10599 = vmatpush.bf16.msra.mxu0 %v6873
        %10600 = vmatpush.bf16.msra.mxu0 %v6871
        %10601 = vmatpush.bf16.msra.mxu0 %v6869
        %10602 = vmatpush.bf16.msra.mxu0 %v6867
        %10603 = vmatpush.bf16.msra.mxu0 %v6865
        %10604 = vmatpush.bf16.msra.mxu0 %v6863
        %10605 = vmatpush.bf16.msra.mxu0 %v6861
        %10606 = vmatpush.bf16.msra.mxu0 %v6859
        %10607 = vmatmul.bf16.gmra.mxu0 %v1489
        %v10608 = vpop.f32.mrf.mxu0
        %v10609 = vadd.f32 %v10590, %v10608
        %v10610 = vpop.f32.mrf.mxu0
        %v10611 = vadd.f32 %v10592, %v10610
        %10612 = vmatmul.bf16.gmra.mxu0 %v1513
        %v10613 = vpop.f32.mrf.mxu0
        %v10614 = vadd.f32 %v10595, %v10613
        %v10615 = vpop.f32.mrf.mxu0
        %v10616 = vadd.f32 %v10597, %v10615
        %10617 = vdwg.mxu0
        %10618 = vmatpush.bf16.msra.mxu0 %v6889
        %10619 = vmatpush.bf16.msra.mxu0 %v6887
        %10620 = vmatpush.bf16.msra.mxu0 %v6885
        %10621 = vmatpush.bf16.msra.mxu0 %v6883
        %10622 = vmatpush.bf16.msra.mxu0 %v6881
        %10623 = vmatpush.bf16.msra.mxu0 %v6879
        %10624 = vmatpush.bf16.msra.mxu0 %v6877
        %10625 = vmatpush.bf16.msra.mxu0 %v6875
        %10626 = vmatmul.bf16.gmra.mxu0 %v1545
        %v10627 = vpop.f32.mrf.mxu0
        %v10628 = vadd.f32 %v10609, %v10627
        %v10629 = vpop.f32.mrf.mxu0
        %v10630 = vadd.f32 %v10611, %v10629
        %10631 = vmatmul.bf16.gmra.mxu0 %v1561
        %v10632 = vpop.f32.mrf.mxu0
        %v10633 = vadd.f32 %v10614, %v10632
        %v10634 = vpop.f32.mrf.mxu0
        %v10635 = vadd.f32 %v10616, %v10634
        %10636 = vdwg.mxu0
        %10637 = vmatpush.bf16.msra.mxu0 %v6905
        %10638 = vmatpush.bf16.msra.mxu0 %v6903
        %10639 = vmatpush.bf16.msra.mxu0 %v6901
        %10640 = vmatpush.bf16.msra.mxu0 %v6899
        %10641 = vmatpush.bf16.msra.mxu0 %v6897
        %10642 = vmatpush.bf16.msra.mxu0 %v6895
        %10643 = vmatpush.bf16.msra.mxu0 %v6893
        %10644 = vmatpush.bf16.msra.mxu0 %v6891
        %10645 = vmatmul.bf16.gmra.mxu0 %v1546
        %v10646 = vpop.f32.mrf.mxu0
        %v10647 = vadd.f32 %v10628, %v10646
        %v10648 = vpop.f32.mrf.mxu0
        %v10649 = vadd.f32 %v10630, %v10648
        %10650 = vmatmul.bf16.gmra.mxu0 %v1562
        %v10651 = vpop.f32.mrf.mxu0
        %v10652 = vadd.f32 %v10633, %v10651
        %v10653 = vpop.f32.mrf.mxu0
        %v10654 = vadd.f32 %v10635, %v10653
        %10655 = vdwg.mxu0
        %10656 = vmatpush.bf16.msra.mxu0 %v6921
        %10657 = vmatpush.bf16.msra.mxu0 %v6919
        %10658 = vmatpush.bf16.msra.mxu0 %v6917
        %10659 = vmatpush.bf16.msra.mxu0 %v6915
        %10660 = vmatpush.bf16.msra.mxu0 %v6913
        %10661 = vmatpush.bf16.msra.mxu0 %v6911
        %10662 = vmatpush.bf16.msra.mxu0 %v6909
        %10663 = vmatpush.bf16.msra.mxu0 %v6907
        %10664 = vmatmul.bf16.gmra.mxu0 %v1547
        %v10665 = vpop.f32.mrf.mxu0
        %v10666 = vadd.f32 %v10647, %v10665
        %v10667 = vpop.f32.mrf.mxu0
        %v10668 = vadd.f32 %v10649, %v10667
        %10669 = vmatmul.bf16.gmra.mxu0 %v1563
        %v10670 = vpop.f32.mrf.mxu0
        %v10671 = vadd.f32 %v10652, %v10670
        %v10672 = vpop.f32.mrf.mxu0
        %v10673 = vadd.f32 %v10654, %v10672
        %10674 = vdwg.mxu0
        %10675 = vmatpush.bf16.msra.mxu0 %v6937
        %10676 = vmatpush.bf16.msra.mxu0 %v6935
        %10677 = vmatpush.bf16.msra.mxu0 %v6933
        %10678 = vmatpush.bf16.msra.mxu0 %v6931
        %10679 = vmatpush.bf16.msra.mxu0 %v6929
        %10680 = vmatpush.bf16.msra.mxu0 %v6927
        %10681 = vmatpush.bf16.msra.mxu0 %v6925
        %10682 = vmatpush.bf16.msra.mxu0 %v6923
        %10683 = vmatmul.bf16.gmra.mxu0 %v1548
        %v10684 = vpop.f32.mrf.mxu0
        %v10685 = vadd.f32 %v10666, %v10684
        %v10686 = vpop.f32.mrf.mxu0
        %v10687 = vadd.f32 %v10668, %v10686
        %10688 = vmatmul.bf16.gmra.mxu0 %v1564
        %v10689 = vpop.f32.mrf.mxu0
        %v10690 = vadd.f32 %v10671, %v10689
        %v10691 = vpop.f32.mrf.mxu0
        %v10692 = vadd.f32 %v10673, %v10691
        %10693 = vdwg.mxu0
        %10694 = vmatpush.bf16.msra.mxu0 %v6953
        %10695 = vmatpush.bf16.msra.mxu0 %v6951
        %10696 = vmatpush.bf16.msra.mxu0 %v6949
        %10697 = vmatpush.bf16.msra.mxu0 %v6947
        %10698 = vmatpush.bf16.msra.mxu0 %v6945
        %10699 = vmatpush.bf16.msra.mxu0 %v6943
        %10700 = vmatpush.bf16.msra.mxu0 %v6941
        %10701 = vmatpush.bf16.msra.mxu0 %v6939
        %10702 = vmatmul.bf16.gmra.mxu0 %v1549
        %v10703 = vpop.f32.mrf.mxu0
        %v10704 = vadd.f32 %v10685, %v10703
        %v10705 = vpop.f32.mrf.mxu0
        %v10706 = vadd.f32 %v10687, %v10705
        %10707 = vmatmul.bf16.gmra.mxu0 %v1565
        %v10708 = vpop.f32.mrf.mxu0
        %v10709 = vadd.f32 %v10690, %v10708
        %v10710 = vpop.f32.mrf.mxu0
        %v10711 = vadd.f32 %v10692, %v10710
        %10712 = vdwg.mxu0
        %10713 = vmatpush.bf16.msra.mxu0 %v6969
        %10714 = vmatpush.bf16.msra.mxu0 %v6967
        %10715 = vmatpush.bf16.msra.mxu0 %v6965
        %10716 = vmatpush.bf16.msra.mxu0 %v6963
        %10717 = vmatpush.bf16.msra.mxu0 %v6961
        %10718 = vmatpush.bf16.msra.mxu0 %v6959
        %10719 = vmatpush.bf16.msra.mxu0 %v6957
        %10720 = vmatpush.bf16.msra.mxu0 %v6955
        %10721 = vmatmul.bf16.gmra.mxu0 %v1550
        %v10722 = vpop.f32.mrf.mxu0
        %v10723 = vadd.f32 %v10704, %v10722
        %v10724 = vpop.f32.mrf.mxu0
        %v10725 = vadd.f32 %v10706, %v10724
        %10726 = vmatmul.bf16.gmra.mxu0 %v1566
        %v10727 = vpop.f32.mrf.mxu0
        %v10728 = vadd.f32 %v10709, %v10727
        %v10729 = vpop.f32.mrf.mxu0
        %v10730 = vadd.f32 %v10711, %v10729
        %10731 = vdwg.mxu0
        %10732 = vmatpush.bf16.msra.mxu0 %v6985
        %10733 = vmatpush.bf16.msra.mxu0 %v6983
        %10734 = vmatpush.bf16.msra.mxu0 %v6981
        %10735 = vmatpush.bf16.msra.mxu0 %v6979
        %10736 = vmatpush.bf16.msra.mxu0 %v6977
        %10737 = vmatpush.bf16.msra.mxu0 %v6975
        %10738 = vmatpush.bf16.msra.mxu0 %v6973
        %10739 = vmatpush.bf16.msra.mxu0 %v6971
        %10740 = vmatmul.bf16.gmra.mxu0 %v1551
        %v10741 = vpop.f32.mrf.mxu0
        %v10742 = vadd.f32 %v10723, %v10741
        %v10743 = vpop.f32.mrf.mxu0
        %v10744 = vadd.f32 %v10725, %v10743
        %10745 = vmatmul.bf16.gmra.mxu0 %v1567
        %v10746 = vpop.f32.mrf.mxu0
        %v10747 = vadd.f32 %v10728, %v10746
        %v10748 = vpop.f32.mrf.mxu0
        %v10749 = vadd.f32 %v10730, %v10748
        %10750 = vdwg.mxu0
        %10751 = vmatpush.bf16.msra.mxu0 %v7001
        %10752 = vmatpush.bf16.msra.mxu0 %v6999
        %10753 = vmatpush.bf16.msra.mxu0 %v6997
        %10754 = vmatpush.bf16.msra.mxu0 %v6995
        %10755 = vmatpush.bf16.msra.mxu0 %v6993
        %10756 = vmatpush.bf16.msra.mxu0 %v6991
        %10757 = vmatpush.bf16.msra.mxu0 %v6989
        %10758 = vmatpush.bf16.msra.mxu0 %v6987
        %10759 = vmatmul.bf16.gmra.mxu0 %v1552
        %v10760 = vpop.f32.mrf.mxu0
        %v10761 = vadd.f32 %v10742, %v10760
        %v10762 = vpop.f32.mrf.mxu0
        %v10763 = vadd.f32 %v10744, %v10762
        %10764 = vmatmul.bf16.gmra.mxu0 %v1568
        %v10765 = vpop.f32.mrf.mxu0
        %v10766 = vadd.f32 %v10747, %v10765
        %v10767 = vpop.f32.mrf.mxu0
        %v10768 = vadd.f32 %v10749, %v10767
        %10769 = vdwg.mxu0
        %10770 = vmatpush.bf16.msra.mxu0 %v7017
        %10771 = vmatpush.bf16.msra.mxu0 %v7015
        %10772 = vmatpush.bf16.msra.mxu0 %v7013
        %10773 = vmatpush.bf16.msra.mxu0 %v7011
        %10774 = vmatpush.bf16.msra.mxu0 %v7009
        %10775 = vmatpush.bf16.msra.mxu0 %v7007
        %10776 = vmatpush.bf16.msra.mxu0 %v7005
        %10777 = vmatpush.bf16.msra.mxu0 %v7003
        %10778 = vmatmul.bf16.gmra.mxu0 %v1602
        %v10779 = vpop.f32.mrf.mxu0
        %v10780 = vadd.f32 %v10761, %v10779
        %v10781 = vpop.f32.mrf.mxu0
        %v10782 = vadd.f32 %v10763, %v10781
        %10783 = vmatmul.bf16.gmra.mxu0 %v1620
        %v10784 = vpop.f32.mrf.mxu0
        %v10785 = vadd.f32 %v10766, %v10784
        %v10786 = vpop.f32.mrf.mxu0
        %v10787 = vadd.f32 %v10768, %v10786
        %10788 = vdwg.mxu0
        %10789 = vmatpush.bf16.msra.mxu0 %v7033
        %10790 = vmatpush.bf16.msra.mxu0 %v7031
        %10791 = vmatpush.bf16.msra.mxu0 %v7029
        %10792 = vmatpush.bf16.msra.mxu0 %v7027
        %10793 = vmatpush.bf16.msra.mxu0 %v7025
        %10794 = vmatpush.bf16.msra.mxu0 %v7023
        %10795 = vmatpush.bf16.msra.mxu0 %v7021
        %10796 = vmatpush.bf16.msra.mxu0 %v7019
        %10797 = vmatmul.bf16.gmra.mxu0 %v1603
        %v10798 = vpop.f32.mrf.mxu0
        %v10799 = vadd.f32 %v10780, %v10798
        %v10800 = vpop.f32.mrf.mxu0
        %v10801 = vadd.f32 %v10782, %v10800
        %10802 = vmatmul.bf16.gmra.mxu0 %v1621
        %v10803 = vpop.f32.mrf.mxu0
        %v10804 = vadd.f32 %v10785, %v10803
        %v10805 = vpop.f32.mrf.mxu0
        %v10806 = vadd.f32 %v10787, %v10805
        %10807 = vdwg.mxu0
        %10808 = vmatpush.bf16.msra.mxu0 %v7049
        %10809 = vmatpush.bf16.msra.mxu0 %v7047
        %10810 = vmatpush.bf16.msra.mxu0 %v7045
        %10811 = vmatpush.bf16.msra.mxu0 %v7043
        %10812 = vmatpush.bf16.msra.mxu0 %v7041
        %10813 = vmatpush.bf16.msra.mxu0 %v7039
        %10814 = vmatpush.bf16.msra.mxu0 %v7037
        %10815 = vmatpush.bf16.msra.mxu0 %v7035
        %10816 = vmatmul.bf16.gmra.mxu0 %v1604
        %v10817 = vpop.f32.mrf.mxu0
        %v10818 = vadd.f32 %v10799, %v10817
        %v10819 = vpop.f32.mrf.mxu0
        %v10820 = vadd.f32 %v10801, %v10819
        %10821 = vmatmul.bf16.gmra.mxu0 %v1622
        %v10822 = vpop.f32.mrf.mxu0
        %v10823 = vadd.f32 %v10804, %v10822
        %v10824 = vpop.f32.mrf.mxu0
        %v10825 = vadd.f32 %v10806, %v10824
        %10826 = vdwg.mxu0
        %10827 = vmatpush.bf16.msra.mxu0 %v7065
        %10828 = vmatpush.bf16.msra.mxu0 %v7063
        %10829 = vmatpush.bf16.msra.mxu0 %v7061
        %10830 = vmatpush.bf16.msra.mxu0 %v7059
        %10831 = vmatpush.bf16.msra.mxu0 %v7057
        %10832 = vmatpush.bf16.msra.mxu0 %v7055
        %10833 = vmatpush.bf16.msra.mxu0 %v7053
        %10834 = vmatpush.bf16.msra.mxu0 %v7051
        %10835 = vmatmul.bf16.gmra.mxu0 %v1605
        %v10836 = vpop.f32.mrf.mxu0
        %v10837 = vadd.f32 %v10818, %v10836
        %v10838 = vpop.f32.mrf.mxu0
        %v10839 = vadd.f32 %v10820, %v10838
        %10840 = vmatmul.bf16.gmra.mxu0 %v1623
        %v10841 = vpop.f32.mrf.mxu0
        %v10842 = vadd.f32 %v10823, %v10841
        %v10843 = vpop.f32.mrf.mxu0
        %v10844 = vadd.f32 %v10825, %v10843
        %10845 = vdwg.mxu0
        %10846 = vmatpush.bf16.msra.mxu0 %v7081
        %10847 = vmatpush.bf16.msra.mxu0 %v7079
        %10848 = vmatpush.bf16.msra.mxu0 %v7077
        %10849 = vmatpush.bf16.msra.mxu0 %v7075
        %10850 = vmatpush.bf16.msra.mxu0 %v7073
        %10851 = vmatpush.bf16.msra.mxu0 %v7071
        %10852 = vmatpush.bf16.msra.mxu0 %v7069
        %10853 = vmatpush.bf16.msra.mxu0 %v7067
        %10854 = vmatmul.bf16.gmra.mxu0 %v1606
        %v10855 = vpop.f32.mrf.mxu0
        %v10856 = vadd.f32 %v10837, %v10855
        %v10857 = vpop.f32.mrf.mxu0
        %v10858 = vadd.f32 %v10839, %v10857
        %10859 = vmatmul.bf16.gmra.mxu0 %v1624
        %v10860 = vpop.f32.mrf.mxu0
        %v10861 = vadd.f32 %v10842, %v10860
        %v10862 = vpop.f32.mrf.mxu0
        %v10863 = vadd.f32 %v10844, %v10862
        %10864 = vdwg.mxu0
        %10865 = vmatpush.bf16.msra.mxu0 %v7097
        %10866 = vmatpush.bf16.msra.mxu0 %v7095
        %10867 = vmatpush.bf16.msra.mxu0 %v7093
        %10868 = vmatpush.bf16.msra.mxu0 %v7091
        %10869 = vmatpush.bf16.msra.mxu0 %v7089
        %10870 = vmatpush.bf16.msra.mxu0 %v7087
        %10871 = vmatpush.bf16.msra.mxu0 %v7085
        %10872 = vmatpush.bf16.msra.mxu0 %v7083
        %10873 = vmatmul.bf16.gmra.mxu0 %v1607
        %v10874 = vpop.f32.mrf.mxu0
        %v10875 = vadd.f32 %v10856, %v10874
        %v10876 = vpop.f32.mrf.mxu0
        %v10877 = vadd.f32 %v10858, %v10876
        %10878 = vmatmul.bf16.gmra.mxu0 %v1625
        %v10879 = vpop.f32.mrf.mxu0
        %v10880 = vadd.f32 %v10861, %v10879
        %v10881 = vpop.f32.mrf.mxu0
        %v10882 = vadd.f32 %v10863, %v10881
        %10883 = vdwg.mxu0
        %10884 = vmatpush.bf16.msra.mxu0 %v7113
        %10885 = vmatpush.bf16.msra.mxu0 %v7111
        %10886 = vmatpush.bf16.msra.mxu0 %v7109
        %10887 = vmatpush.bf16.msra.mxu0 %v7107
        %10888 = vmatpush.bf16.msra.mxu0 %v7105
        %10889 = vmatpush.bf16.msra.mxu0 %v7103
        %10890 = vmatpush.bf16.msra.mxu0 %v7101
        %10891 = vmatpush.bf16.msra.mxu0 %v7099
        %10892 = vmatmul.bf16.gmra.mxu0 %v1608
        %v10893 = vpop.f32.mrf.mxu0
        %v10894 = vadd.f32 %v10875, %v10893
        %v10895 = vpop.f32.mrf.mxu0
        %v10896 = vadd.f32 %v10877, %v10895
        %10897 = vmatmul.bf16.gmra.mxu0 %v1626
        %v10898 = vpop.f32.mrf.mxu0
        %v10899 = vadd.f32 %v10880, %v10898
        %v10900 = vpop.f32.mrf.mxu0
        %v10901 = vadd.f32 %v10882, %v10900
        %10902 = vdwg.mxu0
        %10903 = vmatpush.bf16.msra.mxu0 %v7129
        %10904 = vmatpush.bf16.msra.mxu0 %v7127
        %10905 = vmatpush.bf16.msra.mxu0 %v7125
        %10906 = vmatpush.bf16.msra.mxu0 %v7123
        %10907 = vmatpush.bf16.msra.mxu0 %v7121
        %10908 = vmatpush.bf16.msra.mxu0 %v7119
        %10909 = vmatpush.bf16.msra.mxu0 %v7117
        %10910 = vmatpush.bf16.msra.mxu0 %v7115
        %10911 = vmatmul.bf16.gmra.mxu0 %v1609
        %v10912 = vpop.f32.mrf.mxu0
        %v10913 = vadd.f32 %v10894, %v10912
        %v10914 = vpop.f32.mrf.mxu0
        %v10915 = vadd.f32 %v10896, %v10914
        %10916 = vmatmul.bf16.gmra.mxu0 %v1627
        %v10917 = vpop.f32.mrf.mxu0
        %v10918 = vadd.f32 %v10899, %v10917
        %v10919 = vpop.f32.mrf.mxu0
        %v10920 = vadd.f32 %v10901, %v10919
        %10921 = vdwg.mxu0
        %10922 = vmatpush.bf16.msra.mxu0 %v7145
        %10923 = vmatpush.bf16.msra.mxu0 %v7143
        %10924 = vmatpush.bf16.msra.mxu0 %v7141
        %10925 = vmatpush.bf16.msra.mxu0 %v7139
        %10926 = vmatpush.bf16.msra.mxu0 %v7137
        %10927 = vmatpush.bf16.msra.mxu0 %v7135
        %10928 = vmatpush.bf16.msra.mxu0 %v7133
        %10929 = vmatpush.bf16.msra.mxu0 %v7131
        %10930 = vmatmul.bf16.gmra.mxu0 %v1661
        %v10931 = vpop.f32.mrf.mxu0
        %v10932 = vadd.f32 %v10913, %v10931
        %v10933 = vpop.f32.mrf.mxu0
        %v10934 = vadd.f32 %v10915, %v10933
        %10935 = vmatmul.bf16.gmra.mxu0 %v1679
        %v10936 = vpop.f32.mrf.mxu0
        %v10937 = vadd.f32 %v10918, %v10936
        %v10938 = vpop.f32.mrf.mxu0
        %v10939 = vadd.f32 %v10920, %v10938
        %10940 = vdwg.mxu0
        %10941 = vmatpush.bf16.msra.mxu0 %v7161
        %10942 = vmatpush.bf16.msra.mxu0 %v7159
        %10943 = vmatpush.bf16.msra.mxu0 %v7157
        %10944 = vmatpush.bf16.msra.mxu0 %v7155
        %10945 = vmatpush.bf16.msra.mxu0 %v7153
        %10946 = vmatpush.bf16.msra.mxu0 %v7151
        %10947 = vmatpush.bf16.msra.mxu0 %v7149
        %10948 = vmatpush.bf16.msra.mxu0 %v7147
        %10949 = vmatmul.bf16.gmra.mxu0 %v1662
        %v10950 = vpop.f32.mrf.mxu0
        %v10951 = vadd.f32 %v10932, %v10950
        %v10952 = vpop.f32.mrf.mxu0
        %v10953 = vadd.f32 %v10934, %v10952
        %10954 = vmatmul.bf16.gmra.mxu0 %v1680
        %v10955 = vpop.f32.mrf.mxu0
        %v10956 = vadd.f32 %v10937, %v10955
        %v10957 = vpop.f32.mrf.mxu0
        %v10958 = vadd.f32 %v10939, %v10957
        %10959 = vdwg.mxu0
        %10960 = vmatpush.bf16.msra.mxu0 %v7177
        %10961 = vmatpush.bf16.msra.mxu0 %v7175
        %10962 = vmatpush.bf16.msra.mxu0 %v7173
        %10963 = vmatpush.bf16.msra.mxu0 %v7171
        %10964 = vmatpush.bf16.msra.mxu0 %v7169
        %10965 = vmatpush.bf16.msra.mxu0 %v7167
        %10966 = vmatpush.bf16.msra.mxu0 %v7165
        %10967 = vmatpush.bf16.msra.mxu0 %v7163
        %10968 = vmatmul.bf16.gmra.mxu0 %v1663
        %v10969 = vpop.f32.mrf.mxu0
        %v10970 = vadd.f32 %v10951, %v10969
        %v10971 = vpop.f32.mrf.mxu0
        %v10972 = vadd.f32 %v10953, %v10971
        %10973 = vmatmul.bf16.gmra.mxu0 %v1681
        %v10974 = vpop.f32.mrf.mxu0
        %v10975 = vadd.f32 %v10956, %v10974
        %v10976 = vpop.f32.mrf.mxu0
        %v10977 = vadd.f32 %v10958, %v10976
        %10978 = vdwg.mxu0
        %10979 = vmatpush.bf16.msra.mxu0 %v7193
        %10980 = vmatpush.bf16.msra.mxu0 %v7191
        %10981 = vmatpush.bf16.msra.mxu0 %v7189
        %10982 = vmatpush.bf16.msra.mxu0 %v7187
        %10983 = vmatpush.bf16.msra.mxu0 %v7185
        %10984 = vmatpush.bf16.msra.mxu0 %v7183
        %10985 = vmatpush.bf16.msra.mxu0 %v7181
        %10986 = vmatpush.bf16.msra.mxu0 %v7179
        %10987 = vmatmul.bf16.gmra.mxu0 %v1664
        %v10988 = vpop.f32.mrf.mxu0
        %v10989 = vadd.f32 %v10970, %v10988
        %v10990 = vpop.f32.mrf.mxu0
        %v10991 = vadd.f32 %v10972, %v10990
        %10992 = vmatmul.bf16.gmra.mxu0 %v1682
        %v10993 = vpop.f32.mrf.mxu0
        %v10994 = vadd.f32 %v10975, %v10993
        %v10995 = vpop.f32.mrf.mxu0
        %v10996 = vadd.f32 %v10977, %v10995
        %10997 = vdwg.mxu0
        %10998 = vmatpush.bf16.msra.mxu0 %v7209
        %10999 = vmatpush.bf16.msra.mxu0 %v7207
        %11000 = vmatpush.bf16.msra.mxu0 %v7205
        %11001 = vmatpush.bf16.msra.mxu0 %v7203
        %11002 = vmatpush.bf16.msra.mxu0 %v7201
        %11003 = vmatpush.bf16.msra.mxu0 %v7199
        %11004 = vmatpush.bf16.msra.mxu0 %v7197
        %11005 = vmatpush.bf16.msra.mxu0 %v7195
        %11006 = vmatmul.bf16.gmra.mxu0 %v1665
        %v11007 = vpop.f32.mrf.mxu0
        %v11008 = vadd.f32 %v10989, %v11007
        %v11009 = vpop.f32.mrf.mxu0
        %v11010 = vadd.f32 %v10991, %v11009
        %11011 = vmatmul.bf16.gmra.mxu0 %v1683
        %v11012 = vpop.f32.mrf.mxu0
        %v11013 = vadd.f32 %v10994, %v11012
        %v11014 = vpop.f32.mrf.mxu0
        %v11015 = vadd.f32 %v10996, %v11014
        %11016 = vdwg.mxu0
        %11017 = vmatpush.bf16.msra.mxu0 %v7225
        %11018 = vmatpush.bf16.msra.mxu0 %v7223
        %11019 = vmatpush.bf16.msra.mxu0 %v7221
        %11020 = vmatpush.bf16.msra.mxu0 %v7219
        %11021 = vmatpush.bf16.msra.mxu0 %v7217
        %11022 = vmatpush.bf16.msra.mxu0 %v7215
        %11023 = vmatpush.bf16.msra.mxu0 %v7213
        %11024 = vmatpush.bf16.msra.mxu0 %v7211
        %11025 = vmatmul.bf16.gmra.mxu0 %v1666
        %v11026 = vpop.f32.mrf.mxu0
        %v11027 = vadd.f32 %v11008, %v11026
        %v11028 = vpop.f32.mrf.mxu0
        %v11029 = vadd.f32 %v11010, %v11028
        %11030 = vmatmul.bf16.gmra.mxu0 %v1684
        %v11031 = vpop.f32.mrf.mxu0
        %v11032 = vadd.f32 %v11013, %v11031
        %v11033 = vpop.f32.mrf.mxu0
        %v11034 = vadd.f32 %v11015, %v11033
        %11035 = vdwg.mxu0
        %11036 = vmatpush.bf16.msra.mxu0 %v7241
        %11037 = vmatpush.bf16.msra.mxu0 %v7239
        %11038 = vmatpush.bf16.msra.mxu0 %v7237
        %11039 = vmatpush.bf16.msra.mxu0 %v7235
        %11040 = vmatpush.bf16.msra.mxu0 %v7233
        %11041 = vmatpush.bf16.msra.mxu0 %v7231
        %11042 = vmatpush.bf16.msra.mxu0 %v7229
        %11043 = vmatpush.bf16.msra.mxu0 %v7227
        %11044 = vmatmul.bf16.gmra.mxu0 %v1667
        %v11045 = vpop.f32.mrf.mxu0
        %v11046 = vadd.f32 %v11027, %v11045
        %v11047 = vpop.f32.mrf.mxu0
        %v11048 = vadd.f32 %v11029, %v11047
        %11049 = vmatmul.bf16.gmra.mxu0 %v1685
        %v11050 = vpop.f32.mrf.mxu0
        %v11051 = vadd.f32 %v11032, %v11050
        %v11052 = vpop.f32.mrf.mxu0
        %v11053 = vadd.f32 %v11034, %v11052
        %11054 = vdwg.mxu0
        %11055 = vmatpush.bf16.msra.mxu0 %v7257
        %11056 = vmatpush.bf16.msra.mxu0 %v7255
        %11057 = vmatpush.bf16.msra.mxu0 %v7253
        %11058 = vmatpush.bf16.msra.mxu0 %v7251
        %11059 = vmatpush.bf16.msra.mxu0 %v7249
        %11060 = vmatpush.bf16.msra.mxu0 %v7247
        %11061 = vmatpush.bf16.msra.mxu0 %v7245
        %11062 = vmatpush.bf16.msra.mxu0 %v7243
        %11063 = vmatmul.bf16.gmra.mxu0 %v1668
        %v11064 = vpop.f32.mrf.mxu0
        %v11065 = vadd.f32 %v11046, %v11064
        %v11066 = vpop.f32.mrf.mxu0
        %v11067 = vadd.f32 %v11048, %v11066
        %11068 = vmatmul.bf16.gmra.mxu0 %v1686
        %v11069 = vpop.f32.mrf.mxu0
        %v11070 = vadd.f32 %v11051, %v11069
        %v11071 = vpop.f32.mrf.mxu0
        %v11072 = vadd.f32 %v11053, %v11071
        %11073 = vdwg.mxu0
        %11074 = vmatpush.bf16.msra.mxu0 %v7273
        %11075 = vmatpush.bf16.msra.mxu0 %v7271
        %11076 = vmatpush.bf16.msra.mxu0 %v7269
        %11077 = vmatpush.bf16.msra.mxu0 %v7267
        %11078 = vmatpush.bf16.msra.mxu0 %v7265
        %11079 = vmatpush.bf16.msra.mxu0 %v7263
        %11080 = vmatpush.bf16.msra.mxu0 %v7261
        %11081 = vmatpush.bf16.msra.mxu0 %v7259
        %11082 = vmatmul.bf16.gmra.mxu0 %v1718
        %v11083 = vpop.f32.mrf.mxu0
        %v11084 = vadd.f32 %v11065, %v11083
        %v11085 = vpop.f32.mrf.mxu0
        %v11086 = vadd.f32 %v11067, %v11085
        %11087 = vmatmul.bf16.gmra.mxu0 %v1734
        %v11088 = vpop.f32.mrf.mxu0
        %v11089 = vadd.f32 %v11070, %v11088
        %v11090 = vpop.f32.mrf.mxu0
        %v11091 = vadd.f32 %v11072, %v11090
        %11092 = vdwg.mxu0
        %11093 = vmatpush.bf16.msra.mxu0 %v7289
        %11094 = vmatpush.bf16.msra.mxu0 %v7287
        %11095 = vmatpush.bf16.msra.mxu0 %v7285
        %11096 = vmatpush.bf16.msra.mxu0 %v7283
        %11097 = vmatpush.bf16.msra.mxu0 %v7281
        %11098 = vmatpush.bf16.msra.mxu0 %v7279
        %11099 = vmatpush.bf16.msra.mxu0 %v7277
        %11100 = vmatpush.bf16.msra.mxu0 %v7275
        %11101 = vmatmul.bf16.gmra.mxu0 %v1719
        %v11102 = vpop.f32.mrf.mxu0
        %v11103 = vadd.f32 %v11084, %v11102
        %v11104 = vpop.f32.mrf.mxu0
        %v11105 = vadd.f32 %v11086, %v11104
        %11106 = vmatmul.bf16.gmra.mxu0 %v1735
        %v11107 = vpop.f32.mrf.mxu0
        %v11108 = vadd.f32 %v11089, %v11107
        %v11109 = vpop.f32.mrf.mxu0
        %v11110 = vadd.f32 %v11091, %v11109
        %11111 = vdwg.mxu0
        %11112 = vmatpush.bf16.msra.mxu0 %v7305
        %11113 = vmatpush.bf16.msra.mxu0 %v7303
        %11114 = vmatpush.bf16.msra.mxu0 %v7301
        %11115 = vmatpush.bf16.msra.mxu0 %v7299
        %11116 = vmatpush.bf16.msra.mxu0 %v7297
        %11117 = vmatpush.bf16.msra.mxu0 %v7295
        %11118 = vmatpush.bf16.msra.mxu0 %v7293
        %11119 = vmatpush.bf16.msra.mxu0 %v7291
        %11120 = vmatmul.bf16.gmra.mxu0 %v1720
        %v11121 = vpop.f32.mrf.mxu0
        %v11122 = vadd.f32 %v11103, %v11121
        %v11123 = vpop.f32.mrf.mxu0
        %v11124 = vadd.f32 %v11105, %v11123
        %11125 = vmatmul.bf16.gmra.mxu0 %v1736
        %v11126 = vpop.f32.mrf.mxu0
        %v11127 = vadd.f32 %v11108, %v11126
        %v11128 = vpop.f32.mrf.mxu0
        %v11129 = vadd.f32 %v11110, %v11128
        %11130 = vdwg.mxu0
        %11131 = vmatpush.bf16.msra.mxu0 %v7321
        %11132 = vmatpush.bf16.msra.mxu0 %v7319
        %11133 = vmatpush.bf16.msra.mxu0 %v7317
        %11134 = vmatpush.bf16.msra.mxu0 %v7315
        %11135 = vmatpush.bf16.msra.mxu0 %v7313
        %11136 = vmatpush.bf16.msra.mxu0 %v7311
        %11137 = vmatpush.bf16.msra.mxu0 %v7309
        %11138 = vmatpush.bf16.msra.mxu0 %v7307
        %11139 = vmatmul.bf16.gmra.mxu0 %v1721
        %v11140 = vpop.f32.mrf.mxu0
        %v11141 = vadd.f32 %v11122, %v11140
        %v11142 = vpop.f32.mrf.mxu0
        %v11143 = vadd.f32 %v11124, %v11142
        %11144 = vmatmul.bf16.gmra.mxu0 %v1737
        %v11145 = vpop.f32.mrf.mxu0
        %v11146 = vadd.f32 %v11127, %v11145
        %v11147 = vpop.f32.mrf.mxu0
        %v11148 = vadd.f32 %v11129, %v11147
        %11149 = vdwg.mxu0
        %11150 = vmatpush.bf16.msra.mxu0 %v7337
        %11151 = vmatpush.bf16.msra.mxu0 %v7335
        %11152 = vmatpush.bf16.msra.mxu0 %v7333
        %11153 = vmatpush.bf16.msra.mxu0 %v7331
        %11154 = vmatpush.bf16.msra.mxu0 %v7329
        %11155 = vmatpush.bf16.msra.mxu0 %v7327
        %11156 = vmatpush.bf16.msra.mxu0 %v7325
        %11157 = vmatpush.bf16.msra.mxu0 %v7323
        %11158 = vmatmul.bf16.gmra.mxu0 %v1722
        %v11159 = vpop.f32.mrf.mxu0
        %v11160 = vadd.f32 %v11141, %v11159
        %v11161 = vpop.f32.mrf.mxu0
        %v11162 = vadd.f32 %v11143, %v11161
        %11163 = vmatmul.bf16.gmra.mxu0 %v1738
        %v11164 = vpop.f32.mrf.mxu0
        %v11165 = vadd.f32 %v11146, %v11164
        %v11166 = vpop.f32.mrf.mxu0
        %v11167 = vadd.f32 %v11148, %v11166
        %11168 = vdwg.mxu0
        %11169 = vmatpush.bf16.msra.mxu0 %v7353
        %11170 = vmatpush.bf16.msra.mxu0 %v7351
        %11171 = vmatpush.bf16.msra.mxu0 %v7349
        %11172 = vmatpush.bf16.msra.mxu0 %v7347
        %11173 = vmatpush.bf16.msra.mxu0 %v7345
        %11174 = vmatpush.bf16.msra.mxu0 %v7343
        %11175 = vmatpush.bf16.msra.mxu0 %v7341
        %11176 = vmatpush.bf16.msra.mxu0 %v7339
        %11177 = vmatmul.bf16.gmra.mxu0 %v1723
        %v11178 = vpop.f32.mrf.mxu0
        %v11179 = vadd.f32 %v11160, %v11178
        %v11180 = vpop.f32.mrf.mxu0
        %v11181 = vadd.f32 %v11162, %v11180
        %11182 = vmatmul.bf16.gmra.mxu0 %v1739
        %v11183 = vpop.f32.mrf.mxu0
        %v11184 = vadd.f32 %v11165, %v11183
        %v11185 = vpop.f32.mrf.mxu0
        %v11186 = vadd.f32 %v11167, %v11185
        %11187 = vdwg.mxu0
        %11188 = vmatpush.bf16.msra.mxu0 %v7369
        %11189 = vmatpush.bf16.msra.mxu0 %v7367
        %11190 = vmatpush.bf16.msra.mxu0 %v7365
        %11191 = vmatpush.bf16.msra.mxu0 %v7363
        %11192 = vmatpush.bf16.msra.mxu0 %v7361
        %11193 = vmatpush.bf16.msra.mxu0 %v7359
        %11194 = vmatpush.bf16.msra.mxu0 %v7357
        %11195 = vmatpush.bf16.msra.mxu0 %v7355
        %11196 = vmatmul.bf16.gmra.mxu0 %v1724
        %v11197 = vpop.f32.mrf.mxu0
        %v11198 = vadd.f32 %v11179, %v11197
        %v11199 = vpop.f32.mrf.mxu0
        %v11200 = vadd.f32 %v11181, %v11199
        %11201 = vmatmul.bf16.gmra.mxu0 %v1740
        %v11202 = vpop.f32.mrf.mxu0
        %v11203 = vadd.f32 %v11184, %v11202
        %v11204 = vpop.f32.mrf.mxu0
        %v11205 = vadd.f32 %v11186, %v11204
        %11206 = vdwg.mxu0
        %11207 = vmatpush.bf16.msra.mxu0 %v7385
        %11208 = vmatpush.bf16.msra.mxu0 %v7383
        %11209 = vmatpush.bf16.msra.mxu0 %v7381
        %11210 = vmatpush.bf16.msra.mxu0 %v7379
        %11211 = vmatpush.bf16.msra.mxu0 %v7377
        %11212 = vmatpush.bf16.msra.mxu0 %v7375
        %11213 = vmatpush.bf16.msra.mxu0 %v7373
        %11214 = vmatpush.bf16.msra.mxu0 %v7371
        %11215 = vmatmul.bf16.gmra.mxu0 %v1725
        %v11216 = vpop.f32.mrf.mxu0
        %v11217 = vadd.f32 %v11198, %v11216
        %v11218 = vpop.f32.mrf.mxu0
        %v11219 = vadd.f32 %v11200, %v11218
        %11220 = vmatmul.bf16.gmra.mxu0 %v1741
        %v11221 = vpop.f32.mrf.mxu0
        %v11222 = vadd.f32 %v11203, %v11221
        %v11223 = vpop.f32.mrf.mxu0
        %v11224 = vadd.f32 %v11205, %v11223
        %11225 = vdwg.mxu0
        %11226 = vmatpush.bf16.msra.mxu0 %v7401
        %11227 = vmatpush.bf16.msra.mxu0 %v7399
        %11228 = vmatpush.bf16.msra.mxu0 %v7397
        %11229 = vmatpush.bf16.msra.mxu0 %v7395
        %11230 = vmatpush.bf16.msra.mxu0 %v7393
        %11231 = vmatpush.bf16.msra.mxu0 %v7391
        %11232 = vmatpush.bf16.msra.mxu0 %v7389
        %11233 = vmatpush.bf16.msra.mxu0 %v7387
        %11234 = vmatmul.bf16.gmra.mxu0 %v1775
        %v11235 = vpop.f32.mrf.mxu0
        %v11236 = vadd.f32 %v11217, %v11235
        %v11237 = vpop.f32.mrf.mxu0
        %v11238 = vadd.f32 %v11219, %v11237
        %11239 = vmatmul.bf16.gmra.mxu0 %v1793
        %v11240 = vpop.f32.mrf.mxu0
        %v11241 = vadd.f32 %v11222, %v11240
        %v11242 = vpop.f32.mrf.mxu0
        %v11243 = vadd.f32 %v11224, %v11242
        %11244 = vdwg.mxu0
        %11245 = vmatpush.bf16.msra.mxu0 %v7417
        %11246 = vmatpush.bf16.msra.mxu0 %v7415
        %11247 = vmatpush.bf16.msra.mxu0 %v7413
        %11248 = vmatpush.bf16.msra.mxu0 %v7411
        %11249 = vmatpush.bf16.msra.mxu0 %v7409
        %11250 = vmatpush.bf16.msra.mxu0 %v7407
        %11251 = vmatpush.bf16.msra.mxu0 %v7405
        %11252 = vmatpush.bf16.msra.mxu0 %v7403
        %11253 = vmatmul.bf16.gmra.mxu0 %v1776
        %v11254 = vpop.f32.mrf.mxu0
        %v11255 = vadd.f32 %v11236, %v11254
        %v11256 = vpop.f32.mrf.mxu0
        %v11257 = vadd.f32 %v11238, %v11256
        %11258 = vmatmul.bf16.gmra.mxu0 %v1794
        %v11259 = vpop.f32.mrf.mxu0
        %v11260 = vadd.f32 %v11241, %v11259
        %v11261 = vpop.f32.mrf.mxu0
        %v11262 = vadd.f32 %v11243, %v11261
        %11263 = vdwg.mxu0
        %11264 = vmatpush.bf16.msra.mxu0 %v7433
        %11265 = vmatpush.bf16.msra.mxu0 %v7431
        %11266 = vmatpush.bf16.msra.mxu0 %v7429
        %11267 = vmatpush.bf16.msra.mxu0 %v7427
        %11268 = vmatpush.bf16.msra.mxu0 %v7425
        %11269 = vmatpush.bf16.msra.mxu0 %v7423
        %11270 = vmatpush.bf16.msra.mxu0 %v7421
        %11271 = vmatpush.bf16.msra.mxu0 %v7419
        %11272 = vmatmul.bf16.gmra.mxu0 %v1777
        %v11273 = vpop.f32.mrf.mxu0
        %v11274 = vadd.f32 %v11255, %v11273
        %v11275 = vpop.f32.mrf.mxu0
        %v11276 = vadd.f32 %v11257, %v11275
        %11277 = vmatmul.bf16.gmra.mxu0 %v1795
        %v11278 = vpop.f32.mrf.mxu0
        %v11279 = vadd.f32 %v11260, %v11278
        %v11280 = vpop.f32.mrf.mxu0
        %v11281 = vadd.f32 %v11262, %v11280
        %11282 = vdwg.mxu0
        %11283 = vmatpush.bf16.msra.mxu0 %v7449
        %11284 = vmatpush.bf16.msra.mxu0 %v7447
        %11285 = vmatpush.bf16.msra.mxu0 %v7445
        %11286 = vmatpush.bf16.msra.mxu0 %v7443
        %11287 = vmatpush.bf16.msra.mxu0 %v7441
        %11288 = vmatpush.bf16.msra.mxu0 %v7439
        %11289 = vmatpush.bf16.msra.mxu0 %v7437
        %11290 = vmatpush.bf16.msra.mxu0 %v7435
        %11291 = vmatmul.bf16.gmra.mxu0 %v1778
        %v11292 = vpop.f32.mrf.mxu0
        %v11293 = vadd.f32 %v11274, %v11292
        %v11294 = vpop.f32.mrf.mxu0
        %v11295 = vadd.f32 %v11276, %v11294
        %11296 = vmatmul.bf16.gmra.mxu0 %v1796
        %v11297 = vpop.f32.mrf.mxu0
        %v11298 = vadd.f32 %v11279, %v11297
        %v11299 = vpop.f32.mrf.mxu0
        %v11300 = vadd.f32 %v11281, %v11299
        %11301 = vdwg.mxu0
        %11302 = vmatpush.bf16.msra.mxu0 %v7465
        %11303 = vmatpush.bf16.msra.mxu0 %v7463
        %11304 = vmatpush.bf16.msra.mxu0 %v7461
        %11305 = vmatpush.bf16.msra.mxu0 %v7459
        %11306 = vmatpush.bf16.msra.mxu0 %v7457
        %11307 = vmatpush.bf16.msra.mxu0 %v7455
        %11308 = vmatpush.bf16.msra.mxu0 %v7453
        %11309 = vmatpush.bf16.msra.mxu0 %v7451
        %11310 = vmatmul.bf16.gmra.mxu0 %v1779
        %v11311 = vpop.f32.mrf.mxu0
        %v11312 = vadd.f32 %v11293, %v11311
        %v11313 = vpop.f32.mrf.mxu0
        %v11314 = vadd.f32 %v11295, %v11313
        %11315 = vmatmul.bf16.gmra.mxu0 %v1797
        %v11316 = vpop.f32.mrf.mxu0
        %v11317 = vadd.f32 %v11298, %v11316
        %v11318 = vpop.f32.mrf.mxu0
        %v11319 = vadd.f32 %v11300, %v11318
        %11320 = vdwg.mxu0
        %11321 = vmatpush.bf16.msra.mxu0 %v7481
        %11322 = vmatpush.bf16.msra.mxu0 %v7479
        %11323 = vmatpush.bf16.msra.mxu0 %v7477
        %11324 = vmatpush.bf16.msra.mxu0 %v7475
        %11325 = vmatpush.bf16.msra.mxu0 %v7473
        %11326 = vmatpush.bf16.msra.mxu0 %v7471
        %11327 = vmatpush.bf16.msra.mxu0 %v7469
        %11328 = vmatpush.bf16.msra.mxu0 %v7467
        %11329 = vmatmul.bf16.gmra.mxu0 %v1780
        %v11330 = vpop.f32.mrf.mxu0
        %v11331 = vadd.f32 %v11312, %v11330
        %v11332 = vpop.f32.mrf.mxu0
        %v11333 = vadd.f32 %v11314, %v11332
        %11334 = vmatmul.bf16.gmra.mxu0 %v1798
        %v11335 = vpop.f32.mrf.mxu0
        %v11336 = vadd.f32 %v11317, %v11335
        %v11337 = vpop.f32.mrf.mxu0
        %v11338 = vadd.f32 %v11319, %v11337
        %11339 = vdwg.mxu0
        %11340 = vmatpush.bf16.msra.mxu0 %v7497
        %11341 = vmatpush.bf16.msra.mxu0 %v7495
        %11342 = vmatpush.bf16.msra.mxu0 %v7493
        %11343 = vmatpush.bf16.msra.mxu0 %v7491
        %11344 = vmatpush.bf16.msra.mxu0 %v7489
        %11345 = vmatpush.bf16.msra.mxu0 %v7487
        %11346 = vmatpush.bf16.msra.mxu0 %v7485
        %11347 = vmatpush.bf16.msra.mxu0 %v7483
        %11348 = vmatmul.bf16.gmra.mxu0 %v1781
        %v11349 = vpop.f32.mrf.mxu0
        %v11350 = vadd.f32 %v11331, %v11349
        %v11351 = vpop.f32.mrf.mxu0
        %v11352 = vadd.f32 %v11333, %v11351
        %11353 = vmatmul.bf16.gmra.mxu0 %v1799
        %v11354 = vpop.f32.mrf.mxu0
        %v11355 = vadd.f32 %v11336, %v11354
        %v11356 = vpop.f32.mrf.mxu0
        %v11357 = vadd.f32 %v11338, %v11356
        %11358 = vdwg.mxu0
        %11359 = vmatpush.bf16.msra.mxu0 %v7513
        %11360 = vmatpush.bf16.msra.mxu0 %v7511
        %11361 = vmatpush.bf16.msra.mxu0 %v7509
        %11362 = vmatpush.bf16.msra.mxu0 %v7507
        %11363 = vmatpush.bf16.msra.mxu0 %v7505
        %11364 = vmatpush.bf16.msra.mxu0 %v7503
        %11365 = vmatpush.bf16.msra.mxu0 %v7501
        %11366 = vmatpush.bf16.msra.mxu0 %v7499
        %11367 = vmatmul.bf16.gmra.mxu0 %v1782
        %v11368 = vpop.f32.mrf.mxu0
        %v11369 = vadd.f32 %v11350, %v11368
        %v11370 = vpop.f32.mrf.mxu0
        %v11371 = vadd.f32 %v11352, %v11370
        %11372 = vmatmul.bf16.gmra.mxu0 %v1800
        %v11373 = vpop.f32.mrf.mxu0
        %v11374 = vadd.f32 %v11355, %v11373
        %v11375 = vpop.f32.mrf.mxu0
        %v11376 = vadd.f32 %v11357, %v11375
        %11377 = vdwg.mxu0
        %11378 = vmatpush.bf16.msra.mxu0 %v7529
        %11379 = vmatpush.bf16.msra.mxu0 %v7527
        %11380 = vmatpush.bf16.msra.mxu0 %v7525
        %11381 = vmatpush.bf16.msra.mxu0 %v7523
        %11382 = vmatpush.bf16.msra.mxu0 %v7521
        %11383 = vmatpush.bf16.msra.mxu0 %v7519
        %11384 = vmatpush.bf16.msra.mxu0 %v7517
        %11385 = vmatpush.bf16.msra.mxu0 %v7515
        %11386 = vmatmul.bf16.gmra.mxu0 %v1834
        %v11387 = vpop.f32.mrf.mxu0
        %v11388 = vadd.f32 %v11369, %v11387
        %v11389 = vpop.f32.mrf.mxu0
        %v11390 = vadd.f32 %v11371, %v11389
        %11391 = vmatmul.bf16.gmra.mxu0 %v1852
        %v11392 = vpop.f32.mrf.mxu0
        %v11393 = vadd.f32 %v11374, %v11392
        %v11394 = vpop.f32.mrf.mxu0
        %v11395 = vadd.f32 %v11376, %v11394
        %11396 = vdwg.mxu0
        %11397 = vmatpush.bf16.msra.mxu0 %v7545
        %11398 = vmatpush.bf16.msra.mxu0 %v7543
        %11399 = vmatpush.bf16.msra.mxu0 %v7541
        %11400 = vmatpush.bf16.msra.mxu0 %v7539
        %11401 = vmatpush.bf16.msra.mxu0 %v7537
        %11402 = vmatpush.bf16.msra.mxu0 %v7535
        %11403 = vmatpush.bf16.msra.mxu0 %v7533
        %11404 = vmatpush.bf16.msra.mxu0 %v7531
        %11405 = vmatmul.bf16.gmra.mxu0 %v1835
        %v11406 = vpop.f32.mrf.mxu0
        %v11407 = vadd.f32 %v11388, %v11406
        %v11408 = vpop.f32.mrf.mxu0
        %v11409 = vadd.f32 %v11390, %v11408
        %11410 = vmatmul.bf16.gmra.mxu0 %v1853
        %v11411 = vpop.f32.mrf.mxu0
        %v11412 = vadd.f32 %v11393, %v11411
        %v11413 = vpop.f32.mrf.mxu0
        %v11414 = vadd.f32 %v11395, %v11413
        %11415 = vdwg.mxu0
        %11416 = vmatpush.bf16.msra.mxu0 %v7561
        %11417 = vmatpush.bf16.msra.mxu0 %v7559
        %11418 = vmatpush.bf16.msra.mxu0 %v7557
        %11419 = vmatpush.bf16.msra.mxu0 %v7555
        %11420 = vmatpush.bf16.msra.mxu0 %v7553
        %11421 = vmatpush.bf16.msra.mxu0 %v7551
        %11422 = vmatpush.bf16.msra.mxu0 %v7549
        %11423 = vmatpush.bf16.msra.mxu0 %v7547
        %11424 = vmatmul.bf16.gmra.mxu0 %v1836
        %v11425 = vpop.f32.mrf.mxu0
        %v11426 = vadd.f32 %v11407, %v11425
        %v11427 = vpop.f32.mrf.mxu0
        %v11428 = vadd.f32 %v11409, %v11427
        %11429 = vmatmul.bf16.gmra.mxu0 %v1854
        %v11430 = vpop.f32.mrf.mxu0
        %v11431 = vadd.f32 %v11412, %v11430
        %v11432 = vpop.f32.mrf.mxu0
        %v11433 = vadd.f32 %v11414, %v11432
        %11434 = vdwg.mxu0
        %11435 = vmatpush.bf16.msra.mxu0 %v7577
        %11436 = vmatpush.bf16.msra.mxu0 %v7575
        %11437 = vmatpush.bf16.msra.mxu0 %v7573
        %11438 = vmatpush.bf16.msra.mxu0 %v7571
        %11439 = vmatpush.bf16.msra.mxu0 %v7569
        %11440 = vmatpush.bf16.msra.mxu0 %v7567
        %11441 = vmatpush.bf16.msra.mxu0 %v7565
        %11442 = vmatpush.bf16.msra.mxu0 %v7563
        %11443 = vmatmul.bf16.gmra.mxu0 %v1837
        %v11444 = vpop.f32.mrf.mxu0
        %v11445 = vadd.f32 %v11426, %v11444
        %v11446 = vpop.f32.mrf.mxu0
        %v11447 = vadd.f32 %v11428, %v11446
        %11448 = vmatmul.bf16.gmra.mxu0 %v1855
        %v11449 = vpop.f32.mrf.mxu0
        %v11450 = vadd.f32 %v11431, %v11449
        %v11451 = vpop.f32.mrf.mxu0
        %v11452 = vadd.f32 %v11433, %v11451
        %11453 = vdwg.mxu0
        %11454 = vmatpush.bf16.msra.mxu0 %v7593
        %11455 = vmatpush.bf16.msra.mxu0 %v7591
        %11456 = vmatpush.bf16.msra.mxu0 %v7589
        %11457 = vmatpush.bf16.msra.mxu0 %v7587
        %11458 = vmatpush.bf16.msra.mxu0 %v7585
        %11459 = vmatpush.bf16.msra.mxu0 %v7583
        %11460 = vmatpush.bf16.msra.mxu0 %v7581
        %11461 = vmatpush.bf16.msra.mxu0 %v7579
        %11462 = vmatmul.bf16.gmra.mxu0 %v1838
        %v11463 = vpop.f32.mrf.mxu0
        %v11464 = vadd.f32 %v11445, %v11463
        %v11465 = vpop.f32.mrf.mxu0
        %v11466 = vadd.f32 %v11447, %v11465
        %11467 = vmatmul.bf16.gmra.mxu0 %v1856
        %v11468 = vpop.f32.mrf.mxu0
        %v11469 = vadd.f32 %v11450, %v11468
        %v11470 = vpop.f32.mrf.mxu0
        %v11471 = vadd.f32 %v11452, %v11470
        %11472 = vdwg.mxu0
        %11473 = vmatpush.bf16.msra.mxu0 %v7609
        %11474 = vmatpush.bf16.msra.mxu0 %v7607
        %11475 = vmatpush.bf16.msra.mxu0 %v7605
        %11476 = vmatpush.bf16.msra.mxu0 %v7603
        %11477 = vmatpush.bf16.msra.mxu0 %v7601
        %11478 = vmatpush.bf16.msra.mxu0 %v7599
        %11479 = vmatpush.bf16.msra.mxu0 %v7597
        %11480 = vmatpush.bf16.msra.mxu0 %v7595
        %11481 = vmatmul.bf16.gmra.mxu0 %v1839
        %v11482 = vpop.f32.mrf.mxu0
        %v11483 = vadd.f32 %v11464, %v11482
        %v11484 = vpop.f32.mrf.mxu0
        %v11485 = vadd.f32 %v11466, %v11484
        %11486 = vmatmul.bf16.gmra.mxu0 %v1857
        %v11487 = vpop.f32.mrf.mxu0
        %v11488 = vadd.f32 %v11469, %v11487
        %v11489 = vpop.f32.mrf.mxu0
        %v11490 = vadd.f32 %v11471, %v11489
        %11491 = vdwg.mxu0
        %11492 = vmatpush.bf16.msra.mxu0 %v7625
        %11493 = vmatpush.bf16.msra.mxu0 %v7623
        %11494 = vmatpush.bf16.msra.mxu0 %v7621
        %11495 = vmatpush.bf16.msra.mxu0 %v7619
        %11496 = vmatpush.bf16.msra.mxu0 %v7617
        %11497 = vmatpush.bf16.msra.mxu0 %v7615
        %11498 = vmatpush.bf16.msra.mxu0 %v7613
        %11499 = vmatpush.bf16.msra.mxu0 %v7611
        %11500 = vmatmul.bf16.gmra.mxu0 %v1840
        %v11501 = vpop.f32.mrf.mxu0
        %v11502 = vadd.f32 %v11483, %v11501
        %v11503 = vpop.f32.mrf.mxu0
        %v11504 = vadd.f32 %v11485, %v11503
        %11505 = vmatmul.bf16.gmra.mxu0 %v1858
        %v11506 = vpop.f32.mrf.mxu0
        %v11507 = vadd.f32 %v11488, %v11506
        %v11508 = vpop.f32.mrf.mxu0
        %v11509 = vadd.f32 %v11490, %v11508
        %11510 = vdwg.mxu0
        %11511 = vmatpush.bf16.msra.mxu0 %v7641
        %11512 = vmatpush.bf16.msra.mxu0 %v7639
        %11513 = vmatpush.bf16.msra.mxu0 %v7637
        %11514 = vmatpush.bf16.msra.mxu0 %v7635
        %11515 = vmatpush.bf16.msra.mxu0 %v7633
        %11516 = vmatpush.bf16.msra.mxu0 %v7631
        %11517 = vmatpush.bf16.msra.mxu0 %v7629
        %11518 = vmatpush.bf16.msra.mxu0 %v7627
        %11519 = vmatmul.bf16.gmra.mxu0 %v1841
        %v11520 = vpop.f32.mrf.mxu0
        %v11521 = vadd.f32 %v11502, %v11520
        %v11522 = vpop.f32.mrf.mxu0
        %v11523 = vadd.f32 %v11504, %v11522
        %11524 = vmatmul.bf16.gmra.mxu0 %v1859
        %v11525 = vpop.f32.mrf.mxu0
        %v11526 = vadd.f32 %v11507, %v11525
        %v11527 = vpop.f32.mrf.mxu0
        %v11528 = vadd.f32 %v11509, %v11527
        %11529 = vdwg.mxu0
        %v11538 = vrot.slane %v11521, 4
        %v11539 = vrot.slane %v11523, 4
        %v11540 = vrot.slane %v11526, 4
        %v11541 = vrot.slane %v11528, 4
        %v11542 = vsel %vm561, %v10153, %v11538
        %v11543 = vsel %vm561, %v11538, %v10153
        %v11544 = vrot.slane %v11543, 4
        %v11545 = vsel %vm561, %v10155, %v11539
        %v11546 = vsel %vm561, %v11539, %v10155
        %v11547 = vrot.slane %v11546, 4
        %v11548 = vsel %vm561, %v10158, %v11540
        %v11549 = vsel %vm561, %v11540, %v10158
        %v11550 = vrot.slane %v11549, 4
        %v11551 = vsel %vm561, %v10160, %v11541
        %v11552 = vsel %vm561, %v11541, %v10160
        %v11553 = vrot.slane %v11552, 4
        %11562 = vst [vmem:[%s229] sm:$0xff] %v11542
        %11563 = vst [vmem:[%s229 + $0x8] sm:$0xff] %v11544
        %11564 = vst [vmem:[%s229 + $0x10] sm:$0xff] %v11545
        %11565 = vst [vmem:[%s229 + $0x18] sm:$0xff] %v11547
        %11566 = vst [vmem:[%s229 + $0x20] sm:$0xff] %v11548
        %11567 = vst [vmem:[%s229 + $0x28] sm:$0xff] %v11550
        %11568 = vst [vmem:[%s229 + $0x30] sm:$0xff] %v11551
        %11569 = vst [vmem:[%s229 + $0x38] sm:$0xff] %v11553
        %s11570 = sand.u32 %s104, 1
        %s11571 = scalar_lea.sflag [#allocation4], %s11570
        %s11572 = sand.u32 %s104, 1
        %s11573 = smul.addr %s11572, 64
        %s11574 = scalar_lea.vmem [#allocation7], %s11573
        // Predicated region
        $region41: #{tpu_custom_call.1} parent=31 // pred_check
          %p11575 = pneg %p114
        $region42: #{tpu_custom_call.1} parent=31 // pred_check_branch
          %11577 = sbr.rel (%p11575) target = $region44
        $region43: #{tpu_custom_call.1} parent=31 // pred_region
          %s11578 = smul.u32 2, %s23
          %11580 = vsyncadd %s11571, 0
          %s11581 = smul.addr %s11578, 4
          %s11582 = scalar_lea.hbm %s3, %s11581
          %s11583 = sshll.u32 %s11574, 4
          %s11584 = int_to_ptr.vmem [resolvable:$true] %s11583
          %s11585 = sshll.u32 %s11582, 4
          %s11586 = int_to_ptr.hbm [resolvable:$true] %s11585
          %11591 = dma.vmem_to_hbm [thread:$0]  %s11584, 1024, %s11586, %s11571, 128, 256, 8
        $region44: #{tpu_custom_call.1} parent=31 // pred_fallthru
          _
      $region32: #{tpu_custom_call.1} parent=5 // pred_fallthru
        _
      %p11592 = scmp.le.s32.totalorder 2, %s18
      // Predicated region
      $region45: #{tpu_custom_call.1} parent=5 // pred_check
        %p11593 = pneg %p11592
      $region46: #{tpu_custom_call.1} parent=5 // pred_check_branch
        %11595 = sbr.rel (%p11593) target = $region48
      $region47: #{tpu_custom_call.1} parent=5 // pred_region
        %s11596 = ssub.s32 %s18, 2
        // Predicated region
        $region49: #{tpu_custom_call.1} parent=47 // pred_check
          %p11597 = pneg %p120
        $region50: #{tpu_custom_call.1} parent=47 // pred_check_branch
          %11599 = sbr.rel (%p11597) target = $region52
        $region51: #{tpu_custom_call.1} parent=47 // pred_region
          %s11600 = sand.u32 %s105, 1
          %s11601 = scalar_lea.sflag [#allocation4], %s11600
          %s11602 = sand.u32 %s105, 1
          %s11603 = smul.addr %s11602, 64
          %s11604 = scalar_lea.vmem [#allocation7], %s11603
          %11606 = dma.done %s11601, 1024
        $region52: #{tpu_custom_call.1} parent=47 // pred_fallthru
          _
      $region48: #{tpu_custom_call.1} parent=5 // pred_fallthru
        _
    $region6: #{tpu_custom_call.1} parent=1 // loop_footer
      %s22 = sadd.s32 1, %s18
    $region7: #{tpu_custom_call.1} parent=1 // loop_footer_branch
      %17 = sbr.rel target = $region3
    $region8: #{tpu_custom_call.1} parent=1 // loop_exit
      _
    %11607 = vsyncpa [#allocation3], 1
    %s11608 = scalar_lea.sflag [#allocation3], 1
    %11609 = vsyncpa %s11608, 1
    %11610 = vsyncpa [#allocation6], 1
    %s11611 = scalar_lea.sflag [#allocation6], 1
    %11612 = vsyncpa %s11611, 1
    %11613 = vsyncpa [#allocation4], 1
    %s11614 = scalar_lea.sflag [#allocation4], 1
    %11615 = vsyncpa %s11614, 1

</llo_original>
